<compile_context>
chip_gen: v7x
topology: tpu7x:2x2x1
jax: 0.10.0
libtpu: 0.0.40
codegen_flags: <defaults>
</compile_context>

<pallas_src>
import functools
import math

import jax
import jax.numpy as jnp
from jax.experimental import pallas as pl
from jax.experimental.pallas import tpu as pltpu

# --- model hyper-parameters (Inception1d defaults, kernel_size=40) -----------
KSS = [39, 19, 9]            # [40->39, 20->19, 10->9]
NB_FILTERS = 32
BOTTLENECK = 32
DEPTH = 6
N_KS = len(KSS) + 1
NOUT = N_KS * NB_FILTERS     # 128 channels out of every inception block
NUM_CLASSES = 2

PAD = 20                     # halo (>= max (k-1)//2 = 19; 20 keeps tiles 8-aligned)
K_TAPS = 40                  # 39 real taps + 1 zero tap -> contraction 40*32 = 1280
L_TILE_TARGET = 256          # rows per grid step (bounds VMEM on v7x, amortizes overhead)
ACT_DTYPE = jnp.bfloat16     # matmul operand / inter-block activation dtype


# ----------------------------- Pallas kernels --------------------------------
def _inception_block_kernel(*refs, l_tile, l_valid, mask_tail, has_shortcut):
    """Fused inception block (+ optional residual shortcut) for one L tile."""
    if has_shortcut:
        (xp_ref, res_ref, wb_ref, wbr_ref, wp_ref, scale_ref, shift_ref,
         wsc_ref, sc_scale_ref, sc_shift_ref, o_ref) = refs
    else:
        (xp_ref, wb_ref, wbr_ref, wp_ref, scale_ref, shift_ref, o_ref) = refs

    i = pl.program_id(1)
    t0 = i * l_tile
    if l_tile % 8 == 0:
        t0 = pl.multiple_of(t0, 8)

    # Halo'd window of the zero-padded input for this output tile.
    win = xp_ref[0, pl.ds(t0, l_tile + 2 * PAD), :]          # (Lt+2P, Cin) bf16

    # Bottleneck 1x1 conv (zeros in the halo stay zeros -> emulates conv padding).
    bott = jnp.dot(win, wb_ref[...],
                   preferred_element_type=jnp.float32).astype(ACT_DTYPE)

    # Shared im2col over K_TAPS taps -> one big MXU matmul (contraction 1280)
    # that produces all 3*32 branch channels at once (k19/k9 weights are
    # zero-padded into the packed weight on the host).
    im = jnp.concatenate(
        [bott[1 + j: 1 + j + l_tile, :] for j in range(K_TAPS)], axis=1)
    branches = jnp.dot(im, wbr_ref[...],
                       preferred_element_type=jnp.float32)    # (Lt, 96)

    # Fused MaxPool1d(kernel=3, stride=1, padding=1) + 1x1 conv branch.
    a = win[PAD - 1: PAD - 1 + l_tile, :]
    b = win[PAD:     PAD + l_tile, :]
    c = win[PAD + 1: PAD + 1 + l_tile, :]
    g = t0 + jax.lax.broadcasted_iota(jnp.int32, (l_tile, 1), 0)   # global row id
    neg_inf = jnp.asarray(-jnp.inf, a.dtype)
    a = jnp.where(g == 0, neg_inf, a)              # PyTorch maxpool pads with -inf
    c = jnp.where(g == l_valid - 1, neg_inf, c)
    pooled = jnp.maximum(jnp.maximum(a, b), c)
    pool_out = jnp.dot(pooled, wp_ref[...],
                       preferred_element_type=jnp.float32)    # (Lt, 32)

    # Channel concat (order: k39 | k19 | k9 | pool) + folded BN + ReLU, fp32.
    cat = jnp.concatenate([branches, pool_out], axis=1)       # (Lt, 128)
    y = jnp.maximum(cat * scale_ref[...] + shift_ref[...], 0.0)

    if has_shortcut:
        # Shortcut1d: relu(out + BN(conv1x1(input_res))) fused into the epilogue.
        sc = jnp.dot(res_ref[0], wsc_ref[...],
                     preferred_element_type=jnp.float32)
        sc = sc * sc_scale_ref[...] + sc_shift_ref[...]
        y = jnp.maximum(y + sc, 0.0)

    if mask_tail:
        # Zero rows beyond the true length so they act like conv zero-padding
        # for the next block (only emitted when L was padded up to the tiling).
        y = jnp.where(g < l_valid, y, 0.0)

    o_ref[0] = y.astype(o_ref.dtype)


def _head_kernel(x_ref, scale_ref, shift_ref, w_ref, b_ref, o_ref):
    # AdaptiveConcatPool1d([max | avg]) + Flatten + folded BatchNorm1d + Linear.
    x = x_ref[...].astype(jnp.float32)              # (B, L, C)
    mx = jnp.max(x, axis=1)                          # (B, C)
    av = jnp.mean(x, axis=1)                         # (B, C)
    h = jnp.concatenate([mx, av], axis=1)            # (B, 2C): [max... | avg...]
    h = h * scale_ref[...] + shift_ref[...]
    # TODO(synk): Dropout(p=0.5) in the head is identity at inference; training-mode dropout not implemented.
    o_ref[...] = (jnp.dot(h, w_ref[...], preferred_element_type=jnp.float32)
                  + b_ref[...]).astype(o_ref.dtype)


# ----------------------------- kernel wrappers --------------------------------
def inception_block_apply(x, blk, *, l_valid, l_tile, shortcut=None, res=None):
    """x: (B, L_padded, Cin) bf16 activations. Returns (B, L_padded, 128) bf16."""
    B, l_padded, cin = x.shape
    n_tiles = l_padded // l_tile
    xp = jnp.pad(x, ((0, 0), (PAD, PAD), (0, 0)))    # one halo pad per block
    lh = l_padded + 2 * PAD
    has_sc = shortcut is not None

    args = [xp]
    in_specs = [pl.BlockSpec((1, lh, cin), lambda b, i: (b, 0, 0))]
    if has_sc:
        cres = res.shape[-1]
        args.append(res)
        in_specs.append(pl.BlockSpec((1, l_tile, cres), lambda b, i: (b, i, 0)))

    args += [blk['wb'], blk['wbr'], blk['wp'],
             blk['scale'].reshape(1, NOUT), blk['shift'].reshape(1, NOUT)]
    in_specs += [
        pl.BlockSpec((cin, BOTTLENECK), lambda b, i: (0, 0)),
        pl.BlockSpec((K_TAPS * BOTTLENECK, len(KSS) * NB_FILTERS),
                     lambda b, i: (0, 0)),
        pl.BlockSpec((cin, NB_FILTERS), lambda b, i: (0, 0)),
        pl.BlockSpec((1, NOUT), lambda b, i: (0, 0)),
        pl.BlockSpec((1, NOUT), lambda b, i: (0, 0)),
    ]
    if has_sc:
        cres = res.shape[-1]
        args += [shortcut['w'], shortcut['scale'].reshape(1, NOUT),
                 shortcut['shift'].reshape(1, NOUT)]
        in_specs += [
            pl.BlockSpec((cres, NOUT), lambda b, i: (0, 0)),
            pl.BlockSpec((1, NOUT), lambda b, i: (0, 0)),
            pl.BlockSpec((1, NOUT), lambda b, i: (0, 0)),
        ]

    kernel = functools.partial(
        _inception_block_kernel, l_tile=l_tile, l_valid=l_valid,
        mask_tail=(l_padded > l_valid), has_shortcut=has_sc)

    return pl.pallas_call(
        kernel,
        out_shape=jax.ShapeDtypeStruct((B, l_padded, NOUT), ACT_DTYPE),
        grid=(B, n_tiles),
        in_specs=in_specs,
        out_specs=pl.BlockSpec((1, l_tile, NOUT), lambda b, i: (b, i, 0)),
        compiler_params=pltpu.CompilerParams(
            dimension_semantics=("parallel", "arbitrary")),
    )(*args)


def head_apply(x, p):
    B = x.shape[0]
    return pl.pallas_call(
        _head_kernel,
        out_shape=jax.ShapeDtypeStruct((B, NUM_CLASSES), jnp.float32),
    )(x, p['scale'].reshape(1, -1), p['shift'].reshape(1, -1), p['w'], p['b'])


@jax.jit
def inception1d_forward(x_ncl, params):
    # x_ncl: (B, C_in, L) — PyTorch layout.  Kernels use channels-last (B, L, C).
    x = jnp.transpose(x_ncl, (0, 2, 1)).astype(ACT_DTYPE)
    B, L, _ = x.shape
    l_tile = min(L_TILE_TARGET, L)
    n_tiles = -(-L // l_tile)
    l_padded = n_tiles * l_tile
    if l_padded > L:
        x = jnp.pad(x, ((0, 0), (0, l_padded - L), (0, 0)))

    input_res = x
    for d in range(DEPTH):
        sc = params['shortcuts'][d // 3] if d % 3 == 2 else None
        x = inception_block_apply(
            x, params['blocks'][d], l_valid=L, l_tile=l_tile,
            shortcut=sc, res=input_res if sc is not None else None)
        if sc is not None:   # use_residual=True, every 3rd block
            input_res = x

    if l_padded > L:
        x = x[:, :L, :]
    return head_apply(x, params['head'])


# ------------------------- deterministic parameter init -----------------------
def _uniform(key, shape, bound):
    return jax.random.uniform(key, shape, jnp.float32, -bound, bound)


def _init_conv1x1(key, cin, cout):
    # PyTorch Conv1d(k=1, bias=False) weight, stored (Cin, Cout).
    return _uniform(key, (cin, cout), 1.0 / math.sqrt(cin)).astype(ACT_DTYPE)


def _init_branch_weights(key):
    """Pack the 3 branch conv weights into one (K_TAPS*32, 96) matrix.

    Branch with kernel k / pad p=(k-1)//2 is placed at tap offset 19 - p inside
    the shared 39-tap window (zero rows elsewhere), so a single im2col matmul
    reproduces all three 'same'-padded convolutions exactly.
    """
    wbr = jnp.zeros((K_TAPS * BOTTLENECK, len(KSS) * NB_FILTERS), jnp.float32)
    for bi, (k, kk) in enumerate(zip(KSS, jax.random.split(key, len(KSS)))):
        bound = 1.0 / math.sqrt(BOTTLENECK * k)
        w = _uniform(kk, (k, BOTTLENECK, NB_FILTERS), bound)
        off = (KSS[0] - 1) // 2 - (k - 1) // 2        # 0, 10, 15
        wbr = wbr.at[off * BOTTLENECK:(off + k) * BOTTLENECK,
                     bi * NB_FILTERS:(bi + 1) * NB_FILTERS].set(
                         w.reshape(k * BOTTLENECK, NB_FILTERS))
    return wbr.astype(ACT_DTYPE)


def _init_bn(key, c, eps=1e-5):
    # Eval-mode BN folded to per-channel scale/shift (PyTorch-default running
    # stats, slightly perturbed affine params to exercise the math).
    k1, k2 = jax.random.split(key)
    gamma = 1.0 + 0.1 * jax.random.normal(k1, (c,), jnp.float32)
    beta = 0.1 * jax.random.normal(k2, (c,), jnp.float32)
    mean = jnp.zeros((c,), jnp.float32)
    var = jnp.ones((c,), jnp.float32)
    scale = gamma / jnp.sqrt(var + eps)
    shift = beta - mean * scale
    return scale, shift


def init_params(key, input_channels):
    keys = iter(jax.random.split(key, 64))
    nk = lambda: next(keys)
    blocks = []
    for d in range(DEPTH):
        ni = input_channels if d == 0 else NOUT
        scale, shift = _init_bn(nk(), NOUT)
        blocks.append(dict(
            wb=_init_conv1x1(nk(), ni, BOTTLENECK),       # bottleneck 1x1
            wbr=_init_branch_weights(nk()),               # packed k39|k19|k9
            wp=_init_conv1x1(nk(), ni, NB_FILTERS),       # pool-branch 1x1
            scale=scale, shift=shift))
    shortcuts = []
    for s in range(DEPTH // 3):
        ni = input_channels if s == 0 else NOUT
        scale, shift = _init_bn(nk(), NOUT)
        shortcuts.append(dict(w=_init_conv1x1(nk(), ni, NOUT),
                              scale=scale, shift=shift))
    head_in = 2 * NOUT
    bound = 1.0 / math.sqrt(head_in)
    h_scale, h_shift = _init_bn(nk(), head_in)
    head = dict(scale=h_scale, shift=h_shift,
                w=_uniform(nk(), (head_in, NUM_CLASSES), bound),
                b=_uniform(nk(), (1, NUM_CLASSES), bound))
    return dict(blocks=blocks, shortcuts=shortcuts, head=head)


# ------------------------------------ main ------------------------------------
if __name__ == "__main__":
    key = jax.random.PRNGKey(0)
    kx, kp = jax.random.split(key)
    B, C_IN, L = 2, 8, 16
    x = jax.random.normal(kx, (B, C_IN, L), jnp.float32)   # PyTorch NCL layout
    params = init_params(kp, C_IN)
    out = inception1d_forward(x, params)
    jax.block_until_ready(out)
    assert out.shape == (B, NUM_CLASSES) and out.dtype == jnp.float32
    print("KERNEL_OK")
</pallas_src>

<mosaic_0001>
module attributes {stable_mosaic.version = 11 : i64} {
  func.func @_inception_block_kernel(%arg0: i32, %arg1: i32, %arg2: memref<1x56x128xbf16, #tpu.memory_space<vmem>>, %arg3: memref<1x16x8xbf16, #tpu.memory_space<vmem>>, %arg4: memref<128x32xbf16, #tpu.memory_space<vmem>>, %arg5: memref<1280x96xbf16, #tpu.memory_space<vmem>>, %arg6: memref<128x32xbf16, #tpu.memory_space<vmem>>, %arg7: memref<1x128xf32, #tpu.memory_space<vmem>>, %arg8: memref<1x128xf32, #tpu.memory_space<vmem>>, %arg9: memref<8x128xbf16, #tpu.memory_space<vmem>>, %arg10: memref<1x128xf32, #tpu.memory_space<vmem>>, %arg11: memref<1x128xf32, #tpu.memory_space<vmem>>, %arg12: memref<1x16x128xbf16, #tpu.memory_space<vmem>>) attributes {dimension_semantics = [#tpu.dimension_semantics<parallel>, #tpu.dimension_semantics<arbitrary>], iteration_bounds = array<i64: 2, 1>, scalar_prefetch = 0 : i64, scratch_operands = 0 : i64, tpu.core_type = #tpu.core_type<tc>, window_params = [{transform_indices = @transform_0, window_bounds = array<i64: 1, 56, 128>}, {transform_indices = @transform_1, window_bounds = array<i64: 1, 16, 8>}, {pipeline_mode = #tpu.pipeline_mode<synchronous>, transform_indices = @transform_2, window_bounds = array<i64: 128, 32>}, {pipeline_mode = #tpu.pipeline_mode<synchronous>, transform_indices = @transform_3, window_bounds = array<i64: 1280, 96>}, {pipeline_mode = #tpu.pipeline_mode<synchronous>, transform_indices = @transform_4, window_bounds = array<i64: 128, 32>}, {pipeline_mode = #tpu.pipeline_mode<synchronous>, transform_indices = @transform_5, window_bounds = array<i64: 1, 128>}, {pipeline_mode = #tpu.pipeline_mode<synchronous>, transform_indices = @transform_6, window_bounds = array<i64: 1, 128>}, {pipeline_mode = #tpu.pipeline_mode<synchronous>, transform_indices = @transform_7, window_bounds = array<i64: 8, 128>}, {pipeline_mode = #tpu.pipeline_mode<synchronous>, transform_indices = @transform_8, window_bounds = array<i64: 1, 128>}, {pipeline_mode = #tpu.pipeline_mode<synchronous>, transform_indices = @transform_9, window_bounds = array<i64: 1, 128>}, {transform_indices = @transform_10, window_bounds = array<i64: 1, 16, 128>}]} {
    %c16_i32 = arith.constant 16 : i32
    %0 = arith.muli %arg1, %c16_i32 : i32
    %1 = tpu.assume_multiple %0, 8 : i32
    %c0 = arith.constant 0 : index
    %2 = arith.index_cast %1 : i32 to index
    %c0_0 = arith.constant 0 : index
    %3 = vector.load %arg2[%c0, %2, %c0_0] : memref<1x56x128xbf16, #tpu.memory_space<vmem>>, vector<1x56x128xbf16>
    %4 = vector.shape_cast %3 : vector<1x56x128xbf16> to vector<56x128xbf16>
    %c0_1 = arith.constant 0 : index
    %c0_2 = arith.constant 0 : index
    %5 = vector.load %arg4[%c0_1, %c0_2] : memref<128x32xbf16, #tpu.memory_space<vmem>>, vector<128x32xbf16>
    %cst = arith.constant dense<0.000000e+00> : vector<56x32xf32>
    %6 = tpu.matmul %4, %5, %cst {dimension_numbers = #tpu.dot_dimension_numbers<[1], [0], [0], [1], [0, 0, 1, 1], [], []>} : vector<56x128xbf16>, vector<128x32xbf16>, vector<56x32xf32> -> vector<56x32xf32>
    %7 = arith.truncf %6 : vector<56x32xf32> to vector<56x32xbf16>
    %8 = vector.extract_strided_slice %7 {offsets = [1, 0], sizes = [16, 32], strides = [1, 1]} : vector<56x32xbf16> to vector<16x32xbf16>
    %9 = vector.extract_strided_slice %7 {offsets = [2, 0], sizes = [16, 32], strides = [1, 1]} : vector<56x32xbf16> to vector<16x32xbf16>
    %10 = vector.extract_strided_slice %7 {offsets = [3, 0], sizes = [16, 32], strides = [1, 1]} : vector<56x32xbf16> to vector<16x32xbf16>
    %11 = vector.extract_strided_slice %7 {offsets = [4, 0], sizes = [16, 32], strides = [1, 1]} : vector<56x32xbf16> to vector<16x32xbf16>
    %12 = vector.extract_strided_slice %7 {offsets = [5, 0], sizes = [16, 32], strides = [1, 1]} : vector<56x32xbf16> to vector<16x32xbf16>
    %13 = vector.extract_strided_slice %7 {offsets = [6, 0], sizes = [16, 32], strides = [1, 1]} : vector<56x32xbf16> to vector<16x32xbf16>
    %14 = vector.extract_strided_slice %7 {offsets = [7, 0], sizes = [16, 32], strides = [1, 1]} : vector<56x32xbf16> to vector<16x32xbf16>
    %15 = vector.extract_strided_slice %7 {offsets = [8, 0], sizes = [16, 32], strides = [1, 1]} : vector<56x32xbf16> to vector<16x32xbf16>
    %16 = vector.extract_strided_slice %7 {offsets = [9, 0], sizes = [16, 32], strides = [1, 1]} : vector<56x32xbf16> to vector<16x32xbf16>
    %17 = vector.extract_strided_slice %7 {offsets = [10, 0], sizes = [16, 32], strides = [1, 1]} : vector<56x32xbf16> to vector<16x32xbf16>
    %18 = vector.extract_strided_slice %7 {offsets = [11, 0], sizes = [16, 32], strides = [1, 1]} : vector<56x32xbf16> to vector<16x32xbf16>
    %19 = vector.extract_strided_slice %7 {offsets = [12, 0], sizes = [16, 32], strides = [1, 1]} : vector<56x32xbf16> to vector<16x32xbf16>
    %20 = vector.extract_strided_slice %7 {offsets = [13, 0], sizes = [16, 32], strides = [1, 1]} : vector<56x32xbf16> to vector<16x32xbf16>
    %21 = vector.extract_strided_slice %7 {offsets = [14, 0], sizes = [16, 32], strides = [1, 1]} : vector<56x32xbf16> to vector<16x32xbf16>
    %22 = vector.extract_strided_slice %7 {offsets = [15, 0], sizes = [16, 32], strides = [1, 1]} : vector<56x32xbf16> to vector<16x32xbf16>
    %23 = vector.extract_strided_slice %7 {offsets = [16, 0], sizes = [16, 32], strides = [1, 1]} : vector<56x32xbf16> to vector<16x32xbf16>
    %24 = vector.extract_strided_slice %7 {offsets = [17, 0], sizes = [16, 32], strides = [1, 1]} : vector<56x32xbf16> to vector<16x32xbf16>
    %25 = vector.extract_strided_slice %7 {offsets = [18, 0], sizes = [16, 32], strides = [1, 1]} : vector<56x32xbf16> to vector<16x32xbf16>
    %26 = vector.extract_strided_slice %7 {offsets = [19, 0], sizes = [16, 32], strides = [1, 1]} : vector<56x32xbf16> to vector<16x32xbf16>
    %27 = vector.extract_strided_slice %7 {offsets = [20, 0], sizes = [16, 32], strides = [1, 1]} : vector<56x32xbf16> to vector<16x32xbf16>
    %28 = vector.extract_strided_slice %7 {offsets = [21, 0], sizes = [16, 32], strides = [1, 1]} : vector<56x32xbf16> to vector<16x32xbf16>
    %29 = vector.extract_strided_slice %7 {offsets = [22, 0], sizes = [16, 32], strides = [1, 1]} : vector<56x32xbf16> to vector<16x32xbf16>
    %30 = vector.extract_strided_slice %7 {offsets = [23, 0], sizes = [16, 32], strides = [1, 1]} : vector<56x32xbf16> to vector<16x32xbf16>
    %31 = vector.extract_strided_slice %7 {offsets = [24, 0], sizes = [16, 32], strides = [1, 1]} : vector<56x32xbf16> to vector<16x32xbf16>
    %32 = vector.extract_strided_slice %7 {offsets = [25, 0], sizes = [16, 32], strides = [1, 1]} : vector<56x32xbf16> to vector<16x32xbf16>
    %33 = vector.extract_strided_slice %7 {offsets = [26, 0], sizes = [16, 32], strides = [1, 1]} : vector<56x32xbf16> to vector<16x32xbf16>
    %34 = vector.extract_strided_slice %7 {offsets = [27, 0], sizes = [16, 32], strides = [1, 1]} : vector<56x32xbf16> to vector<16x32xbf16>
    %35 = vector.extract_strided_slice %7 {offsets = [28, 0], sizes = [16, 32], strides = [1, 1]} : vector<56x32xbf16> to vector<16x32xbf16>
    %36 = vector.extract_strided_slice %7 {offsets = [29, 0], sizes = [16, 32], strides = [1, 1]} : vector<56x32xbf16> to vector<16x32xbf16>
    %37 = vector.extract_strided_slice %7 {offsets = [30, 0], sizes = [16, 32], strides = [1, 1]} : vector<56x32xbf16> to vector<16x32xbf16>
    %38 = vector.extract_strided_slice %7 {offsets = [31, 0], sizes = [16, 32], strides = [1, 1]} : vector<56x32xbf16> to vector<16x32xbf16>
    %39 = vector.extract_strided_slice %7 {offsets = [32, 0], sizes = [16, 32], strides = [1, 1]} : vector<56x32xbf16> to vector<16x32xbf16>
    %40 = vector.extract_strided_slice %7 {offsets = [33, 0], sizes = [16, 32], strides = [1, 1]} : vector<56x32xbf16> to vector<16x32xbf16>
    %41 = vector.extract_strided_slice %7 {offsets = [34, 0], sizes = [16, 32], strides = [1, 1]} : vector<56x32xbf16> to vector<16x32xbf16>
    %42 = vector.extract_strided_slice %7 {offsets = [35, 0], sizes = [16, 32], strides = [1, 1]} : vector<56x32xbf16> to vector<16x32xbf16>
    %43 = vector.extract_strided_slice %7 {offsets = [36, 0], sizes = [16, 32], strides = [1, 1]} : vector<56x32xbf16> to vector<16x32xbf16>
    %44 = vector.extract_strided_slice %7 {offsets = [37, 0], sizes = [16, 32], strides = [1, 1]} : vector<56x32xbf16> to vector<16x32xbf16>
    %45 = vector.extract_strided_slice %7 {offsets = [38, 0], sizes = [16, 32], strides = [1, 1]} : vector<56x32xbf16> to vector<16x32xbf16>
    %46 = vector.extract_strided_slice %7 {offsets = [39, 0], sizes = [16, 32], strides = [1, 1]} : vector<56x32xbf16> to vector<16x32xbf16>
    %47 = vector.extract_strided_slice %7 {offsets = [40, 0], sizes = [16, 32], strides = [1, 1]} : vector<56x32xbf16> to vector<16x32xbf16>
    %48 = tpu.concatenate %8, %9, %10, %11, %12, %13, %14, %15, %16, %17, %18, %19, %20, %21, %22, %23 in 1 : vector<16x32xbf16>, vector<16x32xbf16>, vector<16x32xbf16>, vector<16x32xbf16>, vector<16x32xbf16>, vector<16x32xbf16>, vector<16x32xbf16>, vector<16x32xbf16>, vector<16x32xbf16>, vector<16x32xbf16>, vector<16x32xbf16>, vector<16x32xbf16>, vector<16x32xbf16>, vector<16x32xbf16>, vector<16x32xbf16>, vector<16x32xbf16> -> vector<16x512xbf16>
    %49 = tpu.concatenate %24, %25, %26, %27, %28, %29, %30, %31, %32, %33, %34, %35, %36, %37, %38, %39 in 1 : vector<16x32xbf16>, vector<16x32xbf16>, vector<16x32xbf16>, vector<16x32xbf16>, vector<16x32xbf16>, vector<16x32xbf16>, vector<16x32xbf16>, vector<16x32xbf16>, vector<16x32xbf16>, vector<16x32xbf16>, vector<16x32xbf16>, vector<16x32xbf16>, vector<16x32xbf16>, vector<16x32xbf16>, vector<16x32xbf16>, vector<16x32xbf16> -> vector<16x512xbf16>
    %50 = tpu.concatenate %40, %41, %42, %43, %44, %45, %46, %47 in 1 : vector<16x32xbf16>, vector<16x32xbf16>, vector<16x32xbf16>, vector<16x32xbf16>, vector<16x32xbf16>, vector<16x32xbf16>, vector<16x32xbf16>, vector<16x32xbf16> -> vector<16x256xbf16>
    %51 = tpu.concatenate %48, %49, %50 in 1 : vector<16x512xbf16>, vector<16x512xbf16>, vector<16x256xbf16> -> vector<16x1280xbf16>
    %c0_3 = arith.constant 0 : index
    %c0_4 = arith.constant 0 : index
    %52 = vector.load %arg5[%c0_3, %c0_4] : memref<1280x96xbf16, #tpu.memory_space<vmem>>, vector<1280x96xbf16>
    %cst_5 = arith.constant dense<0.000000e+00> : vector<16x96xf32>
    %53 = tpu.matmul %51, %52, %cst_5 {dimension_numbers = #tpu.dot_dimension_numbers<[1], [0], [0], [1], [0, 0, 1, 1], [], []>} : vector<16x1280xbf16>, vector<1280x96xbf16>, vector<16x96xf32> -> vector<16x96xf32>
    %54 = vector.extract_strided_slice %4 {offsets = [19, 0], sizes = [16, 128], strides = [1, 1]} : vector<56x128xbf16> to vector<16x128xbf16>
    %55 = vector.extract_strided_slice %4 {offsets = [20, 0], sizes = [16, 128], strides = [1, 1]} : vector<56x128xbf16> to vector<16x128xbf16>
    %56 = vector.extract_strided_slice %4 {offsets = [21, 0], sizes = [16, 128], strides = [1, 1]} : vector<56x128xbf16> to vector<16x128xbf16>
    %57 = tpu.iota {dimensions = array<i32: 0>} : vector<16x1xi32>
    %58 = vector.broadcast %1 : i32 to vector<16x1xi32>
    %59 = arith.addi %58, %57 : vector<16x1xi32>
    %c0_i32 = arith.constant 0 : i32
    %60 = vector.broadcast %c0_i32 : i32 to vector<16x1xi32>
    %61 = arith.cmpi eq, %59, %60 : vector<16x1xi32>
    %cst_6 = arith.constant 0xFF80 : bf16
    %62 = vector.shape_cast %61 : vector<16x1xi1> to vector<16x1xi1>
    %63 = vector.broadcast %62 : vector<16x1xi1> to vector<16x128xi1>
    %64 = vector.broadcast %cst_6 : bf16 to vector<16x128xbf16>
    %65 = arith.select %63, %64, %54 : vector<16x128xi1>, vector<16x128xbf16>
    %c15_i32 = arith.constant 15 : i32
    %66 = vector.broadcast %c15_i32 : i32 to vector<16x1xi32>
    %67 = arith.cmpi eq, %59, %66 : vector<16x1xi32>
    %cst_7 = arith.constant 0xFF80 : bf16
    %68 = vector.shape_cast %67 : vector<16x1xi1> to vector<16x1xi1>
    %69 = vector.broadcast %68 : vector<16x1xi1> to vector<16x128xi1>
    %70 = vector.broadcast %cst_7 : bf16 to vector<16x128xbf16>
    %71 = arith.select %69, %70, %56 : vector<16x128xi1>, vector<16x128xbf16>
    %72 = arith.maximumf %65, %55 : vector<16x128xbf16>
    %73 = arith.maximumf %72, %71 : vector<16x128xbf16>
    %c0_8 = arith.constant 0 : index
    %c0_9 = arith.constant 0 : index
    %74 = vector.load %arg6[%c0_8, %c0_9] : memref<128x32xbf16, #tpu.memory_space<vmem>>, vector<128x32xbf16>
    %cst_10 = arith.constant dense<0.000000e+00> : vector<16x32xf32>
    %75 = tpu.matmul %73, %74, %cst_10 {dimension_numbers = #tpu.dot_dimension_numbers<[1], [0], [0], [1], [0, 0, 1, 1], [], []>} : vector<16x128xbf16>, vector<128x32xbf16>, vector<16x32xf32> -> vector<16x32xf32>
    %76 = tpu.concatenate %53, %75 in 1 : vector<16x96xf32>, vector<16x32xf32> -> vector<16x128xf32>
    %c0_11 = arith.constant 0 : index
    %c0_12 = arith.constant 0 : index
    %77 = vector.load %arg7[%c0_11, %c0_12] : memref<1x128xf32, #tpu.memory_space<vmem>>, vector<1x128xf32>
    %78 = vector.broadcast %77 : vector<1x128xf32> to vector<16x128xf32>
    %79 = arith.mulf %76, %78 : vector<16x128xf32>
    %c0_13 = arith.constant 0 : index
    %c0_14 = arith.constant 0 : index
    %80 = vector.load %arg8[%c0_13, %c0_14] : memref<1x128xf32, #tpu.memory_space<vmem>>, vector<1x128xf32>
    %81 = vector.broadcast %80 : vector<1x128xf32> to vector<16x128xf32>
    %82 = arith.addf %79, %81 : vector<16x128xf32>
    %cst_15 = arith.constant 0.000000e+00 : f32
    %83 = vector.broadcast %cst_15 : f32 to vector<16x128xf32>
    %84 = arith.maximumf %82, %83 : vector<16x128xf32>
    %c0_16 = arith.constant 0 : index
    %c0_17 = arith.constant 0 : index
    %c0_18 = arith.constant 0 : index
    %85 = vector.load %arg3[%c0_16, %c0_17, %c0_18] : memref<1x16x8xbf16, #tpu.memory_space<vmem>>, vector<1x16x8xbf16>
    %86 = vector.shape_cast %85 : vector<1x16x8xbf16> to vector<16x8xbf16>
    %c0_19 = arith.constant 0 : index
    %c0_20 = arith.constant 0 : index
    %87 = vector.load %arg9[%c0_19, %c0_20] : memref<8x128xbf16, #tpu.memory_space<vmem>>, vector<8x128xbf16>
    %cst_21 = arith.constant dense<0.000000e+00> : vector<16x128xf32>
    %88 = tpu.matmul %86, %87, %cst_21 {dimension_numbers = #tpu.dot_dimension_numbers<[1], [0], [0], [1], [0, 0, 1, 1], [], []>} : vector<16x8xbf16>, vector<8x128xbf16>, vector<16x128xf32> -> vector<16x128xf32>
    %c0_22 = arith.constant 0 : index
    %c0_23 = arith.constant 0 : index
    %89 = vector.load %arg10[%c0_22, %c0_23] : memref<1x128xf32, #tpu.memory_space<vmem>>, vector<1x128xf32>
    %90 = vector.broadcast %89 : vector<1x128xf32> to vector<16x128xf32>
    %91 = arith.mulf %88, %90 : vector<16x128xf32>
    %c0_24 = arith.constant 0 : index
    %c0_25 = arith.constant 0 : index
    %92 = vector.load %arg11[%c0_24, %c0_25] : memref<1x128xf32, #tpu.memory_space<vmem>>, vector<1x128xf32>
    %93 = vector.broadcast %92 : vector<1x128xf32> to vector<16x128xf32>
    %94 = arith.addf %91, %93 : vector<16x128xf32>
    %95 = arith.addf %84, %94 : vector<16x128xf32>
    %cst_26 = arith.constant 0.000000e+00 : f32
    %96 = vector.broadcast %cst_26 : f32 to vector<16x128xf32>
    %97 = arith.maximumf %95, %96 : vector<16x128xf32>
    %98 = arith.truncf %97 : vector<16x128xf32> to vector<16x128xbf16>
    %c0_27 = arith.constant 0 : index
    %c0_28 = arith.constant 0 : index
    %c0_29 = arith.constant 0 : index
    %99 = vector.load %arg12[%c0_27, %c0_28, %c0_29] : memref<1x16x128xbf16, #tpu.memory_space<vmem>>, vector<1x16x128xbf16>
    %100 = vector.shape_cast %99 : vector<1x16x128xbf16> to vector<16x128xbf16>
    %101 = vector.shape_cast %98 : vector<16x128xbf16> to vector<1x16x128xbf16>
    tpu.vector_store %arg12[%c0_27, %c0_28, %c0_29], %101 {strides = array<i32>} : memref<1x16x128xbf16, #tpu.memory_space<vmem>>, vector<1x16x128xbf16>,
    return
  }
  func.func @transform_0(%arg0: i32, %arg1: i32) -> (i32, i32, i32) {
    %c0_i32 = arith.constant 0 : i32
    %c0_i32_0 = arith.constant 0 : i32
    %c0_i32_1 = arith.constant 0 : i32
    return %arg0, %c0_i32, %c0_i32_0 : i32, i32, i32
  }
  func.func @transform_1(%arg0: i32, %arg1: i32) -> (i32, i32, i32) {
    %c0_i32 = arith.constant 0 : i32
    %c0_i32_0 = arith.constant 0 : i32
    return %arg0, %arg1, %c0_i32 : i32, i32, i32
  }
  func.func @transform_2(%arg0: i32, %arg1: i32) -> (i32, i32) {
    %c0_i32 = arith.constant 0 : i32
    %c0_i32_0 = arith.constant 0 : i32
    %c0_i32_1 = arith.constant 0 : i32
    return %c0_i32, %c0_i32_0 : i32, i32
  }
  func.func @transform_3(%arg0: i32, %arg1: i32) -> (i32, i32) {
    %c0_i32 = arith.constant 0 : i32
    %c0_i32_0 = arith.constant 0 : i32
    %c0_i32_1 = arith.constant 0 : i32
    return %c0_i32, %c0_i32_0 : i32, i32
  }
  func.func @transform_4(%arg0: i32, %arg1: i32) -> (i32, i32) {
    %c0_i32 = arith.constant 0 : i32
    %c0_i32_0 = arith.constant 0 : i32
    %c0_i32_1 = arith.constant 0 : i32
    return %c0_i32, %c0_i32_0 : i32, i32
  }
  func.func @transform_5(%arg0: i32, %arg1: i32) -> (i32, i32) {
    %c0_i32 = arith.constant 0 : i32
    %c0_i32_0 = arith.constant 0 : i32
    %c0_i32_1 = arith.constant 0 : i32
    return %c0_i32, %c0_i32_0 : i32, i32
  }
  func.func @transform_6(%arg0: i32, %arg1: i32) -> (i32, i32) {
    %c0_i32 = arith.constant 0 : i32
    %c0_i32_0 = arith.constant 0 : i32
    %c0_i32_1 = arith.constant 0 : i32
    return %c0_i32, %c0_i32_0 : i32, i32
  }
  func.func @transform_7(%arg0: i32, %arg1: i32) -> (i32, i32) {
    %c0_i32 = arith.constant 0 : i32
    %c0_i32_0 = arith.constant 0 : i32
    %c0_i32_1 = arith.constant 0 : i32
    return %c0_i32, %c0_i32_0 : i32, i32
  }
  func.func @transform_8(%arg0: i32, %arg1: i32) -> (i32, i32) {
    %c0_i32 = arith.constant 0 : i32
    %c0_i32_0 = arith.constant 0 : i32
    %c0_i32_1 = arith.constant 0 : i32
    return %c0_i32, %c0_i32_0 : i32, i32
  }
  func.func @transform_9(%arg0: i32, %arg1: i32) -> (i32, i32) {
    %c0_i32 = arith.constant 0 : i32
    %c0_i32_0 = arith.constant 0 : i32
    %c0_i32_1 = arith.constant 0 : i32
    return %c0_i32, %c0_i32_0 : i32, i32
  }
  func.func @transform_10(%arg0: i32, %arg1: i32) -> (i32, i32, i32) {
    %c0_i32 = arith.constant 0 : i32
    %c0_i32_0 = arith.constant 0 : i32
    return %arg0, %arg1, %c0_i32 : i32, i32, i32
  }
}

module attributes {stable_mosaic.version = 11 : i64} {
  func.func @_inception_block_kernel(%arg0: i32, %arg1: i32, %arg2: memref<1x56x8xbf16, #tpu.memory_space<vmem>>, %arg3: memref<8x32xbf16, #tpu.memory_space<vmem>>, %arg4: memref<1280x96xbf16, #tpu.memory_space<vmem>>, %arg5: memref<8x32xbf16, #tpu.memory_space<vmem>>, %arg6: memref<1x128xf32, #tpu.memory_space<vmem>>, %arg7: memref<1x128xf32, #tpu.memory_space<vmem>>, %arg8: memref<1x16x128xbf16, #tpu.memory_space<vmem>>) attributes {dimension_semantics = [#tpu.dimension_semantics<parallel>, #tpu.dimension_semantics<arbitrary>], iteration_bounds = array<i64: 2, 1>, scalar_prefetch = 0 : i64, scratch_operands = 0 : i64, tpu.core_type = #tpu.core_type<tc>, window_params = [{transform_indices = @transform_0, window_bounds = array<i64: 1, 56, 8>}, {pipeline_mode = #tpu.pipeline_mode<synchronous>, transform_indices = @transform_1, window_bounds = array<i64: 8, 32>}, {pipeline_mode = #tpu.pipeline_mode<synchronous>, transform_indices = @transform_2, window_bounds = array<i64: 1280, 96>}, {pipeline_mode = #tpu.pipeline_mode<synchronous>, transform_indices = @transform_3, window_bounds = array<i64: 8, 32>}, {pipeline_mode = #tpu.pipeline_mode<synchronous>, transform_indices = @transform_4, window_bounds = array<i64: 1, 128>}, {pipeline_mode = #tpu.pipeline_mode<synchronous>, transform_indices = @transform_5, window_bounds = array<i64: 1, 128>}, {transform_indices = @transform_6, window_bounds = array<i64: 1, 16, 128>}]} {
    %c16_i32 = arith.constant 16 : i32
    %0 = arith.muli %arg1, %c16_i32 : i32
    %1 = tpu.assume_multiple %0, 8 : i32
    %c0 = arith.constant 0 : index
    %2 = arith.index_cast %1 : i32 to index
    %c0_0 = arith.constant 0 : index
    %3 = vector.load %arg2[%c0, %2, %c0_0] : memref<1x56x8xbf16, #tpu.memory_space<vmem>>, vector<1x56x8xbf16>
    %4 = vector.shape_cast %3 : vector<1x56x8xbf16> to vector<56x8xbf16>
    %c0_1 = arith.constant 0 : index
    %c0_2 = arith.constant 0 : index
    %5 = vector.load %arg3[%c0_1, %c0_2] : memref<8x32xbf16, #tpu.memory_space<vmem>>, vector<8x32xbf16>
    %cst = arith.constant dense<0.000000e+00> : vector<56x32xf32>
    %6 = tpu.matmul %4, %5, %cst {dimension_numbers = #tpu.dot_dimension_numbers<[1], [0], [0], [1], [0, 0, 1, 1], [], []>} : vector<56x8xbf16>, vector<8x32xbf16>, vector<56x32xf32> -> vector<56x32xf32>
    %7 = arith.truncf %6 : vector<56x32xf32> to vector<56x32xbf16>
    %8 = vector.extract_strided_slice %7 {offsets = [1, 0], sizes = [16, 32], strides = [1, 1]} : vector<56x32xbf16> to vector<16x32xbf16>
    %9 = vector.extract_strided_slice %7 {offsets = [2, 0], sizes = [16, 32], strides = [1, 1]} : vector<56x32xbf16> to vector<16x32xbf16>
    %10 = vector.extract_strided_slice %7 {offsets = [3, 0], sizes = [16, 32], strides = [1, 1]} : vector<56x32xbf16> to vector<16x32xbf16>
    %11 = vector.extract_strided_slice %7 {offsets = [4, 0], sizes = [16, 32], strides = [1, 1]} : vector<56x32xbf16> to vector<16x32xbf16>
    %12 = vector.extract_strided_slice %7 {offsets = [5, 0], sizes = [16, 32], strides = [1, 1]} : vector<56x32xbf16> to vector<16x32xbf16>
    %13 = vector.extract_strided_slice %7 {offsets = [6, 0], sizes = [16, 32], strides = [1, 1]} : vector<56x32xbf16> to vector<16x32xbf16>
    %14 = vector.extract_strided_slice %7 {offsets = [7, 0], sizes = [16, 32], strides = [1, 1]} : vector<56x32xbf16> to vector<16x32xbf16>
    %15 = vector.extract_strided_slice %7 {offsets = [8, 0], sizes = [16, 32], strides = [1, 1]} : vector<56x32xbf16> to vector<16x32xbf16>
    %16 = vector.extract_strided_slice %7 {offsets = [9, 0], sizes = [16, 32], strides = [1, 1]} : vector<56x32xbf16> to vector<16x32xbf16>
    %17 = vector.extract_strided_slice %7 {offsets = [10, 0], sizes = [16, 32], strides = [1, 1]} : vector<56x32xbf16> to vector<16x32xbf16>
    %18 = vector.extract_strided_slice %7 {offsets = [11, 0], sizes = [16, 32], strides = [1, 1]} : vector<56x32xbf16> to vector<16x32xbf16>
    %19 = vector.extract_strided_slice %7 {offsets = [12, 0], sizes = [16, 32], strides = [1, 1]} : vector<56x32xbf16> to vector<16x32xbf16>
    %20 = vector.extract_strided_slice %7 {offsets = [13, 0], sizes = [16, 32], strides = [1, 1]} : vector<56x32xbf16> to vector<16x32xbf16>
    %21 = vector.extract_strided_slice %7 {offsets = [14, 0], sizes = [16, 32], strides = [1, 1]} : vector<56x32xbf16> to vector<16x32xbf16>
    %22 = vector.extract_strided_slice %7 {offsets = [15, 0], sizes = [16, 32], strides = [1, 1]} : vector<56x32xbf16> to vector<16x32xbf16>
    %23 = vector.extract_strided_slice %7 {offsets = [16, 0], sizes = [16, 32], strides = [1, 1]} : vector<56x32xbf16> to vector<16x32xbf16>
    %24 = vector.extract_strided_slice %7 {offsets = [17, 0], sizes = [16, 32], strides = [1, 1]} : vector<56x32xbf16> to vector<16x32xbf16>
    %25 = vector.extract_strided_slice %7 {offsets = [18, 0], sizes = [16, 32], strides = [1, 1]} : vector<56x32xbf16> to vector<16x32xbf16>
    %26 = vector.extract_strided_slice %7 {offsets = [19, 0], sizes = [16, 32], strides = [1, 1]} : vector<56x32xbf16> to vector<16x32xbf16>
    %27 = vector.extract_strided_slice %7 {offsets = [20, 0], sizes = [16, 32], strides = [1, 1]} : vector<56x32xbf16> to vector<16x32xbf16>
    %28 = vector.extract_strided_slice %7 {offsets = [21, 0], sizes = [16, 32], strides = [1, 1]} : vector<56x32xbf16> to vector<16x32xbf16>
    %29 = vector.extract_strided_slice %7 {offsets = [22, 0], sizes = [16, 32], strides = [1, 1]} : vector<56x32xbf16> to vector<16x32xbf16>
    %30 = vector.extract_strided_slice %7 {offsets = [23, 0], sizes = [16, 32], strides = [1, 1]} : vector<56x32xbf16> to vector<16x32xbf16>
    %31 = vector.extract_strided_slice %7 {offsets = [24, 0], sizes = [16, 32], strides = [1, 1]} : vector<56x32xbf16> to vector<16x32xbf16>
    %32 = vector.extract_strided_slice %7 {offsets = [25, 0], sizes = [16, 32], strides = [1, 1]} : vector<56x32xbf16> to vector<16x32xbf16>
    %33 = vector.extract_strided_slice %7 {offsets = [26, 0], sizes = [16, 32], strides = [1, 1]} : vector<56x32xbf16> to vector<16x32xbf16>
    %34 = vector.extract_strided_slice %7 {offsets = [27, 0], sizes = [16, 32], strides = [1, 1]} : vector<56x32xbf16> to vector<16x32xbf16>
    %35 = vector.extract_strided_slice %7 {offsets = [28, 0], sizes = [16, 32], strides = [1, 1]} : vector<56x32xbf16> to vector<16x32xbf16>
    %36 = vector.extract_strided_slice %7 {offsets = [29, 0], sizes = [16, 32], strides = [1, 1]} : vector<56x32xbf16> to vector<16x32xbf16>
    %37 = vector.extract_strided_slice %7 {offsets = [30, 0], sizes = [16, 32], strides = [1, 1]} : vector<56x32xbf16> to vector<16x32xbf16>
    %38 = vector.extract_strided_slice %7 {offsets = [31, 0], sizes = [16, 32], strides = [1, 1]} : vector<56x32xbf16> to vector<16x32xbf16>
    %39 = vector.extract_strided_slice %7 {offsets = [32, 0], sizes = [16, 32], strides = [1, 1]} : vector<56x32xbf16> to vector<16x32xbf16>
    %40 = vector.extract_strided_slice %7 {offsets = [33, 0], sizes = [16, 32], strides = [1, 1]} : vector<56x32xbf16> to vector<16x32xbf16>
    %41 = vector.extract_strided_slice %7 {offsets = [34, 0], sizes = [16, 32], strides = [1, 1]} : vector<56x32xbf16> to vector<16x32xbf16>
    %42 = vector.extract_strided_slice %7 {offsets = [35, 0], sizes = [16, 32], strides = [1, 1]} : vector<56x32xbf16> to vector<16x32xbf16>
    %43 = vector.extract_strided_slice %7 {offsets = [36, 0], sizes = [16, 32], strides = [1, 1]} : vector<56x32xbf16> to vector<16x32xbf16>
    %44 = vector.extract_strided_slice %7 {offsets = [37, 0], sizes = [16, 32], strides = [1, 1]} : vector<56x32xbf16> to vector<16x32xbf16>
    %45 = vector.extract_strided_slice %7 {offsets = [38, 0], sizes = [16, 32], strides = [1, 1]} : vector<56x32xbf16> to vector<16x32xbf16>
    %46 = vector.extract_strided_slice %7 {offsets = [39, 0], sizes = [16, 32], strides = [1, 1]} : vector<56x32xbf16> to vector<16x32xbf16>
    %47 = vector.extract_strided_slice %7 {offsets = [40, 0], sizes = [16, 32], strides = [1, 1]} : vector<56x32xbf16> to vector<16x32xbf16>
    %48 = tpu.concatenate %8, %9, %10, %11, %12, %13, %14, %15, %16, %17, %18, %19, %20, %21, %22, %23 in 1 : vector<16x32xbf16>, vector<16x32xbf16>, vector<16x32xbf16>, vector<16x32xbf16>, vector<16x32xbf16>, vector<16x32xbf16>, vector<16x32xbf16>, vector<16x32xbf16>, vector<16x32xbf16>, vector<16x32xbf16>, vector<16x32xbf16>, vector<16x32xbf16>, vector<16x32xbf16>, vector<16x32xbf16>, vector<16x32xbf16>, vector<16x32xbf16> -> vector<16x512xbf16>
    %49 = tpu.concatenate %24, %25, %26, %27, %28, %29, %30, %31, %32, %33, %34, %35, %36, %37, %38, %39 in 1 : vector<16x32xbf16>, vector<16x32xbf16>, vector<16x32xbf16>, vector<16x32xbf16>, vector<16x32xbf16>, vector<16x32xbf16>, vector<16x32xbf16>, vector<16x32xbf16>, vector<16x32xbf16>, vector<16x32xbf16>, vector<16x32xbf16>, vector<16x32xbf16>, vector<16x32xbf16>, vector<16x32xbf16>, vector<16x32xbf16>, vector<16x32xbf16> -> vector<16x512xbf16>
    %50 = tpu.concatenate %40, %41, %42, %43, %44, %45, %46, %47 in 1 : vector<16x32xbf16>, vector<16x32xbf16>, vector<16x32xbf16>, vector<16x32xbf16>, vector<16x32xbf16>, vector<16x32xbf16>, vector<16x32xbf16>, vector<16x32xbf16> -> vector<16x256xbf16>
    %51 = tpu.concatenate %48, %49, %50 in 1 : vector<16x512xbf16>, vector<16x512xbf16>, vector<16x256xbf16> -> vector<16x1280xbf16>
    %c0_3 = arith.constant 0 : index
    %c0_4 = arith.constant 0 : index
    %52 = vector.load %arg4[%c0_3, %c0_4] : memref<1280x96xbf16, #tpu.memory_space<vmem>>, vector<1280x96xbf16>
    %cst_5 = arith.constant dense<0.000000e+00> : vector<16x96xf32>
    %53 = tpu.matmul %51, %52, %cst_5 {dimension_numbers = #tpu.dot_dimension_numbers<[1], [0], [0], [1], [0, 0, 1, 1], [], []>} : vector<16x1280xbf16>, vector<1280x96xbf16>, vector<16x96xf32> -> vector<16x96xf32>
    %54 = vector.extract_strided_slice %4 {offsets = [19, 0], sizes = [16, 8], strides = [1, 1]} : vector<56x8xbf16> to vector<16x8xbf16>
    %55 = vector.extract_strided_slice %4 {offsets = [20, 0], sizes = [16, 8], strides = [1, 1]} : vector<56x8xbf16> to vector<16x8xbf16>
    %56 = vector.extract_strided_slice %4 {offsets = [21, 0], sizes = [16, 8], strides = [1, 1]} : vector<56x8xbf16> to vector<16x8xbf16>
    %57 = tpu.iota {dimensions = array<i32: 0>} : vector<16x1xi32>
    %58 = vector.broadcast %1 : i32 to vector<16x1xi32>
    %59 = arith.addi %58, %57 : vector<16x1xi32>
    %c0_i32 = arith.constant 0 : i32
    %60 = vector.broadcast %c0_i32 : i32 to vector<16x1xi32>
    %61 = arith.cmpi eq, %59, %60 : vector<16x1xi32>
    %cst_6 = arith.constant 0xFF80 : bf16
    %62 = vector.shape_cast %61 : vector<16x1xi1> to vector<16x1xi1>
    %63 = vector.broadcast %62 : vector<16x1xi1> to vector<16x8xi1>
    %64 = vector.broadcast %cst_6 : bf16 to vector<16x8xbf16>
    %65 = arith.select %63, %64, %54 : vector<16x8xi1>, vector<16x8xbf16>
    %c15_i32 = arith.constant 15 : i32
    %66 = vector.broadcast %c15_i32 : i32 to vector<16x1xi32>
    %67 = arith.cmpi eq, %59, %66 : vector<16x1xi32>
    %cst_7 = arith.constant 0xFF80 : bf16
    %68 = vector.shape_cast %67 : vector<16x1xi1> to vector<16x1xi1>
    %69 = vector.broadcast %68 : vector<16x1xi1> to vector<16x8xi1>
    %70 = vector.broadcast %cst_7 : bf16 to vector<16x8xbf16>
    %71 = arith.select %69, %70, %56 : vector<16x8xi1>, vector<16x8xbf16>
    %72 = arith.maximumf %65, %55 : vector<16x8xbf16>
    %73 = arith.maximumf %72, %71 : vector<16x8xbf16>
    %c0_8 = arith.constant 0 : index
    %c0_9 = arith.constant 0 : index
    %74 = vector.load %arg5[%c0_8, %c0_9] : memref<8x32xbf16, #tpu.memory_space<vmem>>, vector<8x32xbf16>
    %cst_10 = arith.constant dense<0.000000e+00> : vector<16x32xf32>
    %75 = tpu.matmul %73, %74, %cst_10 {dimension_numbers = #tpu.dot_dimension_numbers<[1], [0], [0], [1], [0, 0, 1, 1], [], []>} : vector<16x8xbf16>, vector<8x32xbf16>, vector<16x32xf32> -> vector<16x32xf32>
    %76 = tpu.concatenate %53, %75 in 1 : vector<16x96xf32>, vector<16x32xf32> -> vector<16x128xf32>
    %c0_11 = arith.constant 0 : index
    %c0_12 = arith.constant 0 : index
    %77 = vector.load %arg6[%c0_11, %c0_12] : memref<1x128xf32, #tpu.memory_space<vmem>>, vector<1x128xf32>
    %78 = vector.broadcast %77 : vector<1x128xf32> to vector<16x128xf32>
    %79 = arith.mulf %76, %78 : vector<16x128xf32>
    %c0_13 = arith.constant 0 : index
    %c0_14 = arith.constant 0 : index
    %80 = vector.load %arg7[%c0_13, %c0_14] : memref<1x128xf32, #tpu.memory_space<vmem>>, vector<1x128xf32>
    %81 = vector.broadcast %80 : vector<1x128xf32> to vector<16x128xf32>
    %82 = arith.addf %79, %81 : vector<16x128xf32>
    %cst_15 = arith.constant 0.000000e+00 : f32
    %83 = vector.broadcast %cst_15 : f32 to vector<16x128xf32>
    %84 = arith.maximumf %82, %83 : vector<16x128xf32>
    %85 = arith.truncf %84 : vector<16x128xf32> to vector<16x128xbf16>
    %c0_16 = arith.constant 0 : index
    %c0_17 = arith.constant 0 : index
    %c0_18 = arith.constant 0 : index
    %86 = vector.load %arg8[%c0_16, %c0_17, %c0_18] : memref<1x16x128xbf16, #tpu.memory_space<vmem>>, vector<1x16x128xbf16>
    %87 = vector.shape_cast %86 : vector<1x16x128xbf16> to vector<16x128xbf16>
    %88 = vector.shape_cast %85 : vector<16x128xbf16> to vector<1x16x128xbf16>
    tpu.vector_store %arg8[%c0_16, %c0_17, %c0_18], %88 {strides = array<i32>} : memref<1x16x128xbf16, #tpu.memory_space<vmem>>, vector<1x16x128xbf16>,
    return
  }
  func.func @transform_0(%arg0: i32, %arg1: i32) -> (i32, i32, i32) {
    %c0_i32 = arith.constant 0 : i32
    %c0_i32_0 = arith.constant 0 : i32
    %c0_i32_1 = arith.constant 0 : i32
    return %arg0, %c0_i32, %c0_i32_0 : i32, i32, i32
  }
  func.func @transform_1(%arg0: i32, %arg1: i32) -> (i32, i32) {
    %c0_i32 = arith.constant 0 : i32
    %c0_i32_0 = arith.constant 0 : i32
    %c0_i32_1 = arith.constant 0 : i32
    return %c0_i32, %c0_i32_0 : i32, i32
  }
  func.func @transform_2(%arg0: i32, %arg1: i32) -> (i32, i32) {
    %c0_i32 = arith.constant 0 : i32
    %c0_i32_0 = arith.constant 0 : i32
    %c0_i32_1 = arith.constant 0 : i32
    return %c0_i32, %c0_i32_0 : i32, i32
  }
  func.func @transform_3(%arg0: i32, %arg1: i32) -> (i32, i32) {
    %c0_i32 = arith.constant 0 : i32
    %c0_i32_0 = arith.constant 0 : i32
    %c0_i32_1 = arith.constant 0 : i32
    return %c0_i32, %c0_i32_0 : i32, i32
  }
  func.func @transform_4(%arg0: i32, %arg1: i32) -> (i32, i32) {
    %c0_i32 = arith.constant 0 : i32
    %c0_i32_0 = arith.constant 0 : i32
    %c0_i32_1 = arith.constant 0 : i32
    return %c0_i32, %c0_i32_0 : i32, i32
  }
  func.func @transform_5(%arg0: i32, %arg1: i32) -> (i32, i32) {
    %c0_i32 = arith.constant 0 : i32
    %c0_i32_0 = arith.constant 0 : i32
    %c0_i32_1 = arith.constant 0 : i32
    return %c0_i32, %c0_i32_0 : i32, i32
  }
  func.func @transform_6(%arg0: i32, %arg1: i32) -> (i32, i32, i32) {
    %c0_i32 = arith.constant 0 : i32
    %c0_i32_0 = arith.constant 0 : i32
    return %arg0, %arg1, %c0_i32 : i32, i32, i32
  }
}

module attributes {stable_mosaic.version = 11 : i64} {
  func.func @_inception_block_kernel(%arg0: i32, %arg1: i32, %arg2: memref<1x56x128xbf16, #tpu.memory_space<vmem>>, %arg3: memref<128x32xbf16, #tpu.memory_space<vmem>>, %arg4: memref<1280x96xbf16, #tpu.memory_space<vmem>>, %arg5: memref<128x32xbf16, #tpu.memory_space<vmem>>, %arg6: memref<1x128xf32, #tpu.memory_space<vmem>>, %arg7: memref<1x128xf32, #tpu.memory_space<vmem>>, %arg8: memref<1x16x128xbf16, #tpu.memory_space<vmem>>) attributes {dimension_semantics = [#tpu.dimension_semantics<parallel>, #tpu.dimension_semantics<arbitrary>], iteration_bounds = array<i64: 2, 1>, scalar_prefetch = 0 : i64, scratch_operands = 0 : i64, tpu.core_type = #tpu.core_type<tc>, window_params = [{transform_indices = @transform_0, window_bounds = array<i64: 1, 56, 128>}, {pipeline_mode = #tpu.pipeline_mode<synchronous>, transform_indices = @transform_1, window_bounds = array<i64: 128, 32>}, {pipeline_mode = #tpu.pipeline_mode<synchronous>, transform_indices = @transform_2, window_bounds = array<i64: 1280, 96>}, {pipeline_mode = #tpu.pipeline_mode<synchronous>, transform_indices = @transform_3, window_bounds = array<i64: 128, 32>}, {pipeline_mode = #tpu.pipeline_mode<synchronous>, transform_indices = @transform_4, window_bounds = array<i64: 1, 128>}, {pipeline_mode = #tpu.pipeline_mode<synchronous>, transform_indices = @transform_5, window_bounds = array<i64: 1, 128>}, {transform_indices = @transform_6, window_bounds = array<i64: 1, 16, 128>}]} {
    %c16_i32 = arith.constant 16 : i32
    %0 = arith.muli %arg1, %c16_i32 : i32
    %1 = tpu.assume_multiple %0, 8 : i32
    %c0 = arith.constant 0 : index
    %2 = arith.index_cast %1 : i32 to index
    %c0_0 = arith.constant 0 : index
    %3 = vector.load %arg2[%c0, %2, %c0_0] : memref<1x56x128xbf16, #tpu.memory_space<vmem>>, vector<1x56x128xbf16>
    %4 = vector.shape_cast %3 : vector<1x56x128xbf16> to vector<56x128xbf16>
    %c0_1 = arith.constant 0 : index
    %c0_2 = arith.constant 0 : index
    %5 = vector.load %arg3[%c0_1, %c0_2] : memref<128x32xbf16, #tpu.memory_space<vmem>>, vector<128x32xbf16>
    %cst = arith.constant dense<0.000000e+00> : vector<56x32xf32>
    %6 = tpu.matmul %4, %5, %cst {dimension_numbers = #tpu.dot_dimension_numbers<[1], [0], [0], [1], [0, 0, 1, 1], [], []>} : vector<56x128xbf16>, vector<128x32xbf16>, vector<56x32xf32> -> vector<56x32xf32>
    %7 = arith.truncf %6 : vector<56x32xf32> to vector<56x32xbf16>
    %8 = vector.extract_strided_slice %7 {offsets = [1, 0], sizes = [16, 32], strides = [1, 1]} : vector<56x32xbf16> to vector<16x32xbf16>
    %9 = vector.extract_strided_slice %7 {offsets = [2, 0], sizes = [16, 32], strides = [1, 1]} : vector<56x32xbf16> to vector<16x32xbf16>
    %10 = vector.extract_strided_slice %7 {offsets = [3, 0], sizes = [16, 32], strides = [1, 1]} : vector<56x32xbf16> to vector<16x32xbf16>
    %11 = vector.extract_strided_slice %7 {offsets = [4, 0], sizes = [16, 32], strides = [1, 1]} : vector<56x32xbf16> to vector<16x32xbf16>
    %12 = vector.extract_strided_slice %7 {offsets = [5, 0], sizes = [16, 32], strides = [1, 1]} : vector<56x32xbf16> to vector<16x32xbf16>
    %13 = vector.extract_strided_slice %7 {offsets = [6, 0], sizes = [16, 32], strides = [1, 1]} : vector<56x32xbf16> to vector<16x32xbf16>
    %14 = vector.extract_strided_slice %7 {offsets = [7, 0], sizes = [16, 32], strides = [1, 1]} : vector<56x32xbf16> to vector<16x32xbf16>
    %15 = vector.extract_strided_slice %7 {offsets = [8, 0], sizes = [16, 32], strides = [1, 1]} : vector<56x32xbf16> to vector<16x32xbf16>
    %16 = vector.extract_strided_slice %7 {offsets = [9, 0], sizes = [16, 32], strides = [1, 1]} : vector<56x32xbf16> to vector<16x32xbf16>
    %17 = vector.extract_strided_slice %7 {offsets = [10, 0], sizes = [16, 32], strides = [1, 1]} : vector<56x32xbf16> to vector<16x32xbf16>
    %18 = vector.extract_strided_slice %7 {offsets = [11, 0], sizes = [16, 32], strides = [1, 1]} : vector<56x32xbf16> to vector<16x32xbf16>
    %19 = vector.extract_strided_slice %7 {offsets = [12, 0], sizes = [16, 32], strides = [1, 1]} : vector<56x32xbf16> to vector<16x32xbf16>
    %20 = vector.extract_strided_slice %7 {offsets = [13, 0], sizes = [16, 32], strides = [1, 1]} : vector<56x32xbf16> to vector<16x32xbf16>
    %21 = vector.extract_strided_slice %7 {offsets = [14, 0], sizes = [16, 32], strides = [1, 1]} : vector<56x32xbf16> to vector<16x32xbf16>
    %22 = vector.extract_strided_slice %7 {offsets = [15, 0], sizes = [16, 32], strides = [1, 1]} : vector<56x32xbf16> to vector<16x32xbf16>
    %23 = vector.extract_strided_slice %7 {offsets = [16, 0], sizes = [16, 32], strides = [1, 1]} : vector<56x32xbf16> to vector<16x32xbf16>
    %24 = vector.extract_strided_slice %7 {offsets = [17, 0], sizes = [16, 32], strides = [1, 1]} : vector<56x32xbf16> to vector<16x32xbf16>
    %25 = vector.extract_strided_slice %7 {offsets = [18, 0], sizes = [16, 32], strides = [1, 1]} : vector<56x32xbf16> to vector<16x32xbf16>
    %26 = vector.extract_strided_slice %7 {offsets = [19, 0], sizes = [16, 32], strides = [1, 1]} : vector<56x32xbf16> to vector<16x32xbf16>
    %27 = vector.extract_strided_slice %7 {offsets = [20, 0], sizes = [16, 32], strides = [1, 1]} : vector<56x32xbf16> to vector<16x32xbf16>
    %28 = vector.extract_strided_slice %7 {offsets = [21, 0], sizes = [16, 32], strides = [1, 1]} : vector<56x32xbf16> to vector<16x32xbf16>
    %29 = vector.extract_strided_slice %7 {offsets = [22, 0], sizes = [16, 32], strides = [1, 1]} : vector<56x32xbf16> to vector<16x32xbf16>
    %30 = vector.extract_strided_slice %7 {offsets = [23, 0], sizes = [16, 32], strides = [1, 1]} : vector<56x32xbf16> to vector<16x32xbf16>
    %31 = vector.extract_strided_slice %7 {offsets = [24, 0], sizes = [16, 32], strides = [1, 1]} : vector<56x32xbf16> to vector<16x32xbf16>
    %32 = vector.extract_strided_slice %7 {offsets = [25, 0], sizes = [16, 32], strides = [1, 1]} : vector<56x32xbf16> to vector<16x32xbf16>
    %33 = vector.extract_strided_slice %7 {offsets = [26, 0], sizes = [16, 32], strides = [1, 1]} : vector<56x32xbf16> to vector<16x32xbf16>
    %34 = vector.extract_strided_slice %7 {offsets = [27, 0], sizes = [16, 32], strides = [1, 1]} : vector<56x32xbf16> to vector<16x32xbf16>
    %35 = vector.extract_strided_slice %7 {offsets = [28, 0], sizes = [16, 32], strides = [1, 1]} : vector<56x32xbf16> to vector<16x32xbf16>
    %36 = vector.extract_strided_slice %7 {offsets = [29, 0], sizes = [16, 32], strides = [1, 1]} : vector<56x32xbf16> to vector<16x32xbf16>
    %37 = vector.extract_strided_slice %7 {offsets = [30, 0], sizes = [16, 32], strides = [1, 1]} : vector<56x32xbf16> to vector<16x32xbf16>
    %38 = vector.extract_strided_slice %7 {offsets = [31, 0], sizes = [16, 32], strides = [1, 1]} : vector<56x32xbf16> to vector<16x32xbf16>
    %39 = vector.extract_strided_slice %7 {offsets = [32, 0], sizes = [16, 32], strides = [1, 1]} : vector<56x32xbf16> to vector<16x32xbf16>
    %40 = vector.extract_strided_slice %7 {offsets = [33, 0], sizes = [16, 32], strides = [1, 1]} : vector<56x32xbf16> to vector<16x32xbf16>
    %41 = vector.extract_strided_slice %7 {offsets = [34, 0], sizes = [16, 32], strides = [1, 1]} : vector<56x32xbf16> to vector<16x32xbf16>
    %42 = vector.extract_strided_slice %7 {offsets = [35, 0], sizes = [16, 32], strides = [1, 1]} : vector<56x32xbf16> to vector<16x32xbf16>
    %43 = vector.extract_strided_slice %7 {offsets = [36, 0], sizes = [16, 32], strides = [1, 1]} : vector<56x32xbf16> to vector<16x32xbf16>
    %44 = vector.extract_strided_slice %7 {offsets = [37, 0], sizes = [16, 32], strides = [1, 1]} : vector<56x32xbf16> to vector<16x32xbf16>
    %45 = vector.extract_strided_slice %7 {offsets = [38, 0], sizes = [16, 32], strides = [1, 1]} : vector<56x32xbf16> to vector<16x32xbf16>
    %46 = vector.extract_strided_slice %7 {offsets = [39, 0], sizes = [16, 32], strides = [1, 1]} : vector<56x32xbf16> to vector<16x32xbf16>
    %47 = vector.extract_strided_slice %7 {offsets = [40, 0], sizes = [16, 32], strides = [1, 1]} : vector<56x32xbf16> to vector<16x32xbf16>
    %48 = tpu.concatenate %8, %9, %10, %11, %12, %13, %14, %15, %16, %17, %18, %19, %20, %21, %22, %23 in 1 : vector<16x32xbf16>, vector<16x32xbf16>, vector<16x32xbf16>, vector<16x32xbf16>, vector<16x32xbf16>, vector<16x32xbf16>, vector<16x32xbf16>, vector<16x32xbf16>, vector<16x32xbf16>, vector<16x32xbf16>, vector<16x32xbf16>, vector<16x32xbf16>, vector<16x32xbf16>, vector<16x32xbf16>, vector<16x32xbf16>, vector<16x32xbf16> -> vector<16x512xbf16>
    %49 = tpu.concatenate %24, %25, %26, %27, %28, %29, %30, %31, %32, %33, %34, %35, %36, %37, %38, %39 in 1 : vector<16x32xbf16>, vector<16x32xbf16>, vector<16x32xbf16>, vector<16x32xbf16>, vector<16x32xbf16>, vector<16x32xbf16>, vector<16x32xbf16>, vector<16x32xbf16>, vector<16x32xbf16>, vector<16x32xbf16>, vector<16x32xbf16>, vector<16x32xbf16>, vector<16x32xbf16>, vector<16x32xbf16>, vector<16x32xbf16>, vector<16x32xbf16> -> vector<16x512xbf16>
    %50 = tpu.concatenate %40, %41, %42, %43, %44, %45, %46, %47 in 1 : vector<16x32xbf16>, vector<16x32xbf16>, vector<16x32xbf16>, vector<16x32xbf16>, vector<16x32xbf16>, vector<16x32xbf16>, vector<16x32xbf16>, vector<16x32xbf16> -> vector<16x256xbf16>
    %51 = tpu.concatenate %48, %49, %50 in 1 : vector<16x512xbf16>, vector<16x512xbf16>, vector<16x256xbf16> -> vector<16x1280xbf16>
    %c0_3 = arith.constant 0 : index
    %c0_4 = arith.constant 0 : index
    %52 = vector.load %arg4[%c0_3, %c0_4] : memref<1280x96xbf16, #tpu.memory_space<vmem>>, vector<1280x96xbf16>
    %cst_5 = arith.constant dense<0.000000e+00> : vector<16x96xf32>
    %53 = tpu.matmul %51, %52, %cst_5 {dimension_numbers = #tpu.dot_dimension_numbers<[1], [0], [0], [1], [0, 0, 1, 1], [], []>} : vector<16x1280xbf16>, vector<1280x96xbf16>, vector<16x96xf32> -> vector<16x96xf32>
    %54 = vector.extract_strided_slice %4 {offsets = [19, 0], sizes = [16, 128], strides = [1, 1]} : vector<56x128xbf16> to vector<16x128xbf16>
    %55 = vector.extract_strided_slice %4 {offsets = [20, 0], sizes = [16, 128], strides = [1, 1]} : vector<56x128xbf16> to vector<16x128xbf16>
    %56 = vector.extract_strided_slice %4 {offsets = [21, 0], sizes = [16, 128], strides = [1, 1]} : vector<56x128xbf16> to vector<16x128xbf16>
    %57 = tpu.iota {dimensions = array<i32: 0>} : vector<16x1xi32>
    %58 = vector.broadcast %1 : i32 to vector<16x1xi32>
    %59 = arith.addi %58, %57 : vector<16x1xi32>
    %c0_i32 = arith.constant 0 : i32
    %60 = vector.broadcast %c0_i32 : i32 to vector<16x1xi32>
    %61 = arith.cmpi eq, %59, %60 : vector<16x1xi32>
    %cst_6 = arith.constant 0xFF80 : bf16
    %62 = vector.shape_cast %61 : vector<16x1xi1> to vector<16x1xi1>
    %63 = vector.broadcast %62 : vector<16x1xi1> to vector<16x128xi1>
    %64 = vector.broadcast %cst_6 : bf16 to vector<16x128xbf16>
    %65 = arith.select %63, %64, %54 : vector<16x128xi1>, vector<16x128xbf16>
    %c15_i32 = arith.constant 15 : i32
    %66 = vector.broadcast %c15_i32 : i32 to vector<16x1xi32>
    %67 = arith.cmpi eq, %59, %66 : vector<16x1xi32>
    %cst_7 = arith.constant 0xFF80 : bf16
    %68 = vector.shape_cast %67 : vector<16x1xi1> to vector<16x1xi1>
    %69 = vector.broadcast %68 : vector<16x1xi1> to vector<16x128xi1>
    %70 = vector.broadcast %cst_7 : bf16 to vector<16x128xbf16>
    %71 = arith.select %69, %70, %56 : vector<16x128xi1>, vector<16x128xbf16>
    %72 = arith.maximumf %65, %55 : vector<16x128xbf16>
    %73 = arith.maximumf %72, %71 : vector<16x128xbf16>
    %c0_8 = arith.constant 0 : index
    %c0_9 = arith.constant 0 : index
    %74 = vector.load %arg5[%c0_8, %c0_9] : memref<128x32xbf16, #tpu.memory_space<vmem>>, vector<128x32xbf16>
    %cst_10 = arith.constant dense<0.000000e+00> : vector<16x32xf32>
    %75 = tpu.matmul %73, %74, %cst_10 {dimension_numbers = #tpu.dot_dimension_numbers<[1], [0], [0], [1], [0, 0, 1, 1], [], []>} : vector<16x128xbf16>, vector<128x32xbf16>, vector<16x32xf32> -> vector<16x32xf32>
    %76 = tpu.concatenate %53, %75 in 1 : vector<16x96xf32>, vector<16x32xf32> -> vector<16x128xf32>
    %c0_11 = arith.constant 0 : index
    %c0_12 = arith.constant 0 : index
    %77 = vector.load %arg6[%c0_11, %c0_12] : memref<1x128xf32, #tpu.memory_space<vmem>>, vector<1x128xf32>
    %78 = vector.broadcast %77 : vector<1x128xf32> to vector<16x128xf32>
    %79 = arith.mulf %76, %78 : vector<16x128xf32>
    %c0_13 = arith.constant 0 : index
    %c0_14 = arith.constant 0 : index
    %80 = vector.load %arg7[%c0_13, %c0_14] : memref<1x128xf32, #tpu.memory_space<vmem>>, vector<1x128xf32>
    %81 = vector.broadcast %80 : vector<1x128xf32> to vector<16x128xf32>
    %82 = arith.addf %79, %81 : vector<16x128xf32>
    %cst_15 = arith.constant 0.000000e+00 : f32
    %83 = vector.broadcast %cst_15 : f32 to vector<16x128xf32>
    %84 = arith.maximumf %82, %83 : vector<16x128xf32>
    %85 = arith.truncf %84 : vector<16x128xf32> to vector<16x128xbf16>
    %c0_16 = arith.constant 0 : index
    %c0_17 = arith.constant 0 : index
    %c0_18 = arith.constant 0 : index
    %86 = vector.load %arg8[%c0_16, %c0_17, %c0_18] : memref<1x16x128xbf16, #tpu.memory_space<vmem>>, vector<1x16x128xbf16>
    %87 = vector.shape_cast %86 : vector<1x16x128xbf16> to vector<16x128xbf16>
    %88 = vector.shape_cast %85 : vector<16x128xbf16> to vector<1x16x128xbf16>
    tpu.vector_store %arg8[%c0_16, %c0_17, %c0_18], %88 {strides = array<i32>} : memref<1x16x128xbf16, #tpu.memory_space<vmem>>, vector<1x16x128xbf16>,
    return
  }
  func.func @transform_0(%arg0: i32, %arg1: i32) -> (i32, i32, i32) {
    %c0_i32 = arith.constant 0 : i32
    %c0_i32_0 = arith.constant 0 : i32
    %c0_i32_1 = arith.constant 0 : i32
    return %arg0, %c0_i32, %c0_i32_0 : i32, i32, i32
  }
  func.func @transform_1(%arg0: i32, %arg1: i32) -> (i32, i32) {
    %c0_i32 = arith.constant 0 : i32
    %c0_i32_0 = arith.constant 0 : i32
    %c0_i32_1 = arith.constant 0 : i32
    return %c0_i32, %c0_i32_0 : i32, i32
  }
  func.func @transform_2(%arg0: i32, %arg1: i32) -> (i32, i32) {
    %c0_i32 = arith.constant 0 : i32
    %c0_i32_0 = arith.constant 0 : i32
    %c0_i32_1 = arith.constant 0 : i32
    return %c0_i32, %c0_i32_0 : i32, i32
  }
  func.func @transform_3(%arg0: i32, %arg1: i32) -> (i32, i32) {
    %c0_i32 = arith.constant 0 : i32
    %c0_i32_0 = arith.constant 0 : i32
    %c0_i32_1 = arith.constant 0 : i32
    return %c0_i32, %c0_i32_0 : i32, i32
  }
  func.func @transform_4(%arg0: i32, %arg1: i32) -> (i32, i32) {
    %c0_i32 = arith.constant 0 : i32
    %c0_i32_0 = arith.constant 0 : i32
    %c0_i32_1 = arith.constant 0 : i32
    return %c0_i32, %c0_i32_0 : i32, i32
  }
  func.func @transform_5(%arg0: i32, %arg1: i32) -> (i32, i32) {
    %c0_i32 = arith.constant 0 : i32
    %c0_i32_0 = arith.constant 0 : i32
    %c0_i32_1 = arith.constant 0 : i32
    return %c0_i32, %c0_i32_0 : i32, i32
  }
  func.func @transform_6(%arg0: i32, %arg1: i32) -> (i32, i32, i32) {
    %c0_i32 = arith.constant 0 : i32
    %c0_i32_0 = arith.constant 0 : i32
    return %arg0, %arg1, %c0_i32 : i32, i32, i32
  }
}

module attributes {stable_mosaic.version = 11 : i64} {
  func.func @_inception_block_kernel(%arg0: i32, %arg1: i32, %arg2: memref<1x56x128xbf16, #tpu.memory_space<vmem>>, %arg3: memref<1x16x128xbf16, #tpu.memory_space<vmem>>, %arg4: memref<128x32xbf16, #tpu.memory_space<vmem>>, %arg5: memref<1280x96xbf16, #tpu.memory_space<vmem>>, %arg6: memref<128x32xbf16, #tpu.memory_space<vmem>>, %arg7: memref<1x128xf32, #tpu.memory_space<vmem>>, %arg8: memref<1x128xf32, #tpu.memory_space<vmem>>, %arg9: memref<128x128xbf16, #tpu.memory_space<vmem>>, %arg10: memref<1x128xf32, #tpu.memory_space<vmem>>, %arg11: memref<1x128xf32, #tpu.memory_space<vmem>>, %arg12: memref<1x16x128xbf16, #tpu.memory_space<vmem>>) attributes {dimension_semantics = [#tpu.dimension_semantics<parallel>, #tpu.dimension_semantics<arbitrary>], iteration_bounds = array<i64: 2, 1>, scalar_prefetch = 0 : i64, scratch_operands = 0 : i64, tpu.core_type = #tpu.core_type<tc>, window_params = [{transform_indices = @transform_0, window_bounds = array<i64: 1, 56, 128>}, {transform_indices = @transform_1, window_bounds = array<i64: 1, 16, 128>}, {pipeline_mode = #tpu.pipeline_mode<synchronous>, transform_indices = @transform_2, window_bounds = array<i64: 128, 32>}, {pipeline_mode = #tpu.pipeline_mode<synchronous>, transform_indices = @transform_3, window_bounds = array<i64: 1280, 96>}, {pipeline_mode = #tpu.pipeline_mode<synchronous>, transform_indices = @transform_4, window_bounds = array<i64: 128, 32>}, {pipeline_mode = #tpu.pipeline_mode<synchronous>, transform_indices = @transform_5, window_bounds = array<i64: 1, 128>}, {pipeline_mode = #tpu.pipeline_mode<synchronous>, transform_indices = @transform_6, window_bounds = array<i64: 1, 128>}, {pipeline_mode = #tpu.pipeline_mode<synchronous>, transform_indices = @transform_7, window_bounds = array<i64: 128, 128>}, {pipeline_mode = #tpu.pipeline_mode<synchronous>, transform_indices = @transform_8, window_bounds = array<i64: 1, 128>}, {pipeline_mode = #tpu.pipeline_mode<synchronous>, transform_indices = @transform_9, window_bounds = array<i64: 1, 128>}, {transform_indices = @transform_10, window_bounds = array<i64: 1, 16, 128>}]} {
    %c16_i32 = arith.constant 16 : i32
    %0 = arith.muli %arg1, %c16_i32 : i32
    %1 = tpu.assume_multiple %0, 8 : i32
    %c0 = arith.constant 0 : index
    %2 = arith.index_cast %1 : i32 to index
    %c0_0 = arith.constant 0 : index
    %3 = vector.load %arg2[%c0, %2, %c0_0] : memref<1x56x128xbf16, #tpu.memory_space<vmem>>, vector<1x56x128xbf16>
    %4 = vector.shape_cast %3 : vector<1x56x128xbf16> to vector<56x128xbf16>
    %c0_1 = arith.constant 0 : index
    %c0_2 = arith.constant 0 : index
    %5 = vector.load %arg4[%c0_1, %c0_2] : memref<128x32xbf16, #tpu.memory_space<vmem>>, vector<128x32xbf16>
    %cst = arith.constant dense<0.000000e+00> : vector<56x32xf32>
    %6 = tpu.matmul %4, %5, %cst {dimension_numbers = #tpu.dot_dimension_numbers<[1], [0], [0], [1], [0, 0, 1, 1], [], []>} : vector<56x128xbf16>, vector<128x32xbf16>, vector<56x32xf32> -> vector<56x32xf32>
    %7 = arith.truncf %6 : vector<56x32xf32> to vector<56x32xbf16>
    %8 = vector.extract_strided_slice %7 {offsets = [1, 0], sizes = [16, 32], strides = [1, 1]} : vector<56x32xbf16> to vector<16x32xbf16>
    %9 = vector.extract_strided_slice %7 {offsets = [2, 0], sizes = [16, 32], strides = [1, 1]} : vector<56x32xbf16> to vector<16x32xbf16>
    %10 = vector.extract_strided_slice %7 {offsets = [3, 0], sizes = [16, 32], strides = [1, 1]} : vector<56x32xbf16> to vector<16x32xbf16>
    %11 = vector.extract_strided_slice %7 {offsets = [4, 0], sizes = [16, 32], strides = [1, 1]} : vector<56x32xbf16> to vector<16x32xbf16>
    %12 = vector.extract_strided_slice %7 {offsets = [5, 0], sizes = [16, 32], strides = [1, 1]} : vector<56x32xbf16> to vector<16x32xbf16>
    %13 = vector.extract_strided_slice %7 {offsets = [6, 0], sizes = [16, 32], strides = [1, 1]} : vector<56x32xbf16> to vector<16x32xbf16>
    %14 = vector.extract_strided_slice %7 {offsets = [7, 0], sizes = [16, 32], strides = [1, 1]} : vector<56x32xbf16> to vector<16x32xbf16>
    %15 = vector.extract_strided_slice %7 {offsets = [8, 0], sizes = [16, 32], strides = [1, 1]} : vector<56x32xbf16> to vector<16x32xbf16>
    %16 = vector.extract_strided_slice %7 {offsets = [9, 0], sizes = [16, 32], strides = [1, 1]} : vector<56x32xbf16> to vector<16x32xbf16>
    %17 = vector.extract_strided_slice %7 {offsets = [10, 0], sizes = [16, 32], strides = [1, 1]} : vector<56x32xbf16> to vector<16x32xbf16>
    %18 = vector.extract_strided_slice %7 {offsets = [11, 0], sizes = [16, 32], strides = [1, 1]} : vector<56x32xbf16> to vector<16x32xbf16>
    %19 = vector.extract_strided_slice %7 {offsets = [12, 0], sizes = [16, 32], strides = [1, 1]} : vector<56x32xbf16> to vector<16x32xbf16>
    %20 = vector.extract_strided_slice %7 {offsets = [13, 0], sizes = [16, 32], strides = [1, 1]} : vector<56x32xbf16> to vector<16x32xbf16>
    %21 = vector.extract_strided_slice %7 {offsets = [14, 0], sizes = [16, 32], strides = [1, 1]} : vector<56x32xbf16> to vector<16x32xbf16>
    %22 = vector.extract_strided_slice %7 {offsets = [15, 0], sizes = [16, 32], strides = [1, 1]} : vector<56x32xbf16> to vector<16x32xbf16>
    %23 = vector.extract_strided_slice %7 {offsets = [16, 0], sizes = [16, 32], strides = [1, 1]} : vector<56x32xbf16> to vector<16x32xbf16>
    %24 = vector.extract_strided_slice %7 {offsets = [17, 0], sizes = [16, 32], strides = [1, 1]} : vector<56x32xbf16> to vector<16x32xbf16>
    %25 = vector.extract_strided_slice %7 {offsets = [18, 0], sizes = [16, 32], strides = [1, 1]} : vector<56x32xbf16> to vector<16x32xbf16>
    %26 = vector.extract_strided_slice %7 {offsets = [19, 0], sizes = [16, 32], strides = [1, 1]} : vector<56x32xbf16> to vector<16x32xbf16>
    %27 = vector.extract_strided_slice %7 {offsets = [20, 0], sizes = [16, 32], strides = [1, 1]} : vector<56x32xbf16> to vector<16x32xbf16>
    %28 = vector.extract_strided_slice %7 {offsets = [21, 0], sizes = [16, 32], strides = [1, 1]} : vector<56x32xbf16> to vector<16x32xbf16>
    %29 = vector.extract_strided_slice %7 {offsets = [22, 0], sizes = [16, 32], strides = [1, 1]} : vector<56x32xbf16> to vector<16x32xbf16>
    %30 = vector.extract_strided_slice %7 {offsets = [23, 0], sizes = [16, 32], strides = [1, 1]} : vector<56x32xbf16> to vector<16x32xbf16>
    %31 = vector.extract_strided_slice %7 {offsets = [24, 0], sizes = [16, 32], strides = [1, 1]} : vector<56x32xbf16> to vector<16x32xbf16>
    %32 = vector.extract_strided_slice %7 {offsets = [25, 0], sizes = [16, 32], strides = [1, 1]} : vector<56x32xbf16> to vector<16x32xbf16>
    %33 = vector.extract_strided_slice %7 {offsets = [26, 0], sizes = [16, 32], strides = [1, 1]} : vector<56x32xbf16> to vector<16x32xbf16>
    %34 = vector.extract_strided_slice %7 {offsets = [27, 0], sizes = [16, 32], strides = [1, 1]} : vector<56x32xbf16> to vector<16x32xbf16>
    %35 = vector.extract_strided_slice %7 {offsets = [28, 0], sizes = [16, 32], strides = [1, 1]} : vector<56x32xbf16> to vector<16x32xbf16>
    %36 = vector.extract_strided_slice %7 {offsets = [29, 0], sizes = [16, 32], strides = [1, 1]} : vector<56x32xbf16> to vector<16x32xbf16>
    %37 = vector.extract_strided_slice %7 {offsets = [30, 0], sizes = [16, 32], strides = [1, 1]} : vector<56x32xbf16> to vector<16x32xbf16>
    %38 = vector.extract_strided_slice %7 {offsets = [31, 0], sizes = [16, 32], strides = [1, 1]} : vector<56x32xbf16> to vector<16x32xbf16>
    %39 = vector.extract_strided_slice %7 {offsets = [32, 0], sizes = [16, 32], strides = [1, 1]} : vector<56x32xbf16> to vector<16x32xbf16>
    %40 = vector.extract_strided_slice %7 {offsets = [33, 0], sizes = [16, 32], strides = [1, 1]} : vector<56x32xbf16> to vector<16x32xbf16>
    %41 = vector.extract_strided_slice %7 {offsets = [34, 0], sizes = [16, 32], strides = [1, 1]} : vector<56x32xbf16> to vector<16x32xbf16>
    %42 = vector.extract_strided_slice %7 {offsets = [35, 0], sizes = [16, 32], strides = [1, 1]} : vector<56x32xbf16> to vector<16x32xbf16>
    %43 = vector.extract_strided_slice %7 {offsets = [36, 0], sizes = [16, 32], strides = [1, 1]} : vector<56x32xbf16> to vector<16x32xbf16>
    %44 = vector.extract_strided_slice %7 {offsets = [37, 0], sizes = [16, 32], strides = [1, 1]} : vector<56x32xbf16> to vector<16x32xbf16>
    %45 = vector.extract_strided_slice %7 {offsets = [38, 0], sizes = [16, 32], strides = [1, 1]} : vector<56x32xbf16> to vector<16x32xbf16>
    %46 = vector.extract_strided_slice %7 {offsets = [39, 0], sizes = [16, 32], strides = [1, 1]} : vector<56x32xbf16> to vector<16x32xbf16>
    %47 = vector.extract_strided_slice %7 {offsets = [40, 0], sizes = [16, 32], strides = [1, 1]} : vector<56x32xbf16> to vector<16x32xbf16>
    %48 = tpu.concatenate %8, %9, %10, %11, %12, %13, %14, %15, %16, %17, %18, %19, %20, %21, %22, %23 in 1 : vector<16x32xbf16>, vector<16x32xbf16>, vector<16x32xbf16>, vector<16x32xbf16>, vector<16x32xbf16>, vector<16x32xbf16>, vector<16x32xbf16>, vector<16x32xbf16>, vector<16x32xbf16>, vector<16x32xbf16>, vector<16x32xbf16>, vector<16x32xbf16>, vector<16x32xbf16>, vector<16x32xbf16>, vector<16x32xbf16>, vector<16x32xbf16> -> vector<16x512xbf16>
    %49 = tpu.concatenate %24, %25, %26, %27, %28, %29, %30, %31, %32, %33, %34, %35, %36, %37, %38, %39 in 1 : vector<16x32xbf16>, vector<16x32xbf16>, vector<16x32xbf16>, vector<16x32xbf16>, vector<16x32xbf16>, vector<16x32xbf16>, vector<16x32xbf16>, vector<16x32xbf16>, vector<16x32xbf16>, vector<16x32xbf16>, vector<16x32xbf16>, vector<16x32xbf16>, vector<16x32xbf16>, vector<16x32xbf16>, vector<16x32xbf16>, vector<16x32xbf16> -> vector<16x512xbf16>
    %50 = tpu.concatenate %40, %41, %42, %43, %44, %45, %46, %47 in 1 : vector<16x32xbf16>, vector<16x32xbf16>, vector<16x32xbf16>, vector<16x32xbf16>, vector<16x32xbf16>, vector<16x32xbf16>, vector<16x32xbf16>, vector<16x32xbf16> -> vector<16x256xbf16>
    %51 = tpu.concatenate %48, %49, %50 in 1 : vector<16x512xbf16>, vector<16x512xbf16>, vector<16x256xbf16> -> vector<16x1280xbf16>
    %c0_3 = arith.constant 0 : index
    %c0_4 = arith.constant 0 : index
    %52 = vector.load %arg5[%c0_3, %c0_4] : memref<1280x96xbf16, #tpu.memory_space<vmem>>, vector<1280x96xbf16>
    %cst_5 = arith.constant dense<0.000000e+00> : vector<16x96xf32>
    %53 = tpu.matmul %51, %52, %cst_5 {dimension_numbers = #tpu.dot_dimension_numbers<[1], [0], [0], [1], [0, 0, 1, 1], [], []>} : vector<16x1280xbf16>, vector<1280x96xbf16>, vector<16x96xf32> -> vector<16x96xf32>
    %54 = vector.extract_strided_slice %4 {offsets = [19, 0], sizes = [16, 128], strides = [1, 1]} : vector<56x128xbf16> to vector<16x128xbf16>
    %55 = vector.extract_strided_slice %4 {offsets = [20, 0], sizes = [16, 128], strides = [1, 1]} : vector<56x128xbf16> to vector<16x128xbf16>
    %56 = vector.extract_strided_slice %4 {offsets = [21, 0], sizes = [16, 128], strides = [1, 1]} : vector<56x128xbf16> to vector<16x128xbf16>
    %57 = tpu.iota {dimensions = array<i32: 0>} : vector<16x1xi32>
    %58 = vector.broadcast %1 : i32 to vector<16x1xi32>
    %59 = arith.addi %58, %57 : vector<16x1xi32>
    %c0_i32 = arith.constant 0 : i32
    %60 = vector.broadcast %c0_i32 : i32 to vector<16x1xi32>
    %61 = arith.cmpi eq, %59, %60 : vector<16x1xi32>
    %cst_6 = arith.constant 0xFF80 : bf16
    %62 = vector.shape_cast %61 : vector<16x1xi1> to vector<16x1xi1>
    %63 = vector.broadcast %62 : vector<16x1xi1> to vector<16x128xi1>
    %64 = vector.broadcast %cst_6 : bf16 to vector<16x128xbf16>
    %65 = arith.select %63, %64, %54 : vector<16x128xi1>, vector<16x128xbf16>
    %c15_i32 = arith.constant 15 : i32
    %66 = vector.broadcast %c15_i32 : i32 to vector<16x1xi32>
    %67 = arith.cmpi eq, %59, %66 : vector<16x1xi32>
    %cst_7 = arith.constant 0xFF80 : bf16
    %68 = vector.shape_cast %67 : vector<16x1xi1> to vector<16x1xi1>
    %69 = vector.broadcast %68 : vector<16x1xi1> to vector<16x128xi1>
    %70 = vector.broadcast %cst_7 : bf16 to vector<16x128xbf16>
    %71 = arith.select %69, %70, %56 : vector<16x128xi1>, vector<16x128xbf16>
    %72 = arith.maximumf %65, %55 : vector<16x128xbf16>
    %73 = arith.maximumf %72, %71 : vector<16x128xbf16>
    %c0_8 = arith.constant 0 : index
    %c0_9 = arith.constant 0 : index
    %74 = vector.load %arg6[%c0_8, %c0_9] : memref<128x32xbf16, #tpu.memory_space<vmem>>, vector<128x32xbf16>
    %cst_10 = arith.constant dense<0.000000e+00> : vector<16x32xf32>
    %75 = tpu.matmul %73, %74, %cst_10 {dimension_numbers = #tpu.dot_dimension_numbers<[1], [0], [0], [1], [0, 0, 1, 1], [], []>} : vector<16x128xbf16>, vector<128x32xbf16>, vector<16x32xf32> -> vector<16x32xf32>
    %76 = tpu.concatenate %53, %75 in 1 : vector<16x96xf32>, vector<16x32xf32> -> vector<16x128xf32>
    %c0_11 = arith.constant 0 : index
    %c0_12 = arith.constant 0 : index
    %77 = vector.load %arg7[%c0_11, %c0_12] : memref<1x128xf32, #tpu.memory_space<vmem>>, vector<1x128xf32>
    %78 = vector.broadcast %77 : vector<1x128xf32> to vector<16x128xf32>
    %79 = arith.mulf %76, %78 : vector<16x128xf32>
    %c0_13 = arith.constant 0 : index
    %c0_14 = arith.constant 0 : index
    %80 = vector.load %arg8[%c0_13, %c0_14] : memref<1x128xf32, #tpu.memory_space<vmem>>, vector<1x128xf32>
    %81 = vector.broadcast %80 : vector<1x128xf32> to vector<16x128xf32>
    %82 = arith.addf %79, %81 : vector<16x128xf32>
    %cst_15 = arith.constant 0.000000e+00 : f32
    %83 = vector.broadcast %cst_15 : f32 to vector<16x128xf32>
    %84 = arith.maximumf %82, %83 : vector<16x128xf32>
    %c0_16 = arith.constant 0 : index
    %c0_17 = arith.constant 0 : index
    %c0_18 = arith.constant 0 : index
    %85 = vector.load %arg3[%c0_16, %c0_17, %c0_18] : memref<1x16x128xbf16, #tpu.memory_space<vmem>>, vector<1x16x128xbf16>
    %86 = vector.shape_cast %85 : vector<1x16x128xbf16> to vector<16x128xbf16>
    %c0_19 = arith.constant 0 : index
    %c0_20 = arith.constant 0 : index
    %87 = vector.load %arg9[%c0_19, %c0_20] : memref<128x128xbf16, #tpu.memory_space<vmem>>, vector<128x128xbf16>
    %cst_21 = arith.constant dense<0.000000e+00> : vector<16x128xf32>
    %88 = tpu.matmul %86, %87, %cst_21 {dimension_numbers = #tpu.dot_dimension_numbers<[1], [0], [0], [1], [0, 0, 1, 1], [], []>} : vector<16x128xbf16>, vector<128x128xbf16>, vector<16x128xf32> -> vector<16x128xf32>
    %c0_22 = arith.constant 0 : index
    %c0_23 = arith.constant 0 : index
    %89 = vector.load %arg10[%c0_22, %c0_23] : memref<1x128xf32, #tpu.memory_space<vmem>>, vector<1x128xf32>
    %90 = vector.broadcast %89 : vector<1x128xf32> to vector<16x128xf32>
    %91 = arith.mulf %88, %90 : vector<16x128xf32>
    %c0_24 = arith.constant 0 : index
    %c0_25 = arith.constant 0 : index
    %92 = vector.load %arg11[%c0_24, %c0_25] : memref<1x128xf32, #tpu.memory_space<vmem>>, vector<1x128xf32>
    %93 = vector.broadcast %92 : vector<1x128xf32> to vector<16x128xf32>
    %94 = arith.addf %91, %93 : vector<16x128xf32>
    %95 = arith.addf %84, %94 : vector<16x128xf32>
    %cst_26 = arith.constant 0.000000e+00 : f32
    %96 = vector.broadcast %cst_26 : f32 to vector<16x128xf32>
    %97 = arith.maximumf %95, %96 : vector<16x128xf32>
    %98 = arith.truncf %97 : vector<16x128xf32> to vector<16x128xbf16>
    %c0_27 = arith.constant 0 : index
    %c0_28 = arith.constant 0 : index
    %c0_29 = arith.constant 0 : index
    %99 = vector.load %arg12[%c0_27, %c0_28, %c0_29] : memref<1x16x128xbf16, #tpu.memory_space<vmem>>, vector<1x16x128xbf16>
    %100 = vector.shape_cast %99 : vector<1x16x128xbf16> to vector<16x128xbf16>
    %101 = vector.shape_cast %98 : vector<16x128xbf16> to vector<1x16x128xbf16>
    tpu.vector_store %arg12[%c0_27, %c0_28, %c0_29], %101 {strides = array<i32>} : memref<1x16x128xbf16, #tpu.memory_space<vmem>>, vector<1x16x128xbf16>,
    return
  }
  func.func @transform_0(%arg0: i32, %arg1: i32) -> (i32, i32, i32) {
    %c0_i32 = arith.constant 0 : i32
    %c0_i32_0 = arith.constant 0 : i32
    %c0_i32_1 = arith.constant 0 : i32
    return %arg0, %c0_i32, %c0_i32_0 : i32, i32, i32
  }
  func.func @transform_1(%arg0: i32, %arg1: i32) -> (i32, i32, i32) {
    %c0_i32 = arith.constant 0 : i32
    %c0_i32_0 = arith.constant 0 : i32
    return %arg0, %arg1, %c0_i32 : i32, i32, i32
  }
  func.func @transform_2(%arg0: i32, %arg1: i32) -> (i32, i32) {
    %c0_i32 = arith.constant 0 : i32
    %c0_i32_0 = arith.constant 0 : i32
    %c0_i32_1 = arith.constant 0 : i32
    return %c0_i32, %c0_i32_0 : i32, i32
  }
  func.func @transform_3(%arg0: i32, %arg1: i32) -> (i32, i32) {
    %c0_i32 = arith.constant 0 : i32
    %c0_i32_0 = arith.constant 0 : i32
    %c0_i32_1 = arith.constant 0 : i32
    return %c0_i32, %c0_i32_0 : i32, i32
  }
  func.func @transform_4(%arg0: i32, %arg1: i32) -> (i32, i32) {
    %c0_i32 = arith.constant 0 : i32
    %c0_i32_0 = arith.constant 0 : i32
    %c0_i32_1 = arith.constant 0 : i32
    return %c0_i32, %c0_i32_0 : i32, i32
  }
  func.func @transform_5(%arg0: i32, %arg1: i32) -> (i32, i32) {
    %c0_i32 = arith.constant 0 : i32
    %c0_i32_0 = arith.constant 0 : i32
    %c0_i32_1 = arith.constant 0 : i32
    return %c0_i32, %c0_i32_0 : i32, i32
  }
  func.func @transform_6(%arg0: i32, %arg1: i32) -> (i32, i32) {
    %c0_i32 = arith.constant 0 : i32
    %c0_i32_0 = arith.constant 0 : i32
    %c0_i32_1 = arith.constant 0 : i32
    return %c0_i32, %c0_i32_0 : i32, i32
  }
  func.func @transform_7(%arg0: i32, %arg1: i32) -> (i32, i32) {
    %c0_i32 = arith.constant 0 : i32
    %c0_i32_0 = arith.constant 0 : i32
    %c0_i32_1 = arith.constant 0 : i32
    return %c0_i32, %c0_i32_0 : i32, i32
  }
  func.func @transform_8(%arg0: i32, %arg1: i32) -> (i32, i32) {
    %c0_i32 = arith.constant 0 : i32
    %c0_i32_0 = arith.constant 0 : i32
    %c0_i32_1 = arith.constant 0 : i32
    return %c0_i32, %c0_i32_0 : i32, i32
  }
  func.func @transform_9(%arg0: i32, %arg1: i32) -> (i32, i32) {
    %c0_i32 = arith.constant 0 : i32
    %c0_i32_0 = arith.constant 0 : i32
    %c0_i32_1 = arith.constant 0 : i32
    return %c0_i32, %c0_i32_0 : i32, i32
  }
  func.func @transform_10(%arg0: i32, %arg1: i32) -> (i32, i32, i32) {
    %c0_i32 = arith.constant 0 : i32
    %c0_i32_0 = arith.constant 0 : i32
    return %arg0, %arg1, %c0_i32 : i32, i32, i32
  }
}

module attributes {stable_mosaic.version = 11 : i64} {
  func.func @_head_kernel(%arg0: memref<2x16x128xbf16, #tpu.memory_space<vmem>>, %arg1: memref<1x256xf32, #tpu.memory_space<vmem>>, %arg2: memref<1x256xf32, #tpu.memory_space<vmem>>, %arg3: memref<256x2xf32, #tpu.memory_space<vmem>>, %arg4: memref<1x2xf32, #tpu.memory_space<vmem>>, %arg5: memref<2x2xf32, #tpu.memory_space<vmem>>) attributes {dimension_semantics = [], scalar_prefetch = 0 : i64, scratch_operands = 0 : i64, tpu.core_type = #tpu.core_type<tc>} {
    %c0 = arith.constant 0 : index
    %c0_0 = arith.constant 0 : index
    %c0_1 = arith.constant 0 : index
    %0 = vector.load %arg0[%c0, %c0_0, %c0_1] : memref<2x16x128xbf16, #tpu.memory_space<vmem>>, vector<2x16x128xbf16>
    %1 = arith.extf %0 : vector<2x16x128xbf16> to vector<2x16x128xf32>
    %cst = arith.constant dense<0xFF800000> : vector<2x128xf32>
    %2 = vector.multi_reduction <maximumf>, %1, %cst [1] : vector<2x16x128xf32> to vector<2x128xf32>
    %cst_2 = arith.constant dense<0.000000e+00> : vector<2x128xf32>
    %3 = vector.multi_reduction <add>, %1, %cst_2 [1] : vector<2x16x128xf32> to vector<2x128xf32>
    %cst_3 = arith.constant 1.600000e+01 : f32
    %4 = vector.broadcast %cst_3 : f32 to vector<2x128xf32>
    %5 = arith.divf %3, %4 : vector<2x128xf32>
    %6 = tpu.concatenate %2, %5 in 1 : vector<2x128xf32>, vector<2x128xf32> -> vector<2x256xf32>
    %c0_4 = arith.constant 0 : index
    %c0_5 = arith.constant 0 : index
    %7 = vector.load %arg1[%c0_4, %c0_5] : memref<1x256xf32, #tpu.memory_space<vmem>>, vector<1x256xf32>
    %8 = vector.broadcast %7 : vector<1x256xf32> to vector<2x256xf32>
    %9 = arith.mulf %6, %8 : vector<2x256xf32>
    %c0_6 = arith.constant 0 : index
    %c0_7 = arith.constant 0 : index
    %10 = vector.load %arg2[%c0_6, %c0_7] : memref<1x256xf32, #tpu.memory_space<vmem>>, vector<1x256xf32>
    %11 = vector.broadcast %10 : vector<1x256xf32> to vector<2x256xf32>
    %12 = arith.addf %9, %11 : vector<2x256xf32>
    %c0_8 = arith.constant 0 : index
    %c0_9 = arith.constant 0 : index
    %13 = vector.load %arg3[%c0_8, %c0_9] : memref<256x2xf32, #tpu.memory_space<vmem>>, vector<256x2xf32>
    %cst_10 = arith.constant dense<0.000000e+00> : vector<2x2xf32>
    %14 = tpu.matmul %12, %13, %cst_10 {dimension_numbers = #tpu.dot_dimension_numbers<[1], [0], [0], [1], [0, 0, 1, 1], [], []>} : vector<2x256xf32>, vector<256x2xf32>, vector<2x2xf32> -> vector<2x2xf32>
    %c0_11 = arith.constant 0 : index
    %c0_12 = arith.constant 0 : index
    %15 = vector.load %arg4[%c0_11, %c0_12] : memref<1x2xf32, #tpu.memory_space<vmem>>, vector<1x2xf32>
    %16 = vector.broadcast %15 : vector<1x2xf32> to vector<2x2xf32>
    %17 = arith.addf %14, %16 : vector<2x2xf32>
    %c0_13 = arith.constant 0 : index
    %c0_14 = arith.constant 0 : index
    %18 = vector.load %arg5[%c0_13, %c0_14] : memref<2x2xf32, #tpu.memory_space<vmem>>, vector<2x2xf32>
    tpu.vector_store %arg5[%c0_13, %c0_14], %17 {strides = array<i32>} : memref<2x2xf32, #tpu.memory_space<vmem>>, vector<2x2xf32>,
    return
  }
}

</mosaic_0001>

<llo_original>
// kernel: inception1d_forward.12
$region0: #{inception1d_forward.12}
  #allocation0 [shape = 'u32[]', space=smem, size = 0x4, offset = 0x4, fixed_abs, tag = 'smem constant byte address 0x4 - core index']
  #allocation1 [shape = 'u32[144,128]{1,0:T(1,128)}', space=vmem, size = 0x12000, scoped, tag = 'internal scratch']
  %s0 = inlined_call_operand.vmem [shape: bf16[2,56,128], index: 0, kind: input, shape index: {}]
  %s1 = inlined_call_operand.vmem [shape: bf16[2,16,128], index: 1, kind: input, shape index: {}]
  %s2 = inlined_call_operand.vmem [shape: bf16[128,32], index: 2, kind: input, shape index: {}]
  %s3 = inlined_call_operand.vmem [shape: bf16[1280,96], index: 3, kind: input, shape index: {}]
  %s4 = inlined_call_operand.vmem [shape: bf16[128,32], index: 4, kind: input, shape index: {}]
  %s5 = inlined_call_operand.vmem [shape: f32[1,128], index: 5, kind: input, shape index: {}]
  %s6 = inlined_call_operand.vmem [shape: f32[1,128], index: 6, kind: input, shape index: {}]
  %s7 = inlined_call_operand.vmem [shape: bf16[128,128], index: 7, kind: input, shape index: {}]
  %s8 = inlined_call_operand.vmem [shape: f32[1,128], index: 8, kind: input, shape index: {}]
  %s9 = inlined_call_operand.vmem [shape: f32[1,128], index: 9, kind: input, shape index: {}]
  %s10 = inlined_call_operand.vmem [shape: bf16[2,16,128], index: 10, kind: output, shape index: {}]
  %s11 = sld [smem:[#allocation0]]
  $region73: #{inception1d_forward.12} parent=0
    _
  %s13 = ssub.s32 1, %s11
  %s14 = scalar_select 0, %s13, %s11
  loop: start=0, step=1, limit=4
  $region2: #{inception1d_forward.12} parent=0 // loop_pre_header
    _
  $region3: #{inception1d_forward.12} parent=0 // loop_header
    %s16 = sphi 0, %s20
    %p17 = scmp.ge.s32.totalorder %s16, 4
    %s23 = sphi 0, %s35
    %s24 = sphi 0, %s31
    %s25 = sphi 0, %s23
    %s26 = sphi 0, %s24
    %s27 = sphi 0, %s25
    %s28 = sphi 0, %s26
    %s38 = sphi 0, %s40
    %s41 = sphi 0, %s38
    %s42 = sphi 0, %s41
    %s58 = sphi 0, %s42
    %s66 = sphi 0, %s68
    %s69 = sphi 0, %s66
    %s70 = sphi 0, %s69
    %s86 = sphi 0, %s70
    %s90 = sphi 0, %s90
    %s92 = sphi 0, %s90
    %s93 = sphi 0, %s92
    %s107 = sphi 0, %s93
    %s111 = sphi 0, %s111
    %s113 = sphi 0, %s111
    %s114 = sphi 0, %s113
    %s128 = sphi 0, %s114
    %s132 = sphi 0, %s132
    %s134 = sphi 0, %s132
    %s135 = sphi 0, %s134
    %s149 = sphi 0, %s135
    %s153 = sphi 0, %s153
    %s155 = sphi 0, %s153
    %s156 = sphi 0, %s155
    %s170 = sphi 0, %s156
    %s174 = sphi 0, %s174
    %s176 = sphi 0, %s174
    %s177 = sphi 0, %s176
    %s191 = sphi 0, %s177
    %s195 = sphi 0, %s195
    %s197 = sphi 0, %s195
    %s198 = sphi 0, %s197
    %s212 = sphi 0, %s198
    %s216 = sphi 0, %s216
    %s218 = sphi 0, %s216
    %s219 = sphi 0, %s218
    %s233 = sphi 0, %s219
    %s237 = sphi 0, %s237
    %s239 = sphi 0, %s237
    %s240 = sphi 0, %s239
    %s254 = sphi 0, %s240
    %s262 = sphi 0, %s264
    %s265 = sphi 0, %s262
    %s266 = sphi 0, %s265
    %s282 = sphi 0, %s266
  $region4: #{inception1d_forward.12} parent=0 // loop_header_branch
    %19 = sbr.rel (%p17) target = $region8
  $region5: #{inception1d_forward.12} parent=0 // loop_body
    %s21 = ssub.s32 %s16, 1
    %s22 = ssub.s32 %s16, 2
    %s29 = sadd.s32 1, %s24
    %p30 = scmp.ge.s32.totalorder %s29, 1
    %s31 = scalar_select %p30, 0, %s29
    %s32 = sadd.s32 1, %s23
    %s33 = scalar_select %p30, %s32, %s23
    %p34 = scmp.ge.s32.totalorder %s33, 2
    %s35 = scalar_select %p34, 0, %s33
    %s36 = ssub.s32 %s23, %s35
    %p37 = scmp.eq.s32.totalorder %s36, 0
    %s39 = sadd.s32 %s38, 1
    %s40 = scalar_select %p37, %s38, %s39
    %p43 = pneg %p37
    %p44 = scmp.eq.s32.totalorder %s16, 1
    %p45 = por %p43, %p44
    %p46 = scmp.ne.s32.totalorder %s38, %s41
    %p47 = scmp.eq.s32.totalorder %s16, 0
    %p48 = por %p46, %p47
    %p49 = scmp.ne.s32.totalorder %s38, %s41
    %p50 = scmp.eq.s32.totalorder %s21, 1
    %p51 = por %p49, %p50
    %p52 = scmp.ne.s32.totalorder %s41, %s42
    %p53 = scmp.eq.s32.totalorder %s21, 0
    %p54 = por %p52, %p53
    %p55 = scmp.ne.s32.totalorder %s41, %s42
    %p56 = scmp.eq.s32.totalorder %s22, 1
    %p57 = por %p55, %p56
    %p59 = scmp.ne.s32.totalorder %s42, %s58
    %p60 = scmp.eq.s32.totalorder %s22, 0
    %p61 = por %p59, %p60
    %s62 = ssub.s32 %s23, %s35
    %s63 = ssub.s32 %s24, %s31
    %s64 = sor.u32 %s62, %s63
    %p65 = scmp.eq.s32.totalorder %s64, 0
    %s67 = sadd.s32 %s66, 1
    %s68 = scalar_select %p65, %s66, %s67
    %p71 = pneg %p65
    %p72 = scmp.eq.s32.totalorder %s16, 1
    %p73 = por %p71, %p72
    %p74 = scmp.ne.s32.totalorder %s66, %s69
    %p75 = scmp.eq.s32.totalorder %s16, 0
    %p76 = por %p74, %p75
    %p77 = scmp.ne.s32.totalorder %s66, %s69
    %p78 = scmp.eq.s32.totalorder %s21, 1
    %p79 = por %p77, %p78
    %p80 = scmp.ne.s32.totalorder %s69, %s70
    %p81 = scmp.eq.s32.totalorder %s21, 0
    %p82 = por %p80, %p81
    %p83 = scmp.ne.s32.totalorder %s69, %s70
    %p84 = scmp.eq.s32.totalorder %s22, 1
    %p85 = por %p83, %p84
    %p87 = scmp.ne.s32.totalorder %s70, %s86
    %p88 = scmp.eq.s32.totalorder %s22, 0
    %p89 = por %p87, %p88
    %s91 = sadd.s32 %s90, 1
    %p94 = scmp.eq.s32.totalorder %s16, 1
    %p95 = scmp.ne.s32.totalorder %s90, %s92
    %p96 = scmp.eq.s32.totalorder %s16, 0
    %p97 = por %p95, %p96
    %p98 = scmp.ne.s32.totalorder %s90, %s92
    %p99 = scmp.eq.s32.totalorder %s21, 1
    %p100 = por %p98, %p99
    %p101 = scmp.ne.s32.totalorder %s92, %s93
    %p102 = scmp.eq.s32.totalorder %s21, 0
    %p103 = por %p101, %p102
    %p104 = scmp.ne.s32.totalorder %s92, %s93
    %p105 = scmp.eq.s32.totalorder %s22, 1
    %p106 = por %p104, %p105
    %p108 = scmp.ne.s32.totalorder %s93, %s107
    %p109 = scmp.eq.s32.totalorder %s22, 0
    %p110 = por %p108, %p109
    %s112 = sadd.s32 %s111, 1
    %p115 = scmp.eq.s32.totalorder %s16, 1
    %p116 = scmp.ne.s32.totalorder %s111, %s113
    %p117 = scmp.eq.s32.totalorder %s16, 0
    %p118 = por %p116, %p117
    %p119 = scmp.ne.s32.totalorder %s111, %s113
    %p120 = scmp.eq.s32.totalorder %s21, 1
    %p121 = por %p119, %p120
    %p122 = scmp.ne.s32.totalorder %s113, %s114
    %p123 = scmp.eq.s32.totalorder %s21, 0
    %p124 = por %p122, %p123
    %p125 = scmp.ne.s32.totalorder %s113, %s114
    %p126 = scmp.eq.s32.totalorder %s22, 1
    %p127 = por %p125, %p126
    %p129 = scmp.ne.s32.totalorder %s114, %s128
    %p130 = scmp.eq.s32.totalorder %s22, 0
    %p131 = por %p129, %p130
    %s133 = sadd.s32 %s132, 1
    %p136 = scmp.eq.s32.totalorder %s16, 1
    %p137 = scmp.ne.s32.totalorder %s132, %s134
    %p138 = scmp.eq.s32.totalorder %s16, 0
    %p139 = por %p137, %p138
    %p140 = scmp.ne.s32.totalorder %s132, %s134
    %p141 = scmp.eq.s32.totalorder %s21, 1
    %p142 = por %p140, %p141
    %p143 = scmp.ne.s32.totalorder %s134, %s135
    %p144 = scmp.eq.s32.totalorder %s21, 0
    %p145 = por %p143, %p144
    %p146 = scmp.ne.s32.totalorder %s134, %s135
    %p147 = scmp.eq.s32.totalorder %s22, 1
    %p148 = por %p146, %p147
    %p150 = scmp.ne.s32.totalorder %s135, %s149
    %p151 = scmp.eq.s32.totalorder %s22, 0
    %p152 = por %p150, %p151
    %s154 = sadd.s32 %s153, 1
    %p157 = scmp.eq.s32.totalorder %s16, 1
    %p158 = scmp.ne.s32.totalorder %s153, %s155
    %p159 = scmp.eq.s32.totalorder %s16, 0
    %p160 = por %p158, %p159
    %p161 = scmp.ne.s32.totalorder %s153, %s155
    %p162 = scmp.eq.s32.totalorder %s21, 1
    %p163 = por %p161, %p162
    %p164 = scmp.ne.s32.totalorder %s155, %s156
    %p165 = scmp.eq.s32.totalorder %s21, 0
    %p166 = por %p164, %p165
    %p167 = scmp.ne.s32.totalorder %s155, %s156
    %p168 = scmp.eq.s32.totalorder %s22, 1
    %p169 = por %p167, %p168
    %p171 = scmp.ne.s32.totalorder %s156, %s170
    %p172 = scmp.eq.s32.totalorder %s22, 0
    %p173 = por %p171, %p172
    %s175 = sadd.s32 %s174, 1
    %p178 = scmp.eq.s32.totalorder %s16, 1
    %p179 = scmp.ne.s32.totalorder %s174, %s176
    %p180 = scmp.eq.s32.totalorder %s16, 0
    %p181 = por %p179, %p180
    %p182 = scmp.ne.s32.totalorder %s174, %s176
    %p183 = scmp.eq.s32.totalorder %s21, 1
    %p184 = por %p182, %p183
    %p185 = scmp.ne.s32.totalorder %s176, %s177
    %p186 = scmp.eq.s32.totalorder %s21, 0
    %p187 = por %p185, %p186
    %p188 = scmp.ne.s32.totalorder %s176, %s177
    %p189 = scmp.eq.s32.totalorder %s22, 1
    %p190 = por %p188, %p189
    %p192 = scmp.ne.s32.totalorder %s177, %s191
    %p193 = scmp.eq.s32.totalorder %s22, 0
    %p194 = por %p192, %p193
    %s196 = sadd.s32 %s195, 1
    %p199 = scmp.eq.s32.totalorder %s16, 1
    %p200 = scmp.ne.s32.totalorder %s195, %s197
    %p201 = scmp.eq.s32.totalorder %s16, 0
    %p202 = por %p200, %p201
    %p203 = scmp.ne.s32.totalorder %s195, %s197
    %p204 = scmp.eq.s32.totalorder %s21, 1
    %p205 = por %p203, %p204
    %p206 = scmp.ne.s32.totalorder %s197, %s198
    %p207 = scmp.eq.s32.totalorder %s21, 0
    %p208 = por %p206, %p207
    %p209 = scmp.ne.s32.totalorder %s197, %s198
    %p210 = scmp.eq.s32.totalorder %s22, 1
    %p211 = por %p209, %p210
    %p213 = scmp.ne.s32.totalorder %s198, %s212
    %p214 = scmp.eq.s32.totalorder %s22, 0
    %p215 = por %p213, %p214
    %s217 = sadd.s32 %s216, 1
    %p220 = scmp.eq.s32.totalorder %s16, 1
    %p221 = scmp.ne.s32.totalorder %s216, %s218
    %p222 = scmp.eq.s32.totalorder %s16, 0
    %p223 = por %p221, %p222
    %p224 = scmp.ne.s32.totalorder %s216, %s218
    %p225 = scmp.eq.s32.totalorder %s21, 1
    %p226 = por %p224, %p225
    %p227 = scmp.ne.s32.totalorder %s218, %s219
    %p228 = scmp.eq.s32.totalorder %s21, 0
    %p229 = por %p227, %p228
    %p230 = scmp.ne.s32.totalorder %s218, %s219
    %p231 = scmp.eq.s32.totalorder %s22, 1
    %p232 = por %p230, %p231
    %p234 = scmp.ne.s32.totalorder %s219, %s233
    %p235 = scmp.eq.s32.totalorder %s22, 0
    %p236 = por %p234, %p235
    %s238 = sadd.s32 %s237, 1
    %p241 = scmp.eq.s32.totalorder %s16, 1
    %p242 = scmp.ne.s32.totalorder %s237, %s239
    %p243 = scmp.eq.s32.totalorder %s16, 0
    %p244 = por %p242, %p243
    %p245 = scmp.ne.s32.totalorder %s237, %s239
    %p246 = scmp.eq.s32.totalorder %s21, 1
    %p247 = por %p245, %p246
    %p248 = scmp.ne.s32.totalorder %s239, %s240
    %p249 = scmp.eq.s32.totalorder %s21, 0
    %p250 = por %p248, %p249
    %p251 = scmp.ne.s32.totalorder %s239, %s240
    %p252 = scmp.eq.s32.totalorder %s22, 1
    %p253 = por %p251, %p252
    %p255 = scmp.ne.s32.totalorder %s240, %s254
    %p256 = scmp.eq.s32.totalorder %s22, 0
    %p257 = por %p255, %p256
    %s258 = ssub.s32 %s23, %s35
    %s259 = ssub.s32 %s24, %s31
    %s260 = sor.u32 %s258, %s259
    %p261 = scmp.eq.s32.totalorder %s260, 0
    %s263 = sadd.s32 %s262, 1
    %s264 = scalar_select %p261, %s262, %s263
    %p267 = pneg %p261
    %p268 = scmp.eq.s32.totalorder %s16, 1
    %p269 = por %p267, %p268
    %p270 = scmp.ne.s32.totalorder %s262, %s265
    %p271 = scmp.eq.s32.totalorder %s16, 0
    %p272 = por %p270, %p271
    %p273 = scmp.ne.s32.totalorder %s262, %s265
    %p274 = scmp.eq.s32.totalorder %s21, 1
    %p275 = por %p273, %p274
    %p276 = scmp.ne.s32.totalorder %s265, %s266
    %p277 = scmp.eq.s32.totalorder %s21, 0
    %p278 = por %p276, %p277
    %p279 = scmp.ne.s32.totalorder %s265, %s266
    %p280 = scmp.eq.s32.totalorder %s22, 1
    %p281 = por %p279, %p280
    %p283 = scmp.ne.s32.totalorder %s266, %s282
    %p284 = scmp.eq.s32.totalorder %s22, 0
    %p285 = por %p283, %p284
    %p286 = scmp.le.s32.totalorder 1, %s16
    %p287 = scmp.lt.s32.totalorder %s16, 3
    %p288 = pnand %p286, %p287
    %p289 = pneg %p288
    // Predicated region
    $region9: #{inception1d_forward.12} parent=5 // pred_check
      _
    $region10: #{inception1d_forward.12} parent=5 // pred_check_branch
      %291 = sbr.rel (%p288) target = $region12
    $region11: #{inception1d_forward.12} parent=5 // pred_region
      %s292 = ssub.s32 %s16, 1
      // Predicated region
      $region13: #{inception1d_forward.12} parent=11 // pred_check
        %p293 = pneg %p103
      $region14: #{inception1d_forward.12} parent=11 // pred_check_branch
        %295 = sbr.rel (%p293) target = $region16
      $region15: #{inception1d_forward.12} parent=11 // pred_region
        _
      $region16: #{inception1d_forward.12} parent=11 // pred_fallthru
        _
      // Predicated region
      $region17: #{inception1d_forward.12} parent=11 // pred_check
        %p296 = pneg %p124
      $region18: #{inception1d_forward.12} parent=11 // pred_check_branch
        %298 = sbr.rel (%p296) target = $region20
      $region19: #{inception1d_forward.12} parent=11 // pred_region
        _
      $region20: #{inception1d_forward.12} parent=11 // pred_fallthru
        _
      // Predicated region
      $region21: #{inception1d_forward.12} parent=11 // pred_check
        %p299 = pneg %p145
      $region22: #{inception1d_forward.12} parent=11 // pred_check_branch
        %301 = sbr.rel (%p299) target = $region24
      $region23: #{inception1d_forward.12} parent=11 // pred_region
        _
      $region24: #{inception1d_forward.12} parent=11 // pred_fallthru
        _
      // Predicated region
      $region25: #{inception1d_forward.12} parent=11 // pred_check
        %p302 = pneg %p166
      $region26: #{inception1d_forward.12} parent=11 // pred_check_branch
        %304 = sbr.rel (%p302) target = $region28
      $region27: #{inception1d_forward.12} parent=11 // pred_region
        _
      $region28: #{inception1d_forward.12} parent=11 // pred_fallthru
        _
      // Predicated region
      $region29: #{inception1d_forward.12} parent=11 // pred_check
        %p305 = pneg %p187
      $region30: #{inception1d_forward.12} parent=11 // pred_check_branch
        %307 = sbr.rel (%p305) target = $region32
      $region31: #{inception1d_forward.12} parent=11 // pred_region
        _
      $region32: #{inception1d_forward.12} parent=11 // pred_fallthru
        _
      // Predicated region
      $region33: #{inception1d_forward.12} parent=11 // pred_check
        %p308 = pneg %p208
      $region34: #{inception1d_forward.12} parent=11 // pred_check_branch
        %310 = sbr.rel (%p308) target = $region36
      $region35: #{inception1d_forward.12} parent=11 // pred_region
        _
      $region36: #{inception1d_forward.12} parent=11 // pred_fallthru
        _
      // Predicated region
      $region37: #{inception1d_forward.12} parent=11 // pred_check
        %p311 = pneg %p229
      $region38: #{inception1d_forward.12} parent=11 // pred_check_branch
        %313 = sbr.rel (%p311) target = $region40
      $region39: #{inception1d_forward.12} parent=11 // pred_region
        _
      $region40: #{inception1d_forward.12} parent=11 // pred_fallthru
        _
      // Predicated region
      $region41: #{inception1d_forward.12} parent=11 // pred_check
        %p314 = pneg %p250
      $region42: #{inception1d_forward.12} parent=11 // pred_check_branch
        %316 = sbr.rel (%p314) target = $region44
      $region43: #{inception1d_forward.12} parent=11 // pred_region
        _
      $region44: #{inception1d_forward.12} parent=11 // pred_fallthru
        _
    $region12: #{inception1d_forward.12} parent=5 // pred_fallthru
      _
    %p317 = scmp.lt.s32.totalorder %s16, 2
    // Predicated region
    $region45: #{inception1d_forward.12} parent=5 // pred_check
      %p318 = pneg %p317
    $region46: #{inception1d_forward.12} parent=5 // pred_check_branch
      %320 = sbr.rel (%p318) target = $region48
    $region47: #{inception1d_forward.12} parent=5 // pred_region
      // Predicated region
      $region49: #{inception1d_forward.12} parent=47 // pred_check
        %p321 = pneg %p48
      $region50: #{inception1d_forward.12} parent=47 // pred_check_branch
        %323 = sbr.rel (%p321) target = $region52
      $region51: #{inception1d_forward.12} parent=47 // pred_region
        %p324 = scmp.lt.s32.totalorder %s23, 1
        %s325 = scalar_select %p324, %s23, 1
        %s326 = smul.addr %s325, 7
        %s327 = smul.addr %s326, 4
        %s328 = scalar_lea.vmem %s0, %s327
      $region52: #{inception1d_forward.12} parent=47 // pred_fallthru
        _
      // Predicated region
      $region53: #{inception1d_forward.12} parent=47 // pred_check
        %p329 = pneg %p76
      $region54: #{inception1d_forward.12} parent=47 // pred_check_branch
        %331 = sbr.rel (%p329) target = $region56
      $region55: #{inception1d_forward.12} parent=47 // pred_region
        %s332 = smul.u32 2, %s24
        %p333 = scmp.lt.s32.totalorder %s23, 1
        %s334 = scalar_select %p333, %s23, 1
        %p335 = scmp.lt.s32.totalorder %s332, 1
        %s336 = scalar_select %p335, %s332, 1
        %s337 = smul.addr %s334, 2
        %s338 = sadd.s32 %s336, %s337
        %s339 = smul.addr %s338, 4
        %s340 = scalar_lea.vmem %s1, %s339
        %s341 = smul.u32 2, %s24
      $region56: #{inception1d_forward.12} parent=47 // pred_fallthru
        _
    $region48: #{inception1d_forward.12} parent=5 // pred_fallthru
      _
    %p342 = scmp.le.s32.totalorder 1, %s16
    %p343 = scmp.lt.s32.totalorder %s16, 3
    %p344 = pnand %p342, %p343
    %p345 = pneg %p344
    // Predicated region
    $region57: #{inception1d_forward.12} parent=5 // pred_check
      _
    $region58: #{inception1d_forward.12} parent=5 // pred_check_branch
      %347 = sbr.rel (%p344) target = $region60
    $region59: #{inception1d_forward.12} parent=5 // pred_region
      %s348 = ssub.s32 %s16, 1
      %p349 = scmp.lt.s32.totalorder %s25, 1
      %s350 = scalar_select %p349, %s25, 1
      %s351 = smul.addr %s350, 7
      %s352 = smul.addr %s351, 4
      %s353 = scalar_lea.vmem %s0, %s352
      %p354 = pneg %p54
      %p355 = pneg %p51
      %s356 = smul.u32 2, %s26
      %p357 = scmp.lt.s32.totalorder %s25, 1
      %s358 = scalar_select %p357, %s25, 1
      %p359 = scmp.lt.s32.totalorder %s356, 1
      %s360 = scalar_select %p359, %s356, 1
      %s361 = smul.addr %s358, 2
      %s362 = sadd.s32 %s360, %s361
      %s363 = smul.addr %s362, 4
      %s364 = scalar_lea.vmem %s1, %s363
      %p365 = pneg %p82
      %p366 = pneg %p79
      %p367 = pneg %p103
      %p368 = pneg %p100
      %p369 = pneg %p124
      %p370 = pneg %p121
      %p371 = pneg %p145
      %p372 = pneg %p142
      %p373 = pneg %p166
      %p374 = pneg %p163
      %p375 = pneg %p187
      %p376 = pneg %p184
      %p377 = pneg %p208
      %p378 = pneg %p205
      %p379 = pneg %p229
      %p380 = pneg %p226
      %p381 = pneg %p250
      %p382 = pneg %p247
      %p383 = pneg %p278
      %p384 = pneg %p275
      %s385 = smul.u32 2, %s26
      %p386 = scmp.lt.s32.totalorder %s25, 1
      %s387 = scalar_select %p386, %s25, 1
      %p388 = scmp.lt.s32.totalorder %s385, 1
      %s389 = scalar_select %p388, %s385, 1
      %s390 = smul.addr %s387, 2
      %s391 = sadd.s32 %s389, %s390
      %s392 = smul.addr %s391, 4
      %s393 = scalar_lea.vmem %s10, %s392
      %p394 = scmp.lt.s32.totalorder %s25, 1
      %s395 = scalar_select %p394, %s25, 1
      %s396 = smul.addr %s395, 7
      %s397 = smul.addr %s396, 4
      %s398 = scalar_lea.vmem %s0, %s397
      %s399 = smul.u32 2, %s26
      %p400 = scmp.lt.s32.totalorder %s25, 1
      %s401 = scalar_select %p400, %s25, 1
      %p402 = scmp.lt.s32.totalorder %s399, 1
      %s403 = scalar_select %p402, %s399, 1
      %s404 = smul.addr %s401, 2
      %s405 = sadd.s32 %s403, %s404
      %s406 = smul.addr %s405, 4
      %s407 = scalar_lea.vmem %s1, %s406
      %s408 = smul.u32 2, %s26
      %s409 = smul.u32 2, %s26
      %p410 = scmp.lt.s32.totalorder %s25, 1
      %s411 = scalar_select %p410, %s25, 1
      %p412 = scmp.lt.s32.totalorder %s409, 1
      %s413 = scalar_select %p412, %s409, 1
      %s414 = smul.addr %s411, 2
      %s415 = sadd.s32 %s413, %s414
      %s416 = smul.addr %s415, 4
      %s417 = scalar_lea.vmem %s10, %s416
      %s418 = smul.u32 2, %s26
      %s423 = smul.u32 %s26, 16
      %s424 = sshra.s32 %s423, 3
      %s425 = sand.u32 %s423, 7
      %s426 = smul.addr %s424, 4
      %s427 = scalar_lea.vmem %s398, %s426
      %v428 = vld [vmem:[%s427] sm:$0xf]
      %v429 = vld [vmem:[%s427 + $0x4] sm:$0xf]
      %v430 = vld [vmem:[%s427 + $0x8] sm:$0xf]
      %v431 = vld [vmem:[%s427 + $0xc] sm:$0xf]
      %v432 = vld [vmem:[%s427 + $0x10] sm:$0xf]
      %v433 = vld [vmem:[%s427 + $0x14] sm:$0xf]
      %v434 = vld [vmem:[%s427 + $0x18] sm:$0xf]
      %v435 = vld [vmem:[%s2] sm:$0xf]
      %v436 = vld [vmem:[%s2 + $0x4] sm:$0xf]
      %v437 = vld [vmem:[%s2 + $0x8] sm:$0xf]
      %v438 = vld [vmem:[%s2 + $0xc] sm:$0xf]
      %v439 = vld [vmem:[%s2 + $0x10] sm:$0xf]
      %v440 = vld [vmem:[%s2 + $0x14] sm:$0xf]
      %v441 = vld [vmem:[%s2 + $0x18] sm:$0xf]
      %v442 = vld [vmem:[%s2 + $0x1c] sm:$0xf]
      %v443 = vld [vmem:[%s2 + $0x20] sm:$0xf]
      %v444 = vld [vmem:[%s2 + $0x24] sm:$0xf]
      %v445 = vld [vmem:[%s2 + $0x28] sm:$0xf]
      %v446 = vld [vmem:[%s2 + $0x2c] sm:$0xf]
      %v447 = vld [vmem:[%s2 + $0x30] sm:$0xf]
      %v448 = vld [vmem:[%s2 + $0x34] sm:$0xf]
      %v449 = vld [vmem:[%s2 + $0x38] sm:$0xf]
      %v450 = vld [vmem:[%s2 + $0x3c] sm:$0xf]
      %v458 = vunpack.c.l.b16 %v428
      %v459 = vunpack.c.l.b16 %v429
      %v460 = vunpack.c.l.b16 %v430
      %v461 = vunpack.c.l.b16 %v431
      %v462 = vunpack.c.l.b16 %v432
      %v463 = vunpack.c.l.b16 %v433
      %v464 = vunpack.c.l.b16 %v434
      %v465 = vpack.c.b16 %v459, %v458
      %v466 = vpack.c.b16 %v461, %v460
      %v467 = vpack.c.b16 %v463, %v462
      %v468 = vpack.c.b16 %v464, %v464
      %v489 = vunpack.c.l.b16 %v435
      %v490 = vunpack.c.l.b16 %v436
      %v491 = vunpack.c.l.b16 %v437
      %v492 = vunpack.c.l.b16 %v438
      %v493 = vunpack.c.l.b16 %v439
      %v494 = vunpack.c.l.b16 %v440
      %v495 = vunpack.c.l.b16 %v441
      %v496 = vunpack.c.l.b16 %v442
      %v497 = vunpack.c.l.b16 %v443
      %v498 = vunpack.c.l.b16 %v444
      %v499 = vunpack.c.l.b16 %v445
      %v500 = vunpack.c.l.b16 %v446
      %v501 = vunpack.c.l.b16 %v447
      %v502 = vunpack.c.l.b16 %v448
      %v503 = vunpack.c.l.b16 %v449
      %v504 = vunpack.c.l.b16 %v450
      %v505 = vpack.c.b16 %v490, %v489
      %v506 = vpack.c.b16 %v492, %v491
      %v507 = vpack.c.b16 %v494, %v493
      %v508 = vpack.c.b16 %v496, %v495
      %v509 = vpack.c.b16 %v498, %v497
      %v510 = vpack.c.b16 %v500, %v499
      %v511 = vpack.c.b16 %v502, %v501
      %v512 = vpack.c.b16 %v504, %v503
      %521 = vmatprep.subr.bf16.mxu0 0
      %522 = vmatpush1.bf16.msra.mxu0 %v505
      %523 = vmatprep.subr.bf16.mxu0 0
      %524 = vmatpush1.bf16.msra.mxu0 %v506
      %525 = vmatprep.subr.bf16.mxu0 0
      %526 = vmatpush1.bf16.msra.mxu0 %v507
      %527 = vmatprep.subr.bf16.mxu0 0
      %528 = vmatpush1.bf16.msra.mxu0 %v508
      %529 = vmatprep.subr.bf16.mxu0 0
      %530 = vmatpush1.bf16.msra.mxu0 %v509
      %531 = vmatprep.subr.bf16.mxu0 0
      %532 = vmatpush1.bf16.msra.mxu0 %v510
      %533 = vmatprep.subr.bf16.mxu0 0
      %534 = vmatpush1.bf16.msra.mxu0 %v511
      %535 = vmatprep.subr.bf16.mxu0 0
      %536 = vmatpush1.bf16.msra.mxu0 %v512
      %537 = vmatprep.subr.bf16.mxu0 0
      %538 = vmatpush1.bf16.msra.mxu0 0
      %539 = vmatprep.subr.bf16.mxu0 0
      %540 = vmatpush1.bf16.msra.mxu0 0
      %541 = vmatprep.subr.bf16.mxu0 0
      %542 = vmatpush1.bf16.msra.mxu0 0
      %543 = vmatprep.subr.bf16.mxu0 0
      %544 = vmatpush1.bf16.msra.mxu0 0
      %545 = vmatprep.subr.bf16.mxu0 0
      %546 = vmatpush1.bf16.msra.mxu0 0
      %547 = vmatprep.subr.bf16.mxu0 0
      %548 = vmatpush1.bf16.msra.mxu0 0
      %549 = vmatprep.subr.bf16.mxu0 0
      %550 = vmatpush1.bf16.msra.mxu0 0
      %551 = vmatprep.subr.bf16.mxu0 0
      %552 = vmatpush1.bf16.msra.mxu0 0
      %553 = vmatprep.mubr.bf16.mxu0 0
      %554 = vmatmul.mubr.bf16.gmra.mrb[0].mxu0 %v465
      %v555 = vpop.f32.mrb[0].mxu0
      %v556 = vadd.f32 0.0, %v555
      %v557 = vpop.f32.mrb[0].mxu0
      %v558 = vpop.f32.mrb[0].mxu0
      %v559 = vadd.f32 0.0, %v558
      %v560 = vpop.f32.mrb[0].mxu0
      %561 = vmatprep.mubr.bf16.mxu0 0
      %562 = vmatmul.mubr.bf16.gmra.mrb[0].mxu0 %v466
      %v563 = vpop.f32.mrb[0].mxu0
      %v564 = vadd.f32 0.0, %v563
      %v565 = vpop.f32.mrb[0].mxu0
      %v566 = vpop.f32.mrb[0].mxu0
      %v567 = vadd.f32 0.0, %v566
      %v568 = vpop.f32.mrb[0].mxu0
      %569 = vmatprep.mubr.bf16.mxu0 0
      %570 = vmatmul.mubr.bf16.gmra.mrb[0].mxu0 %v467
      %v571 = vpop.f32.mrb[0].mxu0
      %v572 = vadd.f32 0.0, %v571
      %v573 = vpop.f32.mrb[0].mxu0
      %v574 = vpop.f32.mrb[0].mxu0
      %v575 = vadd.f32 0.0, %v574
      %v576 = vpop.f32.mrb[0].mxu0
      %577 = vmatprep.mubr.bf16.mxu0 0
      %578 = vmatmul.mubr.bf16.gmra.mrb[0].mxu0 %v468
      %v579 = vpop.f32.mrb[0].mxu0
      %v580 = vadd.f32 0.0, %v579
      %v581 = vpop.f32.mrb[0].mxu0
      %v582 = vpop.f32.mrb[0].mxu0
      %v583 = vpop.f32.mrb[0].mxu0
      %584 = vdwg.mxu0
      %v585 = vpack.c.bf16 %v559, %v556
      %v586 = vpack.c.bf16 %v567, %v564
      %v587 = vpack.c.bf16 %v575, %v572
      %v588 = vpack.c.bf16 %v580, %v580
      %vm589 = vsmask.f32 7424
      %v591 = vshrl.u32 %v585, 16
      %v593 = vshll.u32 %v585, 16
      %v595 = vrot.slane %v593, 1
      %v596 = vor.u32 %v591, %v595
      %v598 = vshll.u32 %v586, 16
      %v600 = vrot.slane %v598, 1
      %v601 = vsel %vm589, %v596, %v600
      %v602 = vshrl.u32 %v586, 16
      %604 = vrot.lane.b32.xlu0 %v601, 32
      %v605 = vpop.permute.xlu0 %604
      %606 = vrot.lane.b32.xlu0 %v602, 32
      %v607 = vpop.permute.xlu0 %606
      %vm610 = vcmask 1046528
      %v611 = vrot.slane %v585, 1
      %v612 = vrot.slane %v586, 1
      %v613 = vsel %vm610, %v611, %v612
      %614 = vrot.lane.b32.xlu0 %v613, 64
      %v615 = vpop.permute.xlu0 %614
      %616 = vrot.lane.b32.xlu0 %v612, 64
      %v617 = vpop.permute.xlu0 %616
      %vm618 = vsmask.f32 6400
      %v619 = vrot.slane %v591, 1
      %v620 = vrot.slane %v593, 2
      %v621 = vor.u32 %v619, %v620
      %v622 = vrot.slane %v602, 1
      %v623 = vrot.slane %v598, 2
      %v624 = vor.u32 %v622, %v623
      %v625 = vsel %vm618, %v621, %v624
      %626 = vrot.lane.b32.xlu0 %v625, 96
      %v627 = vpop.permute.xlu0 %626
      %628 = vrot.lane.b32.xlu0 %v622, 96
      %v629 = vpop.permute.xlu0 %628
      %vm630 = vcmask 1045504
      %v631 = vrot.slane %v585, 2
      %v632 = vrot.slane %v586, 2
      %v633 = vsel %vm630, %v631, %v632
      %vm634 = vsmask.f32 5376
      %v635 = vrot.slane %v591, 2
      %v636 = vrot.slane %v593, 3
      %v637 = vor.u32 %v635, %v636
      %v638 = vrot.slane %v602, 2
      %v639 = vrot.slane %v598, 3
      %v640 = vor.u32 %v638, %v639
      %v641 = vsel %vm634, %v637, %v640
      %642 = vrot.lane.b32.xlu0 %v641, 32
      %v643 = vpop.permute.xlu0 %642
      %644 = vrot.lane.b32.xlu0 %v638, 32
      %v645 = vpop.permute.xlu0 %644
      %vm646 = vcmask 1044480
      %v647 = vrot.slane %v585, 3
      %v648 = vrot.slane %v586, 3
      %v649 = vsel %vm646, %v647, %v648
      %650 = vrot.lane.b32.xlu0 %v649, 64
      %v651 = vpop.permute.xlu0 %650
      %652 = vrot.lane.b32.xlu0 %v648, 64
      %v653 = vpop.permute.xlu0 %652
      %vm654 = vsmask.f32 4352
      %v655 = vrot.slane %v591, 3
      %v656 = vrot.slane %v593, 4
      %v657 = vor.u32 %v655, %v656
      %v658 = vrot.slane %v602, 3
      %v659 = vrot.slane %v598, 4
      %v660 = vor.u32 %v658, %v659
      %v661 = vsel %vm654, %v657, %v660
      %662 = vrot.lane.b32.xlu0 %v661, 96
      %v663 = vpop.permute.xlu0 %662
      %664 = vrot.lane.b32.xlu0 %v658, 96
      %v665 = vpop.permute.xlu0 %664
      %vm666 = vcmask 1043456
      %v667 = vrot.slane %v585, 4
      %v668 = vrot.slane %v586, 4
      %v669 = vsel %vm666, %v667, %v668
      %vm670 = vsmask.f32 3328
      %v671 = vrot.slane %v591, 4
      %v672 = vrot.slane %v593, 5
      %v673 = vor.u32 %v671, %v672
      %v674 = vrot.slane %v602, 4
      %v675 = vrot.slane %v598, 5
      %v676 = vor.u32 %v674, %v675
      %v677 = vsel %vm670, %v673, %v676
      %678 = vrot.lane.b32.xlu0 %v677, 32
      %v679 = vpop.permute.xlu0 %678
      %680 = vrot.lane.b32.xlu0 %v674, 32
      %v681 = vpop.permute.xlu0 %680
      %vm682 = vcmask 1042432
      %v683 = vrot.slane %v585, 5
      %v684 = vrot.slane %v586, 5
      %v685 = vsel %vm682, %v683, %v684
      %686 = vrot.lane.b32.xlu0 %v685, 64
      %v687 = vpop.permute.xlu0 %686
      %688 = vrot.lane.b32.xlu0 %v684, 64
      %v689 = vpop.permute.xlu0 %688
      %vm690 = vsmask.f32 2304
      %v691 = vrot.slane %v591, 5
      %v692 = vrot.slane %v593, 6
      %v693 = vor.u32 %v691, %v692
      %v694 = vrot.slane %v602, 5
      %v695 = vrot.slane %v598, 6
      %v696 = vor.u32 %v694, %v695
      %v697 = vsel %vm690, %v693, %v696
      %698 = vrot.lane.b32.xlu0 %v697, 96
      %v699 = vpop.permute.xlu0 %698
      %700 = vrot.lane.b32.xlu0 %v694, 96
      %v701 = vpop.permute.xlu0 %700
      %vm702 = vcmask 1041408
      %v703 = vrot.slane %v585, 6
      %v704 = vrot.slane %v586, 6
      %v705 = vsel %vm702, %v703, %v704
      %vm706 = vsmask.f32 1280
      %v707 = vrot.slane %v591, 6
      %v708 = vrot.slane %v593, 7
      %v709 = vor.u32 %v707, %v708
      %v710 = vrot.slane %v602, 6
      %v711 = vrot.slane %v598, 7
      %v712 = vor.u32 %v710, %v711
      %v713 = vsel %vm706, %v709, %v712
      %714 = vrot.lane.b32.xlu0 %v713, 32
      %v715 = vpop.permute.xlu0 %714
      %716 = vrot.lane.b32.xlu0 %v710, 32
      %v717 = vpop.permute.xlu0 %716
      %vm718 = vcmask 1040384
      %v719 = vrot.slane %v585, 7
      %v720 = vrot.slane %v586, 7
      %v721 = vsel %vm718, %v719, %v720
      %722 = vrot.lane.b32.xlu0 %v721, 64
      %v723 = vpop.permute.xlu0 %722
      %724 = vrot.lane.b32.xlu0 %v720, 64
      %v725 = vpop.permute.xlu0 %724
      %v726 = vrot.slane %v602, 7
      %v727 = vor.u32 %v726, %v598
      %728 = vrot.lane.b32.xlu0 %v727, 96
      %v729 = vpop.permute.xlu0 %728
      %730 = vrot.lane.b32.xlu0 %v726, 96
      %v731 = vpop.permute.xlu0 %730
      %vm732 = vcmask 261120
      %v734 = vsel %vm732, %v585, %v605
      %v736 = vsel %vm732, %v586, %v607
      %vm737 = vcmask 523264
      %v739 = vsel %vm737, %v734, %v615
      %v741 = vsel %vm737, %v736, %v617
      %vm742 = vcmask 785408
      %v744 = vsel %vm742, %v739, %v627
      %v746 = vsel %vm742, %v741, %v629
      %v749 = vsel %vm732, %v633, %v643
      %v752 = vsel %vm732, %v632, %v645
      %v754 = vsel %vm737, %v749, %v651
      %v756 = vsel %vm737, %v752, %v653
      %v758 = vsel %vm742, %v754, %v663
      %v760 = vsel %vm742, %v756, %v665
      %v763 = vsel %vm732, %v669, %v679
      %v766 = vsel %vm732, %v668, %v681
      %v768 = vsel %vm737, %v763, %v687
      %v770 = vsel %vm737, %v766, %v689
      %v772 = vsel %vm742, %v768, %v699
      %v774 = vsel %vm742, %v770, %v701
      %v777 = vsel %vm732, %v705, %v715
      %v780 = vsel %vm732, %v704, %v717
      %v782 = vsel %vm737, %v777, %v723
      %v784 = vsel %vm737, %v780, %v725
      %v786 = vsel %vm742, %v782, %v729
      %v788 = vsel %vm742, %v784, %v731
      %v789 = vor.u32 %v602, %v600
      %v791 = vshll.u32 %v587, 16
      %v793 = vrot.slane %v791, 1
      %v794 = vsel %vm589, %v789, %v793
      %v795 = vshrl.u32 %v587, 16
      %797 = vrot.lane.b32.xlu0 %v794, 32
      %v798 = vpop.permute.xlu0 %797
      %799 = vrot.lane.b32.xlu0 %v795, 32
      %v800 = vpop.permute.xlu0 %799
      %v802 = vrot.slane %v587, 1
      %v803 = vsel %vm610, %v612, %v802
      %804 = vrot.lane.b32.xlu0 %v803, 64
      %v805 = vpop.permute.xlu0 %804
      %806 = vrot.lane.b32.xlu0 %v802, 64
      %v807 = vpop.permute.xlu0 %806
      %v808 = vrot.slane %v795, 1
      %v809 = vrot.slane %v791, 2
      %v810 = vor.u32 %v808, %v809
      %v811 = vsel %vm618, %v624, %v810
      %812 = vrot.lane.b32.xlu0 %v811, 96
      %v813 = vpop.permute.xlu0 %812
      %814 = vrot.lane.b32.xlu0 %v808, 96
      %v815 = vpop.permute.xlu0 %814
      %v816 = vrot.slane %v587, 2
      %v817 = vsel %vm630, %v632, %v816
      %v818 = vrot.slane %v795, 2
      %v819 = vrot.slane %v791, 3
      %v820 = vor.u32 %v818, %v819
      %v821 = vsel %vm634, %v640, %v820
      %822 = vrot.lane.b32.xlu0 %v821, 32
      %v823 = vpop.permute.xlu0 %822
      %824 = vrot.lane.b32.xlu0 %v818, 32
      %v825 = vpop.permute.xlu0 %824
      %v826 = vrot.slane %v587, 3
      %v827 = vsel %vm646, %v648, %v826
      %828 = vrot.lane.b32.xlu0 %v827, 64
      %v829 = vpop.permute.xlu0 %828
      %830 = vrot.lane.b32.xlu0 %v826, 64
      %v831 = vpop.permute.xlu0 %830
      %v832 = vrot.slane %v795, 3
      %v833 = vrot.slane %v791, 4
      %v834 = vor.u32 %v832, %v833
      %v835 = vsel %vm654, %v660, %v834
      %836 = vrot.lane.b32.xlu0 %v835, 96
      %v837 = vpop.permute.xlu0 %836
      %838 = vrot.lane.b32.xlu0 %v832, 96
      %v839 = vpop.permute.xlu0 %838
      %v840 = vrot.slane %v587, 4
      %v841 = vsel %vm666, %v668, %v840
      %v842 = vrot.slane %v795, 4
      %v843 = vrot.slane %v791, 5
      %v844 = vor.u32 %v842, %v843
      %v845 = vsel %vm670, %v676, %v844
      %846 = vrot.lane.b32.xlu0 %v845, 32
      %v847 = vpop.permute.xlu0 %846
      %848 = vrot.lane.b32.xlu0 %v842, 32
      %v849 = vpop.permute.xlu0 %848
      %v850 = vrot.slane %v587, 5
      %v851 = vsel %vm682, %v684, %v850
      %852 = vrot.lane.b32.xlu0 %v851, 64
      %v853 = vpop.permute.xlu0 %852
      %854 = vrot.lane.b32.xlu0 %v850, 64
      %v855 = vpop.permute.xlu0 %854
      %v856 = vrot.slane %v795, 5
      %v857 = vrot.slane %v791, 6
      %v858 = vor.u32 %v856, %v857
      %v859 = vsel %vm690, %v696, %v858
      %860 = vrot.lane.b32.xlu0 %v859, 96
      %v861 = vpop.permute.xlu0 %860
      %862 = vrot.lane.b32.xlu0 %v856, 96
      %v863 = vpop.permute.xlu0 %862
      %v864 = vrot.slane %v587, 6
      %v865 = vsel %vm702, %v704, %v864
      %v866 = vrot.slane %v795, 6
      %v867 = vrot.slane %v791, 7
      %v868 = vor.u32 %v866, %v867
      %v869 = vsel %vm706, %v712, %v868
      %870 = vrot.lane.b32.xlu0 %v869, 32
      %v871 = vpop.permute.xlu0 %870
      %872 = vrot.lane.b32.xlu0 %v866, 32
      %v873 = vpop.permute.xlu0 %872
      %v874 = vrot.slane %v587, 7
      %v875 = vsel %vm718, %v720, %v874
      %876 = vrot.lane.b32.xlu0 %v875, 64
      %v877 = vpop.permute.xlu0 %876
      %878 = vrot.lane.b32.xlu0 %v874, 64
      %v879 = vpop.permute.xlu0 %878
      %v880 = vrot.slane %v795, 7
      %v881 = vor.u32 %v880, %v791
      %882 = vrot.lane.b32.xlu0 %v881, 96
      %v883 = vpop.permute.xlu0 %882
      %884 = vrot.lane.b32.xlu0 %v880, 96
      %v885 = vpop.permute.xlu0 %884
      %v887 = vsel %vm732, %v586, %v798
      %v889 = vsel %vm732, %v587, %v800
      %v891 = vsel %vm737, %v887, %v805
      %v893 = vsel %vm737, %v889, %v807
      %v895 = vsel %vm742, %v891, %v813
      %v897 = vsel %vm742, %v893, %v815
      %v900 = vsel %vm732, %v817, %v823
      %v903 = vsel %vm732, %v816, %v825
      %v905 = vsel %vm737, %v900, %v829
      %v907 = vsel %vm737, %v903, %v831
      %v909 = vsel %vm742, %v905, %v837
      %v911 = vsel %vm742, %v907, %v839
      %v914 = vsel %vm732, %v841, %v847
      %v917 = vsel %vm732, %v840, %v849
      %v919 = vsel %vm737, %v914, %v853
      %v921 = vsel %vm737, %v917, %v855
      %v923 = vsel %vm742, %v919, %v861
      %v925 = vsel %vm742, %v921, %v863
      %v928 = vsel %vm732, %v865, %v871
      %v931 = vsel %vm732, %v864, %v873
      %v933 = vsel %vm737, %v928, %v877
      %v935 = vsel %vm737, %v931, %v879
      %v937 = vsel %vm742, %v933, %v883
      %v939 = vsel %vm742, %v935, %v885
      %v940 = vor.u32 %v795, %v793
      %v942 = vshll.u32 %v588, 16
      %v944 = vrot.slane %v942, 1
      %v945 = vsel %vm589, %v940, %v944
      %v946 = vshrl.u32 %v588, 16
      %948 = vrot.lane.b32.xlu0 %v945, 32
      %v949 = vpop.permute.xlu0 %948
      %950 = vrot.lane.b32.xlu0 %v946, 32
      %v951 = vpop.permute.xlu0 %950
      %v953 = vrot.slane %v588, 1
      %v954 = vsel %vm610, %v802, %v953
      %955 = vrot.lane.b32.xlu0 %v954, 64
      %v956 = vpop.permute.xlu0 %955
      %957 = vrot.lane.b32.xlu0 %v953, 64
      %v958 = vpop.permute.xlu0 %957
      %v959 = vrot.slane %v946, 1
      %v960 = vrot.slane %v942, 2
      %v961 = vor.u32 %v959, %v960
      %v962 = vsel %vm618, %v810, %v961
      %963 = vrot.lane.b32.xlu0 %v962, 96
      %v964 = vpop.permute.xlu0 %963
      %965 = vrot.lane.b32.xlu0 %v959, 96
      %v966 = vpop.permute.xlu0 %965
      %v967 = vrot.slane %v588, 2
      %v968 = vsel %vm630, %v816, %v967
      %v969 = vrot.slane %v946, 2
      %v970 = vrot.slane %v942, 3
      %v971 = vor.u32 %v969, %v970
      %v972 = vsel %vm634, %v820, %v971
      %973 = vrot.lane.b32.xlu0 %v972, 32
      %v974 = vpop.permute.xlu0 %973
      %975 = vrot.lane.b32.xlu0 %v969, 32
      %v976 = vpop.permute.xlu0 %975
      %v977 = vrot.slane %v588, 3
      %v978 = vsel %vm646, %v826, %v977
      %979 = vrot.lane.b32.xlu0 %v978, 64
      %v980 = vpop.permute.xlu0 %979
      %981 = vrot.lane.b32.xlu0 %v977, 64
      %v982 = vpop.permute.xlu0 %981
      %v983 = vrot.slane %v946, 3
      %v984 = vrot.slane %v942, 4
      %v985 = vor.u32 %v983, %v984
      %v986 = vsel %vm654, %v834, %v985
      %987 = vrot.lane.b32.xlu0 %v986, 96
      %v988 = vpop.permute.xlu0 %987
      %989 = vrot.lane.b32.xlu0 %v983, 96
      %v990 = vpop.permute.xlu0 %989
      %v992 = vsel %vm732, %v587, %v949
      %v994 = vsel %vm732, %v588, %v951
      %v996 = vsel %vm737, %v992, %v956
      %v998 = vsel %vm737, %v994, %v958
      %v1000 = vsel %vm742, %v996, %v964
      %v1002 = vsel %vm742, %v998, %v966
      %v1005 = vsel %vm732, %v968, %v974
      %v1008 = vsel %vm732, %v967, %v976
      %v1010 = vsel %vm737, %v1005, %v980
      %v1012 = vsel %vm737, %v1008, %v982
      %v1014 = vsel %vm742, %v1010, %v988
      %v1016 = vsel %vm742, %v1012, %v990
      %v1017 = vld [vmem:[%s3] sm:$0xf]
      %v1018 = vld [vmem:[%s3 + $0x4] sm:$0xf]
      %v1019 = vld [vmem:[%s3 + $0x8] sm:$0xf]
      %v1020 = vld [vmem:[%s3 + $0xc] sm:$0xf]
      %v1021 = vld [vmem:[%s3 + $0x10] sm:$0xf]
      %v1022 = vld [vmem:[%s3 + $0x14] sm:$0xf]
      %v1023 = vld [vmem:[%s3 + $0x18] sm:$0xf]
      %v1024 = vld [vmem:[%s3 + $0x1c] sm:$0xf]
      %v1025 = vld [vmem:[%s3 + $0x20] sm:$0xf]
      %v1026 = vld [vmem:[%s3 + $0x24] sm:$0xf]
      %v1027 = vld [vmem:[%s3 + $0x28] sm:$0xf]
      %v1028 = vld [vmem:[%s3 + $0x2c] sm:$0xf]
      %v1029 = vld [vmem:[%s3 + $0x30] sm:$0xf]
      %v1030 = vld [vmem:[%s3 + $0x34] sm:$0xf]
      %v1031 = vld [vmem:[%s3 + $0x38] sm:$0xf]
      %v1032 = vld [vmem:[%s3 + $0x3c] sm:$0xf]
      %v1033 = vld [vmem:[%s3 + $0x40] sm:$0xf]
      %v1034 = vld [vmem:[%s3 + $0x44] sm:$0xf]
      %v1035 = vld [vmem:[%s3 + $0x48] sm:$0xf]
      %v1036 = vld [vmem:[%s3 + $0x4c] sm:$0xf]
      %v1037 = vld [vmem:[%s3 + $0x50] sm:$0xf]
      %v1038 = vld [vmem:[%s3 + $0x54] sm:$0xf]
      %v1039 = vld [vmem:[%s3 + $0x58] sm:$0xf]
      %v1040 = vld [vmem:[%s3 + $0x5c] sm:$0xf]
      %v1041 = vld [vmem:[%s3 + $0x60] sm:$0xf]
      %v1042 = vld [vmem:[%s3 + $0x64] sm:$0xf]
      %v1043 = vld [vmem:[%s3 + $0x68] sm:$0xf]
      %v1044 = vld [vmem:[%s3 + $0x6c] sm:$0xf]
      %v1045 = vld [vmem:[%s3 + $0x70] sm:$0xf]
      %v1046 = vld [vmem:[%s3 + $0x74] sm:$0xf]
      %v1047 = vld [vmem:[%s3 + $0x78] sm:$0xf]
      %v1048 = vld [vmem:[%s3 + $0x7c] sm:$0xf]
      %v1049 = vld [vmem:[%s3 + $0x80] sm:$0xf]
      %v1050 = vld [vmem:[%s3 + $0x84] sm:$0xf]
      %v1051 = vld [vmem:[%s3 + $0x88] sm:$0xf]
      %v1052 = vld [vmem:[%s3 + $0x8c] sm:$0xf]
      %v1053 = vld [vmem:[%s3 + $0x90] sm:$0xf]
      %v1054 = vld [vmem:[%s3 + $0x94] sm:$0xf]
      %v1055 = vld [vmem:[%s3 + $0x98] sm:$0xf]
      %v1056 = vld [vmem:[%s3 + $0x9c] sm:$0xf]
      %v1057 = vld [vmem:[%s3 + $0xa0] sm:$0xf]
      %v1058 = vld [vmem:[%s3 + $0xa4] sm:$0xf]
      %v1059 = vld [vmem:[%s3 + $0xa8] sm:$0xf]
      %v1060 = vld [vmem:[%s3 + $0xac] sm:$0xf]
      %v1061 = vld [vmem:[%s3 + $0xb0] sm:$0xf]
      %v1062 = vld [vmem:[%s3 + $0xb4] sm:$0xf]
      %v1063 = vld [vmem:[%s3 + $0xb8] sm:$0xf]
      %v1064 = vld [vmem:[%s3 + $0xbc] sm:$0xf]
      %v1065 = vld [vmem:[%s3 + $0xc0] sm:$0xf]
      %v1066 = vld [vmem:[%s3 + $0xc4] sm:$0xf]
      %v1067 = vld [vmem:[%s3 + $0xc8] sm:$0xf]
      %v1068 = vld [vmem:[%s3 + $0xcc] sm:$0xf]
      %v1069 = vld [vmem:[%s3 + $0xd0] sm:$0xf]
      %v1070 = vld [vmem:[%s3 + $0xd4] sm:$0xf]
      %v1071 = vld [vmem:[%s3 + $0xd8] sm:$0xf]
      %v1072 = vld [vmem:[%s3 + $0xdc] sm:$0xf]
      %v1073 = vld [vmem:[%s3 + $0xe0] sm:$0xf]
      %v1074 = vld [vmem:[%s3 + $0xe4] sm:$0xf]
      %v1075 = vld [vmem:[%s3 + $0xe8] sm:$0xf]
      %v1076 = vld [vmem:[%s3 + $0xec] sm:$0xf]
      %v1077 = vld [vmem:[%s3 + $0xf0] sm:$0xf]
      %v1078 = vld [vmem:[%s3 + $0xf4] sm:$0xf]
      %v1079 = vld [vmem:[%s3 + $0xf8] sm:$0xf]
      %v1080 = vld [vmem:[%s3 + $0xfc] sm:$0xf]
      %v1081 = vld [vmem:[%s3 + $0x100] sm:$0xf]
      %v1082 = vld [vmem:[%s3 + $0x104] sm:$0xf]
      %v1083 = vld [vmem:[%s3 + $0x108] sm:$0xf]
      %v1084 = vld [vmem:[%s3 + $0x10c] sm:$0xf]
      %v1085 = vld [vmem:[%s3 + $0x110] sm:$0xf]
      %v1086 = vld [vmem:[%s3 + $0x114] sm:$0xf]
      %v1087 = vld [vmem:[%s3 + $0x118] sm:$0xf]
      %v1088 = vld [vmem:[%s3 + $0x11c] sm:$0xf]
      %v1089 = vld [vmem:[%s3 + $0x120] sm:$0xf]
      %v1090 = vld [vmem:[%s3 + $0x124] sm:$0xf]
      %v1091 = vld [vmem:[%s3 + $0x128] sm:$0xf]
      %v1092 = vld [vmem:[%s3 + $0x12c] sm:$0xf]
      %v1093 = vld [vmem:[%s3 + $0x130] sm:$0xf]
      %v1094 = vld [vmem:[%s3 + $0x134] sm:$0xf]
      %v1095 = vld [vmem:[%s3 + $0x138] sm:$0xf]
      %v1096 = vld [vmem:[%s3 + $0x13c] sm:$0xf]
      %v1097 = vld [vmem:[%s3 + $0x140] sm:$0xf]
      %v1098 = vld [vmem:[%s3 + $0x144] sm:$0xf]
      %v1099 = vld [vmem:[%s3 + $0x148] sm:$0xf]
      %v1100 = vld [vmem:[%s3 + $0x14c] sm:$0xf]
      %v1101 = vld [vmem:[%s3 + $0x150] sm:$0xf]
      %v1102 = vld [vmem:[%s3 + $0x154] sm:$0xf]
      %v1103 = vld [vmem:[%s3 + $0x158] sm:$0xf]
      %v1104 = vld [vmem:[%s3 + $0x15c] sm:$0xf]
      %v1105 = vld [vmem:[%s3 + $0x160] sm:$0xf]
      %v1106 = vld [vmem:[%s3 + $0x164] sm:$0xf]
      %v1107 = vld [vmem:[%s3 + $0x168] sm:$0xf]
      %v1108 = vld [vmem:[%s3 + $0x16c] sm:$0xf]
      %v1109 = vld [vmem:[%s3 + $0x170] sm:$0xf]
      %v1110 = vld [vmem:[%s3 + $0x174] sm:$0xf]
      %v1111 = vld [vmem:[%s3 + $0x178] sm:$0xf]
      %v1112 = vld [vmem:[%s3 + $0x17c] sm:$0xf]
      %v1113 = vld [vmem:[%s3 + $0x180] sm:$0xf]
      %v1114 = vld [vmem:[%s3 + $0x184] sm:$0xf]
      %v1115 = vld [vmem:[%s3 + $0x188] sm:$0xf]
      %v1116 = vld [vmem:[%s3 + $0x18c] sm:$0xf]
      %v1117 = vld [vmem:[%s3 + $0x190] sm:$0xf]
      %v1118 = vld [vmem:[%s3 + $0x194] sm:$0xf]
      %v1119 = vld [vmem:[%s3 + $0x198] sm:$0xf]
      %v1120 = vld [vmem:[%s3 + $0x19c] sm:$0xf]
      %v1121 = vld [vmem:[%s3 + $0x1a0] sm:$0xf]
      %v1122 = vld [vmem:[%s3 + $0x1a4] sm:$0xf]
      %v1123 = vld [vmem:[%s3 + $0x1a8] sm:$0xf]
      %v1124 = vld [vmem:[%s3 + $0x1ac] sm:$0xf]
      %v1125 = vld [vmem:[%s3 + $0x1b0] sm:$0xf]
      %v1126 = vld [vmem:[%s3 + $0x1b4] sm:$0xf]
      %v1127 = vld [vmem:[%s3 + $0x1b8] sm:$0xf]
      %v1128 = vld [vmem:[%s3 + $0x1bc] sm:$0xf]
      %v1129 = vld [vmem:[%s3 + $0x1c0] sm:$0xf]
      %v1130 = vld [vmem:[%s3 + $0x1c4] sm:$0xf]
      %v1131 = vld [vmem:[%s3 + $0x1c8] sm:$0xf]
      %v1132 = vld [vmem:[%s3 + $0x1cc] sm:$0xf]
      %v1133 = vld [vmem:[%s3 + $0x1d0] sm:$0xf]
      %v1134 = vld [vmem:[%s3 + $0x1d4] sm:$0xf]
      %v1135 = vld [vmem:[%s3 + $0x1d8] sm:$0xf]
      %v1136 = vld [vmem:[%s3 + $0x1dc] sm:$0xf]
      %v1137 = vld [vmem:[%s3 + $0x1e0] sm:$0xf]
      %v1138 = vld [vmem:[%s3 + $0x1e4] sm:$0xf]
      %v1139 = vld [vmem:[%s3 + $0x1e8] sm:$0xf]
      %v1140 = vld [vmem:[%s3 + $0x1ec] sm:$0xf]
      %v1141 = vld [vmem:[%s3 + $0x1f0] sm:$0xf]
      %v1142 = vld [vmem:[%s3 + $0x1f4] sm:$0xf]
      %v1143 = vld [vmem:[%s3 + $0x1f8] sm:$0xf]
      %v1144 = vld [vmem:[%s3 + $0x1fc] sm:$0xf]
      %v1145 = vld [vmem:[%s3 + $0x200] sm:$0xf]
      %v1146 = vld [vmem:[%s3 + $0x204] sm:$0xf]
      %v1147 = vld [vmem:[%s3 + $0x208] sm:$0xf]
      %v1148 = vld [vmem:[%s3 + $0x20c] sm:$0xf]
      %v1149 = vld [vmem:[%s3 + $0x210] sm:$0xf]
      %v1150 = vld [vmem:[%s3 + $0x214] sm:$0xf]
      %v1151 = vld [vmem:[%s3 + $0x218] sm:$0xf]
      %v1152 = vld [vmem:[%s3 + $0x21c] sm:$0xf]
      %v1153 = vld [vmem:[%s3 + $0x220] sm:$0xf]
      %v1154 = vld [vmem:[%s3 + $0x224] sm:$0xf]
      %v1155 = vld [vmem:[%s3 + $0x228] sm:$0xf]
      %v1156 = vld [vmem:[%s3 + $0x22c] sm:$0xf]
      %v1157 = vld [vmem:[%s3 + $0x230] sm:$0xf]
      %v1158 = vld [vmem:[%s3 + $0x234] sm:$0xf]
      %v1159 = vld [vmem:[%s3 + $0x238] sm:$0xf]
      %v1160 = vld [vmem:[%s3 + $0x23c] sm:$0xf]
      %v1161 = vld [vmem:[%s3 + $0x240] sm:$0xf]
      %v1162 = vld [vmem:[%s3 + $0x244] sm:$0xf]
      %v1163 = vld [vmem:[%s3 + $0x248] sm:$0xf]
      %v1164 = vld [vmem:[%s3 + $0x24c] sm:$0xf]
      %v1165 = vld [vmem:[%s3 + $0x250] sm:$0xf]
      %v1166 = vld [vmem:[%s3 + $0x254] sm:$0xf]
      %v1167 = vld [vmem:[%s3 + $0x258] sm:$0xf]
      %v1168 = vld [vmem:[%s3 + $0x25c] sm:$0xf]
      %v1169 = vld [vmem:[%s3 + $0x260] sm:$0xf]
      %v1170 = vld [vmem:[%s3 + $0x264] sm:$0xf]
      %v1171 = vld [vmem:[%s3 + $0x268] sm:$0xf]
      %v1172 = vld [vmem:[%s3 + $0x26c] sm:$0xf]
      %v1173 = vld [vmem:[%s3 + $0x270] sm:$0xf]
      %v1174 = vld [vmem:[%s3 + $0x274] sm:$0xf]
      %v1175 = vld [vmem:[%s3 + $0x278] sm:$0xf]
      %v1176 = vld [vmem:[%s3 + $0x27c] sm:$0xf]
      %v1177 = vshrl.u32 %v744, 16
      %v1179 = vshll.u32 %v744, 16
      %v1181 = vrot.slane %v1179, 1
      %v1182 = vor.u32 %v1177, %v1181
      %v1183 = vshll.u32 %v746, 16
      %v1185 = vrot.slane %v1183, 1
      %v1186 = vsel %vm589, %v1182, %v1185
      %v1187 = vshrl.u32 %v758, 16
      %v1189 = vshll.u32 %v758, 16
      %v1191 = vrot.slane %v1189, 1
      %v1192 = vor.u32 %v1187, %v1191
      %v1193 = vshll.u32 %v760, 16
      %v1195 = vrot.slane %v1193, 1
      %v1196 = vsel %vm589, %v1192, %v1195
      %v1197 = vshrl.u32 %v772, 16
      %v1199 = vshll.u32 %v772, 16
      %v1201 = vrot.slane %v1199, 1
      %v1202 = vor.u32 %v1197, %v1201
      %v1203 = vshll.u32 %v774, 16
      %v1205 = vrot.slane %v1203, 1
      %v1206 = vsel %vm589, %v1202, %v1205
      %v1207 = vshrl.u32 %v786, 16
      %v1209 = vshll.u32 %v786, 16
      %v1211 = vrot.slane %v1209, 1
      %v1212 = vor.u32 %v1207, %v1211
      %v1213 = vshll.u32 %v788, 16
      %v1215 = vrot.slane %v1213, 1
      %v1216 = vsel %vm589, %v1212, %v1215
      %v1217 = vshrl.u32 %v895, 16
      %v1219 = vshll.u32 %v895, 16
      %v1221 = vrot.slane %v1219, 1
      %v1222 = vor.u32 %v1217, %v1221
      %v1223 = vshll.u32 %v897, 16
      %v1225 = vrot.slane %v1223, 1
      %v1226 = vsel %vm589, %v1222, %v1225
      %v1227 = vshrl.u32 %v909, 16
      %v1229 = vshll.u32 %v909, 16
      %v1231 = vrot.slane %v1229, 1
      %v1232 = vor.u32 %v1227, %v1231
      %v1233 = vshll.u32 %v911, 16
      %v1235 = vrot.slane %v1233, 1
      %v1236 = vsel %vm589, %v1232, %v1235
      %v1237 = vshrl.u32 %v923, 16
      %v1239 = vshll.u32 %v923, 16
      %v1241 = vrot.slane %v1239, 1
      %v1242 = vor.u32 %v1237, %v1241
      %v1243 = vshll.u32 %v925, 16
      %v1245 = vrot.slane %v1243, 1
      %v1246 = vsel %vm589, %v1242, %v1245
      %v1247 = vshrl.u32 %v937, 16
      %v1249 = vshll.u32 %v937, 16
      %v1251 = vrot.slane %v1249, 1
      %v1252 = vor.u32 %v1247, %v1251
      %v1253 = vshll.u32 %v939, 16
      %v1255 = vrot.slane %v1253, 1
      %v1256 = vsel %vm589, %v1252, %v1255
      %v1257 = vshrl.u32 %v1000, 16
      %v1259 = vshll.u32 %v1000, 16
      %v1261 = vrot.slane %v1259, 1
      %v1262 = vor.u32 %v1257, %v1261
      %v1263 = vshll.u32 %v1002, 16
      %v1265 = vrot.slane %v1263, 1
      %v1266 = vsel %vm589, %v1262, %v1265
      %v1267 = vshrl.u32 %v1014, 16
      %v1269 = vshll.u32 %v1014, 16
      %v1271 = vrot.slane %v1269, 1
      %v1272 = vor.u32 %v1267, %v1271
      %v1273 = vshll.u32 %v1016, 16
      %v1275 = vrot.slane %v1273, 1
      %v1276 = vsel %vm589, %v1272, %v1275
      %v1447 = vunpack.c.l.b16 %v1017
      %v1448 = vunpack.c.l.b16 %v1018
      %v1449 = vunpack.c.l.b16 %v1019
      %v1450 = vunpack.c.l.b16 %v1020
      %v1451 = vunpack.c.l.b16 %v1021
      %v1452 = vunpack.c.l.b16 %v1022
      %v1453 = vunpack.c.l.b16 %v1023
      %v1454 = vunpack.c.l.b16 %v1024
      %v1455 = vunpack.c.l.b16 %v1025
      %v1456 = vunpack.c.l.b16 %v1026
      %v1457 = vunpack.c.l.b16 %v1027
      %v1458 = vunpack.c.l.b16 %v1028
      %v1459 = vunpack.c.l.b16 %v1029
      %v1460 = vunpack.c.l.b16 %v1030
      %v1461 = vunpack.c.l.b16 %v1031
      %v1462 = vunpack.c.l.b16 %v1032
      %v1463 = vunpack.c.l.b16 %v1033
      %v1464 = vunpack.c.l.b16 %v1034
      %v1465 = vunpack.c.l.b16 %v1035
      %v1466 = vunpack.c.l.b16 %v1036
      %v1467 = vunpack.c.l.b16 %v1037
      %v1468 = vunpack.c.l.b16 %v1038
      %v1469 = vunpack.c.l.b16 %v1039
      %v1470 = vunpack.c.l.b16 %v1040
      %v1471 = vunpack.c.l.b16 %v1041
      %v1472 = vunpack.c.l.b16 %v1042
      %v1473 = vunpack.c.l.b16 %v1043
      %v1474 = vunpack.c.l.b16 %v1044
      %v1475 = vunpack.c.l.b16 %v1045
      %v1476 = vunpack.c.l.b16 %v1046
      %v1477 = vunpack.c.l.b16 %v1047
      %v1478 = vunpack.c.l.b16 %v1048
      %v1479 = vunpack.c.l.b16 %v1049
      %v1480 = vunpack.c.l.b16 %v1050
      %v1481 = vunpack.c.l.b16 %v1051
      %v1482 = vunpack.c.l.b16 %v1052
      %v1483 = vunpack.c.l.b16 %v1053
      %v1484 = vunpack.c.l.b16 %v1054
      %v1485 = vunpack.c.l.b16 %v1055
      %v1486 = vunpack.c.l.b16 %v1056
      %v1487 = vunpack.c.l.b16 %v1057
      %v1488 = vunpack.c.l.b16 %v1058
      %v1489 = vunpack.c.l.b16 %v1059
      %v1490 = vunpack.c.l.b16 %v1060
      %v1491 = vunpack.c.l.b16 %v1061
      %v1492 = vunpack.c.l.b16 %v1062
      %v1493 = vunpack.c.l.b16 %v1063
      %v1494 = vunpack.c.l.b16 %v1064
      %v1495 = vunpack.c.l.b16 %v1065
      %v1496 = vunpack.c.l.b16 %v1066
      %v1497 = vunpack.c.l.b16 %v1067
      %v1498 = vunpack.c.l.b16 %v1068
      %v1499 = vunpack.c.l.b16 %v1069
      %v1500 = vunpack.c.l.b16 %v1070
      %v1501 = vunpack.c.l.b16 %v1071
      %v1502 = vunpack.c.l.b16 %v1072
      %v1503 = vunpack.c.l.b16 %v1073
      %v1504 = vunpack.c.l.b16 %v1074
      %v1505 = vunpack.c.l.b16 %v1075
      %v1506 = vunpack.c.l.b16 %v1076
      %v1507 = vunpack.c.l.b16 %v1077
      %v1508 = vunpack.c.l.b16 %v1078
      %v1509 = vunpack.c.l.b16 %v1079
      %v1510 = vunpack.c.l.b16 %v1080
      %v1511 = vunpack.c.l.b16 %v1081
      %v1512 = vunpack.c.l.b16 %v1082
      %v1513 = vunpack.c.l.b16 %v1083
      %v1514 = vunpack.c.l.b16 %v1084
      %v1515 = vunpack.c.l.b16 %v1085
      %v1516 = vunpack.c.l.b16 %v1086
      %v1517 = vunpack.c.l.b16 %v1087
      %v1518 = vunpack.c.l.b16 %v1088
      %v1519 = vunpack.c.l.b16 %v1089
      %v1520 = vunpack.c.l.b16 %v1090
      %v1521 = vunpack.c.l.b16 %v1091
      %v1522 = vunpack.c.l.b16 %v1092
      %v1523 = vunpack.c.l.b16 %v1093
      %v1524 = vunpack.c.l.b16 %v1094
      %v1525 = vunpack.c.l.b16 %v1095
      %v1526 = vunpack.c.l.b16 %v1096
      %v1527 = vunpack.c.l.b16 %v1097
      %v1528 = vunpack.c.l.b16 %v1098
      %v1529 = vunpack.c.l.b16 %v1099
      %v1530 = vunpack.c.l.b16 %v1100
      %v1531 = vunpack.c.l.b16 %v1101
      %v1532 = vunpack.c.l.b16 %v1102
      %v1533 = vunpack.c.l.b16 %v1103
      %v1534 = vunpack.c.l.b16 %v1104
      %v1535 = vunpack.c.l.b16 %v1105
      %v1536 = vunpack.c.l.b16 %v1106
      %v1537 = vunpack.c.l.b16 %v1107
      %v1538 = vunpack.c.l.b16 %v1108
      %v1539 = vunpack.c.l.b16 %v1109
      %v1540 = vunpack.c.l.b16 %v1110
      %v1541 = vunpack.c.l.b16 %v1111
      %v1542 = vunpack.c.l.b16 %v1112
      %v1543 = vunpack.c.l.b16 %v1113
      %v1544 = vunpack.c.l.b16 %v1114
      %v1545 = vunpack.c.l.b16 %v1115
      %v1546 = vunpack.c.l.b16 %v1116
      %v1547 = vunpack.c.l.b16 %v1117
      %v1548 = vunpack.c.l.b16 %v1118
      %v1549 = vunpack.c.l.b16 %v1119
      %v1550 = vunpack.c.l.b16 %v1120
      %v1551 = vunpack.c.l.b16 %v1121
      %v1552 = vunpack.c.l.b16 %v1122
      %v1553 = vunpack.c.l.b16 %v1123
      %v1554 = vunpack.c.l.b16 %v1124
      %v1555 = vunpack.c.l.b16 %v1125
      %v1556 = vunpack.c.l.b16 %v1126
      %v1557 = vunpack.c.l.b16 %v1127
      %v1558 = vunpack.c.l.b16 %v1128
      %v1559 = vunpack.c.l.b16 %v1129
      %v1560 = vunpack.c.l.b16 %v1130
      %v1561 = vunpack.c.l.b16 %v1131
      %v1562 = vunpack.c.l.b16 %v1132
      %v1563 = vunpack.c.l.b16 %v1133
      %v1564 = vunpack.c.l.b16 %v1134
      %v1565 = vunpack.c.l.b16 %v1135
      %v1566 = vunpack.c.l.b16 %v1136
      %v1567 = vunpack.c.l.b16 %v1137
      %v1568 = vunpack.c.l.b16 %v1138
      %v1569 = vunpack.c.l.b16 %v1139
      %v1570 = vunpack.c.l.b16 %v1140
      %v1571 = vunpack.c.l.b16 %v1141
      %v1572 = vunpack.c.l.b16 %v1142
      %v1573 = vunpack.c.l.b16 %v1143
      %v1574 = vunpack.c.l.b16 %v1144
      %v1575 = vunpack.c.l.b16 %v1145
      %v1576 = vunpack.c.l.b16 %v1146
      %v1577 = vunpack.c.l.b16 %v1147
      %v1578 = vunpack.c.l.b16 %v1148
      %v1579 = vunpack.c.l.b16 %v1149
      %v1580 = vunpack.c.l.b16 %v1150
      %v1581 = vunpack.c.l.b16 %v1151
      %v1582 = vunpack.c.l.b16 %v1152
      %v1583 = vunpack.c.l.b16 %v1153
      %v1584 = vunpack.c.l.b16 %v1154
      %v1585 = vunpack.c.l.b16 %v1155
      %v1586 = vunpack.c.l.b16 %v1156
      %v1587 = vunpack.c.l.b16 %v1157
      %v1588 = vunpack.c.l.b16 %v1158
      %v1589 = vunpack.c.l.b16 %v1159
      %v1590 = vunpack.c.l.b16 %v1160
      %v1591 = vunpack.c.l.b16 %v1161
      %v1592 = vunpack.c.l.b16 %v1162
      %v1593 = vunpack.c.l.b16 %v1163
      %v1594 = vunpack.c.l.b16 %v1164
      %v1595 = vunpack.c.l.b16 %v1165
      %v1596 = vunpack.c.l.b16 %v1166
      %v1597 = vunpack.c.l.b16 %v1167
      %v1598 = vunpack.c.l.b16 %v1168
      %v1599 = vunpack.c.l.b16 %v1169
      %v1600 = vunpack.c.l.b16 %v1170
      %v1601 = vunpack.c.l.b16 %v1171
      %v1602 = vunpack.c.l.b16 %v1172
      %v1603 = vunpack.c.l.b16 %v1173
      %v1604 = vunpack.c.l.b16 %v1174
      %v1605 = vunpack.c.l.b16 %v1175
      %v1606 = vunpack.c.l.b16 %v1176
      %v1607 = vpack.c.b16 %v1448, %v1447
      %v1608 = vpack.c.b16 %v1450, %v1449
      %v1609 = vpack.c.b16 %v1452, %v1451
      %v1610 = vpack.c.b16 %v1454, %v1453
      %v1611 = vpack.c.b16 %v1456, %v1455
      %v1612 = vpack.c.b16 %v1458, %v1457
      %v1613 = vpack.c.b16 %v1460, %v1459
      %v1614 = vpack.c.b16 %v1462, %v1461
      %v1615 = vpack.c.b16 %v1464, %v1463
      %v1616 = vpack.c.b16 %v1466, %v1465
      %v1617 = vpack.c.b16 %v1468, %v1467
      %v1618 = vpack.c.b16 %v1470, %v1469
      %v1619 = vpack.c.b16 %v1472, %v1471
      %v1620 = vpack.c.b16 %v1474, %v1473
      %v1621 = vpack.c.b16 %v1476, %v1475
      %v1622 = vpack.c.b16 %v1478, %v1477
      %v1623 = vpack.c.b16 %v1480, %v1479
      %v1624 = vpack.c.b16 %v1482, %v1481
      %v1625 = vpack.c.b16 %v1484, %v1483
      %v1626 = vpack.c.b16 %v1486, %v1485
      %v1627 = vpack.c.b16 %v1488, %v1487
      %v1628 = vpack.c.b16 %v1490, %v1489
      %v1629 = vpack.c.b16 %v1492, %v1491
      %v1630 = vpack.c.b16 %v1494, %v1493
      %v1631 = vpack.c.b16 %v1496, %v1495
      %v1632 = vpack.c.b16 %v1498, %v1497
      %v1633 = vpack.c.b16 %v1500, %v1499
      %v1634 = vpack.c.b16 %v1502, %v1501
      %v1635 = vpack.c.b16 %v1504, %v1503
      %v1636 = vpack.c.b16 %v1506, %v1505
      %v1637 = vpack.c.b16 %v1508, %v1507
      %v1638 = vpack.c.b16 %v1510, %v1509
      %v1639 = vpack.c.b16 %v1512, %v1511
      %v1640 = vpack.c.b16 %v1514, %v1513
      %v1641 = vpack.c.b16 %v1516, %v1515
      %v1642 = vpack.c.b16 %v1518, %v1517
      %v1643 = vpack.c.b16 %v1520, %v1519
      %v1644 = vpack.c.b16 %v1522, %v1521
      %v1645 = vpack.c.b16 %v1524, %v1523
      %v1646 = vpack.c.b16 %v1526, %v1525
      %v1647 = vpack.c.b16 %v1528, %v1527
      %v1648 = vpack.c.b16 %v1530, %v1529
      %v1649 = vpack.c.b16 %v1532, %v1531
      %v1650 = vpack.c.b16 %v1534, %v1533
      %v1651 = vpack.c.b16 %v1536, %v1535
      %v1652 = vpack.c.b16 %v1538, %v1537
      %v1653 = vpack.c.b16 %v1540, %v1539
      %v1654 = vpack.c.b16 %v1542, %v1541
      %v1655 = vpack.c.b16 %v1544, %v1543
      %v1656 = vpack.c.b16 %v1546, %v1545
      %v1657 = vpack.c.b16 %v1548, %v1547
      %v1658 = vpack.c.b16 %v1550, %v1549
      %v1659 = vpack.c.b16 %v1552, %v1551
      %v1660 = vpack.c.b16 %v1554, %v1553
      %v1661 = vpack.c.b16 %v1556, %v1555
      %v1662 = vpack.c.b16 %v1558, %v1557
      %v1663 = vpack.c.b16 %v1560, %v1559
      %v1664 = vpack.c.b16 %v1562, %v1561
      %v1665 = vpack.c.b16 %v1564, %v1563
      %v1666 = vpack.c.b16 %v1566, %v1565
      %v1667 = vpack.c.b16 %v1568, %v1567
      %v1668 = vpack.c.b16 %v1570, %v1569
      %v1669 = vpack.c.b16 %v1572, %v1571
      %v1670 = vpack.c.b16 %v1574, %v1573
      %v1671 = vpack.c.b16 %v1576, %v1575
      %v1672 = vpack.c.b16 %v1578, %v1577
      %v1673 = vpack.c.b16 %v1580, %v1579
      %v1674 = vpack.c.b16 %v1582, %v1581
      %v1675 = vpack.c.b16 %v1584, %v1583
      %v1676 = vpack.c.b16 %v1586, %v1585
      %v1677 = vpack.c.b16 %v1588, %v1587
      %v1678 = vpack.c.b16 %v1590, %v1589
      %v1679 = vpack.c.b16 %v1592, %v1591
      %v1680 = vpack.c.b16 %v1594, %v1593
      %v1681 = vpack.c.b16 %v1596, %v1595
      %v1682 = vpack.c.b16 %v1598, %v1597
      %v1683 = vpack.c.b16 %v1600, %v1599
      %v1684 = vpack.c.b16 %v1602, %v1601
      %v1685 = vpack.c.b16 %v1604, %v1603
      %v1686 = vpack.c.b16 %v1606, %v1605
      %1767 = vmatprep.subr.bf16.mxu0 0
      %1768 = vmatpush1.bf16.msra.mxu0 %v1607
      %1769 = vmatprep.subr.bf16.mxu0 0
      %1770 = vmatpush1.bf16.msra.mxu0 %v1608
      %1771 = vmatprep.subr.bf16.mxu0 0
      %1772 = vmatpush1.bf16.msra.mxu0 %v1609
      %1773 = vmatprep.subr.bf16.mxu0 0
      %1774 = vmatpush1.bf16.msra.mxu0 %v1610
      %1775 = vmatprep.subr.bf16.mxu0 0
      %1776 = vmatpush1.bf16.msra.mxu0 %v1611
      %1777 = vmatprep.subr.bf16.mxu0 0
      %1778 = vmatpush1.bf16.msra.mxu0 %v1612
      %1779 = vmatprep.subr.bf16.mxu0 0
      %1780 = vmatpush1.bf16.msra.mxu0 %v1613
      %1781 = vmatprep.subr.bf16.mxu0 0
      %1782 = vmatpush1.bf16.msra.mxu0 %v1614
      %1783 = vmatprep.subr.bf16.mxu0 0
      %1784 = vmatpush1.bf16.msra.mxu0 %v1615
      %1785 = vmatprep.subr.bf16.mxu0 0
      %1786 = vmatpush1.bf16.msra.mxu0 %v1616
      %1787 = vmatprep.subr.bf16.mxu0 0
      %1788 = vmatpush1.bf16.msra.mxu0 %v1617
      %1789 = vmatprep.subr.bf16.mxu0 0
      %1790 = vmatpush1.bf16.msra.mxu0 %v1618
      %1791 = vmatprep.subr.bf16.mxu0 0
      %1792 = vmatpush1.bf16.msra.mxu0 %v1619
      %1793 = vmatprep.subr.bf16.mxu0 0
      %1794 = vmatpush1.bf16.msra.mxu0 %v1620
      %1795 = vmatprep.subr.bf16.mxu0 0
      %1796 = vmatpush1.bf16.msra.mxu0 %v1621
      %1797 = vmatprep.subr.bf16.mxu0 0
      %1798 = vmatpush1.bf16.msra.mxu0 %v1622
      %1799 = vmatprep.mubr.bf16.mxu0 %v1196
      %1800 = vmatmul.mubr.bf16.gmra.mrb[0].mxu0 %v1186
      %v1801 = vpop.f32.mrb[0].mxu0
      %v1802 = vadd.f32 0.0, %v1801
      %v1803 = vpop.f32.mrb[0].mxu0
      %v1804 = vpop.f32.mrb[0].mxu0
      %v1805 = vadd.f32 0.0, %v1804
      %v1806 = vpop.f32.mrb[0].mxu0
      %1807 = vdwg.mxu0
      %1808 = vmatprep.subr.bf16.mxu0 0
      %1809 = vmatpush1.bf16.msra.mxu0 %v1623
      %1810 = vmatprep.subr.bf16.mxu0 0
      %1811 = vmatpush1.bf16.msra.mxu0 %v1624
      %1812 = vmatprep.subr.bf16.mxu0 0
      %1813 = vmatpush1.bf16.msra.mxu0 %v1625
      %1814 = vmatprep.subr.bf16.mxu0 0
      %1815 = vmatpush1.bf16.msra.mxu0 %v1626
      %1816 = vmatprep.subr.bf16.mxu0 0
      %1817 = vmatpush1.bf16.msra.mxu0 %v1627
      %1818 = vmatprep.subr.bf16.mxu0 0
      %1819 = vmatpush1.bf16.msra.mxu0 %v1628
      %1820 = vmatprep.subr.bf16.mxu0 0
      %1821 = vmatpush1.bf16.msra.mxu0 %v1629
      %1822 = vmatprep.subr.bf16.mxu0 0
      %1823 = vmatpush1.bf16.msra.mxu0 %v1630
      %1824 = vmatprep.subr.bf16.mxu0 0
      %1825 = vmatpush1.bf16.msra.mxu0 %v1631
      %1826 = vmatprep.subr.bf16.mxu0 0
      %1827 = vmatpush1.bf16.msra.mxu0 %v1632
      %1828 = vmatprep.subr.bf16.mxu0 0
      %1829 = vmatpush1.bf16.msra.mxu0 %v1633
      %1830 = vmatprep.subr.bf16.mxu0 0
      %1831 = vmatpush1.bf16.msra.mxu0 %v1634
      %1832 = vmatprep.subr.bf16.mxu0 0
      %1833 = vmatpush1.bf16.msra.mxu0 %v1635
      %1834 = vmatprep.subr.bf16.mxu0 0
      %1835 = vmatpush1.bf16.msra.mxu0 %v1636
      %1836 = vmatprep.subr.bf16.mxu0 0
      %1837 = vmatpush1.bf16.msra.mxu0 %v1637
      %1838 = vmatprep.subr.bf16.mxu0 0
      %1839 = vmatpush1.bf16.msra.mxu0 %v1638
      %1840 = vmatprep.mubr.bf16.mxu0 %v1216
      %1841 = vmatmul.mubr.bf16.gmra.mrb[0].mxu0 %v1206
      %v1842 = vpop.f32.mrb[0].mxu0
      %v1843 = vadd.f32 %v1802, %v1842
      %v1844 = vpop.f32.mrb[0].mxu0
      %v1845 = vpop.f32.mrb[0].mxu0
      %v1846 = vadd.f32 %v1805, %v1845
      %v1847 = vpop.f32.mrb[0].mxu0
      %1848 = vdwg.mxu0
      %1849 = vmatprep.subr.bf16.mxu0 0
      %1850 = vmatpush1.bf16.msra.mxu0 %v1639
      %1851 = vmatprep.subr.bf16.mxu0 0
      %1852 = vmatpush1.bf16.msra.mxu0 %v1640
      %1853 = vmatprep.subr.bf16.mxu0 0
      %1854 = vmatpush1.bf16.msra.mxu0 %v1641
      %1855 = vmatprep.subr.bf16.mxu0 0
      %1856 = vmatpush1.bf16.msra.mxu0 %v1642
      %1857 = vmatprep.subr.bf16.mxu0 0
      %1858 = vmatpush1.bf16.msra.mxu0 %v1643
      %1859 = vmatprep.subr.bf16.mxu0 0
      %1860 = vmatpush1.bf16.msra.mxu0 %v1644
      %1861 = vmatprep.subr.bf16.mxu0 0
      %1862 = vmatpush1.bf16.msra.mxu0 %v1645
      %1863 = vmatprep.subr.bf16.mxu0 0
      %1864 = vmatpush1.bf16.msra.mxu0 %v1646
      %1865 = vmatprep.subr.bf16.mxu0 0
      %1866 = vmatpush1.bf16.msra.mxu0 %v1647
      %1867 = vmatprep.subr.bf16.mxu0 0
      %1868 = vmatpush1.bf16.msra.mxu0 %v1648
      %1869 = vmatprep.subr.bf16.mxu0 0
      %1870 = vmatpush1.bf16.msra.mxu0 %v1649
      %1871 = vmatprep.subr.bf16.mxu0 0
      %1872 = vmatpush1.bf16.msra.mxu0 %v1650
      %1873 = vmatprep.subr.bf16.mxu0 0
      %1874 = vmatpush1.bf16.msra.mxu0 %v1651
      %1875 = vmatprep.subr.bf16.mxu0 0
      %1876 = vmatpush1.bf16.msra.mxu0 %v1652
      %1877 = vmatprep.subr.bf16.mxu0 0
      %1878 = vmatpush1.bf16.msra.mxu0 %v1653
      %1879 = vmatprep.subr.bf16.mxu0 0
      %1880 = vmatpush1.bf16.msra.mxu0 %v1654
      %1881 = vmatprep.mubr.bf16.mxu0 %v1236
      %1882 = vmatmul.mubr.bf16.gmra.mrb[0].mxu0 %v1226
      %v1883 = vpop.f32.mrb[0].mxu0
      %v1884 = vadd.f32 %v1843, %v1883
      %v1885 = vpop.f32.mrb[0].mxu0
      %v1886 = vpop.f32.mrb[0].mxu0
      %v1887 = vadd.f32 %v1846, %v1886
      %v1888 = vpop.f32.mrb[0].mxu0
      %1889 = vdwg.mxu0
      %1890 = vmatprep.subr.bf16.mxu0 0
      %1891 = vmatpush1.bf16.msra.mxu0 %v1655
      %1892 = vmatprep.subr.bf16.mxu0 0
      %1893 = vmatpush1.bf16.msra.mxu0 %v1656
      %1894 = vmatprep.subr.bf16.mxu0 0
      %1895 = vmatpush1.bf16.msra.mxu0 %v1657
      %1896 = vmatprep.subr.bf16.mxu0 0
      %1897 = vmatpush1.bf16.msra.mxu0 %v1658
      %1898 = vmatprep.subr.bf16.mxu0 0
      %1899 = vmatpush1.bf16.msra.mxu0 %v1659
      %1900 = vmatprep.subr.bf16.mxu0 0
      %1901 = vmatpush1.bf16.msra.mxu0 %v1660
      %1902 = vmatprep.subr.bf16.mxu0 0
      %1903 = vmatpush1.bf16.msra.mxu0 %v1661
      %1904 = vmatprep.subr.bf16.mxu0 0
      %1905 = vmatpush1.bf16.msra.mxu0 %v1662
      %1906 = vmatprep.subr.bf16.mxu0 0
      %1907 = vmatpush1.bf16.msra.mxu0 %v1663
      %1908 = vmatprep.subr.bf16.mxu0 0
      %1909 = vmatpush1.bf16.msra.mxu0 %v1664
      %1910 = vmatprep.subr.bf16.mxu0 0
      %1911 = vmatpush1.bf16.msra.mxu0 %v1665
      %1912 = vmatprep.subr.bf16.mxu0 0
      %1913 = vmatpush1.bf16.msra.mxu0 %v1666
      %1914 = vmatprep.subr.bf16.mxu0 0
      %1915 = vmatpush1.bf16.msra.mxu0 %v1667
      %1916 = vmatprep.subr.bf16.mxu0 0
      %1917 = vmatpush1.bf16.msra.mxu0 %v1668
      %1918 = vmatprep.subr.bf16.mxu0 0
      %1919 = vmatpush1.bf16.msra.mxu0 %v1669
      %1920 = vmatprep.subr.bf16.mxu0 0
      %1921 = vmatpush1.bf16.msra.mxu0 %v1670
      %1922 = vmatprep.mubr.bf16.mxu0 %v1256
      %1923 = vmatmul.mubr.bf16.gmra.mrb[0].mxu0 %v1246
      %v1924 = vpop.f32.mrb[0].mxu0
      %v1925 = vadd.f32 %v1884, %v1924
      %v1926 = vpop.f32.mrb[0].mxu0
      %v1927 = vpop.f32.mrb[0].mxu0
      %v1928 = vadd.f32 %v1887, %v1927
      %v1929 = vpop.f32.mrb[0].mxu0
      %1930 = vdwg.mxu0
      %1931 = vmatprep.subr.bf16.mxu0 0
      %1932 = vmatpush1.bf16.msra.mxu0 %v1671
      %1933 = vmatprep.subr.bf16.mxu0 0
      %1934 = vmatpush1.bf16.msra.mxu0 %v1672
      %1935 = vmatprep.subr.bf16.mxu0 0
      %1936 = vmatpush1.bf16.msra.mxu0 %v1673
      %1937 = vmatprep.subr.bf16.mxu0 0
      %1938 = vmatpush1.bf16.msra.mxu0 %v1674
      %1939 = vmatprep.subr.bf16.mxu0 0
      %1940 = vmatpush1.bf16.msra.mxu0 %v1675
      %1941 = vmatprep.subr.bf16.mxu0 0
      %1942 = vmatpush1.bf16.msra.mxu0 %v1676
      %1943 = vmatprep.subr.bf16.mxu0 0
      %1944 = vmatpush1.bf16.msra.mxu0 %v1677
      %1945 = vmatprep.subr.bf16.mxu0 0
      %1946 = vmatpush1.bf16.msra.mxu0 %v1678
      %1947 = vmatprep.subr.bf16.mxu0 0
      %1948 = vmatpush1.bf16.msra.mxu0 %v1679
      %1949 = vmatprep.subr.bf16.mxu0 0
      %1950 = vmatpush1.bf16.msra.mxu0 %v1680
      %1951 = vmatprep.subr.bf16.mxu0 0
      %1952 = vmatpush1.bf16.msra.mxu0 %v1681
      %1953 = vmatprep.subr.bf16.mxu0 0
      %1954 = vmatpush1.bf16.msra.mxu0 %v1682
      %1955 = vmatprep.subr.bf16.mxu0 0
      %1956 = vmatpush1.bf16.msra.mxu0 %v1683
      %1957 = vmatprep.subr.bf16.mxu0 0
      %1958 = vmatpush1.bf16.msra.mxu0 %v1684
      %1959 = vmatprep.subr.bf16.mxu0 0
      %1960 = vmatpush1.bf16.msra.mxu0 %v1685
      %1961 = vmatprep.subr.bf16.mxu0 0
      %1962 = vmatpush1.bf16.msra.mxu0 %v1686
      %1963 = vmatprep.mubr.bf16.mxu0 %v1276
      %1964 = vmatmul.mubr.bf16.gmra.mrb[0].mxu0 %v1266
      %v1965 = vpop.f32.mrb[0].mxu0
      %v1966 = vadd.f32 %v1925, %v1965
      %v1967 = vpop.f32.mrb[0].mxu0
      %v1968 = vpop.f32.mrb[0].mxu0
      %v1969 = vadd.f32 %v1928, %v1968
      %v1970 = vpop.f32.mrb[0].mxu0
      %1971 = vdwg.mxu0
      %v1972 = vlaneseq
      %v1973 = vshrl.u32 %v1972, 7
      %v1974 = vadd.s32 %v1973, 8
      %v1975 = vstv %s423
      %v1976 = vadd.s32 %v1975, %v1973
      %v1977 = vadd.s32 %v1975, %v1974
      %vm1978 = vcmp.eq.s32.totalorder %v1976, 0
      %vm1979 = vcmp.eq.s32.totalorder %v1977, 0
      %v1980 = vsel %vm1978, 1, 0
      %v1981 = vsel %vm1979, 1, 0
      %vm1982 = vcmp.eq.s32.totalorder %v1980, 1
      %vm1983 = vcmp.eq.s32.totalorder %v1981, 1
      %vm1984 = vmpackc.low %vm1982, %vm1982
      %vm1985 = vmpackc.low %vm1983, %vm1983
      %v1986 = vsel %vm1984, 65537, 0
      %v1987 = vsel %vm1985, 65537, 0
      %vm1988 = vsmask.f32 5392
      %vm1989 = vmor %vm706, %vm1988
      %v1991 = vshrl.u32 %v1986, 16
      %v1993 = vrot.slane %v1991, 6
      %v1994 = vshll.u32 %v1986, 16
      %v1996 = vrot.slane %v1994, 7
      %v1997 = vor.u32 %v1993, %v1996
      %v1998 = vrot.slane %v1997, 4
      %v2000 = vshrl.u32 %v1987, 16
      %v2002 = vrot.slane %v2000, 6
      %v2003 = vshll.u32 %v1987, 16
      %v2005 = vrot.slane %v2003, 7
      %v2006 = vor.u32 %v2002, %v2005
      %v2007 = vsel %vm1989, %v1998, %v2006
      %v2008 = vrot.slane %v2006, 4
      %vm2009 = vcmp.ne.s16.totalorder %v1997, 0
      %vm2010 = vcmp.ne.s16.totalorder %v2007, 0
      %vm2011 = vcmp.ne.s16.totalorder %v2008, 0
      %v2012 = vsel %vm2009, 4286644096, %v430
      %v2013 = vsel %vm2010, 4286644096, %v431
      %v2014 = vsel %vm2011, 4286644096, %v432
      %vm2015 = vcmp.eq.s32.totalorder %v1976, 15
      %vm2016 = vcmp.eq.s32.totalorder %v1977, 15
      %v2017 = vsel %vm2015, 1, 0
      %v2018 = vsel %vm2016, 1, 0
      %vm2019 = vcmp.eq.s32.totalorder %v2017, 1
      %vm2020 = vcmp.eq.s32.totalorder %v2018, 1
      %vm2021 = vmpackc.low %vm2019, %vm2019
      %vm2022 = vmpackc.low %vm2020, %vm2020
      %v2023 = vsel %vm2021, 65537, 0
      %v2024 = vsel %vm2022, 65537, 0
      %vm2025 = vsmask.f32 6416
      %vm2026 = vmor %vm690, %vm2025
      %v2028 = vshrl.u32 %v2023, 16
      %v2030 = vrot.slane %v2028, 5
      %v2031 = vshll.u32 %v2023, 16
      %v2033 = vrot.slane %v2031, 6
      %v2034 = vor.u32 %v2030, %v2033
      %v2035 = vrot.slane %v2034, 4
      %v2037 = vshrl.u32 %v2024, 16
      %v2039 = vrot.slane %v2037, 5
      %v2040 = vshll.u32 %v2024, 16
      %v2042 = vrot.slane %v2040, 6
      %v2043 = vor.u32 %v2039, %v2042
      %v2044 = vsel %vm2026, %v2035, %v2043
      %v2045 = vrot.slane %v2043, 4
      %vm2046 = vcmp.ne.s16.totalorder %v2034, 0
      %vm2047 = vcmp.ne.s16.totalorder %v2044, 0
      %vm2048 = vcmp.ne.s16.totalorder %v2045, 0
      %v2049 = vsel %vm2046, 4286644096, %v430
      %v2050 = vsel %vm2047, 4286644096, %v431
      %v2051 = vsel %vm2048, 4286644096, %v432
      %vm2052 = vsmask.f32 7440
      %vm2053 = vmor %vm670, %vm2052
      %v2055 = vshrl.u32 %v430, 16
      %v2057 = vrot.slane %v2055, 4
      %v2058 = vshll.u32 %v430, 16
      %v2060 = vrot.slane %v2058, 5
      %v2061 = vor.u32 %v2057, %v2060
      %v2062 = vrot.slane %v2061, 4
      %v2064 = vshll.u32 %v431, 16
      %v2066 = vrot.slane %v2064, 5
      %v2067 = vsel %vm2053, %v2062, %v2066
      %v2068 = vshrl.u32 %v431, 16
      %v2070 = vrot.slane %v2068, 4
      %v2071 = vor.u32 %v2070, %v2066
      %v2072 = vrot.slane %v2071, 4
      %v2074 = vshll.u32 %v432, 16
      %v2076 = vrot.slane %v2074, 5
      %v2077 = vsel %vm2053, %v2072, %v2076
      %v2078 = vshrl.u32 %v432, 16
      %v2080 = vrot.slane %v2078, 4
      %v2081 = vor.u32 %v2080, %v2076
      %v2082 = vrot.slane %v2081, 4
      %v2086 = vmax.bf16 %v2012, %v2067
      %v2087 = vmax.bf16 %v2013, %v2077
      %v2088 = vmax.bf16 %v2014, %v2082
      %vm2092 = vcmask 1046532
      %vm2093 = vmor %vm682, %vm2092
      %v2094 = vrot.slane %v2049, 5
      %v2095 = vrot.slane %v2094, 4
      %v2096 = vrot.slane %v2050, 5
      %v2097 = vsel %vm2093, %v2095, %v2096
      %v2098 = vrot.slane %v2096, 4
      %v2099 = vrot.slane %v2051, 5
      %v2100 = vsel %vm2093, %v2098, %v2099
      %v2101 = vrot.slane %v2099, 4
      %v2105 = vmax.bf16 %v2086, %v2097
      %v2106 = vmax.bf16 %v2087, %v2100
      %v2107 = vmax.bf16 %v2088, %v2101
      %v2108 = vld [vmem:[%s4] sm:$0xf]
      %v2109 = vld [vmem:[%s4 + $0x4] sm:$0xf]
      %v2110 = vld [vmem:[%s4 + $0x8] sm:$0xf]
      %v2111 = vld [vmem:[%s4 + $0xc] sm:$0xf]
      %v2112 = vld [vmem:[%s4 + $0x10] sm:$0xf]
      %v2113 = vld [vmem:[%s4 + $0x14] sm:$0xf]
      %v2114 = vld [vmem:[%s4 + $0x18] sm:$0xf]
      %v2115 = vld [vmem:[%s4 + $0x1c] sm:$0xf]
      %v2116 = vld [vmem:[%s4 + $0x20] sm:$0xf]
      %v2117 = vld [vmem:[%s4 + $0x24] sm:$0xf]
      %v2118 = vld [vmem:[%s4 + $0x28] sm:$0xf]
      %v2119 = vld [vmem:[%s4 + $0x2c] sm:$0xf]
      %v2120 = vld [vmem:[%s4 + $0x30] sm:$0xf]
      %v2121 = vld [vmem:[%s4 + $0x34] sm:$0xf]
      %v2122 = vld [vmem:[%s4 + $0x38] sm:$0xf]
      %v2123 = vld [vmem:[%s4 + $0x3c] sm:$0xf]
      %v2127 = vunpack.c.l.b16 %v2105
      %v2128 = vunpack.c.l.b16 %v2106
      %v2129 = vunpack.c.l.b16 %v2107
      %v2130 = vpack.c.b16 %v2128, %v2127
      %v2131 = vpack.c.b16 %v2129, %v2129
      %v2133 = vshrl.u32 %v2130, 16
      %v2135 = vrot.slane %v2133, 1
      %v2136 = vshll.u32 %v2130, 16
      %v2138 = vrot.slane %v2136, 2
      %v2139 = vor.u32 %v2135, %v2138
      %v2141 = vshrl.u32 %v2131, 16
      %v2143 = vrot.slane %v2141, 1
      %v2144 = vshll.u32 %v2131, 16
      %v2146 = vrot.slane %v2144, 2
      %v2147 = vor.u32 %v2143, %v2146
      %v2148 = vsel %vm618, %v2139, %v2147
      %v2166 = vunpack.c.l.b16 %v2108
      %v2167 = vunpack.c.l.b16 %v2109
      %v2168 = vunpack.c.l.b16 %v2110
      %v2169 = vunpack.c.l.b16 %v2111
      %v2170 = vunpack.c.l.b16 %v2112
      %v2171 = vunpack.c.l.b16 %v2113
      %v2172 = vunpack.c.l.b16 %v2114
      %v2173 = vunpack.c.l.b16 %v2115
      %v2174 = vunpack.c.l.b16 %v2116
      %v2175 = vunpack.c.l.b16 %v2117
      %v2176 = vunpack.c.l.b16 %v2118
      %v2177 = vunpack.c.l.b16 %v2119
      %v2178 = vunpack.c.l.b16 %v2120
      %v2179 = vunpack.c.l.b16 %v2121
      %v2180 = vunpack.c.l.b16 %v2122
      %v2181 = vunpack.c.l.b16 %v2123
      %v2182 = vpack.c.b16 %v2167, %v2166
      %v2183 = vpack.c.b16 %v2169, %v2168
      %v2184 = vpack.c.b16 %v2171, %v2170
      %v2185 = vpack.c.b16 %v2173, %v2172
      %v2186 = vpack.c.b16 %v2175, %v2174
      %v2187 = vpack.c.b16 %v2177, %v2176
      %v2188 = vpack.c.b16 %v2179, %v2178
      %v2189 = vpack.c.b16 %v2181, %v2180
      %2198 = vmatprep.subr.bf16.mxu0 0
      %2199 = vmatpush1.bf16.msra.mxu0 %v2182
      %2200 = vmatprep.subr.bf16.mxu0 0
      %2201 = vmatpush1.bf16.msra.mxu0 %v2183
      %2202 = vmatprep.subr.bf16.mxu0 0
      %2203 = vmatpush1.bf16.msra.mxu0 %v2184
      %2204 = vmatprep.subr.bf16.mxu0 0
      %2205 = vmatpush1.bf16.msra.mxu0 %v2185
      %2206 = vmatprep.subr.bf16.mxu0 0
      %2207 = vmatpush1.bf16.msra.mxu0 %v2186
      %2208 = vmatprep.subr.bf16.mxu0 0
      %2209 = vmatpush1.bf16.msra.mxu0 %v2187
      %2210 = vmatprep.subr.bf16.mxu0 0
      %2211 = vmatpush1.bf16.msra.mxu0 %v2188
      %2212 = vmatprep.subr.bf16.mxu0 0
      %2213 = vmatpush1.bf16.msra.mxu0 %v2189
      %2214 = vmatprep.subr.bf16.mxu0 0
      %2215 = vmatpush1.bf16.msra.mxu0 0
      %2216 = vmatprep.subr.bf16.mxu0 0
      %2217 = vmatpush1.bf16.msra.mxu0 0
      %2218 = vmatprep.subr.bf16.mxu0 0
      %2219 = vmatpush1.bf16.msra.mxu0 0
      %2220 = vmatprep.subr.bf16.mxu0 0
      %2221 = vmatpush1.bf16.msra.mxu0 0
      %2222 = vmatprep.subr.bf16.mxu0 0
      %2223 = vmatpush1.bf16.msra.mxu0 0
      %2224 = vmatprep.subr.bf16.mxu0 0
      %2225 = vmatpush1.bf16.msra.mxu0 0
      %2226 = vmatprep.subr.bf16.mxu0 0
      %2227 = vmatpush1.bf16.msra.mxu0 0
      %2228 = vmatprep.subr.bf16.mxu0 0
      %2229 = vmatpush1.bf16.msra.mxu0 0
      %2230 = vmatprep.mubr.bf16.mxu0 0
      %2231 = vmatmul.mubr.bf16.gmra.mrb[0].mxu0 %v2148
      %v2232 = vpop.f32.mrb[0].mxu0
      %v2233 = vadd.f32 0.0, %v2232
      %v2234 = vpop.f32.mrb[0].mxu0
      %v2235 = vpop.f32.mrb[0].mxu0
      %v2236 = vadd.f32 0.0, %v2235
      %v2237 = vpop.f32.mrb[0].mxu0
      %2238 = vdwg.mxu0
      %2241 = vrot.lane.b32.xlu0 %v2233, 96
      %v2242 = vpop.permute.xlu0 %2241
      %2243 = vrot.lane.b32.xlu0 %v2236, 96
      %v2244 = vpop.permute.xlu0 %2243
      %v2247 = vsel %vm742, %v1966, %v2242
      %v2248 = vsel %vm742, %v1969, %v2244
      %v2249 = vld [vmem:[%s5] sm:$0x1]
      %v2251 = vlaneseq
      %v2252 = vshrl.u32 %v2251, 7
      %v2253 = vsub.s32 0, %v2252
      %v2254 = vrot.slane %v2249, %v2253
      %v2256 = vmul.f32 %v2247, %v2254
      %v2257 = vmul.f32 %v2248, %v2254
      %v2258 = vld [vmem:[%s6] sm:$0x1]
      %v2260 = vlaneseq
      %v2261 = vshrl.u32 %v2260, 7
      %v2262 = vsub.s32 0, %v2261
      %v2263 = vrot.slane %v2258, %v2262
      %v2265 = vadd.f32 %v2256, %v2263
      %v2266 = vadd.f32 %v2257, %v2263
      %v2267 = vmax.f32 %v2265, 0.0
      %v2268 = vmax.f32 %v2266, 0.0
      %v2269 = vld [vmem:[%s407] sm:$0xf]
      %v2270 = vld [vmem:[%s407 + $0x4] sm:$0xf]
      %v2271 = vld [vmem:[%s7] sm:$0xf]
      %v2272 = vld [vmem:[%s7 + $0x4] sm:$0xf]
      %v2273 = vld [vmem:[%s7 + $0x8] sm:$0xf]
      %v2274 = vld [vmem:[%s7 + $0xc] sm:$0xf]
      %v2275 = vld [vmem:[%s7 + $0x10] sm:$0xf]
      %v2276 = vld [vmem:[%s7 + $0x14] sm:$0xf]
      %v2277 = vld [vmem:[%s7 + $0x18] sm:$0xf]
      %v2278 = vld [vmem:[%s7 + $0x1c] sm:$0xf]
      %v2279 = vld [vmem:[%s7 + $0x20] sm:$0xf]
      %v2280 = vld [vmem:[%s7 + $0x24] sm:$0xf]
      %v2281 = vld [vmem:[%s7 + $0x28] sm:$0xf]
      %v2282 = vld [vmem:[%s7 + $0x2c] sm:$0xf]
      %v2283 = vld [vmem:[%s7 + $0x30] sm:$0xf]
      %v2284 = vld [vmem:[%s7 + $0x34] sm:$0xf]
      %v2285 = vld [vmem:[%s7 + $0x38] sm:$0xf]
      %v2286 = vld [vmem:[%s7 + $0x3c] sm:$0xf]
      %v2289 = vunpack.c.l.b16 %v2269
      %v2290 = vunpack.c.l.b16 %v2270
      %v2291 = vpack.c.b16 %v2290, %v2289
      %v2309 = vunpack.c.l.b16 %v2271
      %v2310 = vunpack.c.l.b16 %v2272
      %v2311 = vunpack.c.l.b16 %v2273
      %v2312 = vunpack.c.l.b16 %v2274
      %v2313 = vunpack.c.l.b16 %v2275
      %v2314 = vunpack.c.l.b16 %v2276
      %v2315 = vunpack.c.l.b16 %v2277
      %v2316 = vunpack.c.l.b16 %v2278
      %v2317 = vunpack.c.l.b16 %v2279
      %v2318 = vunpack.c.l.b16 %v2280
      %v2319 = vunpack.c.l.b16 %v2281
      %v2320 = vunpack.c.l.b16 %v2282
      %v2321 = vunpack.c.l.b16 %v2283
      %v2322 = vunpack.c.l.b16 %v2284
      %v2323 = vunpack.c.l.b16 %v2285
      %v2324 = vunpack.c.l.b16 %v2286
      %v2325 = vpack.c.b16 %v2310, %v2309
      %v2326 = vpack.c.b16 %v2312, %v2311
      %v2327 = vpack.c.b16 %v2314, %v2313
      %v2328 = vpack.c.b16 %v2316, %v2315
      %v2329 = vpack.c.b16 %v2318, %v2317
      %v2330 = vpack.c.b16 %v2320, %v2319
      %v2331 = vpack.c.b16 %v2322, %v2321
      %v2332 = vpack.c.b16 %v2324, %v2323
      %2341 = vmatprep.subr.bf16.mxu0 0
      %2342 = vmatpush1.bf16.msra.mxu0 %v2325
      %2343 = vmatprep.subr.bf16.mxu0 0
      %2344 = vmatpush1.bf16.msra.mxu0 %v2326
      %2345 = vmatprep.subr.bf16.mxu0 0
      %2346 = vmatpush1.bf16.msra.mxu0 %v2327
      %2347 = vmatprep.subr.bf16.mxu0 0
      %2348 = vmatpush1.bf16.msra.mxu0 %v2328
      %2349 = vmatprep.subr.bf16.mxu0 0
      %2350 = vmatpush1.bf16.msra.mxu0 %v2329
      %2351 = vmatprep.subr.bf16.mxu0 0
      %2352 = vmatpush1.bf16.msra.mxu0 %v2330
      %2353 = vmatprep.subr.bf16.mxu0 0
      %2354 = vmatpush1.bf16.msra.mxu0 %v2331
      %2355 = vmatprep.subr.bf16.mxu0 0
      %2356 = vmatpush1.bf16.msra.mxu0 %v2332
      %2357 = vmatprep.subr.bf16.mxu0 0
      %2358 = vmatpush1.bf16.msra.mxu0 0
      %2359 = vmatprep.subr.bf16.mxu0 0
      %2360 = vmatpush1.bf16.msra.mxu0 0
      %2361 = vmatprep.subr.bf16.mxu0 0
      %2362 = vmatpush1.bf16.msra.mxu0 0
      %2363 = vmatprep.subr.bf16.mxu0 0
      %2364 = vmatpush1.bf16.msra.mxu0 0
      %2365 = vmatprep.subr.bf16.mxu0 0
      %2366 = vmatpush1.bf16.msra.mxu0 0
      %2367 = vmatprep.subr.bf16.mxu0 0
      %2368 = vmatpush1.bf16.msra.mxu0 0
      %2369 = vmatprep.subr.bf16.mxu0 0
      %2370 = vmatpush1.bf16.msra.mxu0 0
      %2371 = vmatprep.subr.bf16.mxu0 0
      %2372 = vmatpush1.bf16.msra.mxu0 0
      %2373 = vmatprep.mubr.bf16.mxu0 0
      %2374 = vmatmul.mubr.bf16.gmra.mrb[0].mxu0 %v2291
      %v2375 = vpop.f32.mrb[0].mxu0
      %v2376 = vadd.f32 0.0, %v2375
      %v2377 = vpop.f32.mrb[0].mxu0
      %v2378 = vpop.f32.mrb[0].mxu0
      %v2379 = vadd.f32 0.0, %v2378
      %v2380 = vpop.f32.mrb[0].mxu0
      %2381 = vdwg.mxu0
      %v2382 = vld [vmem:[%s8] sm:$0x1]
      %v2384 = vlaneseq
      %v2385 = vshrl.u32 %v2384, 7
      %v2386 = vsub.s32 0, %v2385
      %v2387 = vrot.slane %v2382, %v2386
      %v2389 = vmul.f32 %v2376, %v2387
      %v2390 = vmul.f32 %v2379, %v2387
      %v2391 = vld [vmem:[%s9] sm:$0x1]
      %v2393 = vlaneseq
      %v2394 = vshrl.u32 %v2393, 7
      %v2395 = vsub.s32 0, %v2394
      %v2396 = vrot.slane %v2391, %v2395
      %v2398 = vadd.f32 %v2389, %v2396
      %v2399 = vadd.f32 %v2390, %v2396
      %v2400 = vadd.f32 %v2267, %v2398
      %v2401 = vadd.f32 %v2268, %v2399
      %v2402 = vmax.f32 %v2400, 0.0
      %v2403 = vmax.f32 %v2401, 0.0
      %v2404 = vpack.c.bf16 %v2403, %v2402
      %v2406 = vunpack.c.l.b16 %v2404
      %v2407 = vunpack.c.h.b16 %v2404
      %v2408 = vpack.c.b16 %v2406, %v2406
      %v2409 = vpack.c.b16 %v2407, %v2407
      %2412 = vst [vmem:[%s417] sm:$0xf] %v2408
      %2413 = vst [vmem:[%s417 + $0x4] sm:$0xf] %v2409
      %s2414 = smul.u32 2, %s26
      %p2415 = scmp.lt.s32.totalorder %s25, 1
      %s2416 = scalar_select %p2415, %s25, 1
      %p2417 = scmp.lt.s32.totalorder %s2414, 1
      %s2418 = scalar_select %p2417, %s2414, 1
      %s2419 = smul.addr %s2416, 2
      %s2420 = sadd.s32 %s2418, %s2419
      %s2421 = smul.addr %s2420, 4
      %s2422 = scalar_lea.vmem %s10, %s2421
      // Predicated region
      $region61: #{inception1d_forward.12} parent=59 // pred_check
        %p2423 = pneg %p275
      $region62: #{inception1d_forward.12} parent=59 // pred_check_branch
        %2425 = sbr.rel (%p2423) target = $region64
      $region63: #{inception1d_forward.12} parent=59 // pred_region
        %s2426 = smul.u32 2, %s26
      $region64: #{inception1d_forward.12} parent=59 // pred_fallthru
        _
    $region60: #{inception1d_forward.12} parent=5 // pred_fallthru
      _
    %p2427 = scmp.le.s32.totalorder 2, %s16
    // Predicated region
    $region65: #{inception1d_forward.12} parent=5 // pred_check
      %p2428 = pneg %p2427
    $region66: #{inception1d_forward.12} parent=5 // pred_check_branch
      %2430 = sbr.rel (%p2428) target = $region68
    $region67: #{inception1d_forward.12} parent=5 // pred_region
      %s2431 = ssub.s32 %s16, 2
      // Predicated region
      $region69: #{inception1d_forward.12} parent=67 // pred_check
        %p2432 = pneg %p281
      $region70: #{inception1d_forward.12} parent=67 // pred_check_branch
        %2434 = sbr.rel (%p2432) target = $region72
      $region71: #{inception1d_forward.12} parent=67 // pred_region
        %s2435 = smul.u32 2, %s28
        %p2436 = scmp.lt.s32.totalorder %s27, 1
        %s2437 = scalar_select %p2436, %s27, 1
        %p2438 = scmp.lt.s32.totalorder %s2435, 1
        %s2439 = scalar_select %p2438, %s2435, 1
        %s2440 = smul.addr %s2437, 2
        %s2441 = sadd.s32 %s2439, %s2440
        %s2442 = smul.addr %s2441, 4
        %s2443 = scalar_lea.vmem %s10, %s2442
      $region72: #{inception1d_forward.12} parent=67 // pred_fallthru
        _
    $region68: #{inception1d_forward.12} parent=5 // pred_fallthru
      _
  $region6: #{inception1d_forward.12} parent=0 // loop_footer
    %s20 = sadd.s32 1, %s16
  $region7: #{inception1d_forward.12} parent=0 // loop_footer_branch
    %15 = sbr.rel target = $region3
  $region8: #{inception1d_forward.12} parent=0 // loop_exit
    _

// kernel: inception1d_forward.8
$region0: #{inception1d_forward.8}
  #allocation0 [shape = 'u32[]', space=smem, size = 0x4, offset = 0x4, fixed_abs, tag = 'smem constant byte address 0x4 - core index']
  #allocation1 [shape = 'u32[144,128]{1,0:T(1,128)}', space=vmem, size = 0x12000, scoped, tag = 'internal scratch']
  %s0 = inlined_call_operand.vmem [shape: bf16[2,56,128], index: 0, kind: input, shape index: {}]
  %s1 = inlined_call_operand.vmem [shape: bf16[128,32], index: 1, kind: input, shape index: {}]
  %s2 = inlined_call_operand.vmem [shape: bf16[1280,96], index: 2, kind: input, shape index: {}]
  %s3 = inlined_call_operand.vmem [shape: bf16[128,32], index: 3, kind: input, shape index: {}]
  %s4 = inlined_call_operand.vmem [shape: f32[1,128], index: 4, kind: input, shape index: {}]
  %s5 = inlined_call_operand.vmem [shape: f32[1,128], index: 5, kind: input, shape index: {}]
  %s6 = inlined_call_operand.vmem [shape: bf16[2,16,128], index: 6, kind: output, shape index: {}]
  %s7 = sld [smem:[#allocation0]]
  $region57: #{inception1d_forward.8} parent=0
    _
  %s9 = ssub.s32 1, %s7
  %s10 = scalar_select 0, %s9, %s7
  loop: start=0, step=1, limit=4
  $region2: #{inception1d_forward.8} parent=0 // loop_pre_header
    _
  $region3: #{inception1d_forward.8} parent=0 // loop_header
    %s12 = sphi 0, %s16
    %p13 = scmp.ge.s32.totalorder %s12, 4
    %s19 = sphi 0, %s31
    %s20 = sphi 0, %s27
    %s21 = sphi 0, %s19
    %s22 = sphi 0, %s20
    %s23 = sphi 0, %s21
    %s24 = sphi 0, %s22
    %s34 = sphi 0, %s36
    %s37 = sphi 0, %s34
    %s38 = sphi 0, %s37
    %s54 = sphi 0, %s38
    %s58 = sphi 0, %s58
    %s60 = sphi 0, %s58
    %s61 = sphi 0, %s60
    %s75 = sphi 0, %s61
    %s79 = sphi 0, %s79
    %s81 = sphi 0, %s79
    %s82 = sphi 0, %s81
    %s96 = sphi 0, %s82
    %s100 = sphi 0, %s100
    %s102 = sphi 0, %s100
    %s103 = sphi 0, %s102
    %s117 = sphi 0, %s103
    %s121 = sphi 0, %s121
    %s123 = sphi 0, %s121
    %s124 = sphi 0, %s123
    %s138 = sphi 0, %s124
    %s142 = sphi 0, %s142
    %s144 = sphi 0, %s142
    %s145 = sphi 0, %s144
    %s159 = sphi 0, %s145
    %s167 = sphi 0, %s169
    %s170 = sphi 0, %s167
    %s171 = sphi 0, %s170
    %s187 = sphi 0, %s171
  $region4: #{inception1d_forward.8} parent=0 // loop_header_branch
    %15 = sbr.rel (%p13) target = $region8
  $region5: #{inception1d_forward.8} parent=0 // loop_body
    %s17 = ssub.s32 %s12, 1
    %s18 = ssub.s32 %s12, 2
    %s25 = sadd.s32 1, %s20
    %p26 = scmp.ge.s32.totalorder %s25, 1
    %s27 = scalar_select %p26, 0, %s25
    %s28 = sadd.s32 1, %s19
    %s29 = scalar_select %p26, %s28, %s19
    %p30 = scmp.ge.s32.totalorder %s29, 2
    %s31 = scalar_select %p30, 0, %s29
    %s32 = ssub.s32 %s19, %s31
    %p33 = scmp.eq.s32.totalorder %s32, 0
    %s35 = sadd.s32 %s34, 1
    %s36 = scalar_select %p33, %s34, %s35
    %p39 = pneg %p33
    %p40 = scmp.eq.s32.totalorder %s12, 1
    %p41 = por %p39, %p40
    %p42 = scmp.ne.s32.totalorder %s34, %s37
    %p43 = scmp.eq.s32.totalorder %s12, 0
    %p44 = por %p42, %p43
    %p45 = scmp.ne.s32.totalorder %s34, %s37
    %p46 = scmp.eq.s32.totalorder %s17, 1
    %p47 = por %p45, %p46
    %p48 = scmp.ne.s32.totalorder %s37, %s38
    %p49 = scmp.eq.s32.totalorder %s17, 0
    %p50 = por %p48, %p49
    %p51 = scmp.ne.s32.totalorder %s37, %s38
    %p52 = scmp.eq.s32.totalorder %s18, 1
    %p53 = por %p51, %p52
    %p55 = scmp.ne.s32.totalorder %s38, %s54
    %p56 = scmp.eq.s32.totalorder %s18, 0
    %p57 = por %p55, %p56
    %s59 = sadd.s32 %s58, 1
    %p62 = scmp.eq.s32.totalorder %s12, 1
    %p63 = scmp.ne.s32.totalorder %s58, %s60
    %p64 = scmp.eq.s32.totalorder %s12, 0
    %p65 = por %p63, %p64
    %p66 = scmp.ne.s32.totalorder %s58, %s60
    %p67 = scmp.eq.s32.totalorder %s17, 1
    %p68 = por %p66, %p67
    %p69 = scmp.ne.s32.totalorder %s60, %s61
    %p70 = scmp.eq.s32.totalorder %s17, 0
    %p71 = por %p69, %p70
    %p72 = scmp.ne.s32.totalorder %s60, %s61
    %p73 = scmp.eq.s32.totalorder %s18, 1
    %p74 = por %p72, %p73
    %p76 = scmp.ne.s32.totalorder %s61, %s75
    %p77 = scmp.eq.s32.totalorder %s18, 0
    %p78 = por %p76, %p77
    %s80 = sadd.s32 %s79, 1
    %p83 = scmp.eq.s32.totalorder %s12, 1
    %p84 = scmp.ne.s32.totalorder %s79, %s81
    %p85 = scmp.eq.s32.totalorder %s12, 0
    %p86 = por %p84, %p85
    %p87 = scmp.ne.s32.totalorder %s79, %s81
    %p88 = scmp.eq.s32.totalorder %s17, 1
    %p89 = por %p87, %p88
    %p90 = scmp.ne.s32.totalorder %s81, %s82
    %p91 = scmp.eq.s32.totalorder %s17, 0
    %p92 = por %p90, %p91
    %p93 = scmp.ne.s32.totalorder %s81, %s82
    %p94 = scmp.eq.s32.totalorder %s18, 1
    %p95 = por %p93, %p94
    %p97 = scmp.ne.s32.totalorder %s82, %s96
    %p98 = scmp.eq.s32.totalorder %s18, 0
    %p99 = por %p97, %p98
    %s101 = sadd.s32 %s100, 1
    %p104 = scmp.eq.s32.totalorder %s12, 1
    %p105 = scmp.ne.s32.totalorder %s100, %s102
    %p106 = scmp.eq.s32.totalorder %s12, 0
    %p107 = por %p105, %p106
    %p108 = scmp.ne.s32.totalorder %s100, %s102
    %p109 = scmp.eq.s32.totalorder %s17, 1
    %p110 = por %p108, %p109
    %p111 = scmp.ne.s32.totalorder %s102, %s103
    %p112 = scmp.eq.s32.totalorder %s17, 0
    %p113 = por %p111, %p112
    %p114 = scmp.ne.s32.totalorder %s102, %s103
    %p115 = scmp.eq.s32.totalorder %s18, 1
    %p116 = por %p114, %p115
    %p118 = scmp.ne.s32.totalorder %s103, %s117
    %p119 = scmp.eq.s32.totalorder %s18, 0
    %p120 = por %p118, %p119
    %s122 = sadd.s32 %s121, 1
    %p125 = scmp.eq.s32.totalorder %s12, 1
    %p126 = scmp.ne.s32.totalorder %s121, %s123
    %p127 = scmp.eq.s32.totalorder %s12, 0
    %p128 = por %p126, %p127
    %p129 = scmp.ne.s32.totalorder %s121, %s123
    %p130 = scmp.eq.s32.totalorder %s17, 1
    %p131 = por %p129, %p130
    %p132 = scmp.ne.s32.totalorder %s123, %s124
    %p133 = scmp.eq.s32.totalorder %s17, 0
    %p134 = por %p132, %p133
    %p135 = scmp.ne.s32.totalorder %s123, %s124
    %p136 = scmp.eq.s32.totalorder %s18, 1
    %p137 = por %p135, %p136
    %p139 = scmp.ne.s32.totalorder %s124, %s138
    %p140 = scmp.eq.s32.totalorder %s18, 0
    %p141 = por %p139, %p140
    %s143 = sadd.s32 %s142, 1
    %p146 = scmp.eq.s32.totalorder %s12, 1
    %p147 = scmp.ne.s32.totalorder %s142, %s144
    %p148 = scmp.eq.s32.totalorder %s12, 0
    %p149 = por %p147, %p148
    %p150 = scmp.ne.s32.totalorder %s142, %s144
    %p151 = scmp.eq.s32.totalorder %s17, 1
    %p152 = por %p150, %p151
    %p153 = scmp.ne.s32.totalorder %s144, %s145
    %p154 = scmp.eq.s32.totalorder %s17, 0
    %p155 = por %p153, %p154
    %p156 = scmp.ne.s32.totalorder %s144, %s145
    %p157 = scmp.eq.s32.totalorder %s18, 1
    %p158 = por %p156, %p157
    %p160 = scmp.ne.s32.totalorder %s145, %s159
    %p161 = scmp.eq.s32.totalorder %s18, 0
    %p162 = por %p160, %p161
    %s163 = ssub.s32 %s19, %s31
    %s164 = ssub.s32 %s20, %s27
    %s165 = sor.u32 %s163, %s164
    %p166 = scmp.eq.s32.totalorder %s165, 0
    %s168 = sadd.s32 %s167, 1
    %s169 = scalar_select %p166, %s167, %s168
    %p172 = pneg %p166
    %p173 = scmp.eq.s32.totalorder %s12, 1
    %p174 = por %p172, %p173
    %p175 = scmp.ne.s32.totalorder %s167, %s170
    %p176 = scmp.eq.s32.totalorder %s12, 0
    %p177 = por %p175, %p176
    %p178 = scmp.ne.s32.totalorder %s167, %s170
    %p179 = scmp.eq.s32.totalorder %s17, 1
    %p180 = por %p178, %p179
    %p181 = scmp.ne.s32.totalorder %s170, %s171
    %p182 = scmp.eq.s32.totalorder %s17, 0
    %p183 = por %p181, %p182
    %p184 = scmp.ne.s32.totalorder %s170, %s171
    %p185 = scmp.eq.s32.totalorder %s18, 1
    %p186 = por %p184, %p185
    %p188 = scmp.ne.s32.totalorder %s171, %s187
    %p189 = scmp.eq.s32.totalorder %s18, 0
    %p190 = por %p188, %p189
    %p191 = scmp.le.s32.totalorder 1, %s12
    %p192 = scmp.lt.s32.totalorder %s12, 3
    %p193 = pnand %p191, %p192
    %p194 = pneg %p193
    // Predicated region
    $region9: #{inception1d_forward.8} parent=5 // pred_check
      _
    $region10: #{inception1d_forward.8} parent=5 // pred_check_branch
      %196 = sbr.rel (%p193) target = $region12
    $region11: #{inception1d_forward.8} parent=5 // pred_region
      %s197 = ssub.s32 %s12, 1
      // Predicated region
      $region13: #{inception1d_forward.8} parent=11 // pred_check
        %p198 = pneg %p71
      $region14: #{inception1d_forward.8} parent=11 // pred_check_branch
        %200 = sbr.rel (%p198) target = $region16
      $region15: #{inception1d_forward.8} parent=11 // pred_region
        _
      $region16: #{inception1d_forward.8} parent=11 // pred_fallthru
        _
      // Predicated region
      $region17: #{inception1d_forward.8} parent=11 // pred_check
        %p201 = pneg %p92
      $region18: #{inception1d_forward.8} parent=11 // pred_check_branch
        %203 = sbr.rel (%p201) target = $region20
      $region19: #{inception1d_forward.8} parent=11 // pred_region
        _
      $region20: #{inception1d_forward.8} parent=11 // pred_fallthru
        _
      // Predicated region
      $region21: #{inception1d_forward.8} parent=11 // pred_check
        %p204 = pneg %p113
      $region22: #{inception1d_forward.8} parent=11 // pred_check_branch
        %206 = sbr.rel (%p204) target = $region24
      $region23: #{inception1d_forward.8} parent=11 // pred_region
        _
      $region24: #{inception1d_forward.8} parent=11 // pred_fallthru
        _
      // Predicated region
      $region25: #{inception1d_forward.8} parent=11 // pred_check
        %p207 = pneg %p134
      $region26: #{inception1d_forward.8} parent=11 // pred_check_branch
        %209 = sbr.rel (%p207) target = $region28
      $region27: #{inception1d_forward.8} parent=11 // pred_region
        _
      $region28: #{inception1d_forward.8} parent=11 // pred_fallthru
        _
      // Predicated region
      $region29: #{inception1d_forward.8} parent=11 // pred_check
        %p210 = pneg %p155
      $region30: #{inception1d_forward.8} parent=11 // pred_check_branch
        %212 = sbr.rel (%p210) target = $region32
      $region31: #{inception1d_forward.8} parent=11 // pred_region
        _
      $region32: #{inception1d_forward.8} parent=11 // pred_fallthru
        _
    $region12: #{inception1d_forward.8} parent=5 // pred_fallthru
      _
    %p213 = scmp.lt.s32.totalorder %s12, 2
    // Predicated region
    $region33: #{inception1d_forward.8} parent=5 // pred_check
      %p214 = pneg %p213
    $region34: #{inception1d_forward.8} parent=5 // pred_check_branch
      %216 = sbr.rel (%p214) target = $region36
    $region35: #{inception1d_forward.8} parent=5 // pred_region
      // Predicated region
      $region37: #{inception1d_forward.8} parent=35 // pred_check
        %p217 = pneg %p44
      $region38: #{inception1d_forward.8} parent=35 // pred_check_branch
        %219 = sbr.rel (%p217) target = $region40
      $region39: #{inception1d_forward.8} parent=35 // pred_region
        %p220 = scmp.lt.s32.totalorder %s19, 1
        %s221 = scalar_select %p220, %s19, 1
        %s222 = smul.addr %s221, 7
        %s223 = smul.addr %s222, 4
        %s224 = scalar_lea.vmem %s0, %s223
      $region40: #{inception1d_forward.8} parent=35 // pred_fallthru
        _
    $region36: #{inception1d_forward.8} parent=5 // pred_fallthru
      _
    %p225 = scmp.le.s32.totalorder 1, %s12
    %p226 = scmp.lt.s32.totalorder %s12, 3
    %p227 = pnand %p225, %p226
    %p228 = pneg %p227
    // Predicated region
    $region41: #{inception1d_forward.8} parent=5 // pred_check
      _
    $region42: #{inception1d_forward.8} parent=5 // pred_check_branch
      %230 = sbr.rel (%p227) target = $region44
    $region43: #{inception1d_forward.8} parent=5 // pred_region
      %s231 = ssub.s32 %s12, 1
      %p232 = scmp.lt.s32.totalorder %s21, 1
      %s233 = scalar_select %p232, %s21, 1
      %s234 = smul.addr %s233, 7
      %s235 = smul.addr %s234, 4
      %s236 = scalar_lea.vmem %s0, %s235
      %p237 = pneg %p50
      %p238 = pneg %p47
      %p239 = pneg %p71
      %p240 = pneg %p68
      %p241 = pneg %p92
      %p242 = pneg %p89
      %p243 = pneg %p113
      %p244 = pneg %p110
      %p245 = pneg %p134
      %p246 = pneg %p131
      %p247 = pneg %p155
      %p248 = pneg %p152
      %p249 = pneg %p183
      %p250 = pneg %p180
      %s251 = smul.u32 2, %s22
      %p252 = scmp.lt.s32.totalorder %s21, 1
      %s253 = scalar_select %p252, %s21, 1
      %p254 = scmp.lt.s32.totalorder %s251, 1
      %s255 = scalar_select %p254, %s251, 1
      %s256 = smul.addr %s253, 2
      %s257 = sadd.s32 %s255, %s256
      %s258 = smul.addr %s257, 4
      %s259 = scalar_lea.vmem %s6, %s258
      %p260 = scmp.lt.s32.totalorder %s21, 1
      %s261 = scalar_select %p260, %s21, 1
      %s262 = smul.addr %s261, 7
      %s263 = smul.addr %s262, 4
      %s264 = scalar_lea.vmem %s0, %s263
      %s265 = smul.u32 2, %s22
      %p266 = scmp.lt.s32.totalorder %s21, 1
      %s267 = scalar_select %p266, %s21, 1
      %p268 = scmp.lt.s32.totalorder %s265, 1
      %s269 = scalar_select %p268, %s265, 1
      %s270 = smul.addr %s267, 2
      %s271 = sadd.s32 %s269, %s270
      %s272 = smul.addr %s271, 4
      %s273 = scalar_lea.vmem %s6, %s272
      %s274 = smul.u32 2, %s22
      %s279 = smul.u32 %s22, 16
      %s280 = sshra.s32 %s279, 3
      %s281 = sand.u32 %s279, 7
      %s282 = smul.addr %s280, 4
      %s283 = scalar_lea.vmem %s264, %s282
      %v284 = vld [vmem:[%s283] sm:$0xf]
      %v285 = vld [vmem:[%s283 + $0x4] sm:$0xf]
      %v286 = vld [vmem:[%s283 + $0x8] sm:$0xf]
      %v287 = vld [vmem:[%s283 + $0xc] sm:$0xf]
      %v288 = vld [vmem:[%s283 + $0x10] sm:$0xf]
      %v289 = vld [vmem:[%s283 + $0x14] sm:$0xf]
      %v290 = vld [vmem:[%s283 + $0x18] sm:$0xf]
      %v291 = vld [vmem:[%s1] sm:$0xf]
      %v292 = vld [vmem:[%s1 + $0x4] sm:$0xf]
      %v293 = vld [vmem:[%s1 + $0x8] sm:$0xf]
      %v294 = vld [vmem:[%s1 + $0xc] sm:$0xf]
      %v295 = vld [vmem:[%s1 + $0x10] sm:$0xf]
      %v296 = vld [vmem:[%s1 + $0x14] sm:$0xf]
      %v297 = vld [vmem:[%s1 + $0x18] sm:$0xf]
      %v298 = vld [vmem:[%s1 + $0x1c] sm:$0xf]
      %v299 = vld [vmem:[%s1 + $0x20] sm:$0xf]
      %v300 = vld [vmem:[%s1 + $0x24] sm:$0xf]
      %v301 = vld [vmem:[%s1 + $0x28] sm:$0xf]
      %v302 = vld [vmem:[%s1 + $0x2c] sm:$0xf]
      %v303 = vld [vmem:[%s1 + $0x30] sm:$0xf]
      %v304 = vld [vmem:[%s1 + $0x34] sm:$0xf]
      %v305 = vld [vmem:[%s1 + $0x38] sm:$0xf]
      %v306 = vld [vmem:[%s1 + $0x3c] sm:$0xf]
      %v314 = vunpack.c.l.b16 %v284
      %v315 = vunpack.c.l.b16 %v285
      %v316 = vunpack.c.l.b16 %v286
      %v317 = vunpack.c.l.b16 %v287
      %v318 = vunpack.c.l.b16 %v288
      %v319 = vunpack.c.l.b16 %v289
      %v320 = vunpack.c.l.b16 %v290
      %v321 = vpack.c.b16 %v315, %v314
      %v322 = vpack.c.b16 %v317, %v316
      %v323 = vpack.c.b16 %v319, %v318
      %v324 = vpack.c.b16 %v320, %v320
      %v345 = vunpack.c.l.b16 %v291
      %v346 = vunpack.c.l.b16 %v292
      %v347 = vunpack.c.l.b16 %v293
      %v348 = vunpack.c.l.b16 %v294
      %v349 = vunpack.c.l.b16 %v295
      %v350 = vunpack.c.l.b16 %v296
      %v351 = vunpack.c.l.b16 %v297
      %v352 = vunpack.c.l.b16 %v298
      %v353 = vunpack.c.l.b16 %v299
      %v354 = vunpack.c.l.b16 %v300
      %v355 = vunpack.c.l.b16 %v301
      %v356 = vunpack.c.l.b16 %v302
      %v357 = vunpack.c.l.b16 %v303
      %v358 = vunpack.c.l.b16 %v304
      %v359 = vunpack.c.l.b16 %v305
      %v360 = vunpack.c.l.b16 %v306
      %v361 = vpack.c.b16 %v346, %v345
      %v362 = vpack.c.b16 %v348, %v347
      %v363 = vpack.c.b16 %v350, %v349
      %v364 = vpack.c.b16 %v352, %v351
      %v365 = vpack.c.b16 %v354, %v353
      %v366 = vpack.c.b16 %v356, %v355
      %v367 = vpack.c.b16 %v358, %v357
      %v368 = vpack.c.b16 %v360, %v359
      %377 = vmatprep.subr.bf16.mxu0 0
      %378 = vmatpush1.bf16.msra.mxu0 %v361
      %379 = vmatprep.subr.bf16.mxu0 0
      %380 = vmatpush1.bf16.msra.mxu0 %v362
      %381 = vmatprep.subr.bf16.mxu0 0
      %382 = vmatpush1.bf16.msra.mxu0 %v363
      %383 = vmatprep.subr.bf16.mxu0 0
      %384 = vmatpush1.bf16.msra.mxu0 %v364
      %385 = vmatprep.subr.bf16.mxu0 0
      %386 = vmatpush1.bf16.msra.mxu0 %v365
      %387 = vmatprep.subr.bf16.mxu0 0
      %388 = vmatpush1.bf16.msra.mxu0 %v366
      %389 = vmatprep.subr.bf16.mxu0 0
      %390 = vmatpush1.bf16.msra.mxu0 %v367
      %391 = vmatprep.subr.bf16.mxu0 0
      %392 = vmatpush1.bf16.msra.mxu0 %v368
      %393 = vmatprep.subr.bf16.mxu0 0
      %394 = vmatpush1.bf16.msra.mxu0 0
      %395 = vmatprep.subr.bf16.mxu0 0
      %396 = vmatpush1.bf16.msra.mxu0 0
      %397 = vmatprep.subr.bf16.mxu0 0
      %398 = vmatpush1.bf16.msra.mxu0 0
      %399 = vmatprep.subr.bf16.mxu0 0
      %400 = vmatpush1.bf16.msra.mxu0 0
      %401 = vmatprep.subr.bf16.mxu0 0
      %402 = vmatpush1.bf16.msra.mxu0 0
      %403 = vmatprep.subr.bf16.mxu0 0
      %404 = vmatpush1.bf16.msra.mxu0 0
      %405 = vmatprep.subr.bf16.mxu0 0
      %406 = vmatpush1.bf16.msra.mxu0 0
      %407 = vmatprep.subr.bf16.mxu0 0
      %408 = vmatpush1.bf16.msra.mxu0 0
      %409 = vmatprep.mubr.bf16.mxu0 0
      %410 = vmatmul.mubr.bf16.gmra.mrb[0].mxu0 %v321
      %v411 = vpop.f32.mrb[0].mxu0
      %v412 = vadd.f32 0.0, %v411
      %v413 = vpop.f32.mrb[0].mxu0
      %v414 = vpop.f32.mrb[0].mxu0
      %v415 = vadd.f32 0.0, %v414
      %v416 = vpop.f32.mrb[0].mxu0
      %417 = vmatprep.mubr.bf16.mxu0 0
      %418 = vmatmul.mubr.bf16.gmra.mrb[0].mxu0 %v322
      %v419 = vpop.f32.mrb[0].mxu0
      %v420 = vadd.f32 0.0, %v419
      %v421 = vpop.f32.mrb[0].mxu0
      %v422 = vpop.f32.mrb[0].mxu0
      %v423 = vadd.f32 0.0, %v422
      %v424 = vpop.f32.mrb[0].mxu0
      %425 = vmatprep.mubr.bf16.mxu0 0
      %426 = vmatmul.mubr.bf16.gmra.mrb[0].mxu0 %v323
      %v427 = vpop.f32.mrb[0].mxu0
      %v428 = vadd.f32 0.0, %v427
      %v429 = vpop.f32.mrb[0].mxu0
      %v430 = vpop.f32.mrb[0].mxu0
      %v431 = vadd.f32 0.0, %v430
      %v432 = vpop.f32.mrb[0].mxu0
      %433 = vmatprep.mubr.bf16.mxu0 0
      %434 = vmatmul.mubr.bf16.gmra.mrb[0].mxu0 %v324
      %v435 = vpop.f32.mrb[0].mxu0
      %v436 = vadd.f32 0.0, %v435
      %v437 = vpop.f32.mrb[0].mxu0
      %v438 = vpop.f32.mrb[0].mxu0
      %v439 = vpop.f32.mrb[0].mxu0
      %440 = vdwg.mxu0
      %v441 = vpack.c.bf16 %v415, %v412
      %v442 = vpack.c.bf16 %v423, %v420
      %v443 = vpack.c.bf16 %v431, %v428
      %v444 = vpack.c.bf16 %v436, %v436
      %vm445 = vsmask.f32 7424
      %v447 = vshrl.u32 %v441, 16
      %v449 = vshll.u32 %v441, 16
      %v451 = vrot.slane %v449, 1
      %v452 = vor.u32 %v447, %v451
      %v454 = vshll.u32 %v442, 16
      %v456 = vrot.slane %v454, 1
      %v457 = vsel %vm445, %v452, %v456
      %v458 = vshrl.u32 %v442, 16
      %460 = vrot.lane.b32.xlu0 %v457, 32
      %v461 = vpop.permute.xlu0 %460
      %462 = vrot.lane.b32.xlu0 %v458, 32
      %v463 = vpop.permute.xlu0 %462
      %vm466 = vcmask 1046528
      %v467 = vrot.slane %v441, 1
      %v468 = vrot.slane %v442, 1
      %v469 = vsel %vm466, %v467, %v468
      %470 = vrot.lane.b32.xlu0 %v469, 64
      %v471 = vpop.permute.xlu0 %470
      %472 = vrot.lane.b32.xlu0 %v468, 64
      %v473 = vpop.permute.xlu0 %472
      %vm474 = vsmask.f32 6400
      %v475 = vrot.slane %v447, 1
      %v476 = vrot.slane %v449, 2
      %v477 = vor.u32 %v475, %v476
      %v478 = vrot.slane %v458, 1
      %v479 = vrot.slane %v454, 2
      %v480 = vor.u32 %v478, %v479
      %v481 = vsel %vm474, %v477, %v480
      %482 = vrot.lane.b32.xlu0 %v481, 96
      %v483 = vpop.permute.xlu0 %482
      %484 = vrot.lane.b32.xlu0 %v478, 96
      %v485 = vpop.permute.xlu0 %484
      %vm486 = vcmask 1045504
      %v487 = vrot.slane %v441, 2
      %v488 = vrot.slane %v442, 2
      %v489 = vsel %vm486, %v487, %v488
      %vm490 = vsmask.f32 5376
      %v491 = vrot.slane %v447, 2
      %v492 = vrot.slane %v449, 3
      %v493 = vor.u32 %v491, %v492
      %v494 = vrot.slane %v458, 2
      %v495 = vrot.slane %v454, 3
      %v496 = vor.u32 %v494, %v495
      %v497 = vsel %vm490, %v493, %v496
      %498 = vrot.lane.b32.xlu0 %v497, 32
      %v499 = vpop.permute.xlu0 %498
      %500 = vrot.lane.b32.xlu0 %v494, 32
      %v501 = vpop.permute.xlu0 %500
      %vm502 = vcmask 1044480
      %v503 = vrot.slane %v441, 3
      %v504 = vrot.slane %v442, 3
      %v505 = vsel %vm502, %v503, %v504
      %506 = vrot.lane.b32.xlu0 %v505, 64
      %v507 = vpop.permute.xlu0 %506
      %508 = vrot.lane.b32.xlu0 %v504, 64
      %v509 = vpop.permute.xlu0 %508
      %vm510 = vsmask.f32 4352
      %v511 = vrot.slane %v447, 3
      %v512 = vrot.slane %v449, 4
      %v513 = vor.u32 %v511, %v512
      %v514 = vrot.slane %v458, 3
      %v515 = vrot.slane %v454, 4
      %v516 = vor.u32 %v514, %v515
      %v517 = vsel %vm510, %v513, %v516
      %518 = vrot.lane.b32.xlu0 %v517, 96
      %v519 = vpop.permute.xlu0 %518
      %520 = vrot.lane.b32.xlu0 %v514, 96
      %v521 = vpop.permute.xlu0 %520
      %vm522 = vcmask 1043456
      %v523 = vrot.slane %v441, 4
      %v524 = vrot.slane %v442, 4
      %v525 = vsel %vm522, %v523, %v524
      %vm526 = vsmask.f32 3328
      %v527 = vrot.slane %v447, 4
      %v528 = vrot.slane %v449, 5
      %v529 = vor.u32 %v527, %v528
      %v530 = vrot.slane %v458, 4
      %v531 = vrot.slane %v454, 5
      %v532 = vor.u32 %v530, %v531
      %v533 = vsel %vm526, %v529, %v532
      %534 = vrot.lane.b32.xlu0 %v533, 32
      %v535 = vpop.permute.xlu0 %534
      %536 = vrot.lane.b32.xlu0 %v530, 32
      %v537 = vpop.permute.xlu0 %536
      %vm538 = vcmask 1042432
      %v539 = vrot.slane %v441, 5
      %v540 = vrot.slane %v442, 5
      %v541 = vsel %vm538, %v539, %v540
      %542 = vrot.lane.b32.xlu0 %v541, 64
      %v543 = vpop.permute.xlu0 %542
      %544 = vrot.lane.b32.xlu0 %v540, 64
      %v545 = vpop.permute.xlu0 %544
      %vm546 = vsmask.f32 2304
      %v547 = vrot.slane %v447, 5
      %v548 = vrot.slane %v449, 6
      %v549 = vor.u32 %v547, %v548
      %v550 = vrot.slane %v458, 5
      %v551 = vrot.slane %v454, 6
      %v552 = vor.u32 %v550, %v551
      %v553 = vsel %vm546, %v549, %v552
      %554 = vrot.lane.b32.xlu0 %v553, 96
      %v555 = vpop.permute.xlu0 %554
      %556 = vrot.lane.b32.xlu0 %v550, 96
      %v557 = vpop.permute.xlu0 %556
      %vm558 = vcmask 1041408
      %v559 = vrot.slane %v441, 6
      %v560 = vrot.slane %v442, 6
      %v561 = vsel %vm558, %v559, %v560
      %vm562 = vsmask.f32 1280
      %v563 = vrot.slane %v447, 6
      %v564 = vrot.slane %v449, 7
      %v565 = vor.u32 %v563, %v564
      %v566 = vrot.slane %v458, 6
      %v567 = vrot.slane %v454, 7
      %v568 = vor.u32 %v566, %v567
      %v569 = vsel %vm562, %v565, %v568
      %570 = vrot.lane.b32.xlu0 %v569, 32
      %v571 = vpop.permute.xlu0 %570
      %572 = vrot.lane.b32.xlu0 %v566, 32
      %v573 = vpop.permute.xlu0 %572
      %vm574 = vcmask 1040384
      %v575 = vrot.slane %v441, 7
      %v576 = vrot.slane %v442, 7
      %v577 = vsel %vm574, %v575, %v576
      %578 = vrot.lane.b32.xlu0 %v577, 64
      %v579 = vpop.permute.xlu0 %578
      %580 = vrot.lane.b32.xlu0 %v576, 64
      %v581 = vpop.permute.xlu0 %580
      %v582 = vrot.slane %v458, 7
      %v583 = vor.u32 %v582, %v454
      %584 = vrot.lane.b32.xlu0 %v583, 96
      %v585 = vpop.permute.xlu0 %584
      %586 = vrot.lane.b32.xlu0 %v582, 96
      %v587 = vpop.permute.xlu0 %586
      %vm588 = vcmask 261120
      %v590 = vsel %vm588, %v441, %v461
      %v592 = vsel %vm588, %v442, %v463
      %vm593 = vcmask 523264
      %v595 = vsel %vm593, %v590, %v471
      %v597 = vsel %vm593, %v592, %v473
      %vm598 = vcmask 785408
      %v600 = vsel %vm598, %v595, %v483
      %v602 = vsel %vm598, %v597, %v485
      %v605 = vsel %vm588, %v489, %v499
      %v608 = vsel %vm588, %v488, %v501
      %v610 = vsel %vm593, %v605, %v507
      %v612 = vsel %vm593, %v608, %v509
      %v614 = vsel %vm598, %v610, %v519
      %v616 = vsel %vm598, %v612, %v521
      %v619 = vsel %vm588, %v525, %v535
      %v622 = vsel %vm588, %v524, %v537
      %v624 = vsel %vm593, %v619, %v543
      %v626 = vsel %vm593, %v622, %v545
      %v628 = vsel %vm598, %v624, %v555
      %v630 = vsel %vm598, %v626, %v557
      %v633 = vsel %vm588, %v561, %v571
      %v636 = vsel %vm588, %v560, %v573
      %v638 = vsel %vm593, %v633, %v579
      %v640 = vsel %vm593, %v636, %v581
      %v642 = vsel %vm598, %v638, %v585
      %v644 = vsel %vm598, %v640, %v587
      %v645 = vor.u32 %v458, %v456
      %v647 = vshll.u32 %v443, 16
      %v649 = vrot.slane %v647, 1
      %v650 = vsel %vm445, %v645, %v649
      %v651 = vshrl.u32 %v443, 16
      %653 = vrot.lane.b32.xlu0 %v650, 32
      %v654 = vpop.permute.xlu0 %653
      %655 = vrot.lane.b32.xlu0 %v651, 32
      %v656 = vpop.permute.xlu0 %655
      %v658 = vrot.slane %v443, 1
      %v659 = vsel %vm466, %v468, %v658
      %660 = vrot.lane.b32.xlu0 %v659, 64
      %v661 = vpop.permute.xlu0 %660
      %662 = vrot.lane.b32.xlu0 %v658, 64
      %v663 = vpop.permute.xlu0 %662
      %v664 = vrot.slane %v651, 1
      %v665 = vrot.slane %v647, 2
      %v666 = vor.u32 %v664, %v665
      %v667 = vsel %vm474, %v480, %v666
      %668 = vrot.lane.b32.xlu0 %v667, 96
      %v669 = vpop.permute.xlu0 %668
      %670 = vrot.lane.b32.xlu0 %v664, 96
      %v671 = vpop.permute.xlu0 %670
      %v672 = vrot.slane %v443, 2
      %v673 = vsel %vm486, %v488, %v672
      %v674 = vrot.slane %v651, 2
      %v675 = vrot.slane %v647, 3
      %v676 = vor.u32 %v674, %v675
      %v677 = vsel %vm490, %v496, %v676
      %678 = vrot.lane.b32.xlu0 %v677, 32
      %v679 = vpop.permute.xlu0 %678
      %680 = vrot.lane.b32.xlu0 %v674, 32
      %v681 = vpop.permute.xlu0 %680
      %v682 = vrot.slane %v443, 3
      %v683 = vsel %vm502, %v504, %v682
      %684 = vrot.lane.b32.xlu0 %v683, 64
      %v685 = vpop.permute.xlu0 %684
      %686 = vrot.lane.b32.xlu0 %v682, 64
      %v687 = vpop.permute.xlu0 %686
      %v688 = vrot.slane %v651, 3
      %v689 = vrot.slane %v647, 4
      %v690 = vor.u32 %v688, %v689
      %v691 = vsel %vm510, %v516, %v690
      %692 = vrot.lane.b32.xlu0 %v691, 96
      %v693 = vpop.permute.xlu0 %692
      %694 = vrot.lane.b32.xlu0 %v688, 96
      %v695 = vpop.permute.xlu0 %694
      %v696 = vrot.slane %v443, 4
      %v697 = vsel %vm522, %v524, %v696
      %v698 = vrot.slane %v651, 4
      %v699 = vrot.slane %v647, 5
      %v700 = vor.u32 %v698, %v699
      %v701 = vsel %vm526, %v532, %v700
      %702 = vrot.lane.b32.xlu0 %v701, 32
      %v703 = vpop.permute.xlu0 %702
      %704 = vrot.lane.b32.xlu0 %v698, 32
      %v705 = vpop.permute.xlu0 %704
      %v706 = vrot.slane %v443, 5
      %v707 = vsel %vm538, %v540, %v706
      %708 = vrot.lane.b32.xlu0 %v707, 64
      %v709 = vpop.permute.xlu0 %708
      %710 = vrot.lane.b32.xlu0 %v706, 64
      %v711 = vpop.permute.xlu0 %710
      %v712 = vrot.slane %v651, 5
      %v713 = vrot.slane %v647, 6
      %v714 = vor.u32 %v712, %v713
      %v715 = vsel %vm546, %v552, %v714
      %716 = vrot.lane.b32.xlu0 %v715, 96
      %v717 = vpop.permute.xlu0 %716
      %718 = vrot.lane.b32.xlu0 %v712, 96
      %v719 = vpop.permute.xlu0 %718
      %v720 = vrot.slane %v443, 6
      %v721 = vsel %vm558, %v560, %v720
      %v722 = vrot.slane %v651, 6
      %v723 = vrot.slane %v647, 7
      %v724 = vor.u32 %v722, %v723
      %v725 = vsel %vm562, %v568, %v724
      %726 = vrot.lane.b32.xlu0 %v725, 32
      %v727 = vpop.permute.xlu0 %726
      %728 = vrot.lane.b32.xlu0 %v722, 32
      %v729 = vpop.permute.xlu0 %728
      %v730 = vrot.slane %v443, 7
      %v731 = vsel %vm574, %v576, %v730
      %732 = vrot.lane.b32.xlu0 %v731, 64
      %v733 = vpop.permute.xlu0 %732
      %734 = vrot.lane.b32.xlu0 %v730, 64
      %v735 = vpop.permute.xlu0 %734
      %v736 = vrot.slane %v651, 7
      %v737 = vor.u32 %v736, %v647
      %738 = vrot.lane.b32.xlu0 %v737, 96
      %v739 = vpop.permute.xlu0 %738
      %740 = vrot.lane.b32.xlu0 %v736, 96
      %v741 = vpop.permute.xlu0 %740
      %v743 = vsel %vm588, %v442, %v654
      %v745 = vsel %vm588, %v443, %v656
      %v747 = vsel %vm593, %v743, %v661
      %v749 = vsel %vm593, %v745, %v663
      %v751 = vsel %vm598, %v747, %v669
      %v753 = vsel %vm598, %v749, %v671
      %v756 = vsel %vm588, %v673, %v679
      %v759 = vsel %vm588, %v672, %v681
      %v761 = vsel %vm593, %v756, %v685
      %v763 = vsel %vm593, %v759, %v687
      %v765 = vsel %vm598, %v761, %v693
      %v767 = vsel %vm598, %v763, %v695
      %v770 = vsel %vm588, %v697, %v703
      %v773 = vsel %vm588, %v696, %v705
      %v775 = vsel %vm593, %v770, %v709
      %v777 = vsel %vm593, %v773, %v711
      %v779 = vsel %vm598, %v775, %v717
      %v781 = vsel %vm598, %v777, %v719
      %v784 = vsel %vm588, %v721, %v727
      %v787 = vsel %vm588, %v720, %v729
      %v789 = vsel %vm593, %v784, %v733
      %v791 = vsel %vm593, %v787, %v735
      %v793 = vsel %vm598, %v789, %v739
      %v795 = vsel %vm598, %v791, %v741
      %v796 = vor.u32 %v651, %v649
      %v798 = vshll.u32 %v444, 16
      %v800 = vrot.slane %v798, 1
      %v801 = vsel %vm445, %v796, %v800
      %v802 = vshrl.u32 %v444, 16
      %804 = vrot.lane.b32.xlu0 %v801, 32
      %v805 = vpop.permute.xlu0 %804
      %806 = vrot.lane.b32.xlu0 %v802, 32
      %v807 = vpop.permute.xlu0 %806
      %v809 = vrot.slane %v444, 1
      %v810 = vsel %vm466, %v658, %v809
      %811 = vrot.lane.b32.xlu0 %v810, 64
      %v812 = vpop.permute.xlu0 %811
      %813 = vrot.lane.b32.xlu0 %v809, 64
      %v814 = vpop.permute.xlu0 %813
      %v815 = vrot.slane %v802, 1
      %v816 = vrot.slane %v798, 2
      %v817 = vor.u32 %v815, %v816
      %v818 = vsel %vm474, %v666, %v817
      %819 = vrot.lane.b32.xlu0 %v818, 96
      %v820 = vpop.permute.xlu0 %819
      %821 = vrot.lane.b32.xlu0 %v815, 96
      %v822 = vpop.permute.xlu0 %821
      %v823 = vrot.slane %v444, 2
      %v824 = vsel %vm486, %v672, %v823
      %v825 = vrot.slane %v802, 2
      %v826 = vrot.slane %v798, 3
      %v827 = vor.u32 %v825, %v826
      %v828 = vsel %vm490, %v676, %v827
      %829 = vrot.lane.b32.xlu0 %v828, 32
      %v830 = vpop.permute.xlu0 %829
      %831 = vrot.lane.b32.xlu0 %v825, 32
      %v832 = vpop.permute.xlu0 %831
      %v833 = vrot.slane %v444, 3
      %v834 = vsel %vm502, %v682, %v833
      %835 = vrot.lane.b32.xlu0 %v834, 64
      %v836 = vpop.permute.xlu0 %835
      %837 = vrot.lane.b32.xlu0 %v833, 64
      %v838 = vpop.permute.xlu0 %837
      %v839 = vrot.slane %v802, 3
      %v840 = vrot.slane %v798, 4
      %v841 = vor.u32 %v839, %v840
      %v842 = vsel %vm510, %v690, %v841
      %843 = vrot.lane.b32.xlu0 %v842, 96
      %v844 = vpop.permute.xlu0 %843
      %845 = vrot.lane.b32.xlu0 %v839, 96
      %v846 = vpop.permute.xlu0 %845
      %v848 = vsel %vm588, %v443, %v805
      %v850 = vsel %vm588, %v444, %v807
      %v852 = vsel %vm593, %v848, %v812
      %v854 = vsel %vm593, %v850, %v814
      %v856 = vsel %vm598, %v852, %v820
      %v858 = vsel %vm598, %v854, %v822
      %v861 = vsel %vm588, %v824, %v830
      %v864 = vsel %vm588, %v823, %v832
      %v866 = vsel %vm593, %v861, %v836
      %v868 = vsel %vm593, %v864, %v838
      %v870 = vsel %vm598, %v866, %v844
      %v872 = vsel %vm598, %v868, %v846
      %v873 = vld [vmem:[%s2] sm:$0xf]
      %v874 = vld [vmem:[%s2 + $0x4] sm:$0xf]
      %v875 = vld [vmem:[%s2 + $0x8] sm:$0xf]
      %v876 = vld [vmem:[%s2 + $0xc] sm:$0xf]
      %v877 = vld [vmem:[%s2 + $0x10] sm:$0xf]
      %v878 = vld [vmem:[%s2 + $0x14] sm:$0xf]
      %v879 = vld [vmem:[%s2 + $0x18] sm:$0xf]
      %v880 = vld [vmem:[%s2 + $0x1c] sm:$0xf]
      %v881 = vld [vmem:[%s2 + $0x20] sm:$0xf]
      %v882 = vld [vmem:[%s2 + $0x24] sm:$0xf]
      %v883 = vld [vmem:[%s2 + $0x28] sm:$0xf]
      %v884 = vld [vmem:[%s2 + $0x2c] sm:$0xf]
      %v885 = vld [vmem:[%s2 + $0x30] sm:$0xf]
      %v886 = vld [vmem:[%s2 + $0x34] sm:$0xf]
      %v887 = vld [vmem:[%s2 + $0x38] sm:$0xf]
      %v888 = vld [vmem:[%s2 + $0x3c] sm:$0xf]
      %v889 = vld [vmem:[%s2 + $0x40] sm:$0xf]
      %v890 = vld [vmem:[%s2 + $0x44] sm:$0xf]
      %v891 = vld [vmem:[%s2 + $0x48] sm:$0xf]
      %v892 = vld [vmem:[%s2 + $0x4c] sm:$0xf]
      %v893 = vld [vmem:[%s2 + $0x50] sm:$0xf]
      %v894 = vld [vmem:[%s2 + $0x54] sm:$0xf]
      %v895 = vld [vmem:[%s2 + $0x58] sm:$0xf]
      %v896 = vld [vmem:[%s2 + $0x5c] sm:$0xf]
      %v897 = vld [vmem:[%s2 + $0x60] sm:$0xf]
      %v898 = vld [vmem:[%s2 + $0x64] sm:$0xf]
      %v899 = vld [vmem:[%s2 + $0x68] sm:$0xf]
      %v900 = vld [vmem:[%s2 + $0x6c] sm:$0xf]
      %v901 = vld [vmem:[%s2 + $0x70] sm:$0xf]
      %v902 = vld [vmem:[%s2 + $0x74] sm:$0xf]
      %v903 = vld [vmem:[%s2 + $0x78] sm:$0xf]
      %v904 = vld [vmem:[%s2 + $0x7c] sm:$0xf]
      %v905 = vld [vmem:[%s2 + $0x80] sm:$0xf]
      %v906 = vld [vmem:[%s2 + $0x84] sm:$0xf]
      %v907 = vld [vmem:[%s2 + $0x88] sm:$0xf]
      %v908 = vld [vmem:[%s2 + $0x8c] sm:$0xf]
      %v909 = vld [vmem:[%s2 + $0x90] sm:$0xf]
      %v910 = vld [vmem:[%s2 + $0x94] sm:$0xf]
      %v911 = vld [vmem:[%s2 + $0x98] sm:$0xf]
      %v912 = vld [vmem:[%s2 + $0x9c] sm:$0xf]
      %v913 = vld [vmem:[%s2 + $0xa0] sm:$0xf]
      %v914 = vld [vmem:[%s2 + $0xa4] sm:$0xf]
      %v915 = vld [vmem:[%s2 + $0xa8] sm:$0xf]
      %v916 = vld [vmem:[%s2 + $0xac] sm:$0xf]
      %v917 = vld [vmem:[%s2 + $0xb0] sm:$0xf]
      %v918 = vld [vmem:[%s2 + $0xb4] sm:$0xf]
      %v919 = vld [vmem:[%s2 + $0xb8] sm:$0xf]
      %v920 = vld [vmem:[%s2 + $0xbc] sm:$0xf]
      %v921 = vld [vmem:[%s2 + $0xc0] sm:$0xf]
      %v922 = vld [vmem:[%s2 + $0xc4] sm:$0xf]
      %v923 = vld [vmem:[%s2 + $0xc8] sm:$0xf]
      %v924 = vld [vmem:[%s2 + $0xcc] sm:$0xf]
      %v925 = vld [vmem:[%s2 + $0xd0] sm:$0xf]
      %v926 = vld [vmem:[%s2 + $0xd4] sm:$0xf]
      %v927 = vld [vmem:[%s2 + $0xd8] sm:$0xf]
      %v928 = vld [vmem:[%s2 + $0xdc] sm:$0xf]
      %v929 = vld [vmem:[%s2 + $0xe0] sm:$0xf]
      %v930 = vld [vmem:[%s2 + $0xe4] sm:$0xf]
      %v931 = vld [vmem:[%s2 + $0xe8] sm:$0xf]
      %v932 = vld [vmem:[%s2 + $0xec] sm:$0xf]
      %v933 = vld [vmem:[%s2 + $0xf0] sm:$0xf]
      %v934 = vld [vmem:[%s2 + $0xf4] sm:$0xf]
      %v935 = vld [vmem:[%s2 + $0xf8] sm:$0xf]
      %v936 = vld [vmem:[%s2 + $0xfc] sm:$0xf]
      %v937 = vld [vmem:[%s2 + $0x100] sm:$0xf]
      %v938 = vld [vmem:[%s2 + $0x104] sm:$0xf]
      %v939 = vld [vmem:[%s2 + $0x108] sm:$0xf]
      %v940 = vld [vmem:[%s2 + $0x10c] sm:$0xf]
      %v941 = vld [vmem:[%s2 + $0x110] sm:$0xf]
      %v942 = vld [vmem:[%s2 + $0x114] sm:$0xf]
      %v943 = vld [vmem:[%s2 + $0x118] sm:$0xf]
      %v944 = vld [vmem:[%s2 + $0x11c] sm:$0xf]
      %v945 = vld [vmem:[%s2 + $0x120] sm:$0xf]
      %v946 = vld [vmem:[%s2 + $0x124] sm:$0xf]
      %v947 = vld [vmem:[%s2 + $0x128] sm:$0xf]
      %v948 = vld [vmem:[%s2 + $0x12c] sm:$0xf]
      %v949 = vld [vmem:[%s2 + $0x130] sm:$0xf]
      %v950 = vld [vmem:[%s2 + $0x134] sm:$0xf]
      %v951 = vld [vmem:[%s2 + $0x138] sm:$0xf]
      %v952 = vld [vmem:[%s2 + $0x13c] sm:$0xf]
      %v953 = vld [vmem:[%s2 + $0x140] sm:$0xf]
      %v954 = vld [vmem:[%s2 + $0x144] sm:$0xf]
      %v955 = vld [vmem:[%s2 + $0x148] sm:$0xf]
      %v956 = vld [vmem:[%s2 + $0x14c] sm:$0xf]
      %v957 = vld [vmem:[%s2 + $0x150] sm:$0xf]
      %v958 = vld [vmem:[%s2 + $0x154] sm:$0xf]
      %v959 = vld [vmem:[%s2 + $0x158] sm:$0xf]
      %v960 = vld [vmem:[%s2 + $0x15c] sm:$0xf]
      %v961 = vld [vmem:[%s2 + $0x160] sm:$0xf]
      %v962 = vld [vmem:[%s2 + $0x164] sm:$0xf]
      %v963 = vld [vmem:[%s2 + $0x168] sm:$0xf]
      %v964 = vld [vmem:[%s2 + $0x16c] sm:$0xf]
      %v965 = vld [vmem:[%s2 + $0x170] sm:$0xf]
      %v966 = vld [vmem:[%s2 + $0x174] sm:$0xf]
      %v967 = vld [vmem:[%s2 + $0x178] sm:$0xf]
      %v968 = vld [vmem:[%s2 + $0x17c] sm:$0xf]
      %v969 = vld [vmem:[%s2 + $0x180] sm:$0xf]
      %v970 = vld [vmem:[%s2 + $0x184] sm:$0xf]
      %v971 = vld [vmem:[%s2 + $0x188] sm:$0xf]
      %v972 = vld [vmem:[%s2 + $0x18c] sm:$0xf]
      %v973 = vld [vmem:[%s2 + $0x190] sm:$0xf]
      %v974 = vld [vmem:[%s2 + $0x194] sm:$0xf]
      %v975 = vld [vmem:[%s2 + $0x198] sm:$0xf]
      %v976 = vld [vmem:[%s2 + $0x19c] sm:$0xf]
      %v977 = vld [vmem:[%s2 + $0x1a0] sm:$0xf]
      %v978 = vld [vmem:[%s2 + $0x1a4] sm:$0xf]
      %v979 = vld [vmem:[%s2 + $0x1a8] sm:$0xf]
      %v980 = vld [vmem:[%s2 + $0x1ac] sm:$0xf]
      %v981 = vld [vmem:[%s2 + $0x1b0] sm:$0xf]
      %v982 = vld [vmem:[%s2 + $0x1b4] sm:$0xf]
      %v983 = vld [vmem:[%s2 + $0x1b8] sm:$0xf]
      %v984 = vld [vmem:[%s2 + $0x1bc] sm:$0xf]
      %v985 = vld [vmem:[%s2 + $0x1c0] sm:$0xf]
      %v986 = vld [vmem:[%s2 + $0x1c4] sm:$0xf]
      %v987 = vld [vmem:[%s2 + $0x1c8] sm:$0xf]
      %v988 = vld [vmem:[%s2 + $0x1cc] sm:$0xf]
      %v989 = vld [vmem:[%s2 + $0x1d0] sm:$0xf]
      %v990 = vld [vmem:[%s2 + $0x1d4] sm:$0xf]
      %v991 = vld [vmem:[%s2 + $0x1d8] sm:$0xf]
      %v992 = vld [vmem:[%s2 + $0x1dc] sm:$0xf]
      %v993 = vld [vmem:[%s2 + $0x1e0] sm:$0xf]
      %v994 = vld [vmem:[%s2 + $0x1e4] sm:$0xf]
      %v995 = vld [vmem:[%s2 + $0x1e8] sm:$0xf]
      %v996 = vld [vmem:[%s2 + $0x1ec] sm:$0xf]
      %v997 = vld [vmem:[%s2 + $0x1f0] sm:$0xf]
      %v998 = vld [vmem:[%s2 + $0x1f4] sm:$0xf]
      %v999 = vld [vmem:[%s2 + $0x1f8] sm:$0xf]
      %v1000 = vld [vmem:[%s2 + $0x1fc] sm:$0xf]
      %v1001 = vld [vmem:[%s2 + $0x200] sm:$0xf]
      %v1002 = vld [vmem:[%s2 + $0x204] sm:$0xf]
      %v1003 = vld [vmem:[%s2 + $0x208] sm:$0xf]
      %v1004 = vld [vmem:[%s2 + $0x20c] sm:$0xf]
      %v1005 = vld [vmem:[%s2 + $0x210] sm:$0xf]
      %v1006 = vld [vmem:[%s2 + $0x214] sm:$0xf]
      %v1007 = vld [vmem:[%s2 + $0x218] sm:$0xf]
      %v1008 = vld [vmem:[%s2 + $0x21c] sm:$0xf]
      %v1009 = vld [vmem:[%s2 + $0x220] sm:$0xf]
      %v1010 = vld [vmem:[%s2 + $0x224] sm:$0xf]
      %v1011 = vld [vmem:[%s2 + $0x228] sm:$0xf]
      %v1012 = vld [vmem:[%s2 + $0x22c] sm:$0xf]
      %v1013 = vld [vmem:[%s2 + $0x230] sm:$0xf]
      %v1014 = vld [vmem:[%s2 + $0x234] sm:$0xf]
      %v1015 = vld [vmem:[%s2 + $0x238] sm:$0xf]
      %v1016 = vld [vmem:[%s2 + $0x23c] sm:$0xf]
      %v1017 = vld [vmem:[%s2 + $0x240] sm:$0xf]
      %v1018 = vld [vmem:[%s2 + $0x244] sm:$0xf]
      %v1019 = vld [vmem:[%s2 + $0x248] sm:$0xf]
      %v1020 = vld [vmem:[%s2 + $0x24c] sm:$0xf]
      %v1021 = vld [vmem:[%s2 + $0x250] sm:$0xf]
      %v1022 = vld [vmem:[%s2 + $0x254] sm:$0xf]
      %v1023 = vld [vmem:[%s2 + $0x258] sm:$0xf]
      %v1024 = vld [vmem:[%s2 + $0x25c] sm:$0xf]
      %v1025 = vld [vmem:[%s2 + $0x260] sm:$0xf]
      %v1026 = vld [vmem:[%s2 + $0x264] sm:$0xf]
      %v1027 = vld [vmem:[%s2 + $0x268] sm:$0xf]
      %v1028 = vld [vmem:[%s2 + $0x26c] sm:$0xf]
      %v1029 = vld [vmem:[%s2 + $0x270] sm:$0xf]
      %v1030 = vld [vmem:[%s2 + $0x274] sm:$0xf]
      %v1031 = vld [vmem:[%s2 + $0x278] sm:$0xf]
      %v1032 = vld [vmem:[%s2 + $0x27c] sm:$0xf]
      %v1033 = vshrl.u32 %v600, 16
      %v1035 = vshll.u32 %v600, 16
      %v1037 = vrot.slane %v1035, 1
      %v1038 = vor.u32 %v1033, %v1037
      %v1039 = vshll.u32 %v602, 16
      %v1041 = vrot.slane %v1039, 1
      %v1042 = vsel %vm445, %v1038, %v1041
      %v1043 = vshrl.u32 %v614, 16
      %v1045 = vshll.u32 %v614, 16
      %v1047 = vrot.slane %v1045, 1
      %v1048 = vor.u32 %v1043, %v1047
      %v1049 = vshll.u32 %v616, 16
      %v1051 = vrot.slane %v1049, 1
      %v1052 = vsel %vm445, %v1048, %v1051
      %v1053 = vshrl.u32 %v628, 16
      %v1055 = vshll.u32 %v628, 16
      %v1057 = vrot.slane %v1055, 1
      %v1058 = vor.u32 %v1053, %v1057
      %v1059 = vshll.u32 %v630, 16
      %v1061 = vrot.slane %v1059, 1
      %v1062 = vsel %vm445, %v1058, %v1061
      %v1063 = vshrl.u32 %v642, 16
      %v1065 = vshll.u32 %v642, 16
      %v1067 = vrot.slane %v1065, 1
      %v1068 = vor.u32 %v1063, %v1067
      %v1069 = vshll.u32 %v644, 16
      %v1071 = vrot.slane %v1069, 1
      %v1072 = vsel %vm445, %v1068, %v1071
      %v1073 = vshrl.u32 %v751, 16
      %v1075 = vshll.u32 %v751, 16
      %v1077 = vrot.slane %v1075, 1
      %v1078 = vor.u32 %v1073, %v1077
      %v1079 = vshll.u32 %v753, 16
      %v1081 = vrot.slane %v1079, 1
      %v1082 = vsel %vm445, %v1078, %v1081
      %v1083 = vshrl.u32 %v765, 16
      %v1085 = vshll.u32 %v765, 16
      %v1087 = vrot.slane %v1085, 1
      %v1088 = vor.u32 %v1083, %v1087
      %v1089 = vshll.u32 %v767, 16
      %v1091 = vrot.slane %v1089, 1
      %v1092 = vsel %vm445, %v1088, %v1091
      %v1093 = vshrl.u32 %v779, 16
      %v1095 = vshll.u32 %v779, 16
      %v1097 = vrot.slane %v1095, 1
      %v1098 = vor.u32 %v1093, %v1097
      %v1099 = vshll.u32 %v781, 16
      %v1101 = vrot.slane %v1099, 1
      %v1102 = vsel %vm445, %v1098, %v1101
      %v1103 = vshrl.u32 %v793, 16
      %v1105 = vshll.u32 %v793, 16
      %v1107 = vrot.slane %v1105, 1
      %v1108 = vor.u32 %v1103, %v1107
      %v1109 = vshll.u32 %v795, 16
      %v1111 = vrot.slane %v1109, 1
      %v1112 = vsel %vm445, %v1108, %v1111
      %v1113 = vshrl.u32 %v856, 16
      %v1115 = vshll.u32 %v856, 16
      %v1117 = vrot.slane %v1115, 1
      %v1118 = vor.u32 %v1113, %v1117
      %v1119 = vshll.u32 %v858, 16
      %v1121 = vrot.slane %v1119, 1
      %v1122 = vsel %vm445, %v1118, %v1121
      %v1123 = vshrl.u32 %v870, 16
      %v1125 = vshll.u32 %v870, 16
      %v1127 = vrot.slane %v1125, 1
      %v1128 = vor.u32 %v1123, %v1127
      %v1129 = vshll.u32 %v872, 16
      %v1131 = vrot.slane %v1129, 1
      %v1132 = vsel %vm445, %v1128, %v1131
      %v1303 = vunpack.c.l.b16 %v873
      %v1304 = vunpack.c.l.b16 %v874
      %v1305 = vunpack.c.l.b16 %v875
      %v1306 = vunpack.c.l.b16 %v876
      %v1307 = vunpack.c.l.b16 %v877
      %v1308 = vunpack.c.l.b16 %v878
      %v1309 = vunpack.c.l.b16 %v879
      %v1310 = vunpack.c.l.b16 %v880
      %v1311 = vunpack.c.l.b16 %v881
      %v1312 = vunpack.c.l.b16 %v882
      %v1313 = vunpack.c.l.b16 %v883
      %v1314 = vunpack.c.l.b16 %v884
      %v1315 = vunpack.c.l.b16 %v885
      %v1316 = vunpack.c.l.b16 %v886
      %v1317 = vunpack.c.l.b16 %v887
      %v1318 = vunpack.c.l.b16 %v888
      %v1319 = vunpack.c.l.b16 %v889
      %v1320 = vunpack.c.l.b16 %v890
      %v1321 = vunpack.c.l.b16 %v891
      %v1322 = vunpack.c.l.b16 %v892
      %v1323 = vunpack.c.l.b16 %v893
      %v1324 = vunpack.c.l.b16 %v894
      %v1325 = vunpack.c.l.b16 %v895
      %v1326 = vunpack.c.l.b16 %v896
      %v1327 = vunpack.c.l.b16 %v897
      %v1328 = vunpack.c.l.b16 %v898
      %v1329 = vunpack.c.l.b16 %v899
      %v1330 = vunpack.c.l.b16 %v900
      %v1331 = vunpack.c.l.b16 %v901
      %v1332 = vunpack.c.l.b16 %v902
      %v1333 = vunpack.c.l.b16 %v903
      %v1334 = vunpack.c.l.b16 %v904
      %v1335 = vunpack.c.l.b16 %v905
      %v1336 = vunpack.c.l.b16 %v906
      %v1337 = vunpack.c.l.b16 %v907
      %v1338 = vunpack.c.l.b16 %v908
      %v1339 = vunpack.c.l.b16 %v909
      %v1340 = vunpack.c.l.b16 %v910
      %v1341 = vunpack.c.l.b16 %v911
      %v1342 = vunpack.c.l.b16 %v912
      %v1343 = vunpack.c.l.b16 %v913
      %v1344 = vunpack.c.l.b16 %v914
      %v1345 = vunpack.c.l.b16 %v915
      %v1346 = vunpack.c.l.b16 %v916
      %v1347 = vunpack.c.l.b16 %v917
      %v1348 = vunpack.c.l.b16 %v918
      %v1349 = vunpack.c.l.b16 %v919
      %v1350 = vunpack.c.l.b16 %v920
      %v1351 = vunpack.c.l.b16 %v921
      %v1352 = vunpack.c.l.b16 %v922
      %v1353 = vunpack.c.l.b16 %v923
      %v1354 = vunpack.c.l.b16 %v924
      %v1355 = vunpack.c.l.b16 %v925
      %v1356 = vunpack.c.l.b16 %v926
      %v1357 = vunpack.c.l.b16 %v927
      %v1358 = vunpack.c.l.b16 %v928
      %v1359 = vunpack.c.l.b16 %v929
      %v1360 = vunpack.c.l.b16 %v930
      %v1361 = vunpack.c.l.b16 %v931
      %v1362 = vunpack.c.l.b16 %v932
      %v1363 = vunpack.c.l.b16 %v933
      %v1364 = vunpack.c.l.b16 %v934
      %v1365 = vunpack.c.l.b16 %v935
      %v1366 = vunpack.c.l.b16 %v936
      %v1367 = vunpack.c.l.b16 %v937
      %v1368 = vunpack.c.l.b16 %v938
      %v1369 = vunpack.c.l.b16 %v939
      %v1370 = vunpack.c.l.b16 %v940
      %v1371 = vunpack.c.l.b16 %v941
      %v1372 = vunpack.c.l.b16 %v942
      %v1373 = vunpack.c.l.b16 %v943
      %v1374 = vunpack.c.l.b16 %v944
      %v1375 = vunpack.c.l.b16 %v945
      %v1376 = vunpack.c.l.b16 %v946
      %v1377 = vunpack.c.l.b16 %v947
      %v1378 = vunpack.c.l.b16 %v948
      %v1379 = vunpack.c.l.b16 %v949
      %v1380 = vunpack.c.l.b16 %v950
      %v1381 = vunpack.c.l.b16 %v951
      %v1382 = vunpack.c.l.b16 %v952
      %v1383 = vunpack.c.l.b16 %v953
      %v1384 = vunpack.c.l.b16 %v954
      %v1385 = vunpack.c.l.b16 %v955
      %v1386 = vunpack.c.l.b16 %v956
      %v1387 = vunpack.c.l.b16 %v957
      %v1388 = vunpack.c.l.b16 %v958
      %v1389 = vunpack.c.l.b16 %v959
      %v1390 = vunpack.c.l.b16 %v960
      %v1391 = vunpack.c.l.b16 %v961
      %v1392 = vunpack.c.l.b16 %v962
      %v1393 = vunpack.c.l.b16 %v963
      %v1394 = vunpack.c.l.b16 %v964
      %v1395 = vunpack.c.l.b16 %v965
      %v1396 = vunpack.c.l.b16 %v966
      %v1397 = vunpack.c.l.b16 %v967
      %v1398 = vunpack.c.l.b16 %v968
      %v1399 = vunpack.c.l.b16 %v969
      %v1400 = vunpack.c.l.b16 %v970
      %v1401 = vunpack.c.l.b16 %v971
      %v1402 = vunpack.c.l.b16 %v972
      %v1403 = vunpack.c.l.b16 %v973
      %v1404 = vunpack.c.l.b16 %v974
      %v1405 = vunpack.c.l.b16 %v975
      %v1406 = vunpack.c.l.b16 %v976
      %v1407 = vunpack.c.l.b16 %v977
      %v1408 = vunpack.c.l.b16 %v978
      %v1409 = vunpack.c.l.b16 %v979
      %v1410 = vunpack.c.l.b16 %v980
      %v1411 = vunpack.c.l.b16 %v981
      %v1412 = vunpack.c.l.b16 %v982
      %v1413 = vunpack.c.l.b16 %v983
      %v1414 = vunpack.c.l.b16 %v984
      %v1415 = vunpack.c.l.b16 %v985
      %v1416 = vunpack.c.l.b16 %v986
      %v1417 = vunpack.c.l.b16 %v987
      %v1418 = vunpack.c.l.b16 %v988
      %v1419 = vunpack.c.l.b16 %v989
      %v1420 = vunpack.c.l.b16 %v990
      %v1421 = vunpack.c.l.b16 %v991
      %v1422 = vunpack.c.l.b16 %v992
      %v1423 = vunpack.c.l.b16 %v993
      %v1424 = vunpack.c.l.b16 %v994
      %v1425 = vunpack.c.l.b16 %v995
      %v1426 = vunpack.c.l.b16 %v996
      %v1427 = vunpack.c.l.b16 %v997
      %v1428 = vunpack.c.l.b16 %v998
      %v1429 = vunpack.c.l.b16 %v999
      %v1430 = vunpack.c.l.b16 %v1000
      %v1431 = vunpack.c.l.b16 %v1001
      %v1432 = vunpack.c.l.b16 %v1002
      %v1433 = vunpack.c.l.b16 %v1003
      %v1434 = vunpack.c.l.b16 %v1004
      %v1435 = vunpack.c.l.b16 %v1005
      %v1436 = vunpack.c.l.b16 %v1006
      %v1437 = vunpack.c.l.b16 %v1007
      %v1438 = vunpack.c.l.b16 %v1008
      %v1439 = vunpack.c.l.b16 %v1009
      %v1440 = vunpack.c.l.b16 %v1010
      %v1441 = vunpack.c.l.b16 %v1011
      %v1442 = vunpack.c.l.b16 %v1012
      %v1443 = vunpack.c.l.b16 %v1013
      %v1444 = vunpack.c.l.b16 %v1014
      %v1445 = vunpack.c.l.b16 %v1015
      %v1446 = vunpack.c.l.b16 %v1016
      %v1447 = vunpack.c.l.b16 %v1017
      %v1448 = vunpack.c.l.b16 %v1018
      %v1449 = vunpack.c.l.b16 %v1019
      %v1450 = vunpack.c.l.b16 %v1020
      %v1451 = vunpack.c.l.b16 %v1021
      %v1452 = vunpack.c.l.b16 %v1022
      %v1453 = vunpack.c.l.b16 %v1023
      %v1454 = vunpack.c.l.b16 %v1024
      %v1455 = vunpack.c.l.b16 %v1025
      %v1456 = vunpack.c.l.b16 %v1026
      %v1457 = vunpack.c.l.b16 %v1027
      %v1458 = vunpack.c.l.b16 %v1028
      %v1459 = vunpack.c.l.b16 %v1029
      %v1460 = vunpack.c.l.b16 %v1030
      %v1461 = vunpack.c.l.b16 %v1031
      %v1462 = vunpack.c.l.b16 %v1032
      %v1463 = vpack.c.b16 %v1304, %v1303
      %v1464 = vpack.c.b16 %v1306, %v1305
      %v1465 = vpack.c.b16 %v1308, %v1307
      %v1466 = vpack.c.b16 %v1310, %v1309
      %v1467 = vpack.c.b16 %v1312, %v1311
      %v1468 = vpack.c.b16 %v1314, %v1313
      %v1469 = vpack.c.b16 %v1316, %v1315
      %v1470 = vpack.c.b16 %v1318, %v1317
      %v1471 = vpack.c.b16 %v1320, %v1319
      %v1472 = vpack.c.b16 %v1322, %v1321
      %v1473 = vpack.c.b16 %v1324, %v1323
      %v1474 = vpack.c.b16 %v1326, %v1325
      %v1475 = vpack.c.b16 %v1328, %v1327
      %v1476 = vpack.c.b16 %v1330, %v1329
      %v1477 = vpack.c.b16 %v1332, %v1331
      %v1478 = vpack.c.b16 %v1334, %v1333
      %v1479 = vpack.c.b16 %v1336, %v1335
      %v1480 = vpack.c.b16 %v1338, %v1337
      %v1481 = vpack.c.b16 %v1340, %v1339
      %v1482 = vpack.c.b16 %v1342, %v1341
      %v1483 = vpack.c.b16 %v1344, %v1343
      %v1484 = vpack.c.b16 %v1346, %v1345
      %v1485 = vpack.c.b16 %v1348, %v1347
      %v1486 = vpack.c.b16 %v1350, %v1349
      %v1487 = vpack.c.b16 %v1352, %v1351
      %v1488 = vpack.c.b16 %v1354, %v1353
      %v1489 = vpack.c.b16 %v1356, %v1355
      %v1490 = vpack.c.b16 %v1358, %v1357
      %v1491 = vpack.c.b16 %v1360, %v1359
      %v1492 = vpack.c.b16 %v1362, %v1361
      %v1493 = vpack.c.b16 %v1364, %v1363
      %v1494 = vpack.c.b16 %v1366, %v1365
      %v1495 = vpack.c.b16 %v1368, %v1367
      %v1496 = vpack.c.b16 %v1370, %v1369
      %v1497 = vpack.c.b16 %v1372, %v1371
      %v1498 = vpack.c.b16 %v1374, %v1373
      %v1499 = vpack.c.b16 %v1376, %v1375
      %v1500 = vpack.c.b16 %v1378, %v1377
      %v1501 = vpack.c.b16 %v1380, %v1379
      %v1502 = vpack.c.b16 %v1382, %v1381
      %v1503 = vpack.c.b16 %v1384, %v1383
      %v1504 = vpack.c.b16 %v1386, %v1385
      %v1505 = vpack.c.b16 %v1388, %v1387
      %v1506 = vpack.c.b16 %v1390, %v1389
      %v1507 = vpack.c.b16 %v1392, %v1391
      %v1508 = vpack.c.b16 %v1394, %v1393
      %v1509 = vpack.c.b16 %v1396, %v1395
      %v1510 = vpack.c.b16 %v1398, %v1397
      %v1511 = vpack.c.b16 %v1400, %v1399
      %v1512 = vpack.c.b16 %v1402, %v1401
      %v1513 = vpack.c.b16 %v1404, %v1403
      %v1514 = vpack.c.b16 %v1406, %v1405
      %v1515 = vpack.c.b16 %v1408, %v1407
      %v1516 = vpack.c.b16 %v1410, %v1409
      %v1517 = vpack.c.b16 %v1412, %v1411
      %v1518 = vpack.c.b16 %v1414, %v1413
      %v1519 = vpack.c.b16 %v1416, %v1415
      %v1520 = vpack.c.b16 %v1418, %v1417
      %v1521 = vpack.c.b16 %v1420, %v1419
      %v1522 = vpack.c.b16 %v1422, %v1421
      %v1523 = vpack.c.b16 %v1424, %v1423
      %v1524 = vpack.c.b16 %v1426, %v1425
      %v1525 = vpack.c.b16 %v1428, %v1427
      %v1526 = vpack.c.b16 %v1430, %v1429
      %v1527 = vpack.c.b16 %v1432, %v1431
      %v1528 = vpack.c.b16 %v1434, %v1433
      %v1529 = vpack.c.b16 %v1436, %v1435
      %v1530 = vpack.c.b16 %v1438, %v1437
      %v1531 = vpack.c.b16 %v1440, %v1439
      %v1532 = vpack.c.b16 %v1442, %v1441
      %v1533 = vpack.c.b16 %v1444, %v1443
      %v1534 = vpack.c.b16 %v1446, %v1445
      %v1535 = vpack.c.b16 %v1448, %v1447
      %v1536 = vpack.c.b16 %v1450, %v1449
      %v1537 = vpack.c.b16 %v1452, %v1451
      %v1538 = vpack.c.b16 %v1454, %v1453
      %v1539 = vpack.c.b16 %v1456, %v1455
      %v1540 = vpack.c.b16 %v1458, %v1457
      %v1541 = vpack.c.b16 %v1460, %v1459
      %v1542 = vpack.c.b16 %v1462, %v1461
      %1623 = vmatprep.subr.bf16.mxu0 0
      %1624 = vmatpush1.bf16.msra.mxu0 %v1463
      %1625 = vmatprep.subr.bf16.mxu0 0
      %1626 = vmatpush1.bf16.msra.mxu0 %v1464
      %1627 = vmatprep.subr.bf16.mxu0 0
      %1628 = vmatpush1.bf16.msra.mxu0 %v1465
      %1629 = vmatprep.subr.bf16.mxu0 0
      %1630 = vmatpush1.bf16.msra.mxu0 %v1466
      %1631 = vmatprep.subr.bf16.mxu0 0
      %1632 = vmatpush1.bf16.msra.mxu0 %v1467
      %1633 = vmatprep.subr.bf16.mxu0 0
      %1634 = vmatpush1.bf16.msra.mxu0 %v1468
      %1635 = vmatprep.subr.bf16.mxu0 0
      %1636 = vmatpush1.bf16.msra.mxu0 %v1469
      %1637 = vmatprep.subr.bf16.mxu0 0
      %1638 = vmatpush1.bf16.msra.mxu0 %v1470
      %1639 = vmatprep.subr.bf16.mxu0 0
      %1640 = vmatpush1.bf16.msra.mxu0 %v1471
      %1641 = vmatprep.subr.bf16.mxu0 0
      %1642 = vmatpush1.bf16.msra.mxu0 %v1472
      %1643 = vmatprep.subr.bf16.mxu0 0
      %1644 = vmatpush1.bf16.msra.mxu0 %v1473
      %1645 = vmatprep.subr.bf16.mxu0 0
      %1646 = vmatpush1.bf16.msra.mxu0 %v1474
      %1647 = vmatprep.subr.bf16.mxu0 0
      %1648 = vmatpush1.bf16.msra.mxu0 %v1475
      %1649 = vmatprep.subr.bf16.mxu0 0
      %1650 = vmatpush1.bf16.msra.mxu0 %v1476
      %1651 = vmatprep.subr.bf16.mxu0 0
      %1652 = vmatpush1.bf16.msra.mxu0 %v1477
      %1653 = vmatprep.subr.bf16.mxu0 0
      %1654 = vmatpush1.bf16.msra.mxu0 %v1478
      %1655 = vmatprep.mubr.bf16.mxu0 %v1052
      %1656 = vmatmul.mubr.bf16.gmra.mrb[0].mxu0 %v1042
      %v1657 = vpop.f32.mrb[0].mxu0
      %v1658 = vadd.f32 0.0, %v1657
      %v1659 = vpop.f32.mrb[0].mxu0
      %v1660 = vpop.f32.mrb[0].mxu0
      %v1661 = vadd.f32 0.0, %v1660
      %v1662 = vpop.f32.mrb[0].mxu0
      %1663 = vdwg.mxu0
      %1664 = vmatprep.subr.bf16.mxu0 0
      %1665 = vmatpush1.bf16.msra.mxu0 %v1479
      %1666 = vmatprep.subr.bf16.mxu0 0
      %1667 = vmatpush1.bf16.msra.mxu0 %v1480
      %1668 = vmatprep.subr.bf16.mxu0 0
      %1669 = vmatpush1.bf16.msra.mxu0 %v1481
      %1670 = vmatprep.subr.bf16.mxu0 0
      %1671 = vmatpush1.bf16.msra.mxu0 %v1482
      %1672 = vmatprep.subr.bf16.mxu0 0
      %1673 = vmatpush1.bf16.msra.mxu0 %v1483
      %1674 = vmatprep.subr.bf16.mxu0 0
      %1675 = vmatpush1.bf16.msra.mxu0 %v1484
      %1676 = vmatprep.subr.bf16.mxu0 0
      %1677 = vmatpush1.bf16.msra.mxu0 %v1485
      %1678 = vmatprep.subr.bf16.mxu0 0
      %1679 = vmatpush1.bf16.msra.mxu0 %v1486
      %1680 = vmatprep.subr.bf16.mxu0 0
      %1681 = vmatpush1.bf16.msra.mxu0 %v1487
      %1682 = vmatprep.subr.bf16.mxu0 0
      %1683 = vmatpush1.bf16.msra.mxu0 %v1488
      %1684 = vmatprep.subr.bf16.mxu0 0
      %1685 = vmatpush1.bf16.msra.mxu0 %v1489
      %1686 = vmatprep.subr.bf16.mxu0 0
      %1687 = vmatpush1.bf16.msra.mxu0 %v1490
      %1688 = vmatprep.subr.bf16.mxu0 0
      %1689 = vmatpush1.bf16.msra.mxu0 %v1491
      %1690 = vmatprep.subr.bf16.mxu0 0
      %1691 = vmatpush1.bf16.msra.mxu0 %v1492
      %1692 = vmatprep.subr.bf16.mxu0 0
      %1693 = vmatpush1.bf16.msra.mxu0 %v1493
      %1694 = vmatprep.subr.bf16.mxu0 0
      %1695 = vmatpush1.bf16.msra.mxu0 %v1494
      %1696 = vmatprep.mubr.bf16.mxu0 %v1072
      %1697 = vmatmul.mubr.bf16.gmra.mrb[0].mxu0 %v1062
      %v1698 = vpop.f32.mrb[0].mxu0
      %v1699 = vadd.f32 %v1658, %v1698
      %v1700 = vpop.f32.mrb[0].mxu0
      %v1701 = vpop.f32.mrb[0].mxu0
      %v1702 = vadd.f32 %v1661, %v1701
      %v1703 = vpop.f32.mrb[0].mxu0
      %1704 = vdwg.mxu0
      %1705 = vmatprep.subr.bf16.mxu0 0
      %1706 = vmatpush1.bf16.msra.mxu0 %v1495
      %1707 = vmatprep.subr.bf16.mxu0 0
      %1708 = vmatpush1.bf16.msra.mxu0 %v1496
      %1709 = vmatprep.subr.bf16.mxu0 0
      %1710 = vmatpush1.bf16.msra.mxu0 %v1497
      %1711 = vmatprep.subr.bf16.mxu0 0
      %1712 = vmatpush1.bf16.msra.mxu0 %v1498
      %1713 = vmatprep.subr.bf16.mxu0 0
      %1714 = vmatpush1.bf16.msra.mxu0 %v1499
      %1715 = vmatprep.subr.bf16.mxu0 0
      %1716 = vmatpush1.bf16.msra.mxu0 %v1500
      %1717 = vmatprep.subr.bf16.mxu0 0
      %1718 = vmatpush1.bf16.msra.mxu0 %v1501
      %1719 = vmatprep.subr.bf16.mxu0 0
      %1720 = vmatpush1.bf16.msra.mxu0 %v1502
      %1721 = vmatprep.subr.bf16.mxu0 0
      %1722 = vmatpush1.bf16.msra.mxu0 %v1503
      %1723 = vmatprep.subr.bf16.mxu0 0
      %1724 = vmatpush1.bf16.msra.mxu0 %v1504
      %1725 = vmatprep.subr.bf16.mxu0 0
      %1726 = vmatpush1.bf16.msra.mxu0 %v1505
      %1727 = vmatprep.subr.bf16.mxu0 0
      %1728 = vmatpush1.bf16.msra.mxu0 %v1506
      %1729 = vmatprep.subr.bf16.mxu0 0
      %1730 = vmatpush1.bf16.msra.mxu0 %v1507
      %1731 = vmatprep.subr.bf16.mxu0 0
      %1732 = vmatpush1.bf16.msra.mxu0 %v1508
      %1733 = vmatprep.subr.bf16.mxu0 0
      %1734 = vmatpush1.bf16.msra.mxu0 %v1509
      %1735 = vmatprep.subr.bf16.mxu0 0
      %1736 = vmatpush1.bf16.msra.mxu0 %v1510
      %1737 = vmatprep.mubr.bf16.mxu0 %v1092
      %1738 = vmatmul.mubr.bf16.gmra.mrb[0].mxu0 %v1082
      %v1739 = vpop.f32.mrb[0].mxu0
      %v1740 = vadd.f32 %v1699, %v1739
      %v1741 = vpop.f32.mrb[0].mxu0
      %v1742 = vpop.f32.mrb[0].mxu0
      %v1743 = vadd.f32 %v1702, %v1742
      %v1744 = vpop.f32.mrb[0].mxu0
      %1745 = vdwg.mxu0
      %1746 = vmatprep.subr.bf16.mxu0 0
      %1747 = vmatpush1.bf16.msra.mxu0 %v1511
      %1748 = vmatprep.subr.bf16.mxu0 0
      %1749 = vmatpush1.bf16.msra.mxu0 %v1512
      %1750 = vmatprep.subr.bf16.mxu0 0
      %1751 = vmatpush1.bf16.msra.mxu0 %v1513
      %1752 = vmatprep.subr.bf16.mxu0 0
      %1753 = vmatpush1.bf16.msra.mxu0 %v1514
      %1754 = vmatprep.subr.bf16.mxu0 0
      %1755 = vmatpush1.bf16.msra.mxu0 %v1515
      %1756 = vmatprep.subr.bf16.mxu0 0
      %1757 = vmatpush1.bf16.msra.mxu0 %v1516
      %1758 = vmatprep.subr.bf16.mxu0 0
      %1759 = vmatpush1.bf16.msra.mxu0 %v1517
      %1760 = vmatprep.subr.bf16.mxu0 0
      %1761 = vmatpush1.bf16.msra.mxu0 %v1518
      %1762 = vmatprep.subr.bf16.mxu0 0
      %1763 = vmatpush1.bf16.msra.mxu0 %v1519
      %1764 = vmatprep.subr.bf16.mxu0 0
      %1765 = vmatpush1.bf16.msra.mxu0 %v1520
      %1766 = vmatprep.subr.bf16.mxu0 0
      %1767 = vmatpush1.bf16.msra.mxu0 %v1521
      %1768 = vmatprep.subr.bf16.mxu0 0
      %1769 = vmatpush1.bf16.msra.mxu0 %v1522
      %1770 = vmatprep.subr.bf16.mxu0 0
      %1771 = vmatpush1.bf16.msra.mxu0 %v1523
      %1772 = vmatprep.subr.bf16.mxu0 0
      %1773 = vmatpush1.bf16.msra.mxu0 %v1524
      %1774 = vmatprep.subr.bf16.mxu0 0
      %1775 = vmatpush1.bf16.msra.mxu0 %v1525
      %1776 = vmatprep.subr.bf16.mxu0 0
      %1777 = vmatpush1.bf16.msra.mxu0 %v1526
      %1778 = vmatprep.mubr.bf16.mxu0 %v1112
      %1779 = vmatmul.mubr.bf16.gmra.mrb[0].mxu0 %v1102
      %v1780 = vpop.f32.mrb[0].mxu0
      %v1781 = vadd.f32 %v1740, %v1780
      %v1782 = vpop.f32.mrb[0].mxu0
      %v1783 = vpop.f32.mrb[0].mxu0
      %v1784 = vadd.f32 %v1743, %v1783
      %v1785 = vpop.f32.mrb[0].mxu0
      %1786 = vdwg.mxu0
      %1787 = vmatprep.subr.bf16.mxu0 0
      %1788 = vmatpush1.bf16.msra.mxu0 %v1527
      %1789 = vmatprep.subr.bf16.mxu0 0
      %1790 = vmatpush1.bf16.msra.mxu0 %v1528
      %1791 = vmatprep.subr.bf16.mxu0 0
      %1792 = vmatpush1.bf16.msra.mxu0 %v1529
      %1793 = vmatprep.subr.bf16.mxu0 0
      %1794 = vmatpush1.bf16.msra.mxu0 %v1530
      %1795 = vmatprep.subr.bf16.mxu0 0
      %1796 = vmatpush1.bf16.msra.mxu0 %v1531
      %1797 = vmatprep.subr.bf16.mxu0 0
      %1798 = vmatpush1.bf16.msra.mxu0 %v1532
      %1799 = vmatprep.subr.bf16.mxu0 0
      %1800 = vmatpush1.bf16.msra.mxu0 %v1533
      %1801 = vmatprep.subr.bf16.mxu0 0
      %1802 = vmatpush1.bf16.msra.mxu0 %v1534
      %1803 = vmatprep.subr.bf16.mxu0 0
      %1804 = vmatpush1.bf16.msra.mxu0 %v1535
      %1805 = vmatprep.subr.bf16.mxu0 0
      %1806 = vmatpush1.bf16.msra.mxu0 %v1536
      %1807 = vmatprep.subr.bf16.mxu0 0
      %1808 = vmatpush1.bf16.msra.mxu0 %v1537
      %1809 = vmatprep.subr.bf16.mxu0 0
      %1810 = vmatpush1.bf16.msra.mxu0 %v1538
      %1811 = vmatprep.subr.bf16.mxu0 0
      %1812 = vmatpush1.bf16.msra.mxu0 %v1539
      %1813 = vmatprep.subr.bf16.mxu0 0
      %1814 = vmatpush1.bf16.msra.mxu0 %v1540
      %1815 = vmatprep.subr.bf16.mxu0 0
      %1816 = vmatpush1.bf16.msra.mxu0 %v1541
      %1817 = vmatprep.subr.bf16.mxu0 0
      %1818 = vmatpush1.bf16.msra.mxu0 %v1542
      %1819 = vmatprep.mubr.bf16.mxu0 %v1132
      %1820 = vmatmul.mubr.bf16.gmra.mrb[0].mxu0 %v1122
      %v1821 = vpop.f32.mrb[0].mxu0
      %v1822 = vadd.f32 %v1781, %v1821
      %v1823 = vpop.f32.mrb[0].mxu0
      %v1824 = vpop.f32.mrb[0].mxu0
      %v1825 = vadd.f32 %v1784, %v1824
      %v1826 = vpop.f32.mrb[0].mxu0
      %1827 = vdwg.mxu0
      %v1828 = vlaneseq
      %v1829 = vshrl.u32 %v1828, 7
      %v1830 = vadd.s32 %v1829, 8
      %v1831 = vstv %s279
      %v1832 = vadd.s32 %v1831, %v1829
      %v1833 = vadd.s32 %v1831, %v1830
      %vm1834 = vcmp.eq.s32.totalorder %v1832, 0
      %vm1835 = vcmp.eq.s32.totalorder %v1833, 0
      %v1836 = vsel %vm1834, 1, 0
      %v1837 = vsel %vm1835, 1, 0
      %vm1838 = vcmp.eq.s32.totalorder %v1836, 1
      %vm1839 = vcmp.eq.s32.totalorder %v1837, 1
      %vm1840 = vmpackc.low %vm1838, %vm1838
      %vm1841 = vmpackc.low %vm1839, %vm1839
      %v1842 = vsel %vm1840, 65537, 0
      %v1843 = vsel %vm1841, 65537, 0
      %vm1844 = vsmask.f32 5392
      %vm1845 = vmor %vm562, %vm1844
      %v1847 = vshrl.u32 %v1842, 16
      %v1849 = vrot.slane %v1847, 6
      %v1850 = vshll.u32 %v1842, 16
      %v1852 = vrot.slane %v1850, 7
      %v1853 = vor.u32 %v1849, %v1852
      %v1854 = vrot.slane %v1853, 4
      %v1856 = vshrl.u32 %v1843, 16
      %v1858 = vrot.slane %v1856, 6
      %v1859 = vshll.u32 %v1843, 16
      %v1861 = vrot.slane %v1859, 7
      %v1862 = vor.u32 %v1858, %v1861
      %v1863 = vsel %vm1845, %v1854, %v1862
      %v1864 = vrot.slane %v1862, 4
      %vm1865 = vcmp.ne.s16.totalorder %v1853, 0
      %vm1866 = vcmp.ne.s16.totalorder %v1863, 0
      %vm1867 = vcmp.ne.s16.totalorder %v1864, 0
      %v1868 = vsel %vm1865, 4286644096, %v286
      %v1869 = vsel %vm1866, 4286644096, %v287
      %v1870 = vsel %vm1867, 4286644096, %v288
      %vm1871 = vcmp.eq.s32.totalorder %v1832, 15
      %vm1872 = vcmp.eq.s32.totalorder %v1833, 15
      %v1873 = vsel %vm1871, 1, 0
      %v1874 = vsel %vm1872, 1, 0
      %vm1875 = vcmp.eq.s32.totalorder %v1873, 1
      %vm1876 = vcmp.eq.s32.totalorder %v1874, 1
      %vm1877 = vmpackc.low %vm1875, %vm1875
      %vm1878 = vmpackc.low %vm1876, %vm1876
      %v1879 = vsel %vm1877, 65537, 0
      %v1880 = vsel %vm1878, 65537, 0
      %vm1881 = vsmask.f32 6416
      %vm1882 = vmor %vm546, %vm1881
      %v1884 = vshrl.u32 %v1879, 16
      %v1886 = vrot.slane %v1884, 5
      %v1887 = vshll.u32 %v1879, 16
      %v1889 = vrot.slane %v1887, 6
      %v1890 = vor.u32 %v1886, %v1889
      %v1891 = vrot.slane %v1890, 4
      %v1893 = vshrl.u32 %v1880, 16
      %v1895 = vrot.slane %v1893, 5
      %v1896 = vshll.u32 %v1880, 16
      %v1898 = vrot.slane %v1896, 6
      %v1899 = vor.u32 %v1895, %v1898
      %v1900 = vsel %vm1882, %v1891, %v1899
      %v1901 = vrot.slane %v1899, 4
      %vm1902 = vcmp.ne.s16.totalorder %v1890, 0
      %vm1903 = vcmp.ne.s16.totalorder %v1900, 0
      %vm1904 = vcmp.ne.s16.totalorder %v1901, 0
      %v1905 = vsel %vm1902, 4286644096, %v286
      %v1906 = vsel %vm1903, 4286644096, %v287
      %v1907 = vsel %vm1904, 4286644096, %v288
      %vm1908 = vsmask.f32 7440
      %vm1909 = vmor %vm526, %vm1908
      %v1911 = vshrl.u32 %v286, 16
      %v1913 = vrot.slane %v1911, 4
      %v1914 = vshll.u32 %v286, 16
      %v1916 = vrot.slane %v1914, 5
      %v1917 = vor.u32 %v1913, %v1916
      %v1918 = vrot.slane %v1917, 4
      %v1920 = vshll.u32 %v287, 16
      %v1922 = vrot.slane %v1920, 5
      %v1923 = vsel %vm1909, %v1918, %v1922
      %v1924 = vshrl.u32 %v287, 16
      %v1926 = vrot.slane %v1924, 4
      %v1927 = vor.u32 %v1926, %v1922
      %v1928 = vrot.slane %v1927, 4
      %v1930 = vshll.u32 %v288, 16
      %v1932 = vrot.slane %v1930, 5
      %v1933 = vsel %vm1909, %v1928, %v1932
      %v1934 = vshrl.u32 %v288, 16
      %v1936 = vrot.slane %v1934, 4
      %v1937 = vor.u32 %v1936, %v1932
      %v1938 = vrot.slane %v1937, 4
      %v1942 = vmax.bf16 %v1868, %v1923
      %v1943 = vmax.bf16 %v1869, %v1933
      %v1944 = vmax.bf16 %v1870, %v1938
      %vm1948 = vcmask 1046532
      %vm1949 = vmor %vm538, %vm1948
      %v1950 = vrot.slane %v1905, 5
      %v1951 = vrot.slane %v1950, 4
      %v1952 = vrot.slane %v1906, 5
      %v1953 = vsel %vm1949, %v1951, %v1952
      %v1954 = vrot.slane %v1952, 4
      %v1955 = vrot.slane %v1907, 5
      %v1956 = vsel %vm1949, %v1954, %v1955
      %v1957 = vrot.slane %v1955, 4
      %v1961 = vmax.bf16 %v1942, %v1953
      %v1962 = vmax.bf16 %v1943, %v1956
      %v1963 = vmax.bf16 %v1944, %v1957
      %v1964 = vld [vmem:[%s3] sm:$0xf]
      %v1965 = vld [vmem:[%s3 + $0x4] sm:$0xf]
      %v1966 = vld [vmem:[%s3 + $0x8] sm:$0xf]
      %v1967 = vld [vmem:[%s3 + $0xc] sm:$0xf]
      %v1968 = vld [vmem:[%s3 + $0x10] sm:$0xf]
      %v1969 = vld [vmem:[%s3 + $0x14] sm:$0xf]
      %v1970 = vld [vmem:[%s3 + $0x18] sm:$0xf]
      %v1971 = vld [vmem:[%s3 + $0x1c] sm:$0xf]
      %v1972 = vld [vmem:[%s3 + $0x20] sm:$0xf]
      %v1973 = vld [vmem:[%s3 + $0x24] sm:$0xf]
      %v1974 = vld [vmem:[%s3 + $0x28] sm:$0xf]
      %v1975 = vld [vmem:[%s3 + $0x2c] sm:$0xf]
      %v1976 = vld [vmem:[%s3 + $0x30] sm:$0xf]
      %v1977 = vld [vmem:[%s3 + $0x34] sm:$0xf]
      %v1978 = vld [vmem:[%s3 + $0x38] sm:$0xf]
      %v1979 = vld [vmem:[%s3 + $0x3c] sm:$0xf]
      %v1983 = vunpack.c.l.b16 %v1961
      %v1984 = vunpack.c.l.b16 %v1962
      %v1985 = vunpack.c.l.b16 %v1963
      %v1986 = vpack.c.b16 %v1984, %v1983
      %v1987 = vpack.c.b16 %v1985, %v1985
      %v1989 = vshrl.u32 %v1986, 16
      %v1991 = vrot.slane %v1989, 1
      %v1992 = vshll.u32 %v1986, 16
      %v1994 = vrot.slane %v1992, 2
      %v1995 = vor.u32 %v1991, %v1994
      %v1997 = vshrl.u32 %v1987, 16
      %v1999 = vrot.slane %v1997, 1
      %v2000 = vshll.u32 %v1987, 16
      %v2002 = vrot.slane %v2000, 2
      %v2003 = vor.u32 %v1999, %v2002
      %v2004 = vsel %vm474, %v1995, %v2003
      %v2022 = vunpack.c.l.b16 %v1964
      %v2023 = vunpack.c.l.b16 %v1965
      %v2024 = vunpack.c.l.b16 %v1966
      %v2025 = vunpack.c.l.b16 %v1967
      %v2026 = vunpack.c.l.b16 %v1968
      %v2027 = vunpack.c.l.b16 %v1969
      %v2028 = vunpack.c.l.b16 %v1970
      %v2029 = vunpack.c.l.b16 %v1971
      %v2030 = vunpack.c.l.b16 %v1972
      %v2031 = vunpack.c.l.b16 %v1973
      %v2032 = vunpack.c.l.b16 %v1974
      %v2033 = vunpack.c.l.b16 %v1975
      %v2034 = vunpack.c.l.b16 %v1976
      %v2035 = vunpack.c.l.b16 %v1977
      %v2036 = vunpack.c.l.b16 %v1978
      %v2037 = vunpack.c.l.b16 %v1979
      %v2038 = vpack.c.b16 %v2023, %v2022
      %v2039 = vpack.c.b16 %v2025, %v2024
      %v2040 = vpack.c.b16 %v2027, %v2026
      %v2041 = vpack.c.b16 %v2029, %v2028
      %v2042 = vpack.c.b16 %v2031, %v2030
      %v2043 = vpack.c.b16 %v2033, %v2032
      %v2044 = vpack.c.b16 %v2035, %v2034
      %v2045 = vpack.c.b16 %v2037, %v2036
      %2054 = vmatprep.subr.bf16.mxu0 0
      %2055 = vmatpush1.bf16.msra.mxu0 %v2038
      %2056 = vmatprep.subr.bf16.mxu0 0
      %2057 = vmatpush1.bf16.msra.mxu0 %v2039
      %2058 = vmatprep.subr.bf16.mxu0 0
      %2059 = vmatpush1.bf16.msra.mxu0 %v2040
      %2060 = vmatprep.subr.bf16.mxu0 0
      %2061 = vmatpush1.bf16.msra.mxu0 %v2041
      %2062 = vmatprep.subr.bf16.mxu0 0
      %2063 = vmatpush1.bf16.msra.mxu0 %v2042
      %2064 = vmatprep.subr.bf16.mxu0 0
      %2065 = vmatpush1.bf16.msra.mxu0 %v2043
      %2066 = vmatprep.subr.bf16.mxu0 0
      %2067 = vmatpush1.bf16.msra.mxu0 %v2044
      %2068 = vmatprep.subr.bf16.mxu0 0
      %2069 = vmatpush1.bf16.msra.mxu0 %v2045
      %2070 = vmatprep.subr.bf16.mxu0 0
      %2071 = vmatpush1.bf16.msra.mxu0 0
      %2072 = vmatprep.subr.bf16.mxu0 0
      %2073 = vmatpush1.bf16.msra.mxu0 0
      %2074 = vmatprep.subr.bf16.mxu0 0
      %2075 = vmatpush1.bf16.msra.mxu0 0
      %2076 = vmatprep.subr.bf16.mxu0 0
      %2077 = vmatpush1.bf16.msra.mxu0 0
      %2078 = vmatprep.subr.bf16.mxu0 0
      %2079 = vmatpush1.bf16.msra.mxu0 0
      %2080 = vmatprep.subr.bf16.mxu0 0
      %2081 = vmatpush1.bf16.msra.mxu0 0
      %2082 = vmatprep.subr.bf16.mxu0 0
      %2083 = vmatpush1.bf16.msra.mxu0 0
      %2084 = vmatprep.subr.bf16.mxu0 0
      %2085 = vmatpush1.bf16.msra.mxu0 0
      %2086 = vmatprep.mubr.bf16.mxu0 0
      %2087 = vmatmul.mubr.bf16.gmra.mrb[0].mxu0 %v2004
      %v2088 = vpop.f32.mrb[0].mxu0
      %v2089 = vadd.f32 0.0, %v2088
      %v2090 = vpop.f32.mrb[0].mxu0
      %v2091 = vpop.f32.mrb[0].mxu0
      %v2092 = vadd.f32 0.0, %v2091
      %v2093 = vpop.f32.mrb[0].mxu0
      %2094 = vdwg.mxu0
      %2097 = vrot.lane.b32.xlu0 %v2089, 96
      %v2098 = vpop.permute.xlu0 %2097
      %2099 = vrot.lane.b32.xlu0 %v2092, 96
      %v2100 = vpop.permute.xlu0 %2099
      %v2103 = vsel %vm598, %v1822, %v2098
      %v2104 = vsel %vm598, %v1825, %v2100
      %v2105 = vld [vmem:[%s4] sm:$0x1]
      %v2107 = vlaneseq
      %v2108 = vshrl.u32 %v2107, 7
      %v2109 = vsub.s32 0, %v2108
      %v2110 = vrot.slane %v2105, %v2109
      %v2112 = vmul.f32 %v2103, %v2110
      %v2113 = vmul.f32 %v2104, %v2110
      %v2114 = vld [vmem:[%s5] sm:$0x1]
      %v2116 = vlaneseq
      %v2117 = vshrl.u32 %v2116, 7
      %v2118 = vsub.s32 0, %v2117
      %v2119 = vrot.slane %v2114, %v2118
      %v2121 = vadd.f32 %v2112, %v2119
      %v2122 = vadd.f32 %v2113, %v2119
      %v2123 = vmax.f32 %v2121, 0.0
      %v2124 = vmax.f32 %v2122, 0.0
      %v2125 = vpack.c.bf16 %v2124, %v2123
      %v2127 = vunpack.c.l.b16 %v2125
      %v2128 = vunpack.c.h.b16 %v2125
      %v2129 = vpack.c.b16 %v2127, %v2127
      %v2130 = vpack.c.b16 %v2128, %v2128
      %2133 = vst [vmem:[%s273] sm:$0xf] %v2129
      %2134 = vst [vmem:[%s273 + $0x4] sm:$0xf] %v2130
      %s2135 = smul.u32 2, %s22
      %p2136 = scmp.lt.s32.totalorder %s21, 1
      %s2137 = scalar_select %p2136, %s21, 1
      %p2138 = scmp.lt.s32.totalorder %s2135, 1
      %s2139 = scalar_select %p2138, %s2135, 1
      %s2140 = smul.addr %s2137, 2
      %s2141 = sadd.s32 %s2139, %s2140
      %s2142 = smul.addr %s2141, 4
      %s2143 = scalar_lea.vmem %s6, %s2142
      // Predicated region
      $region45: #{inception1d_forward.8} parent=43 // pred_check
        %p2144 = pneg %p180
      $region46: #{inception1d_forward.8} parent=43 // pred_check_branch
        %2146 = sbr.rel (%p2144) target = $region48
      $region47: #{inception1d_forward.8} parent=43 // pred_region
        %s2147 = smul.u32 2, %s22
      $region48: #{inception1d_forward.8} parent=43 // pred_fallthru
        _
    $region44: #{inception1d_forward.8} parent=5 // pred_fallthru
      _
    %p2148 = scmp.le.s32.totalorder 2, %s12
    // Predicated region
    $region49: #{inception1d_forward.8} parent=5 // pred_check
      %p2149 = pneg %p2148
    $region50: #{inception1d_forward.8} parent=5 // pred_check_branch
      %2151 = sbr.rel (%p2149) target = $region52
    $region51: #{inception1d_forward.8} parent=5 // pred_region
      %s2152 = ssub.s32 %s12, 2
      // Predicated region
      $region53: #{inception1d_forward.8} parent=51 // pred_check
        %p2153 = pneg %p186
      $region54: #{inception1d_forward.8} parent=51 // pred_check_branch
        %2155 = sbr.rel (%p2153) target = $region56
      $region55: #{inception1d_forward.8} parent=51 // pred_region
        %s2156 = smul.u32 2, %s24
        %p2157 = scmp.lt.s32.totalorder %s23, 1
        %s2158 = scalar_select %p2157, %s23, 1
        %p2159 = scmp.lt.s32.totalorder %s2156, 1
        %s2160 = scalar_select %p2159, %s2156, 1
        %s2161 = smul.addr %s2158, 2
        %s2162 = sadd.s32 %s2160, %s2161
        %s2163 = smul.addr %s2162, 4
        %s2164 = scalar_lea.vmem %s6, %s2163
      $region56: #{inception1d_forward.8} parent=51 // pred_fallthru
        _
    $region52: #{inception1d_forward.8} parent=5 // pred_fallthru
      _
  $region6: #{inception1d_forward.8} parent=0 // loop_footer
    %s16 = sadd.s32 1, %s12
  $region7: #{inception1d_forward.8} parent=0 // loop_footer_branch
    %11 = sbr.rel target = $region3
  $region8: #{inception1d_forward.8} parent=0 // loop_exit
    _

// kernel: inception1d_forward.7
$region0: #{inception1d_forward.7}
  #allocation0 [shape = 'u32[]', space=smem, size = 0x4, offset = 0x4, fixed_abs, tag = 'smem constant byte address 0x4 - core index']
  #allocation1 [shape = 'u32[144,128]{1,0:T(1,128)}', space=vmem, size = 0x12000, scoped, tag = 'internal scratch']
  %s0 = inlined_call_operand.vmem [shape: bf16[2,56,8], index: 0, kind: input, shape index: {}]
  %s1 = inlined_call_operand.vmem [shape: bf16[8,32], index: 1, kind: input, shape index: {}]
  %s2 = inlined_call_operand.vmem [shape: bf16[1280,96], index: 2, kind: input, shape index: {}]
  %s3 = inlined_call_operand.vmem [shape: bf16[8,32], index: 3, kind: input, shape index: {}]
  %s4 = inlined_call_operand.vmem [shape: f32[1,128], index: 4, kind: input, shape index: {}]
  %s5 = inlined_call_operand.vmem [shape: f32[1,128], index: 5, kind: input, shape index: {}]
  %s6 = inlined_call_operand.vmem [shape: bf16[2,16,128], index: 6, kind: output, shape index: {}]
  %s7 = sld [smem:[#allocation0]]
  $region57: #{inception1d_forward.7} parent=0
    _
  %s9 = ssub.s32 1, %s7
  %s10 = scalar_select 0, %s9, %s7
  loop: start=0, step=1, limit=4
  $region2: #{inception1d_forward.7} parent=0 // loop_pre_header
    _
  $region3: #{inception1d_forward.7} parent=0 // loop_header
    %s12 = sphi 0, %s16
    %p13 = scmp.ge.s32.totalorder %s12, 4
    %s19 = sphi 0, %s31
    %s20 = sphi 0, %s27
    %s21 = sphi 0, %s19
    %s22 = sphi 0, %s20
    %s23 = sphi 0, %s21
    %s24 = sphi 0, %s22
    %s34 = sphi 0, %s36
    %s37 = sphi 0, %s34
    %s38 = sphi 0, %s37
    %s54 = sphi 0, %s38
    %s58 = sphi 0, %s58
    %s60 = sphi 0, %s58
    %s61 = sphi 0, %s60
    %s75 = sphi 0, %s61
    %s79 = sphi 0, %s79
    %s81 = sphi 0, %s79
    %s82 = sphi 0, %s81
    %s96 = sphi 0, %s82
    %s100 = sphi 0, %s100
    %s102 = sphi 0, %s100
    %s103 = sphi 0, %s102
    %s117 = sphi 0, %s103
    %s121 = sphi 0, %s121
    %s123 = sphi 0, %s121
    %s124 = sphi 0, %s123
    %s138 = sphi 0, %s124
    %s142 = sphi 0, %s142
    %s144 = sphi 0, %s142
    %s145 = sphi 0, %s144
    %s159 = sphi 0, %s145
    %s167 = sphi 0, %s169
    %s170 = sphi 0, %s167
    %s171 = sphi 0, %s170
    %s187 = sphi 0, %s171
  $region4: #{inception1d_forward.7} parent=0 // loop_header_branch
    %15 = sbr.rel (%p13) target = $region8
  $region5: #{inception1d_forward.7} parent=0 // loop_body
    %s17 = ssub.s32 %s12, 1
    %s18 = ssub.s32 %s12, 2
    %s25 = sadd.s32 1, %s20
    %p26 = scmp.ge.s32.totalorder %s25, 1
    %s27 = scalar_select %p26, 0, %s25
    %s28 = sadd.s32 1, %s19
    %s29 = scalar_select %p26, %s28, %s19
    %p30 = scmp.ge.s32.totalorder %s29, 2
    %s31 = scalar_select %p30, 0, %s29
    %s32 = ssub.s32 %s19, %s31
    %p33 = scmp.eq.s32.totalorder %s32, 0
    %s35 = sadd.s32 %s34, 1
    %s36 = scalar_select %p33, %s34, %s35
    %p39 = pneg %p33
    %p40 = scmp.eq.s32.totalorder %s12, 1
    %p41 = por %p39, %p40
    %p42 = scmp.ne.s32.totalorder %s34, %s37
    %p43 = scmp.eq.s32.totalorder %s12, 0
    %p44 = por %p42, %p43
    %p45 = scmp.ne.s32.totalorder %s34, %s37
    %p46 = scmp.eq.s32.totalorder %s17, 1
    %p47 = por %p45, %p46
    %p48 = scmp.ne.s32.totalorder %s37, %s38
    %p49 = scmp.eq.s32.totalorder %s17, 0
    %p50 = por %p48, %p49
    %p51 = scmp.ne.s32.totalorder %s37, %s38
    %p52 = scmp.eq.s32.totalorder %s18, 1
    %p53 = por %p51, %p52
    %p55 = scmp.ne.s32.totalorder %s38, %s54
    %p56 = scmp.eq.s32.totalorder %s18, 0
    %p57 = por %p55, %p56
    %s59 = sadd.s32 %s58, 1
    %p62 = scmp.eq.s32.totalorder %s12, 1
    %p63 = scmp.ne.s32.totalorder %s58, %s60
    %p64 = scmp.eq.s32.totalorder %s12, 0
    %p65 = por %p63, %p64
    %p66 = scmp.ne.s32.totalorder %s58, %s60
    %p67 = scmp.eq.s32.totalorder %s17, 1
    %p68 = por %p66, %p67
    %p69 = scmp.ne.s32.totalorder %s60, %s61
    %p70 = scmp.eq.s32.totalorder %s17, 0
    %p71 = por %p69, %p70
    %p72 = scmp.ne.s32.totalorder %s60, %s61
    %p73 = scmp.eq.s32.totalorder %s18, 1
    %p74 = por %p72, %p73
    %p76 = scmp.ne.s32.totalorder %s61, %s75
    %p77 = scmp.eq.s32.totalorder %s18, 0
    %p78 = por %p76, %p77
    %s80 = sadd.s32 %s79, 1
    %p83 = scmp.eq.s32.totalorder %s12, 1
    %p84 = scmp.ne.s32.totalorder %s79, %s81
    %p85 = scmp.eq.s32.totalorder %s12, 0
    %p86 = por %p84, %p85
    %p87 = scmp.ne.s32.totalorder %s79, %s81
    %p88 = scmp.eq.s32.totalorder %s17, 1
    %p89 = por %p87, %p88
    %p90 = scmp.ne.s32.totalorder %s81, %s82
    %p91 = scmp.eq.s32.totalorder %s17, 0
    %p92 = por %p90, %p91
    %p93 = scmp.ne.s32.totalorder %s81, %s82
    %p94 = scmp.eq.s32.totalorder %s18, 1
    %p95 = por %p93, %p94
    %p97 = scmp.ne.s32.totalorder %s82, %s96
    %p98 = scmp.eq.s32.totalorder %s18, 0
    %p99 = por %p97, %p98
    %s101 = sadd.s32 %s100, 1
    %p104 = scmp.eq.s32.totalorder %s12, 1
    %p105 = scmp.ne.s32.totalorder %s100, %s102
    %p106 = scmp.eq.s32.totalorder %s12, 0
    %p107 = por %p105, %p106
    %p108 = scmp.ne.s32.totalorder %s100, %s102
    %p109 = scmp.eq.s32.totalorder %s17, 1
    %p110 = por %p108, %p109
    %p111 = scmp.ne.s32.totalorder %s102, %s103
    %p112 = scmp.eq.s32.totalorder %s17, 0
    %p113 = por %p111, %p112
    %p114 = scmp.ne.s32.totalorder %s102, %s103
    %p115 = scmp.eq.s32.totalorder %s18, 1
    %p116 = por %p114, %p115
    %p118 = scmp.ne.s32.totalorder %s103, %s117
    %p119 = scmp.eq.s32.totalorder %s18, 0
    %p120 = por %p118, %p119
    %s122 = sadd.s32 %s121, 1
    %p125 = scmp.eq.s32.totalorder %s12, 1
    %p126 = scmp.ne.s32.totalorder %s121, %s123
    %p127 = scmp.eq.s32.totalorder %s12, 0
    %p128 = por %p126, %p127
    %p129 = scmp.ne.s32.totalorder %s121, %s123
    %p130 = scmp.eq.s32.totalorder %s17, 1
    %p131 = por %p129, %p130
    %p132 = scmp.ne.s32.totalorder %s123, %s124
    %p133 = scmp.eq.s32.totalorder %s17, 0
    %p134 = por %p132, %p133
    %p135 = scmp.ne.s32.totalorder %s123, %s124
    %p136 = scmp.eq.s32.totalorder %s18, 1
    %p137 = por %p135, %p136
    %p139 = scmp.ne.s32.totalorder %s124, %s138
    %p140 = scmp.eq.s32.totalorder %s18, 0
    %p141 = por %p139, %p140
    %s143 = sadd.s32 %s142, 1
    %p146 = scmp.eq.s32.totalorder %s12, 1
    %p147 = scmp.ne.s32.totalorder %s142, %s144
    %p148 = scmp.eq.s32.totalorder %s12, 0
    %p149 = por %p147, %p148
    %p150 = scmp.ne.s32.totalorder %s142, %s144
    %p151 = scmp.eq.s32.totalorder %s17, 1
    %p152 = por %p150, %p151
    %p153 = scmp.ne.s32.totalorder %s144, %s145
    %p154 = scmp.eq.s32.totalorder %s17, 0
    %p155 = por %p153, %p154
    %p156 = scmp.ne.s32.totalorder %s144, %s145
    %p157 = scmp.eq.s32.totalorder %s18, 1
    %p158 = por %p156, %p157
    %p160 = scmp.ne.s32.totalorder %s145, %s159
    %p161 = scmp.eq.s32.totalorder %s18, 0
    %p162 = por %p160, %p161
    %s163 = ssub.s32 %s19, %s31
    %s164 = ssub.s32 %s20, %s27
    %s165 = sor.u32 %s163, %s164
    %p166 = scmp.eq.s32.totalorder %s165, 0
    %s168 = sadd.s32 %s167, 1
    %s169 = scalar_select %p166, %s167, %s168
    %p172 = pneg %p166
    %p173 = scmp.eq.s32.totalorder %s12, 1
    %p174 = por %p172, %p173
    %p175 = scmp.ne.s32.totalorder %s167, %s170
    %p176 = scmp.eq.s32.totalorder %s12, 0
    %p177 = por %p175, %p176
    %p178 = scmp.ne.s32.totalorder %s167, %s170
    %p179 = scmp.eq.s32.totalorder %s17, 1
    %p180 = por %p178, %p179
    %p181 = scmp.ne.s32.totalorder %s170, %s171
    %p182 = scmp.eq.s32.totalorder %s17, 0
    %p183 = por %p181, %p182
    %p184 = scmp.ne.s32.totalorder %s170, %s171
    %p185 = scmp.eq.s32.totalorder %s18, 1
    %p186 = por %p184, %p185
    %p188 = scmp.ne.s32.totalorder %s171, %s187
    %p189 = scmp.eq.s32.totalorder %s18, 0
    %p190 = por %p188, %p189
    %p191 = scmp.le.s32.totalorder 1, %s12
    %p192 = scmp.lt.s32.totalorder %s12, 3
    %p193 = pnand %p191, %p192
    %p194 = pneg %p193
    // Predicated region
    $region9: #{inception1d_forward.7} parent=5 // pred_check
      _
    $region10: #{inception1d_forward.7} parent=5 // pred_check_branch
      %196 = sbr.rel (%p193) target = $region12
    $region11: #{inception1d_forward.7} parent=5 // pred_region
      %s197 = ssub.s32 %s12, 1
      // Predicated region
      $region13: #{inception1d_forward.7} parent=11 // pred_check
        %p198 = pneg %p71
      $region14: #{inception1d_forward.7} parent=11 // pred_check_branch
        %200 = sbr.rel (%p198) target = $region16
      $region15: #{inception1d_forward.7} parent=11 // pred_region
        _
      $region16: #{inception1d_forward.7} parent=11 // pred_fallthru
        _
      // Predicated region
      $region17: #{inception1d_forward.7} parent=11 // pred_check
        %p201 = pneg %p92
      $region18: #{inception1d_forward.7} parent=11 // pred_check_branch
        %203 = sbr.rel (%p201) target = $region20
      $region19: #{inception1d_forward.7} parent=11 // pred_region
        _
      $region20: #{inception1d_forward.7} parent=11 // pred_fallthru
        _
      // Predicated region
      $region21: #{inception1d_forward.7} parent=11 // pred_check
        %p204 = pneg %p113
      $region22: #{inception1d_forward.7} parent=11 // pred_check_branch
        %206 = sbr.rel (%p204) target = $region24
      $region23: #{inception1d_forward.7} parent=11 // pred_region
        _
      $region24: #{inception1d_forward.7} parent=11 // pred_fallthru
        _
      // Predicated region
      $region25: #{inception1d_forward.7} parent=11 // pred_check
        %p207 = pneg %p134
      $region26: #{inception1d_forward.7} parent=11 // pred_check_branch
        %209 = sbr.rel (%p207) target = $region28
      $region27: #{inception1d_forward.7} parent=11 // pred_region
        _
      $region28: #{inception1d_forward.7} parent=11 // pred_fallthru
        _
      // Predicated region
      $region29: #{inception1d_forward.7} parent=11 // pred_check
        %p210 = pneg %p155
      $region30: #{inception1d_forward.7} parent=11 // pred_check_branch
        %212 = sbr.rel (%p210) target = $region32
      $region31: #{inception1d_forward.7} parent=11 // pred_region
        _
      $region32: #{inception1d_forward.7} parent=11 // pred_fallthru
        _
    $region12: #{inception1d_forward.7} parent=5 // pred_fallthru
      _
    %p213 = scmp.lt.s32.totalorder %s12, 2
    // Predicated region
    $region33: #{inception1d_forward.7} parent=5 // pred_check
      %p214 = pneg %p213
    $region34: #{inception1d_forward.7} parent=5 // pred_check_branch
      %216 = sbr.rel (%p214) target = $region36
    $region35: #{inception1d_forward.7} parent=5 // pred_region
      // Predicated region
      $region37: #{inception1d_forward.7} parent=35 // pred_check
        %p217 = pneg %p44
      $region38: #{inception1d_forward.7} parent=35 // pred_check_branch
        %219 = sbr.rel (%p217) target = $region40
      $region39: #{inception1d_forward.7} parent=35 // pred_region
        %p220 = scmp.lt.s32.totalorder %s19, 1
        %s221 = scalar_select %p220, %s19, 1
        %s222 = smul.addr %s221, 7
        %s223 = smul.addr %s222, 4
        %s224 = scalar_lea.vmem %s0, %s223
      $region40: #{inception1d_forward.7} parent=35 // pred_fallthru
        _
    $region36: #{inception1d_forward.7} parent=5 // pred_fallthru
      _
    %p225 = scmp.le.s32.totalorder 1, %s12
    %p226 = scmp.lt.s32.totalorder %s12, 3
    %p227 = pnand %p225, %p226
    %p228 = pneg %p227
    // Predicated region
    $region41: #{inception1d_forward.7} parent=5 // pred_check
      _
    $region42: #{inception1d_forward.7} parent=5 // pred_check_branch
      %230 = sbr.rel (%p227) target = $region44
    $region43: #{inception1d_forward.7} parent=5 // pred_region
      %s231 = ssub.s32 %s12, 1
      %p232 = scmp.lt.s32.totalorder %s21, 1
      %s233 = scalar_select %p232, %s21, 1
      %s234 = smul.addr %s233, 7
      %s235 = smul.addr %s234, 4
      %s236 = scalar_lea.vmem %s0, %s235
      %p237 = pneg %p50
      %p238 = pneg %p47
      %p239 = pneg %p71
      %p240 = pneg %p68
      %p241 = pneg %p92
      %p242 = pneg %p89
      %p243 = pneg %p113
      %p244 = pneg %p110
      %p245 = pneg %p134
      %p246 = pneg %p131
      %p247 = pneg %p155
      %p248 = pneg %p152
      %p249 = pneg %p183
      %p250 = pneg %p180
      %s251 = smul.u32 2, %s22
      %p252 = scmp.lt.s32.totalorder %s21, 1
      %s253 = scalar_select %p252, %s21, 1
      %p254 = scmp.lt.s32.totalorder %s251, 1
      %s255 = scalar_select %p254, %s251, 1
      %s256 = smul.addr %s253, 2
      %s257 = sadd.s32 %s255, %s256
      %s258 = smul.addr %s257, 4
      %s259 = scalar_lea.vmem %s6, %s258
      %p260 = scmp.lt.s32.totalorder %s21, 1
      %s261 = scalar_select %p260, %s21, 1
      %s262 = smul.addr %s261, 7
      %s263 = smul.addr %s262, 4
      %s264 = scalar_lea.vmem %s0, %s263
      %s265 = smul.u32 2, %s22
      %p266 = scmp.lt.s32.totalorder %s21, 1
      %s267 = scalar_select %p266, %s21, 1
      %p268 = scmp.lt.s32.totalorder %s265, 1
      %s269 = scalar_select %p268, %s265, 1
      %s270 = smul.addr %s267, 2
      %s271 = sadd.s32 %s269, %s270
      %s272 = smul.addr %s271, 4
      %s273 = scalar_lea.vmem %s6, %s272
      %s274 = smul.u32 2, %s22
      %s279 = smul.u32 %s22, 16
      %s280 = sshra.s32 %s279, 3
      %s281 = sand.u32 %s279, 7
      %s282 = smul.addr %s280, 4
      %s283 = scalar_lea.vmem %s264, %s282
      %v284 = vld [vmem:[%s283] sm:$0xf]
      %v285 = vld [vmem:[%s283 + $0x4] sm:$0xf]
      %v286 = vld [vmem:[%s283 + $0x8] sm:$0xf]
      %v287 = vld [vmem:[%s283 + $0xc] sm:$0xf]
      %v288 = vld [vmem:[%s283 + $0x10] sm:$0xf]
      %v289 = vld [vmem:[%s283 + $0x14] sm:$0xf]
      %v290 = vld [vmem:[%s283 + $0x18] sm:$0xf]
      %v291 = vld [vmem:[%s1] sm:$0xf]
      %v299 = vunpack.c.l.b16 %v284
      %v300 = vunpack.c.l.b16 %v285
      %v301 = vunpack.c.l.b16 %v286
      %v302 = vunpack.c.l.b16 %v287
      %v303 = vunpack.c.l.b16 %v288
      %v304 = vunpack.c.l.b16 %v289
      %v305 = vunpack.c.l.b16 %v290
      %v306 = vpack.c.b16 %v300, %v299
      %v307 = vpack.c.b16 %v302, %v301
      %v308 = vpack.c.b16 %v304, %v303
      %v309 = vpack.c.b16 %v305, %v305
      %vm310 = vcmask 64512
      %v312 = vsel %vm310, %v306, 0
      %v315 = vsel %vm310, %v307, 0
      %v318 = vsel %vm310, %v308, 0
      %v321 = vsel %vm310, %v309, 0
      %vm323 = vcmask 1043456
      %v325 = vsel %vm323, %v291, 0
      %327 = vmatprep.subr.bf16.mxu0 0
      %328 = vmatpush1.bf16.msra.mxu0 %v325
      %329 = vmatprep.subr.bf16.mxu0 0
      %330 = vmatpush1.bf16.msra.mxu0 0
      %331 = vmatprep.subr.bf16.mxu0 0
      %332 = vmatpush1.bf16.msra.mxu0 0
      %333 = vmatprep.subr.bf16.mxu0 0
      %334 = vmatpush1.bf16.msra.mxu0 0
      %335 = vmatprep.subr.bf16.mxu0 0
      %336 = vmatpush1.bf16.msra.mxu0 0
      %337 = vmatprep.subr.bf16.mxu0 0
      %338 = vmatpush1.bf16.msra.mxu0 0
      %339 = vmatprep.subr.bf16.mxu0 0
      %340 = vmatpush1.bf16.msra.mxu0 0
      %341 = vmatprep.subr.bf16.mxu0 0
      %342 = vmatpush1.bf16.msra.mxu0 0
      %343 = vmatprep.subr.bf16.mxu0 0
      %344 = vmatpush1.bf16.msra.mxu0 0
      %345 = vmatprep.subr.bf16.mxu0 0
      %346 = vmatpush1.bf16.msra.mxu0 0
      %347 = vmatprep.subr.bf16.mxu0 0
      %348 = vmatpush1.bf16.msra.mxu0 0
      %349 = vmatprep.subr.bf16.mxu0 0
      %350 = vmatpush1.bf16.msra.mxu0 0
      %351 = vmatprep.subr.bf16.mxu0 0
      %352 = vmatpush1.bf16.msra.mxu0 0
      %353 = vmatprep.subr.bf16.mxu0 0
      %354 = vmatpush1.bf16.msra.mxu0 0
      %355 = vmatprep.subr.bf16.mxu0 0
      %356 = vmatpush1.bf16.msra.mxu0 0
      %357 = vmatprep.subr.bf16.mxu0 0
      %358 = vmatpush1.bf16.msra.mxu0 0
      %359 = vmatprep.mubr.bf16.mxu0 0
      %360 = vmatmul.mubr.bf16.gmra.mrb[0].mxu0 %v312
      %v361 = vpop.f32.mrb[0].mxu0
      %v362 = vadd.f32 0.0, %v361
      %v363 = vpop.f32.mrb[0].mxu0
      %v364 = vpop.f32.mrb[0].mxu0
      %v365 = vadd.f32 0.0, %v364
      %v366 = vpop.f32.mrb[0].mxu0
      %367 = vmatprep.mubr.bf16.mxu0 0
      %368 = vmatmul.mubr.bf16.gmra.mrb[0].mxu0 %v315
      %v369 = vpop.f32.mrb[0].mxu0
      %v370 = vadd.f32 0.0, %v369
      %v371 = vpop.f32.mrb[0].mxu0
      %v372 = vpop.f32.mrb[0].mxu0
      %v373 = vadd.f32 0.0, %v372
      %v374 = vpop.f32.mrb[0].mxu0
      %375 = vmatprep.mubr.bf16.mxu0 0
      %376 = vmatmul.mubr.bf16.gmra.mrb[0].mxu0 %v318
      %v377 = vpop.f32.mrb[0].mxu0
      %v378 = vadd.f32 0.0, %v377
      %v379 = vpop.f32.mrb[0].mxu0
      %v380 = vpop.f32.mrb[0].mxu0
      %v381 = vadd.f32 0.0, %v380
      %v382 = vpop.f32.mrb[0].mxu0
      %383 = vmatprep.mubr.bf16.mxu0 0
      %384 = vmatmul.mubr.bf16.gmra.mrb[0].mxu0 %v321
      %v385 = vpop.f32.mrb[0].mxu0
      %v386 = vadd.f32 0.0, %v385
      %v387 = vpop.f32.mrb[0].mxu0
      %v388 = vpop.f32.mrb[0].mxu0
      %v389 = vpop.f32.mrb[0].mxu0
      %390 = vdwg.mxu0
      %v391 = vpack.c.bf16 %v365, %v362
      %v392 = vpack.c.bf16 %v373, %v370
      %v393 = vpack.c.bf16 %v381, %v378
      %v394 = vpack.c.bf16 %v386, %v386
      %vm395 = vsmask.f32 7424
      %v397 = vshrl.u32 %v391, 16
      %v399 = vshll.u32 %v391, 16
      %v401 = vrot.slane %v399, 1
      %v402 = vor.u32 %v397, %v401
      %v404 = vshll.u32 %v392, 16
      %v406 = vrot.slane %v404, 1
      %v407 = vsel %vm395, %v402, %v406
      %v408 = vshrl.u32 %v392, 16
      %410 = vrot.lane.b32.xlu0 %v407, 32
      %v411 = vpop.permute.xlu0 %410
      %412 = vrot.lane.b32.xlu0 %v408, 32
      %v413 = vpop.permute.xlu0 %412
      %vm416 = vcmask 1046528
      %v417 = vrot.slane %v391, 1
      %v418 = vrot.slane %v392, 1
      %v419 = vsel %vm416, %v417, %v418
      %420 = vrot.lane.b32.xlu0 %v419, 64
      %v421 = vpop.permute.xlu0 %420
      %422 = vrot.lane.b32.xlu0 %v418, 64
      %v423 = vpop.permute.xlu0 %422
      %vm424 = vsmask.f32 6400
      %v425 = vrot.slane %v397, 1
      %v426 = vrot.slane %v399, 2
      %v427 = vor.u32 %v425, %v426
      %v428 = vrot.slane %v408, 1
      %v429 = vrot.slane %v404, 2
      %v430 = vor.u32 %v428, %v429
      %v431 = vsel %vm424, %v427, %v430
      %432 = vrot.lane.b32.xlu0 %v431, 96
      %v433 = vpop.permute.xlu0 %432
      %434 = vrot.lane.b32.xlu0 %v428, 96
      %v435 = vpop.permute.xlu0 %434
      %vm436 = vcmask 1045504
      %v437 = vrot.slane %v391, 2
      %v438 = vrot.slane %v392, 2
      %v439 = vsel %vm436, %v437, %v438
      %vm440 = vsmask.f32 5376
      %v441 = vrot.slane %v397, 2
      %v442 = vrot.slane %v399, 3
      %v443 = vor.u32 %v441, %v442
      %v444 = vrot.slane %v408, 2
      %v445 = vrot.slane %v404, 3
      %v446 = vor.u32 %v444, %v445
      %v447 = vsel %vm440, %v443, %v446
      %448 = vrot.lane.b32.xlu0 %v447, 32
      %v449 = vpop.permute.xlu0 %448
      %450 = vrot.lane.b32.xlu0 %v444, 32
      %v451 = vpop.permute.xlu0 %450
      %vm452 = vcmask 1044480
      %v453 = vrot.slane %v391, 3
      %v454 = vrot.slane %v392, 3
      %v455 = vsel %vm452, %v453, %v454
      %456 = vrot.lane.b32.xlu0 %v455, 64
      %v457 = vpop.permute.xlu0 %456
      %458 = vrot.lane.b32.xlu0 %v454, 64
      %v459 = vpop.permute.xlu0 %458
      %vm460 = vsmask.f32 4352
      %v461 = vrot.slane %v397, 3
      %v462 = vrot.slane %v399, 4
      %v463 = vor.u32 %v461, %v462
      %v464 = vrot.slane %v408, 3
      %v465 = vrot.slane %v404, 4
      %v466 = vor.u32 %v464, %v465
      %v467 = vsel %vm460, %v463, %v466
      %468 = vrot.lane.b32.xlu0 %v467, 96
      %v469 = vpop.permute.xlu0 %468
      %470 = vrot.lane.b32.xlu0 %v464, 96
      %v471 = vpop.permute.xlu0 %470
      %vm472 = vcmask 1043456
      %v473 = vrot.slane %v391, 4
      %v474 = vrot.slane %v392, 4
      %v475 = vsel %vm472, %v473, %v474
      %vm476 = vsmask.f32 3328
      %v477 = vrot.slane %v397, 4
      %v478 = vrot.slane %v399, 5
      %v479 = vor.u32 %v477, %v478
      %v480 = vrot.slane %v408, 4
      %v481 = vrot.slane %v404, 5
      %v482 = vor.u32 %v480, %v481
      %v483 = vsel %vm476, %v479, %v482
      %484 = vrot.lane.b32.xlu0 %v483, 32
      %v485 = vpop.permute.xlu0 %484
      %486 = vrot.lane.b32.xlu0 %v480, 32
      %v487 = vpop.permute.xlu0 %486
      %vm488 = vcmask 1042432
      %v489 = vrot.slane %v391, 5
      %v490 = vrot.slane %v392, 5
      %v491 = vsel %vm488, %v489, %v490
      %492 = vrot.lane.b32.xlu0 %v491, 64
      %v493 = vpop.permute.xlu0 %492
      %494 = vrot.lane.b32.xlu0 %v490, 64
      %v495 = vpop.permute.xlu0 %494
      %vm496 = vsmask.f32 2304
      %v497 = vrot.slane %v397, 5
      %v498 = vrot.slane %v399, 6
      %v499 = vor.u32 %v497, %v498
      %v500 = vrot.slane %v408, 5
      %v501 = vrot.slane %v404, 6
      %v502 = vor.u32 %v500, %v501
      %v503 = vsel %vm496, %v499, %v502
      %504 = vrot.lane.b32.xlu0 %v503, 96
      %v505 = vpop.permute.xlu0 %504
      %506 = vrot.lane.b32.xlu0 %v500, 96
      %v507 = vpop.permute.xlu0 %506
      %vm508 = vcmask 1041408
      %v509 = vrot.slane %v391, 6
      %v510 = vrot.slane %v392, 6
      %v511 = vsel %vm508, %v509, %v510
      %vm512 = vsmask.f32 1280
      %v513 = vrot.slane %v397, 6
      %v514 = vrot.slane %v399, 7
      %v515 = vor.u32 %v513, %v514
      %v516 = vrot.slane %v408, 6
      %v517 = vrot.slane %v404, 7
      %v518 = vor.u32 %v516, %v517
      %v519 = vsel %vm512, %v515, %v518
      %520 = vrot.lane.b32.xlu0 %v519, 32
      %v521 = vpop.permute.xlu0 %520
      %522 = vrot.lane.b32.xlu0 %v516, 32
      %v523 = vpop.permute.xlu0 %522
      %vm524 = vcmask 1040384
      %v525 = vrot.slane %v391, 7
      %v526 = vrot.slane %v392, 7
      %v527 = vsel %vm524, %v525, %v526
      %528 = vrot.lane.b32.xlu0 %v527, 64
      %v529 = vpop.permute.xlu0 %528
      %530 = vrot.lane.b32.xlu0 %v526, 64
      %v531 = vpop.permute.xlu0 %530
      %v532 = vrot.slane %v408, 7
      %v533 = vor.u32 %v532, %v404
      %534 = vrot.lane.b32.xlu0 %v533, 96
      %v535 = vpop.permute.xlu0 %534
      %536 = vrot.lane.b32.xlu0 %v532, 96
      %v537 = vpop.permute.xlu0 %536
      %vm538 = vcmask 261120
      %v540 = vsel %vm538, %v391, %v411
      %v542 = vsel %vm538, %v392, %v413
      %vm543 = vcmask 523264
      %v545 = vsel %vm543, %v540, %v421
      %v547 = vsel %vm543, %v542, %v423
      %vm548 = vcmask 785408
      %v550 = vsel %vm548, %v545, %v433
      %v552 = vsel %vm548, %v547, %v435
      %v555 = vsel %vm538, %v439, %v449
      %v558 = vsel %vm538, %v438, %v451
      %v560 = vsel %vm543, %v555, %v457
      %v562 = vsel %vm543, %v558, %v459
      %v564 = vsel %vm548, %v560, %v469
      %v566 = vsel %vm548, %v562, %v471
      %v569 = vsel %vm538, %v475, %v485
      %v572 = vsel %vm538, %v474, %v487
      %v574 = vsel %vm543, %v569, %v493
      %v576 = vsel %vm543, %v572, %v495
      %v578 = vsel %vm548, %v574, %v505
      %v580 = vsel %vm548, %v576, %v507
      %v583 = vsel %vm538, %v511, %v521
      %v586 = vsel %vm538, %v510, %v523
      %v588 = vsel %vm543, %v583, %v529
      %v590 = vsel %vm543, %v586, %v531
      %v592 = vsel %vm548, %v588, %v535
      %v594 = vsel %vm548, %v590, %v537
      %v595 = vor.u32 %v408, %v406
      %v597 = vshll.u32 %v393, 16
      %v599 = vrot.slane %v597, 1
      %v600 = vsel %vm395, %v595, %v599
      %v601 = vshrl.u32 %v393, 16
      %603 = vrot.lane.b32.xlu0 %v600, 32
      %v604 = vpop.permute.xlu0 %603
      %605 = vrot.lane.b32.xlu0 %v601, 32
      %v606 = vpop.permute.xlu0 %605
      %v608 = vrot.slane %v393, 1
      %v609 = vsel %vm416, %v418, %v608
      %610 = vrot.lane.b32.xlu0 %v609, 64
      %v611 = vpop.permute.xlu0 %610
      %612 = vrot.lane.b32.xlu0 %v608, 64
      %v613 = vpop.permute.xlu0 %612
      %v614 = vrot.slane %v601, 1
      %v615 = vrot.slane %v597, 2
      %v616 = vor.u32 %v614, %v615
      %v617 = vsel %vm424, %v430, %v616
      %618 = vrot.lane.b32.xlu0 %v617, 96
      %v619 = vpop.permute.xlu0 %618
      %620 = vrot.lane.b32.xlu0 %v614, 96
      %v621 = vpop.permute.xlu0 %620
      %v622 = vrot.slane %v393, 2
      %v623 = vsel %vm436, %v438, %v622
      %v624 = vrot.slane %v601, 2
      %v625 = vrot.slane %v597, 3
      %v626 = vor.u32 %v624, %v625
      %v627 = vsel %vm440, %v446, %v626
      %628 = vrot.lane.b32.xlu0 %v627, 32
      %v629 = vpop.permute.xlu0 %628
      %630 = vrot.lane.b32.xlu0 %v624, 32
      %v631 = vpop.permute.xlu0 %630
      %v632 = vrot.slane %v393, 3
      %v633 = vsel %vm452, %v454, %v632
      %634 = vrot.lane.b32.xlu0 %v633, 64
      %v635 = vpop.permute.xlu0 %634
      %636 = vrot.lane.b32.xlu0 %v632, 64
      %v637 = vpop.permute.xlu0 %636
      %v638 = vrot.slane %v601, 3
      %v639 = vrot.slane %v597, 4
      %v640 = vor.u32 %v638, %v639
      %v641 = vsel %vm460, %v466, %v640
      %642 = vrot.lane.b32.xlu0 %v641, 96
      %v643 = vpop.permute.xlu0 %642
      %644 = vrot.lane.b32.xlu0 %v638, 96
      %v645 = vpop.permute.xlu0 %644
      %v646 = vrot.slane %v393, 4
      %v647 = vsel %vm472, %v474, %v646
      %v648 = vrot.slane %v601, 4
      %v649 = vrot.slane %v597, 5
      %v650 = vor.u32 %v648, %v649
      %v651 = vsel %vm476, %v482, %v650
      %652 = vrot.lane.b32.xlu0 %v651, 32
      %v653 = vpop.permute.xlu0 %652
      %654 = vrot.lane.b32.xlu0 %v648, 32
      %v655 = vpop.permute.xlu0 %654
      %v656 = vrot.slane %v393, 5
      %v657 = vsel %vm488, %v490, %v656
      %658 = vrot.lane.b32.xlu0 %v657, 64
      %v659 = vpop.permute.xlu0 %658
      %660 = vrot.lane.b32.xlu0 %v656, 64
      %v661 = vpop.permute.xlu0 %660
      %v662 = vrot.slane %v601, 5
      %v663 = vrot.slane %v597, 6
      %v664 = vor.u32 %v662, %v663
      %v665 = vsel %vm496, %v502, %v664
      %666 = vrot.lane.b32.xlu0 %v665, 96
      %v667 = vpop.permute.xlu0 %666
      %668 = vrot.lane.b32.xlu0 %v662, 96
      %v669 = vpop.permute.xlu0 %668
      %v670 = vrot.slane %v393, 6
      %v671 = vsel %vm508, %v510, %v670
      %v672 = vrot.slane %v601, 6
      %v673 = vrot.slane %v597, 7
      %v674 = vor.u32 %v672, %v673
      %v675 = vsel %vm512, %v518, %v674
      %676 = vrot.lane.b32.xlu0 %v675, 32
      %v677 = vpop.permute.xlu0 %676
      %678 = vrot.lane.b32.xlu0 %v672, 32
      %v679 = vpop.permute.xlu0 %678
      %v680 = vrot.slane %v393, 7
      %v681 = vsel %vm524, %v526, %v680
      %682 = vrot.lane.b32.xlu0 %v681, 64
      %v683 = vpop.permute.xlu0 %682
      %684 = vrot.lane.b32.xlu0 %v680, 64
      %v685 = vpop.permute.xlu0 %684
      %v686 = vrot.slane %v601, 7
      %v687 = vor.u32 %v686, %v597
      %688 = vrot.lane.b32.xlu0 %v687, 96
      %v689 = vpop.permute.xlu0 %688
      %690 = vrot.lane.b32.xlu0 %v686, 96
      %v691 = vpop.permute.xlu0 %690
      %v693 = vsel %vm538, %v392, %v604
      %v695 = vsel %vm538, %v393, %v606
      %v697 = vsel %vm543, %v693, %v611
      %v699 = vsel %vm543, %v695, %v613
      %v701 = vsel %vm548, %v697, %v619
      %v703 = vsel %vm548, %v699, %v621
      %v706 = vsel %vm538, %v623, %v629
      %v709 = vsel %vm538, %v622, %v631
      %v711 = vsel %vm543, %v706, %v635
      %v713 = vsel %vm543, %v709, %v637
      %v715 = vsel %vm548, %v711, %v643
      %v717 = vsel %vm548, %v713, %v645
      %v720 = vsel %vm538, %v647, %v653
      %v723 = vsel %vm538, %v646, %v655
      %v725 = vsel %vm543, %v720, %v659
      %v727 = vsel %vm543, %v723, %v661
      %v729 = vsel %vm548, %v725, %v667
      %v731 = vsel %vm548, %v727, %v669
      %v734 = vsel %vm538, %v671, %v677
      %v737 = vsel %vm538, %v670, %v679
      %v739 = vsel %vm543, %v734, %v683
      %v741 = vsel %vm543, %v737, %v685
      %v743 = vsel %vm548, %v739, %v689
      %v745 = vsel %vm548, %v741, %v691
      %v746 = vor.u32 %v601, %v599
      %v748 = vshll.u32 %v394, 16
      %v750 = vrot.slane %v748, 1
      %v751 = vsel %vm395, %v746, %v750
      %v752 = vshrl.u32 %v394, 16
      %754 = vrot.lane.b32.xlu0 %v751, 32
      %v755 = vpop.permute.xlu0 %754
      %756 = vrot.lane.b32.xlu0 %v752, 32
      %v757 = vpop.permute.xlu0 %756
      %v759 = vrot.slane %v394, 1
      %v760 = vsel %vm416, %v608, %v759
      %761 = vrot.lane.b32.xlu0 %v760, 64
      %v762 = vpop.permute.xlu0 %761
      %763 = vrot.lane.b32.xlu0 %v759, 64
      %v764 = vpop.permute.xlu0 %763
      %v765 = vrot.slane %v752, 1
      %v766 = vrot.slane %v748, 2
      %v767 = vor.u32 %v765, %v766
      %v768 = vsel %vm424, %v616, %v767
      %769 = vrot.lane.b32.xlu0 %v768, 96
      %v770 = vpop.permute.xlu0 %769
      %771 = vrot.lane.b32.xlu0 %v765, 96
      %v772 = vpop.permute.xlu0 %771
      %v773 = vrot.slane %v394, 2
      %v774 = vsel %vm436, %v622, %v773
      %v775 = vrot.slane %v752, 2
      %v776 = vrot.slane %v748, 3
      %v777 = vor.u32 %v775, %v776
      %v778 = vsel %vm440, %v626, %v777
      %779 = vrot.lane.b32.xlu0 %v778, 32
      %v780 = vpop.permute.xlu0 %779
      %781 = vrot.lane.b32.xlu0 %v775, 32
      %v782 = vpop.permute.xlu0 %781
      %v783 = vrot.slane %v394, 3
      %v784 = vsel %vm452, %v632, %v783
      %785 = vrot.lane.b32.xlu0 %v784, 64
      %v786 = vpop.permute.xlu0 %785
      %787 = vrot.lane.b32.xlu0 %v783, 64
      %v788 = vpop.permute.xlu0 %787
      %v789 = vrot.slane %v752, 3
      %v790 = vrot.slane %v748, 4
      %v791 = vor.u32 %v789, %v790
      %v792 = vsel %vm460, %v640, %v791
      %793 = vrot.lane.b32.xlu0 %v792, 96
      %v794 = vpop.permute.xlu0 %793
      %795 = vrot.lane.b32.xlu0 %v789, 96
      %v796 = vpop.permute.xlu0 %795
      %v798 = vsel %vm538, %v393, %v755
      %v800 = vsel %vm538, %v394, %v757
      %v802 = vsel %vm543, %v798, %v762
      %v804 = vsel %vm543, %v800, %v764
      %v806 = vsel %vm548, %v802, %v770
      %v808 = vsel %vm548, %v804, %v772
      %v811 = vsel %vm538, %v774, %v780
      %v814 = vsel %vm538, %v773, %v782
      %v816 = vsel %vm543, %v811, %v786
      %v818 = vsel %vm543, %v814, %v788
      %v820 = vsel %vm548, %v816, %v794
      %v822 = vsel %vm548, %v818, %v796
      %v823 = vld [vmem:[%s2] sm:$0xf]
      %v824 = vld [vmem:[%s2 + $0x4] sm:$0xf]
      %v825 = vld [vmem:[%s2 + $0x8] sm:$0xf]
      %v826 = vld [vmem:[%s2 + $0xc] sm:$0xf]
      %v827 = vld [vmem:[%s2 + $0x10] sm:$0xf]
      %v828 = vld [vmem:[%s2 + $0x14] sm:$0xf]
      %v829 = vld [vmem:[%s2 + $0x18] sm:$0xf]
      %v830 = vld [vmem:[%s2 + $0x1c] sm:$0xf]
      %v831 = vld [vmem:[%s2 + $0x20] sm:$0xf]
      %v832 = vld [vmem:[%s2 + $0x24] sm:$0xf]
      %v833 = vld [vmem:[%s2 + $0x28] sm:$0xf]
      %v834 = vld [vmem:[%s2 + $0x2c] sm:$0xf]
      %v835 = vld [vmem:[%s2 + $0x30] sm:$0xf]
      %v836 = vld [vmem:[%s2 + $0x34] sm:$0xf]
      %v837 = vld [vmem:[%s2 + $0x38] sm:$0xf]
      %v838 = vld [vmem:[%s2 + $0x3c] sm:$0xf]
      %v839 = vld [vmem:[%s2 + $0x40] sm:$0xf]
      %v840 = vld [vmem:[%s2 + $0x44] sm:$0xf]
      %v841 = vld [vmem:[%s2 + $0x48] sm:$0xf]
      %v842 = vld [vmem:[%s2 + $0x4c] sm:$0xf]
      %v843 = vld [vmem:[%s2 + $0x50] sm:$0xf]
      %v844 = vld [vmem:[%s2 + $0x54] sm:$0xf]
      %v845 = vld [vmem:[%s2 + $0x58] sm:$0xf]
      %v846 = vld [vmem:[%s2 + $0x5c] sm:$0xf]
      %v847 = vld [vmem:[%s2 + $0x60] sm:$0xf]
      %v848 = vld [vmem:[%s2 + $0x64] sm:$0xf]
      %v849 = vld [vmem:[%s2 + $0x68] sm:$0xf]
      %v850 = vld [vmem:[%s2 + $0x6c] sm:$0xf]
      %v851 = vld [vmem:[%s2 + $0x70] sm:$0xf]
      %v852 = vld [vmem:[%s2 + $0x74] sm:$0xf]
      %v853 = vld [vmem:[%s2 + $0x78] sm:$0xf]
      %v854 = vld [vmem:[%s2 + $0x7c] sm:$0xf]
      %v855 = vld [vmem:[%s2 + $0x80] sm:$0xf]
      %v856 = vld [vmem:[%s2 + $0x84] sm:$0xf]
      %v857 = vld [vmem:[%s2 + $0x88] sm:$0xf]
      %v858 = vld [vmem:[%s2 + $0x8c] sm:$0xf]
      %v859 = vld [vmem:[%s2 + $0x90] sm:$0xf]
      %v860 = vld [vmem:[%s2 + $0x94] sm:$0xf]
      %v861 = vld [vmem:[%s2 + $0x98] sm:$0xf]
      %v862 = vld [vmem:[%s2 + $0x9c] sm:$0xf]
      %v863 = vld [vmem:[%s2 + $0xa0] sm:$0xf]
      %v864 = vld [vmem:[%s2 + $0xa4] sm:$0xf]
      %v865 = vld [vmem:[%s2 + $0xa8] sm:$0xf]
      %v866 = vld [vmem:[%s2 + $0xac] sm:$0xf]
      %v867 = vld [vmem:[%s2 + $0xb0] sm:$0xf]
      %v868 = vld [vmem:[%s2 + $0xb4] sm:$0xf]
      %v869 = vld [vmem:[%s2 + $0xb8] sm:$0xf]
      %v870 = vld [vmem:[%s2 + $0xbc] sm:$0xf]
      %v871 = vld [vmem:[%s2 + $0xc0] sm:$0xf]
      %v872 = vld [vmem:[%s2 + $0xc4] sm:$0xf]
      %v873 = vld [vmem:[%s2 + $0xc8] sm:$0xf]
      %v874 = vld [vmem:[%s2 + $0xcc] sm:$0xf]
      %v875 = vld [vmem:[%s2 + $0xd0] sm:$0xf]
      %v876 = vld [vmem:[%s2 + $0xd4] sm:$0xf]
      %v877 = vld [vmem:[%s2 + $0xd8] sm:$0xf]
      %v878 = vld [vmem:[%s2 + $0xdc] sm:$0xf]
      %v879 = vld [vmem:[%s2 + $0xe0] sm:$0xf]
      %v880 = vld [vmem:[%s2 + $0xe4] sm:$0xf]
      %v881 = vld [vmem:[%s2 + $0xe8] sm:$0xf]
      %v882 = vld [vmem:[%s2 + $0xec] sm:$0xf]
      %v883 = vld [vmem:[%s2 + $0xf0] sm:$0xf]
      %v884 = vld [vmem:[%s2 + $0xf4] sm:$0xf]
      %v885 = vld [vmem:[%s2 + $0xf8] sm:$0xf]
      %v886 = vld [vmem:[%s2 + $0xfc] sm:$0xf]
      %v887 = vld [vmem:[%s2 + $0x100] sm:$0xf]
      %v888 = vld [vmem:[%s2 + $0x104] sm:$0xf]
      %v889 = vld [vmem:[%s2 + $0x108] sm:$0xf]
      %v890 = vld [vmem:[%s2 + $0x10c] sm:$0xf]
      %v891 = vld [vmem:[%s2 + $0x110] sm:$0xf]
      %v892 = vld [vmem:[%s2 + $0x114] sm:$0xf]
      %v893 = vld [vmem:[%s2 + $0x118] sm:$0xf]
      %v894 = vld [vmem:[%s2 + $0x11c] sm:$0xf]
      %v895 = vld [vmem:[%s2 + $0x120] sm:$0xf]
      %v896 = vld [vmem:[%s2 + $0x124] sm:$0xf]
      %v897 = vld [vmem:[%s2 + $0x128] sm:$0xf]
      %v898 = vld [vmem:[%s2 + $0x12c] sm:$0xf]
      %v899 = vld [vmem:[%s2 + $0x130] sm:$0xf]
      %v900 = vld [vmem:[%s2 + $0x134] sm:$0xf]
      %v901 = vld [vmem:[%s2 + $0x138] sm:$0xf]
      %v902 = vld [vmem:[%s2 + $0x13c] sm:$0xf]
      %v903 = vld [vmem:[%s2 + $0x140] sm:$0xf]
      %v904 = vld [vmem:[%s2 + $0x144] sm:$0xf]
      %v905 = vld [vmem:[%s2 + $0x148] sm:$0xf]
      %v906 = vld [vmem:[%s2 + $0x14c] sm:$0xf]
      %v907 = vld [vmem:[%s2 + $0x150] sm:$0xf]
      %v908 = vld [vmem:[%s2 + $0x154] sm:$0xf]
      %v909 = vld [vmem:[%s2 + $0x158] sm:$0xf]
      %v910 = vld [vmem:[%s2 + $0x15c] sm:$0xf]
      %v911 = vld [vmem:[%s2 + $0x160] sm:$0xf]
      %v912 = vld [vmem:[%s2 + $0x164] sm:$0xf]
      %v913 = vld [vmem:[%s2 + $0x168] sm:$0xf]
      %v914 = vld [vmem:[%s2 + $0x16c] sm:$0xf]
      %v915 = vld [vmem:[%s2 + $0x170] sm:$0xf]
      %v916 = vld [vmem:[%s2 + $0x174] sm:$0xf]
      %v917 = vld [vmem:[%s2 + $0x178] sm:$0xf]
      %v918 = vld [vmem:[%s2 + $0x17c] sm:$0xf]
      %v919 = vld [vmem:[%s2 + $0x180] sm:$0xf]
      %v920 = vld [vmem:[%s2 + $0x184] sm:$0xf]
      %v921 = vld [vmem:[%s2 + $0x188] sm:$0xf]
      %v922 = vld [vmem:[%s2 + $0x18c] sm:$0xf]
      %v923 = vld [vmem:[%s2 + $0x190] sm:$0xf]
      %v924 = vld [vmem:[%s2 + $0x194] sm:$0xf]
      %v925 = vld [vmem:[%s2 + $0x198] sm:$0xf]
      %v926 = vld [vmem:[%s2 + $0x19c] sm:$0xf]
      %v927 = vld [vmem:[%s2 + $0x1a0] sm:$0xf]
      %v928 = vld [vmem:[%s2 + $0x1a4] sm:$0xf]
      %v929 = vld [vmem:[%s2 + $0x1a8] sm:$0xf]
      %v930 = vld [vmem:[%s2 + $0x1ac] sm:$0xf]
      %v931 = vld [vmem:[%s2 + $0x1b0] sm:$0xf]
      %v932 = vld [vmem:[%s2 + $0x1b4] sm:$0xf]
      %v933 = vld [vmem:[%s2 + $0x1b8] sm:$0xf]
      %v934 = vld [vmem:[%s2 + $0x1bc] sm:$0xf]
      %v935 = vld [vmem:[%s2 + $0x1c0] sm:$0xf]
      %v936 = vld [vmem:[%s2 + $0x1c4] sm:$0xf]
      %v937 = vld [vmem:[%s2 + $0x1c8] sm:$0xf]
      %v938 = vld [vmem:[%s2 + $0x1cc] sm:$0xf]
      %v939 = vld [vmem:[%s2 + $0x1d0] sm:$0xf]
      %v940 = vld [vmem:[%s2 + $0x1d4] sm:$0xf]
      %v941 = vld [vmem:[%s2 + $0x1d8] sm:$0xf]
      %v942 = vld [vmem:[%s2 + $0x1dc] sm:$0xf]
      %v943 = vld [vmem:[%s2 + $0x1e0] sm:$0xf]
      %v944 = vld [vmem:[%s2 + $0x1e4] sm:$0xf]
      %v945 = vld [vmem:[%s2 + $0x1e8] sm:$0xf]
      %v946 = vld [vmem:[%s2 + $0x1ec] sm:$0xf]
      %v947 = vld [vmem:[%s2 + $0x1f0] sm:$0xf]
      %v948 = vld [vmem:[%s2 + $0x1f4] sm:$0xf]
      %v949 = vld [vmem:[%s2 + $0x1f8] sm:$0xf]
      %v950 = vld [vmem:[%s2 + $0x1fc] sm:$0xf]
      %v951 = vld [vmem:[%s2 + $0x200] sm:$0xf]
      %v952 = vld [vmem:[%s2 + $0x204] sm:$0xf]
      %v953 = vld [vmem:[%s2 + $0x208] sm:$0xf]
      %v954 = vld [vmem:[%s2 + $0x20c] sm:$0xf]
      %v955 = vld [vmem:[%s2 + $0x210] sm:$0xf]
      %v956 = vld [vmem:[%s2 + $0x214] sm:$0xf]
      %v957 = vld [vmem:[%s2 + $0x218] sm:$0xf]
      %v958 = vld [vmem:[%s2 + $0x21c] sm:$0xf]
      %v959 = vld [vmem:[%s2 + $0x220] sm:$0xf]
      %v960 = vld [vmem:[%s2 + $0x224] sm:$0xf]
      %v961 = vld [vmem:[%s2 + $0x228] sm:$0xf]
      %v962 = vld [vmem:[%s2 + $0x22c] sm:$0xf]
      %v963 = vld [vmem:[%s2 + $0x230] sm:$0xf]
      %v964 = vld [vmem:[%s2 + $0x234] sm:$0xf]
      %v965 = vld [vmem:[%s2 + $0x238] sm:$0xf]
      %v966 = vld [vmem:[%s2 + $0x23c] sm:$0xf]
      %v967 = vld [vmem:[%s2 + $0x240] sm:$0xf]
      %v968 = vld [vmem:[%s2 + $0x244] sm:$0xf]
      %v969 = vld [vmem:[%s2 + $0x248] sm:$0xf]
      %v970 = vld [vmem:[%s2 + $0x24c] sm:$0xf]
      %v971 = vld [vmem:[%s2 + $0x250] sm:$0xf]
      %v972 = vld [vmem:[%s2 + $0x254] sm:$0xf]
      %v973 = vld [vmem:[%s2 + $0x258] sm:$0xf]
      %v974 = vld [vmem:[%s2 + $0x25c] sm:$0xf]
      %v975 = vld [vmem:[%s2 + $0x260] sm:$0xf]
      %v976 = vld [vmem:[%s2 + $0x264] sm:$0xf]
      %v977 = vld [vmem:[%s2 + $0x268] sm:$0xf]
      %v978 = vld [vmem:[%s2 + $0x26c] sm:$0xf]
      %v979 = vld [vmem:[%s2 + $0x270] sm:$0xf]
      %v980 = vld [vmem:[%s2 + $0x274] sm:$0xf]
      %v981 = vld [vmem:[%s2 + $0x278] sm:$0xf]
      %v982 = vld [vmem:[%s2 + $0x27c] sm:$0xf]
      %v983 = vshrl.u32 %v550, 16
      %v985 = vshll.u32 %v550, 16
      %v987 = vrot.slane %v985, 1
      %v988 = vor.u32 %v983, %v987
      %v989 = vshll.u32 %v552, 16
      %v991 = vrot.slane %v989, 1
      %v992 = vsel %vm395, %v988, %v991
      %v993 = vshrl.u32 %v564, 16
      %v995 = vshll.u32 %v564, 16
      %v997 = vrot.slane %v995, 1
      %v998 = vor.u32 %v993, %v997
      %v999 = vshll.u32 %v566, 16
      %v1001 = vrot.slane %v999, 1
      %v1002 = vsel %vm395, %v998, %v1001
      %v1003 = vshrl.u32 %v578, 16
      %v1005 = vshll.u32 %v578, 16
      %v1007 = vrot.slane %v1005, 1
      %v1008 = vor.u32 %v1003, %v1007
      %v1009 = vshll.u32 %v580, 16
      %v1011 = vrot.slane %v1009, 1
      %v1012 = vsel %vm395, %v1008, %v1011
      %v1013 = vshrl.u32 %v592, 16
      %v1015 = vshll.u32 %v592, 16
      %v1017 = vrot.slane %v1015, 1
      %v1018 = vor.u32 %v1013, %v1017
      %v1019 = vshll.u32 %v594, 16
      %v1021 = vrot.slane %v1019, 1
      %v1022 = vsel %vm395, %v1018, %v1021
      %v1023 = vshrl.u32 %v701, 16
      %v1025 = vshll.u32 %v701, 16
      %v1027 = vrot.slane %v1025, 1
      %v1028 = vor.u32 %v1023, %v1027
      %v1029 = vshll.u32 %v703, 16
      %v1031 = vrot.slane %v1029, 1
      %v1032 = vsel %vm395, %v1028, %v1031
      %v1033 = vshrl.u32 %v715, 16
      %v1035 = vshll.u32 %v715, 16
      %v1037 = vrot.slane %v1035, 1
      %v1038 = vor.u32 %v1033, %v1037
      %v1039 = vshll.u32 %v717, 16
      %v1041 = vrot.slane %v1039, 1
      %v1042 = vsel %vm395, %v1038, %v1041
      %v1043 = vshrl.u32 %v729, 16
      %v1045 = vshll.u32 %v729, 16
      %v1047 = vrot.slane %v1045, 1
      %v1048 = vor.u32 %v1043, %v1047
      %v1049 = vshll.u32 %v731, 16
      %v1051 = vrot.slane %v1049, 1
      %v1052 = vsel %vm395, %v1048, %v1051
      %v1053 = vshrl.u32 %v743, 16
      %v1055 = vshll.u32 %v743, 16
      %v1057 = vrot.slane %v1055, 1
      %v1058 = vor.u32 %v1053, %v1057
      %v1059 = vshll.u32 %v745, 16
      %v1061 = vrot.slane %v1059, 1
      %v1062 = vsel %vm395, %v1058, %v1061
      %v1063 = vshrl.u32 %v806, 16
      %v1065 = vshll.u32 %v806, 16
      %v1067 = vrot.slane %v1065, 1
      %v1068 = vor.u32 %v1063, %v1067
      %v1069 = vshll.u32 %v808, 16
      %v1071 = vrot.slane %v1069, 1
      %v1072 = vsel %vm395, %v1068, %v1071
      %v1073 = vshrl.u32 %v820, 16
      %v1075 = vshll.u32 %v820, 16
      %v1077 = vrot.slane %v1075, 1
      %v1078 = vor.u32 %v1073, %v1077
      %v1079 = vshll.u32 %v822, 16
      %v1081 = vrot.slane %v1079, 1
      %v1082 = vsel %vm395, %v1078, %v1081
      %v1253 = vunpack.c.l.b16 %v823
      %v1254 = vunpack.c.l.b16 %v824
      %v1255 = vunpack.c.l.b16 %v825
      %v1256 = vunpack.c.l.b16 %v826
      %v1257 = vunpack.c.l.b16 %v827
      %v1258 = vunpack.c.l.b16 %v828
      %v1259 = vunpack.c.l.b16 %v829
      %v1260 = vunpack.c.l.b16 %v830
      %v1261 = vunpack.c.l.b16 %v831
      %v1262 = vunpack.c.l.b16 %v832
      %v1263 = vunpack.c.l.b16 %v833
      %v1264 = vunpack.c.l.b16 %v834
      %v1265 = vunpack.c.l.b16 %v835
      %v1266 = vunpack.c.l.b16 %v836
      %v1267 = vunpack.c.l.b16 %v837
      %v1268 = vunpack.c.l.b16 %v838
      %v1269 = vunpack.c.l.b16 %v839
      %v1270 = vunpack.c.l.b16 %v840
      %v1271 = vunpack.c.l.b16 %v841
      %v1272 = vunpack.c.l.b16 %v842
      %v1273 = vunpack.c.l.b16 %v843
      %v1274 = vunpack.c.l.b16 %v844
      %v1275 = vunpack.c.l.b16 %v845
      %v1276 = vunpack.c.l.b16 %v846
      %v1277 = vunpack.c.l.b16 %v847
      %v1278 = vunpack.c.l.b16 %v848
      %v1279 = vunpack.c.l.b16 %v849
      %v1280 = vunpack.c.l.b16 %v850
      %v1281 = vunpack.c.l.b16 %v851
      %v1282 = vunpack.c.l.b16 %v852
      %v1283 = vunpack.c.l.b16 %v853
      %v1284 = vunpack.c.l.b16 %v854
      %v1285 = vunpack.c.l.b16 %v855
      %v1286 = vunpack.c.l.b16 %v856
      %v1287 = vunpack.c.l.b16 %v857
      %v1288 = vunpack.c.l.b16 %v858
      %v1289 = vunpack.c.l.b16 %v859
      %v1290 = vunpack.c.l.b16 %v860
      %v1291 = vunpack.c.l.b16 %v861
      %v1292 = vunpack.c.l.b16 %v862
      %v1293 = vunpack.c.l.b16 %v863
      %v1294 = vunpack.c.l.b16 %v864
      %v1295 = vunpack.c.l.b16 %v865
      %v1296 = vunpack.c.l.b16 %v866
      %v1297 = vunpack.c.l.b16 %v867
      %v1298 = vunpack.c.l.b16 %v868
      %v1299 = vunpack.c.l.b16 %v869
      %v1300 = vunpack.c.l.b16 %v870
      %v1301 = vunpack.c.l.b16 %v871
      %v1302 = vunpack.c.l.b16 %v872
      %v1303 = vunpack.c.l.b16 %v873
      %v1304 = vunpack.c.l.b16 %v874
      %v1305 = vunpack.c.l.b16 %v875
      %v1306 = vunpack.c.l.b16 %v876
      %v1307 = vunpack.c.l.b16 %v877
      %v1308 = vunpack.c.l.b16 %v878
      %v1309 = vunpack.c.l.b16 %v879
      %v1310 = vunpack.c.l.b16 %v880
      %v1311 = vunpack.c.l.b16 %v881
      %v1312 = vunpack.c.l.b16 %v882
      %v1313 = vunpack.c.l.b16 %v883
      %v1314 = vunpack.c.l.b16 %v884
      %v1315 = vunpack.c.l.b16 %v885
      %v1316 = vunpack.c.l.b16 %v886
      %v1317 = vunpack.c.l.b16 %v887
      %v1318 = vunpack.c.l.b16 %v888
      %v1319 = vunpack.c.l.b16 %v889
      %v1320 = vunpack.c.l.b16 %v890
      %v1321 = vunpack.c.l.b16 %v891
      %v1322 = vunpack.c.l.b16 %v892
      %v1323 = vunpack.c.l.b16 %v893
      %v1324 = vunpack.c.l.b16 %v894
      %v1325 = vunpack.c.l.b16 %v895
      %v1326 = vunpack.c.l.b16 %v896
      %v1327 = vunpack.c.l.b16 %v897
      %v1328 = vunpack.c.l.b16 %v898
      %v1329 = vunpack.c.l.b16 %v899
      %v1330 = vunpack.c.l.b16 %v900
      %v1331 = vunpack.c.l.b16 %v901
      %v1332 = vunpack.c.l.b16 %v902
      %v1333 = vunpack.c.l.b16 %v903
      %v1334 = vunpack.c.l.b16 %v904
      %v1335 = vunpack.c.l.b16 %v905
      %v1336 = vunpack.c.l.b16 %v906
      %v1337 = vunpack.c.l.b16 %v907
      %v1338 = vunpack.c.l.b16 %v908
      %v1339 = vunpack.c.l.b16 %v909
      %v1340 = vunpack.c.l.b16 %v910
      %v1341 = vunpack.c.l.b16 %v911
      %v1342 = vunpack.c.l.b16 %v912
      %v1343 = vunpack.c.l.b16 %v913
      %v1344 = vunpack.c.l.b16 %v914
      %v1345 = vunpack.c.l.b16 %v915
      %v1346 = vunpack.c.l.b16 %v916
      %v1347 = vunpack.c.l.b16 %v917
      %v1348 = vunpack.c.l.b16 %v918
      %v1349 = vunpack.c.l.b16 %v919
      %v1350 = vunpack.c.l.b16 %v920
      %v1351 = vunpack.c.l.b16 %v921
      %v1352 = vunpack.c.l.b16 %v922
      %v1353 = vunpack.c.l.b16 %v923
      %v1354 = vunpack.c.l.b16 %v924
      %v1355 = vunpack.c.l.b16 %v925
      %v1356 = vunpack.c.l.b16 %v926
      %v1357 = vunpack.c.l.b16 %v927
      %v1358 = vunpack.c.l.b16 %v928
      %v1359 = vunpack.c.l.b16 %v929
      %v1360 = vunpack.c.l.b16 %v930
      %v1361 = vunpack.c.l.b16 %v931
      %v1362 = vunpack.c.l.b16 %v932
      %v1363 = vunpack.c.l.b16 %v933
      %v1364 = vunpack.c.l.b16 %v934
      %v1365 = vunpack.c.l.b16 %v935
      %v1366 = vunpack.c.l.b16 %v936
      %v1367 = vunpack.c.l.b16 %v937
      %v1368 = vunpack.c.l.b16 %v938
      %v1369 = vunpack.c.l.b16 %v939
      %v1370 = vunpack.c.l.b16 %v940
      %v1371 = vunpack.c.l.b16 %v941
      %v1372 = vunpack.c.l.b16 %v942
      %v1373 = vunpack.c.l.b16 %v943
      %v1374 = vunpack.c.l.b16 %v944
      %v1375 = vunpack.c.l.b16 %v945
      %v1376 = vunpack.c.l.b16 %v946
      %v1377 = vunpack.c.l.b16 %v947
      %v1378 = vunpack.c.l.b16 %v948
      %v1379 = vunpack.c.l.b16 %v949
      %v1380 = vunpack.c.l.b16 %v950
      %v1381 = vunpack.c.l.b16 %v951
      %v1382 = vunpack.c.l.b16 %v952
      %v1383 = vunpack.c.l.b16 %v953
      %v1384 = vunpack.c.l.b16 %v954
      %v1385 = vunpack.c.l.b16 %v955
      %v1386 = vunpack.c.l.b16 %v956
      %v1387 = vunpack.c.l.b16 %v957
      %v1388 = vunpack.c.l.b16 %v958
      %v1389 = vunpack.c.l.b16 %v959
      %v1390 = vunpack.c.l.b16 %v960
      %v1391 = vunpack.c.l.b16 %v961
      %v1392 = vunpack.c.l.b16 %v962
      %v1393 = vunpack.c.l.b16 %v963
      %v1394 = vunpack.c.l.b16 %v964
      %v1395 = vunpack.c.l.b16 %v965
      %v1396 = vunpack.c.l.b16 %v966
      %v1397 = vunpack.c.l.b16 %v967
      %v1398 = vunpack.c.l.b16 %v968
      %v1399 = vunpack.c.l.b16 %v969
      %v1400 = vunpack.c.l.b16 %v970
      %v1401 = vunpack.c.l.b16 %v971
      %v1402 = vunpack.c.l.b16 %v972
      %v1403 = vunpack.c.l.b16 %v973
      %v1404 = vunpack.c.l.b16 %v974
      %v1405 = vunpack.c.l.b16 %v975
      %v1406 = vunpack.c.l.b16 %v976
      %v1407 = vunpack.c.l.b16 %v977
      %v1408 = vunpack.c.l.b16 %v978
      %v1409 = vunpack.c.l.b16 %v979
      %v1410 = vunpack.c.l.b16 %v980
      %v1411 = vunpack.c.l.b16 %v981
      %v1412 = vunpack.c.l.b16 %v982
      %v1413 = vpack.c.b16 %v1254, %v1253
      %v1414 = vpack.c.b16 %v1256, %v1255
      %v1415 = vpack.c.b16 %v1258, %v1257
      %v1416 = vpack.c.b16 %v1260, %v1259
      %v1417 = vpack.c.b16 %v1262, %v1261
      %v1418 = vpack.c.b16 %v1264, %v1263
      %v1419 = vpack.c.b16 %v1266, %v1265
      %v1420 = vpack.c.b16 %v1268, %v1267
      %v1421 = vpack.c.b16 %v1270, %v1269
      %v1422 = vpack.c.b16 %v1272, %v1271
      %v1423 = vpack.c.b16 %v1274, %v1273
      %v1424 = vpack.c.b16 %v1276, %v1275
      %v1425 = vpack.c.b16 %v1278, %v1277
      %v1426 = vpack.c.b16 %v1280, %v1279
      %v1427 = vpack.c.b16 %v1282, %v1281
      %v1428 = vpack.c.b16 %v1284, %v1283
      %v1429 = vpack.c.b16 %v1286, %v1285
      %v1430 = vpack.c.b16 %v1288, %v1287
      %v1431 = vpack.c.b16 %v1290, %v1289
      %v1432 = vpack.c.b16 %v1292, %v1291
      %v1433 = vpack.c.b16 %v1294, %v1293
      %v1434 = vpack.c.b16 %v1296, %v1295
      %v1435 = vpack.c.b16 %v1298, %v1297
      %v1436 = vpack.c.b16 %v1300, %v1299
      %v1437 = vpack.c.b16 %v1302, %v1301
      %v1438 = vpack.c.b16 %v1304, %v1303
      %v1439 = vpack.c.b16 %v1306, %v1305
      %v1440 = vpack.c.b16 %v1308, %v1307
      %v1441 = vpack.c.b16 %v1310, %v1309
      %v1442 = vpack.c.b16 %v1312, %v1311
      %v1443 = vpack.c.b16 %v1314, %v1313
      %v1444 = vpack.c.b16 %v1316, %v1315
      %v1445 = vpack.c.b16 %v1318, %v1317
      %v1446 = vpack.c.b16 %v1320, %v1319
      %v1447 = vpack.c.b16 %v1322, %v1321
      %v1448 = vpack.c.b16 %v1324, %v1323
      %v1449 = vpack.c.b16 %v1326, %v1325
      %v1450 = vpack.c.b16 %v1328, %v1327
      %v1451 = vpack.c.b16 %v1330, %v1329
      %v1452 = vpack.c.b16 %v1332, %v1331
      %v1453 = vpack.c.b16 %v1334, %v1333
      %v1454 = vpack.c.b16 %v1336, %v1335
      %v1455 = vpack.c.b16 %v1338, %v1337
      %v1456 = vpack.c.b16 %v1340, %v1339
      %v1457 = vpack.c.b16 %v1342, %v1341
      %v1458 = vpack.c.b16 %v1344, %v1343
      %v1459 = vpack.c.b16 %v1346, %v1345
      %v1460 = vpack.c.b16 %v1348, %v1347
      %v1461 = vpack.c.b16 %v1350, %v1349
      %v1462 = vpack.c.b16 %v1352, %v1351
      %v1463 = vpack.c.b16 %v1354, %v1353
      %v1464 = vpack.c.b16 %v1356, %v1355
      %v1465 = vpack.c.b16 %v1358, %v1357
      %v1466 = vpack.c.b16 %v1360, %v1359
      %v1467 = vpack.c.b16 %v1362, %v1361
      %v1468 = vpack.c.b16 %v1364, %v1363
      %v1469 = vpack.c.b16 %v1366, %v1365
      %v1470 = vpack.c.b16 %v1368, %v1367
      %v1471 = vpack.c.b16 %v1370, %v1369
      %v1472 = vpack.c.b16 %v1372, %v1371
      %v1473 = vpack.c.b16 %v1374, %v1373
      %v1474 = vpack.c.b16 %v1376, %v1375
      %v1475 = vpack.c.b16 %v1378, %v1377
      %v1476 = vpack.c.b16 %v1380, %v1379
      %v1477 = vpack.c.b16 %v1382, %v1381
      %v1478 = vpack.c.b16 %v1384, %v1383
      %v1479 = vpack.c.b16 %v1386, %v1385
      %v1480 = vpack.c.b16 %v1388, %v1387
      %v1481 = vpack.c.b16 %v1390, %v1389
      %v1482 = vpack.c.b16 %v1392, %v1391
      %v1483 = vpack.c.b16 %v1394, %v1393
      %v1484 = vpack.c.b16 %v1396, %v1395
      %v1485 = vpack.c.b16 %v1398, %v1397
      %v1486 = vpack.c.b16 %v1400, %v1399
      %v1487 = vpack.c.b16 %v1402, %v1401
      %v1488 = vpack.c.b16 %v1404, %v1403
      %v1489 = vpack.c.b16 %v1406, %v1405
      %v1490 = vpack.c.b16 %v1408, %v1407
      %v1491 = vpack.c.b16 %v1410, %v1409
      %v1492 = vpack.c.b16 %v1412, %v1411
      %1573 = vmatprep.subr.bf16.mxu0 0
      %1574 = vmatpush1.bf16.msra.mxu0 %v1413
      %1575 = vmatprep.subr.bf16.mxu0 0
      %1576 = vmatpush1.bf16.msra.mxu0 %v1414
      %1577 = vmatprep.subr.bf16.mxu0 0
      %1578 = vmatpush1.bf16.msra.mxu0 %v1415
      %1579 = vmatprep.subr.bf16.mxu0 0
      %1580 = vmatpush1.bf16.msra.mxu0 %v1416
      %1581 = vmatprep.subr.bf16.mxu0 0
      %1582 = vmatpush1.bf16.msra.mxu0 %v1417
      %1583 = vmatprep.subr.bf16.mxu0 0
      %1584 = vmatpush1.bf16.msra.mxu0 %v1418
      %1585 = vmatprep.subr.bf16.mxu0 0
      %1586 = vmatpush1.bf16.msra.mxu0 %v1419
      %1587 = vmatprep.subr.bf16.mxu0 0
      %1588 = vmatpush1.bf16.msra.mxu0 %v1420
      %1589 = vmatprep.subr.bf16.mxu0 0
      %1590 = vmatpush1.bf16.msra.mxu0 %v1421
      %1591 = vmatprep.subr.bf16.mxu0 0
      %1592 = vmatpush1.bf16.msra.mxu0 %v1422
      %1593 = vmatprep.subr.bf16.mxu0 0
      %1594 = vmatpush1.bf16.msra.mxu0 %v1423
      %1595 = vmatprep.subr.bf16.mxu0 0
      %1596 = vmatpush1.bf16.msra.mxu0 %v1424
      %1597 = vmatprep.subr.bf16.mxu0 0
      %1598 = vmatpush1.bf16.msra.mxu0 %v1425
      %1599 = vmatprep.subr.bf16.mxu0 0
      %1600 = vmatpush1.bf16.msra.mxu0 %v1426
      %1601 = vmatprep.subr.bf16.mxu0 0
      %1602 = vmatpush1.bf16.msra.mxu0 %v1427
      %1603 = vmatprep.subr.bf16.mxu0 0
      %1604 = vmatpush1.bf16.msra.mxu0 %v1428
      %1605 = vmatprep.mubr.bf16.mxu0 %v1002
      %1606 = vmatmul.mubr.bf16.gmra.mrb[0].mxu0 %v992
      %v1607 = vpop.f32.mrb[0].mxu0
      %v1608 = vadd.f32 0.0, %v1607
      %v1609 = vpop.f32.mrb[0].mxu0
      %v1610 = vpop.f32.mrb[0].mxu0
      %v1611 = vadd.f32 0.0, %v1610
      %v1612 = vpop.f32.mrb[0].mxu0
      %1613 = vdwg.mxu0
      %1614 = vmatprep.subr.bf16.mxu0 0
      %1615 = vmatpush1.bf16.msra.mxu0 %v1429
      %1616 = vmatprep.subr.bf16.mxu0 0
      %1617 = vmatpush1.bf16.msra.mxu0 %v1430
      %1618 = vmatprep.subr.bf16.mxu0 0
      %1619 = vmatpush1.bf16.msra.mxu0 %v1431
      %1620 = vmatprep.subr.bf16.mxu0 0
      %1621 = vmatpush1.bf16.msra.mxu0 %v1432
      %1622 = vmatprep.subr.bf16.mxu0 0
      %1623 = vmatpush1.bf16.msra.mxu0 %v1433
      %1624 = vmatprep.subr.bf16.mxu0 0
      %1625 = vmatpush1.bf16.msra.mxu0 %v1434
      %1626 = vmatprep.subr.bf16.mxu0 0
      %1627 = vmatpush1.bf16.msra.mxu0 %v1435
      %1628 = vmatprep.subr.bf16.mxu0 0
      %1629 = vmatpush1.bf16.msra.mxu0 %v1436
      %1630 = vmatprep.subr.bf16.mxu0 0
      %1631 = vmatpush1.bf16.msra.mxu0 %v1437
      %1632 = vmatprep.subr.bf16.mxu0 0
      %1633 = vmatpush1.bf16.msra.mxu0 %v1438
      %1634 = vmatprep.subr.bf16.mxu0 0
      %1635 = vmatpush1.bf16.msra.mxu0 %v1439
      %1636 = vmatprep.subr.bf16.mxu0 0
      %1637 = vmatpush1.bf16.msra.mxu0 %v1440
      %1638 = vmatprep.subr.bf16.mxu0 0
      %1639 = vmatpush1.bf16.msra.mxu0 %v1441
      %1640 = vmatprep.subr.bf16.mxu0 0
      %1641 = vmatpush1.bf16.msra.mxu0 %v1442
      %1642 = vmatprep.subr.bf16.mxu0 0
      %1643 = vmatpush1.bf16.msra.mxu0 %v1443
      %1644 = vmatprep.subr.bf16.mxu0 0
      %1645 = vmatpush1.bf16.msra.mxu0 %v1444
      %1646 = vmatprep.mubr.bf16.mxu0 %v1022
      %1647 = vmatmul.mubr.bf16.gmra.mrb[0].mxu0 %v1012
      %v1648 = vpop.f32.mrb[0].mxu0
      %v1649 = vadd.f32 %v1608, %v1648
      %v1650 = vpop.f32.mrb[0].mxu0
      %v1651 = vpop.f32.mrb[0].mxu0
      %v1652 = vadd.f32 %v1611, %v1651
      %v1653 = vpop.f32.mrb[0].mxu0
      %1654 = vdwg.mxu0
      %1655 = vmatprep.subr.bf16.mxu0 0
      %1656 = vmatpush1.bf16.msra.mxu0 %v1445
      %1657 = vmatprep.subr.bf16.mxu0 0
      %1658 = vmatpush1.bf16.msra.mxu0 %v1446
      %1659 = vmatprep.subr.bf16.mxu0 0
      %1660 = vmatpush1.bf16.msra.mxu0 %v1447
      %1661 = vmatprep.subr.bf16.mxu0 0
      %1662 = vmatpush1.bf16.msra.mxu0 %v1448
      %1663 = vmatprep.subr.bf16.mxu0 0
      %1664 = vmatpush1.bf16.msra.mxu0 %v1449
      %1665 = vmatprep.subr.bf16.mxu0 0
      %1666 = vmatpush1.bf16.msra.mxu0 %v1450
      %1667 = vmatprep.subr.bf16.mxu0 0
      %1668 = vmatpush1.bf16.msra.mxu0 %v1451
      %1669 = vmatprep.subr.bf16.mxu0 0
      %1670 = vmatpush1.bf16.msra.mxu0 %v1452
      %1671 = vmatprep.subr.bf16.mxu0 0
      %1672 = vmatpush1.bf16.msra.mxu0 %v1453
      %1673 = vmatprep.subr.bf16.mxu0 0
      %1674 = vmatpush1.bf16.msra.mxu0 %v1454
      %1675 = vmatprep.subr.bf16.mxu0 0
      %1676 = vmatpush1.bf16.msra.mxu0 %v1455
      %1677 = vmatprep.subr.bf16.mxu0 0
      %1678 = vmatpush1.bf16.msra.mxu0 %v1456
      %1679 = vmatprep.subr.bf16.mxu0 0
      %1680 = vmatpush1.bf16.msra.mxu0 %v1457
      %1681 = vmatprep.subr.bf16.mxu0 0
      %1682 = vmatpush1.bf16.msra.mxu0 %v1458
      %1683 = vmatprep.subr.bf16.mxu0 0
      %1684 = vmatpush1.bf16.msra.mxu0 %v1459
      %1685 = vmatprep.subr.bf16.mxu0 0
      %1686 = vmatpush1.bf16.msra.mxu0 %v1460
      %1687 = vmatprep.mubr.bf16.mxu0 %v1042
      %1688 = vmatmul.mubr.bf16.gmra.mrb[0].mxu0 %v1032
      %v1689 = vpop.f32.mrb[0].mxu0
      %v1690 = vadd.f32 %v1649, %v1689
      %v1691 = vpop.f32.mrb[0].mxu0
      %v1692 = vpop.f32.mrb[0].mxu0
      %v1693 = vadd.f32 %v1652, %v1692
      %v1694 = vpop.f32.mrb[0].mxu0
      %1695 = vdwg.mxu0
      %1696 = vmatprep.subr.bf16.mxu0 0
      %1697 = vmatpush1.bf16.msra.mxu0 %v1461
      %1698 = vmatprep.subr.bf16.mxu0 0
      %1699 = vmatpush1.bf16.msra.mxu0 %v1462
      %1700 = vmatprep.subr.bf16.mxu0 0
      %1701 = vmatpush1.bf16.msra.mxu0 %v1463
      %1702 = vmatprep.subr.bf16.mxu0 0
      %1703 = vmatpush1.bf16.msra.mxu0 %v1464
      %1704 = vmatprep.subr.bf16.mxu0 0
      %1705 = vmatpush1.bf16.msra.mxu0 %v1465
      %1706 = vmatprep.subr.bf16.mxu0 0
      %1707 = vmatpush1.bf16.msra.mxu0 %v1466
      %1708 = vmatprep.subr.bf16.mxu0 0
      %1709 = vmatpush1.bf16.msra.mxu0 %v1467
      %1710 = vmatprep.subr.bf16.mxu0 0
      %1711 = vmatpush1.bf16.msra.mxu0 %v1468
      %1712 = vmatprep.subr.bf16.mxu0 0
      %1713 = vmatpush1.bf16.msra.mxu0 %v1469
      %1714 = vmatprep.subr.bf16.mxu0 0
      %1715 = vmatpush1.bf16.msra.mxu0 %v1470
      %1716 = vmatprep.subr.bf16.mxu0 0
      %1717 = vmatpush1.bf16.msra.mxu0 %v1471
      %1718 = vmatprep.subr.bf16.mxu0 0
      %1719 = vmatpush1.bf16.msra.mxu0 %v1472
      %1720 = vmatprep.subr.bf16.mxu0 0
      %1721 = vmatpush1.bf16.msra.mxu0 %v1473
      %1722 = vmatprep.subr.bf16.mxu0 0
      %1723 = vmatpush1.bf16.msra.mxu0 %v1474
      %1724 = vmatprep.subr.bf16.mxu0 0
      %1725 = vmatpush1.bf16.msra.mxu0 %v1475
      %1726 = vmatprep.subr.bf16.mxu0 0
      %1727 = vmatpush1.bf16.msra.mxu0 %v1476
      %1728 = vmatprep.mubr.bf16.mxu0 %v1062
      %1729 = vmatmul.mubr.bf16.gmra.mrb[0].mxu0 %v1052
      %v1730 = vpop.f32.mrb[0].mxu0
      %v1731 = vadd.f32 %v1690, %v1730
      %v1732 = vpop.f32.mrb[0].mxu0
      %v1733 = vpop.f32.mrb[0].mxu0
      %v1734 = vadd.f32 %v1693, %v1733
      %v1735 = vpop.f32.mrb[0].mxu0
      %1736 = vdwg.mxu0
      %1737 = vmatprep.subr.bf16.mxu0 0
      %1738 = vmatpush1.bf16.msra.mxu0 %v1477
      %1739 = vmatprep.subr.bf16.mxu0 0
      %1740 = vmatpush1.bf16.msra.mxu0 %v1478
      %1741 = vmatprep.subr.bf16.mxu0 0
      %1742 = vmatpush1.bf16.msra.mxu0 %v1479
      %1743 = vmatprep.subr.bf16.mxu0 0
      %1744 = vmatpush1.bf16.msra.mxu0 %v1480
      %1745 = vmatprep.subr.bf16.mxu0 0
      %1746 = vmatpush1.bf16.msra.mxu0 %v1481
      %1747 = vmatprep.subr.bf16.mxu0 0
      %1748 = vmatpush1.bf16.msra.mxu0 %v1482
      %1749 = vmatprep.subr.bf16.mxu0 0
      %1750 = vmatpush1.bf16.msra.mxu0 %v1483
      %1751 = vmatprep.subr.bf16.mxu0 0
      %1752 = vmatpush1.bf16.msra.mxu0 %v1484
      %1753 = vmatprep.subr.bf16.mxu0 0
      %1754 = vmatpush1.bf16.msra.mxu0 %v1485
      %1755 = vmatprep.subr.bf16.mxu0 0
      %1756 = vmatpush1.bf16.msra.mxu0 %v1486
      %1757 = vmatprep.subr.bf16.mxu0 0
      %1758 = vmatpush1.bf16.msra.mxu0 %v1487
      %1759 = vmatprep.subr.bf16.mxu0 0
      %1760 = vmatpush1.bf16.msra.mxu0 %v1488
      %1761 = vmatprep.subr.bf16.mxu0 0
      %1762 = vmatpush1.bf16.msra.mxu0 %v1489
      %1763 = vmatprep.subr.bf16.mxu0 0
      %1764 = vmatpush1.bf16.msra.mxu0 %v1490
      %1765 = vmatprep.subr.bf16.mxu0 0
      %1766 = vmatpush1.bf16.msra.mxu0 %v1491
      %1767 = vmatprep.subr.bf16.mxu0 0
      %1768 = vmatpush1.bf16.msra.mxu0 %v1492
      %1769 = vmatprep.mubr.bf16.mxu0 %v1082
      %1770 = vmatmul.mubr.bf16.gmra.mrb[0].mxu0 %v1072
      %v1771 = vpop.f32.mrb[0].mxu0
      %v1772 = vadd.f32 %v1731, %v1771
      %v1773 = vpop.f32.mrb[0].mxu0
      %v1774 = vpop.f32.mrb[0].mxu0
      %v1775 = vadd.f32 %v1734, %v1774
      %v1776 = vpop.f32.mrb[0].mxu0
      %1777 = vdwg.mxu0
      %v1778 = vlaneseq
      %v1779 = vshrl.u32 %v1778, 7
      %v1780 = vadd.s32 %v1779, 8
      %v1781 = vstv %s279
      %v1782 = vadd.s32 %v1781, %v1779
      %v1783 = vadd.s32 %v1781, %v1780
      %vm1784 = vcmp.eq.s32.totalorder %v1782, 0
      %vm1785 = vcmp.eq.s32.totalorder %v1783, 0
      %v1786 = vsel %vm1784, 1, 0
      %v1787 = vsel %vm1785, 1, 0
      %vm1788 = vcmp.eq.s32.totalorder %v1786, 1
      %vm1789 = vcmp.eq.s32.totalorder %v1787, 1
      %vm1790 = vmpackc.low %vm1788, %vm1788
      %vm1791 = vmpackc.low %vm1789, %vm1789
      %v1792 = vsel %vm1790, 65537, 0
      %v1793 = vsel %vm1791, 65537, 0
      %vm1794 = vsmask.f32 5392
      %vm1795 = vmor %vm512, %vm1794
      %v1797 = vshrl.u32 %v1792, 16
      %v1799 = vrot.slane %v1797, 6
      %v1800 = vshll.u32 %v1792, 16
      %v1802 = vrot.slane %v1800, 7
      %v1803 = vor.u32 %v1799, %v1802
      %v1804 = vrot.slane %v1803, 4
      %v1806 = vshrl.u32 %v1793, 16
      %v1808 = vrot.slane %v1806, 6
      %v1809 = vshll.u32 %v1793, 16
      %v1811 = vrot.slane %v1809, 7
      %v1812 = vor.u32 %v1808, %v1811
      %v1813 = vsel %vm1795, %v1804, %v1812
      %v1814 = vrot.slane %v1812, 4
      %vm1815 = vcmp.ne.s16.totalorder %v1803, 0
      %vm1816 = vcmp.ne.s16.totalorder %v1813, 0
      %vm1817 = vcmp.ne.s16.totalorder %v1814, 0
      %v1818 = vsel %vm1815, 4286644096, %v286
      %v1819 = vsel %vm1816, 4286644096, %v287
      %v1820 = vsel %vm1817, 4286644096, %v288
      %vm1821 = vcmp.eq.s32.totalorder %v1782, 15
      %vm1822 = vcmp.eq.s32.totalorder %v1783, 15
      %v1823 = vsel %vm1821, 1, 0
      %v1824 = vsel %vm1822, 1, 0
      %vm1825 = vcmp.eq.s32.totalorder %v1823, 1
      %vm1826 = vcmp.eq.s32.totalorder %v1824, 1
      %vm1827 = vmpackc.low %vm1825, %vm1825
      %vm1828 = vmpackc.low %vm1826, %vm1826
      %v1829 = vsel %vm1827, 65537, 0
      %v1830 = vsel %vm1828, 65537, 0
      %vm1831 = vsmask.f32 6416
      %vm1832 = vmor %vm496, %vm1831
      %v1834 = vshrl.u32 %v1829, 16
      %v1836 = vrot.slane %v1834, 5
      %v1837 = vshll.u32 %v1829, 16
      %v1839 = vrot.slane %v1837, 6
      %v1840 = vor.u32 %v1836, %v1839
      %v1841 = vrot.slane %v1840, 4
      %v1843 = vshrl.u32 %v1830, 16
      %v1845 = vrot.slane %v1843, 5
      %v1846 = vshll.u32 %v1830, 16
      %v1848 = vrot.slane %v1846, 6
      %v1849 = vor.u32 %v1845, %v1848
      %v1850 = vsel %vm1832, %v1841, %v1849
      %v1851 = vrot.slane %v1849, 4
      %vm1852 = vcmp.ne.s16.totalorder %v1840, 0
      %vm1853 = vcmp.ne.s16.totalorder %v1850, 0
      %vm1854 = vcmp.ne.s16.totalorder %v1851, 0
      %v1855 = vsel %vm1852, 4286644096, %v286
      %v1856 = vsel %vm1853, 4286644096, %v287
      %v1857 = vsel %vm1854, 4286644096, %v288
      %vm1858 = vsmask.f32 7440
      %vm1859 = vmor %vm476, %vm1858
      %v1861 = vshrl.u32 %v286, 16
      %v1863 = vrot.slane %v1861, 4
      %v1864 = vshll.u32 %v286, 16
      %v1866 = vrot.slane %v1864, 5
      %v1867 = vor.u32 %v1863, %v1866
      %v1868 = vrot.slane %v1867, 4
      %v1870 = vshll.u32 %v287, 16
      %v1872 = vrot.slane %v1870, 5
      %v1873 = vsel %vm1859, %v1868, %v1872
      %v1874 = vshrl.u32 %v287, 16
      %v1876 = vrot.slane %v1874, 4
      %v1877 = vor.u32 %v1876, %v1872
      %v1878 = vrot.slane %v1877, 4
      %v1880 = vshll.u32 %v288, 16
      %v1882 = vrot.slane %v1880, 5
      %v1883 = vsel %vm1859, %v1878, %v1882
      %v1884 = vshrl.u32 %v288, 16
      %v1886 = vrot.slane %v1884, 4
      %v1887 = vor.u32 %v1886, %v1882
      %v1888 = vrot.slane %v1887, 4
      %v1892 = vmax.bf16 %v1818, %v1873
      %v1893 = vmax.bf16 %v1819, %v1883
      %v1894 = vmax.bf16 %v1820, %v1888
      %vm1898 = vcmask 1046532
      %vm1899 = vmor %vm488, %vm1898
      %v1900 = vrot.slane %v1855, 5
      %v1901 = vrot.slane %v1900, 4
      %v1902 = vrot.slane %v1856, 5
      %v1903 = vsel %vm1899, %v1901, %v1902
      %v1904 = vrot.slane %v1902, 4
      %v1905 = vrot.slane %v1857, 5
      %v1906 = vsel %vm1899, %v1904, %v1905
      %v1907 = vrot.slane %v1905, 4
      %v1911 = vmax.bf16 %v1892, %v1903
      %v1912 = vmax.bf16 %v1893, %v1906
      %v1913 = vmax.bf16 %v1894, %v1907
      %v1914 = vld [vmem:[%s3] sm:$0xf]
      %v1918 = vunpack.c.l.b16 %v1911
      %v1919 = vunpack.c.l.b16 %v1912
      %v1920 = vunpack.c.l.b16 %v1913
      %v1921 = vpack.c.b16 %v1919, %v1918
      %v1922 = vpack.c.b16 %v1920, %v1920
      %v1924 = vshrl.u32 %v1921, 16
      %v1926 = vrot.slane %v1924, 1
      %v1927 = vshll.u32 %v1921, 16
      %v1929 = vrot.slane %v1927, 2
      %v1930 = vor.u32 %v1926, %v1929
      %v1932 = vshrl.u32 %v1922, 16
      %v1934 = vrot.slane %v1932, 1
      %v1935 = vshll.u32 %v1922, 16
      %v1937 = vrot.slane %v1935, 2
      %v1938 = vor.u32 %v1934, %v1937
      %v1939 = vsel %vm424, %v1930, %v1938
      %v1941 = vsel %vm310, %v1939, 0
      %v1944 = vsel %vm323, %v1914, 0
      %1946 = vmatprep.subr.bf16.mxu0 0
      %1947 = vmatpush1.bf16.msra.mxu0 %v1944
      %1948 = vmatprep.subr.bf16.mxu0 0
      %1949 = vmatpush1.bf16.msra.mxu0 0
      %1950 = vmatprep.subr.bf16.mxu0 0
      %1951 = vmatpush1.bf16.msra.mxu0 0
      %1952 = vmatprep.subr.bf16.mxu0 0
      %1953 = vmatpush1.bf16.msra.mxu0 0
      %1954 = vmatprep.subr.bf16.mxu0 0
      %1955 = vmatpush1.bf16.msra.mxu0 0
      %1956 = vmatprep.subr.bf16.mxu0 0
      %1957 = vmatpush1.bf16.msra.mxu0 0
      %1958 = vmatprep.subr.bf16.mxu0 0
      %1959 = vmatpush1.bf16.msra.mxu0 0
      %1960 = vmatprep.subr.bf16.mxu0 0
      %1961 = vmatpush1.bf16.msra.mxu0 0
      %1962 = vmatprep.subr.bf16.mxu0 0
      %1963 = vmatpush1.bf16.msra.mxu0 0
      %1964 = vmatprep.subr.bf16.mxu0 0
      %1965 = vmatpush1.bf16.msra.mxu0 0
      %1966 = vmatprep.subr.bf16.mxu0 0
      %1967 = vmatpush1.bf16.msra.mxu0 0
      %1968 = vmatprep.subr.bf16.mxu0 0
      %1969 = vmatpush1.bf16.msra.mxu0 0
      %1970 = vmatprep.subr.bf16.mxu0 0
      %1971 = vmatpush1.bf16.msra.mxu0 0
      %1972 = vmatprep.subr.bf16.mxu0 0
      %1973 = vmatpush1.bf16.msra.mxu0 0
      %1974 = vmatprep.subr.bf16.mxu0 0
      %1975 = vmatpush1.bf16.msra.mxu0 0
      %1976 = vmatprep.subr.bf16.mxu0 0
      %1977 = vmatpush1.bf16.msra.mxu0 0
      %1978 = vmatprep.mubr.bf16.mxu0 0
      %1979 = vmatmul.mubr.bf16.gmra.mrb[0].mxu0 %v1941
      %v1980 = vpop.f32.mrb[0].mxu0
      %v1981 = vadd.f32 0.0, %v1980
      %v1982 = vpop.f32.mrb[0].mxu0
      %v1983 = vpop.f32.mrb[0].mxu0
      %v1984 = vadd.f32 0.0, %v1983
      %v1985 = vpop.f32.mrb[0].mxu0
      %1986 = vdwg.mxu0
      %1989 = vrot.lane.b32.xlu0 %v1981, 96
      %v1990 = vpop.permute.xlu0 %1989
      %1991 = vrot.lane.b32.xlu0 %v1984, 96
      %v1992 = vpop.permute.xlu0 %1991
      %v1995 = vsel %vm548, %v1772, %v1990
      %v1996 = vsel %vm548, %v1775, %v1992
      %v1997 = vld [vmem:[%s4] sm:$0x1]
      %v1999 = vlaneseq
      %v2000 = vshrl.u32 %v1999, 7
      %v2001 = vsub.s32 0, %v2000
      %v2002 = vrot.slane %v1997, %v2001
      %v2004 = vmul.f32 %v1995, %v2002
      %v2005 = vmul.f32 %v1996, %v2002
      %v2006 = vld [vmem:[%s5] sm:$0x1]
      %v2008 = vlaneseq
      %v2009 = vshrl.u32 %v2008, 7
      %v2010 = vsub.s32 0, %v2009
      %v2011 = vrot.slane %v2006, %v2010
      %v2013 = vadd.f32 %v2004, %v2011
      %v2014 = vadd.f32 %v2005, %v2011
      %v2015 = vmax.f32 %v2013, 0.0
      %v2016 = vmax.f32 %v2014, 0.0
      %v2017 = vpack.c.bf16 %v2016, %v2015
      %v2019 = vunpack.c.l.b16 %v2017
      %v2020 = vunpack.c.h.b16 %v2017
      %v2021 = vpack.c.b16 %v2019, %v2019
      %v2022 = vpack.c.b16 %v2020, %v2020
      %2025 = vst [vmem:[%s273] sm:$0xf] %v2021
      %2026 = vst [vmem:[%s273 + $0x4] sm:$0xf] %v2022
      %s2027 = smul.u32 2, %s22
      %p2028 = scmp.lt.s32.totalorder %s21, 1
      %s2029 = scalar_select %p2028, %s21, 1
      %p2030 = scmp.lt.s32.totalorder %s2027, 1
      %s2031 = scalar_select %p2030, %s2027, 1
      %s2032 = smul.addr %s2029, 2
      %s2033 = sadd.s32 %s2031, %s2032
      %s2034 = smul.addr %s2033, 4
      %s2035 = scalar_lea.vmem %s6, %s2034
      // Predicated region
      $region45: #{inception1d_forward.7} parent=43 // pred_check
        %p2036 = pneg %p180
      $region46: #{inception1d_forward.7} parent=43 // pred_check_branch
        %2038 = sbr.rel (%p2036) target = $region48
      $region47: #{inception1d_forward.7} parent=43 // pred_region
        %s2039 = smul.u32 2, %s22
      $region48: #{inception1d_forward.7} parent=43 // pred_fallthru
        _
    $region44: #{inception1d_forward.7} parent=5 // pred_fallthru
      _
    %p2040 = scmp.le.s32.totalorder 2, %s12
    // Predicated region
    $region49: #{inception1d_forward.7} parent=5 // pred_check
      %p2041 = pneg %p2040
    $region50: #{inception1d_forward.7} parent=5 // pred_check_branch
      %2043 = sbr.rel (%p2041) target = $region52
    $region51: #{inception1d_forward.7} parent=5 // pred_region
      %s2044 = ssub.s32 %s12, 2
      // Predicated region
      $region53: #{inception1d_forward.7} parent=51 // pred_check
        %p2045 = pneg %p186
      $region54: #{inception1d_forward.7} parent=51 // pred_check_branch
        %2047 = sbr.rel (%p2045) target = $region56
      $region55: #{inception1d_forward.7} parent=51 // pred_region
        %s2048 = smul.u32 2, %s24
        %p2049 = scmp.lt.s32.totalorder %s23, 1
        %s2050 = scalar_select %p2049, %s23, 1
        %p2051 = scmp.lt.s32.totalorder %s2048, 1
        %s2052 = scalar_select %p2051, %s2048, 1
        %s2053 = smul.addr %s2050, 2
        %s2054 = sadd.s32 %s2052, %s2053
        %s2055 = smul.addr %s2054, 4
        %s2056 = scalar_lea.vmem %s6, %s2055
      $region56: #{inception1d_forward.7} parent=51 // pred_fallthru
        _
    $region52: #{inception1d_forward.7} parent=5 // pred_fallthru
      _
  $region6: #{inception1d_forward.7} parent=0 // loop_footer
    %s16 = sadd.s32 1, %s12
  $region7: #{inception1d_forward.7} parent=0 // loop_footer_branch
    %11 = sbr.rel target = $region3
  $region8: #{inception1d_forward.7} parent=0 // loop_exit
    _

// kernel: inception1d_forward.9
$region0: #{inception1d_forward.9}
  #allocation0 [shape = 'u32[]', space=smem, size = 0x4, offset = 0x4, fixed_abs, tag = 'smem constant byte address 0x4 - core index']
  #allocation1 [shape = 'u32[144,128]{1,0:T(1,128)}', space=vmem, size = 0x12000, scoped, tag = 'internal scratch']
  %s0 = inlined_call_operand.vmem [shape: bf16[2,56,128], index: 0, kind: input, shape index: {}]
  %s1 = inlined_call_operand.vmem [shape: bf16[2,16,8], index: 1, kind: input, shape index: {}]
  %s2 = inlined_call_operand.vmem [shape: bf16[128,32], index: 2, kind: input, shape index: {}]
  %s3 = inlined_call_operand.vmem [shape: bf16[1280,96], index: 3, kind: input, shape index: {}]
  %s4 = inlined_call_operand.vmem [shape: bf16[128,32], index: 4, kind: input, shape index: {}]
  %s5 = inlined_call_operand.vmem [shape: f32[1,128], index: 5, kind: input, shape index: {}]
  %s6 = inlined_call_operand.vmem [shape: f32[1,128], index: 6, kind: input, shape index: {}]
  %s7 = inlined_call_operand.vmem [shape: bf16[8,128], index: 7, kind: input, shape index: {}]
  %s8 = inlined_call_operand.vmem [shape: f32[1,128], index: 8, kind: input, shape index: {}]
  %s9 = inlined_call_operand.vmem [shape: f32[1,128], index: 9, kind: input, shape index: {}]
  %s10 = inlined_call_operand.vmem [shape: bf16[2,16,128], index: 10, kind: output, shape index: {}]
  %s11 = sld [smem:[#allocation0]]
  $region73: #{inception1d_forward.9} parent=0
    _
  %s13 = ssub.s32 1, %s11
  %s14 = scalar_select 0, %s13, %s11
  loop: start=0, step=1, limit=4
  $region2: #{inception1d_forward.9} parent=0 // loop_pre_header
    _
  $region3: #{inception1d_forward.9} parent=0 // loop_header
    %s16 = sphi 0, %s20
    %p17 = scmp.ge.s32.totalorder %s16, 4
    %s23 = sphi 0, %s35
    %s24 = sphi 0, %s31
    %s25 = sphi 0, %s23
    %s26 = sphi 0, %s24
    %s27 = sphi 0, %s25
    %s28 = sphi 0, %s26
    %s38 = sphi 0, %s40
    %s41 = sphi 0, %s38
    %s42 = sphi 0, %s41
    %s58 = sphi 0, %s42
    %s66 = sphi 0, %s68
    %s69 = sphi 0, %s66
    %s70 = sphi 0, %s69
    %s86 = sphi 0, %s70
    %s90 = sphi 0, %s90
    %s92 = sphi 0, %s90
    %s93 = sphi 0, %s92
    %s107 = sphi 0, %s93
    %s111 = sphi 0, %s111
    %s113 = sphi 0, %s111
    %s114 = sphi 0, %s113
    %s128 = sphi 0, %s114
    %s132 = sphi 0, %s132
    %s134 = sphi 0, %s132
    %s135 = sphi 0, %s134
    %s149 = sphi 0, %s135
    %s153 = sphi 0, %s153
    %s155 = sphi 0, %s153
    %s156 = sphi 0, %s155
    %s170 = sphi 0, %s156
    %s174 = sphi 0, %s174
    %s176 = sphi 0, %s174
    %s177 = sphi 0, %s176
    %s191 = sphi 0, %s177
    %s195 = sphi 0, %s195
    %s197 = sphi 0, %s195
    %s198 = sphi 0, %s197
    %s212 = sphi 0, %s198
    %s216 = sphi 0, %s216
    %s218 = sphi 0, %s216
    %s219 = sphi 0, %s218
    %s233 = sphi 0, %s219
    %s237 = sphi 0, %s237
    %s239 = sphi 0, %s237
    %s240 = sphi 0, %s239
    %s254 = sphi 0, %s240
    %s262 = sphi 0, %s264
    %s265 = sphi 0, %s262
    %s266 = sphi 0, %s265
    %s282 = sphi 0, %s266
  $region4: #{inception1d_forward.9} parent=0 // loop_header_branch
    %19 = sbr.rel (%p17) target = $region8
  $region5: #{inception1d_forward.9} parent=0 // loop_body
    %s21 = ssub.s32 %s16, 1
    %s22 = ssub.s32 %s16, 2
    %s29 = sadd.s32 1, %s24
    %p30 = scmp.ge.s32.totalorder %s29, 1
    %s31 = scalar_select %p30, 0, %s29
    %s32 = sadd.s32 1, %s23
    %s33 = scalar_select %p30, %s32, %s23
    %p34 = scmp.ge.s32.totalorder %s33, 2
    %s35 = scalar_select %p34, 0, %s33
    %s36 = ssub.s32 %s23, %s35
    %p37 = scmp.eq.s32.totalorder %s36, 0
    %s39 = sadd.s32 %s38, 1
    %s40 = scalar_select %p37, %s38, %s39
    %p43 = pneg %p37
    %p44 = scmp.eq.s32.totalorder %s16, 1
    %p45 = por %p43, %p44
    %p46 = scmp.ne.s32.totalorder %s38, %s41
    %p47 = scmp.eq.s32.totalorder %s16, 0
    %p48 = por %p46, %p47
    %p49 = scmp.ne.s32.totalorder %s38, %s41
    %p50 = scmp.eq.s32.totalorder %s21, 1
    %p51 = por %p49, %p50
    %p52 = scmp.ne.s32.totalorder %s41, %s42
    %p53 = scmp.eq.s32.totalorder %s21, 0
    %p54 = por %p52, %p53
    %p55 = scmp.ne.s32.totalorder %s41, %s42
    %p56 = scmp.eq.s32.totalorder %s22, 1
    %p57 = por %p55, %p56
    %p59 = scmp.ne.s32.totalorder %s42, %s58
    %p60 = scmp.eq.s32.totalorder %s22, 0
    %p61 = por %p59, %p60
    %s62 = ssub.s32 %s23, %s35
    %s63 = ssub.s32 %s24, %s31
    %s64 = sor.u32 %s62, %s63
    %p65 = scmp.eq.s32.totalorder %s64, 0
    %s67 = sadd.s32 %s66, 1
    %s68 = scalar_select %p65, %s66, %s67
    %p71 = pneg %p65
    %p72 = scmp.eq.s32.totalorder %s16, 1
    %p73 = por %p71, %p72
    %p74 = scmp.ne.s32.totalorder %s66, %s69
    %p75 = scmp.eq.s32.totalorder %s16, 0
    %p76 = por %p74, %p75
    %p77 = scmp.ne.s32.totalorder %s66, %s69
    %p78 = scmp.eq.s32.totalorder %s21, 1
    %p79 = por %p77, %p78
    %p80 = scmp.ne.s32.totalorder %s69, %s70
    %p81 = scmp.eq.s32.totalorder %s21, 0
    %p82 = por %p80, %p81
    %p83 = scmp.ne.s32.totalorder %s69, %s70
    %p84 = scmp.eq.s32.totalorder %s22, 1
    %p85 = por %p83, %p84
    %p87 = scmp.ne.s32.totalorder %s70, %s86
    %p88 = scmp.eq.s32.totalorder %s22, 0
    %p89 = por %p87, %p88
    %s91 = sadd.s32 %s90, 1
    %p94 = scmp.eq.s32.totalorder %s16, 1
    %p95 = scmp.ne.s32.totalorder %s90, %s92
    %p96 = scmp.eq.s32.totalorder %s16, 0
    %p97 = por %p95, %p96
    %p98 = scmp.ne.s32.totalorder %s90, %s92
    %p99 = scmp.eq.s32.totalorder %s21, 1
    %p100 = por %p98, %p99
    %p101 = scmp.ne.s32.totalorder %s92, %s93
    %p102 = scmp.eq.s32.totalorder %s21, 0
    %p103 = por %p101, %p102
    %p104 = scmp.ne.s32.totalorder %s92, %s93
    %p105 = scmp.eq.s32.totalorder %s22, 1
    %p106 = por %p104, %p105
    %p108 = scmp.ne.s32.totalorder %s93, %s107
    %p109 = scmp.eq.s32.totalorder %s22, 0
    %p110 = por %p108, %p109
    %s112 = sadd.s32 %s111, 1
    %p115 = scmp.eq.s32.totalorder %s16, 1
    %p116 = scmp.ne.s32.totalorder %s111, %s113
    %p117 = scmp.eq.s32.totalorder %s16, 0
    %p118 = por %p116, %p117
    %p119 = scmp.ne.s32.totalorder %s111, %s113
    %p120 = scmp.eq.s32.totalorder %s21, 1
    %p121 = por %p119, %p120
    %p122 = scmp.ne.s32.totalorder %s113, %s114
    %p123 = scmp.eq.s32.totalorder %s21, 0
    %p124 = por %p122, %p123
    %p125 = scmp.ne.s32.totalorder %s113, %s114
    %p126 = scmp.eq.s32.totalorder %s22, 1
    %p127 = por %p125, %p126
    %p129 = scmp.ne.s32.totalorder %s114, %s128
    %p130 = scmp.eq.s32.totalorder %s22, 0
    %p131 = por %p129, %p130
    %s133 = sadd.s32 %s132, 1
    %p136 = scmp.eq.s32.totalorder %s16, 1
    %p137 = scmp.ne.s32.totalorder %s132, %s134
    %p138 = scmp.eq.s32.totalorder %s16, 0
    %p139 = por %p137, %p138
    %p140 = scmp.ne.s32.totalorder %s132, %s134
    %p141 = scmp.eq.s32.totalorder %s21, 1
    %p142 = por %p140, %p141
    %p143 = scmp.ne.s32.totalorder %s134, %s135
    %p144 = scmp.eq.s32.totalorder %s21, 0
    %p145 = por %p143, %p144
    %p146 = scmp.ne.s32.totalorder %s134, %s135
    %p147 = scmp.eq.s32.totalorder %s22, 1
    %p148 = por %p146, %p147
    %p150 = scmp.ne.s32.totalorder %s135, %s149
    %p151 = scmp.eq.s32.totalorder %s22, 0
    %p152 = por %p150, %p151
    %s154 = sadd.s32 %s153, 1
    %p157 = scmp.eq.s32.totalorder %s16, 1
    %p158 = scmp.ne.s32.totalorder %s153, %s155
    %p159 = scmp.eq.s32.totalorder %s16, 0
    %p160 = por %p158, %p159
    %p161 = scmp.ne.s32.totalorder %s153, %s155
    %p162 = scmp.eq.s32.totalorder %s21, 1
    %p163 = por %p161, %p162
    %p164 = scmp.ne.s32.totalorder %s155, %s156
    %p165 = scmp.eq.s32.totalorder %s21, 0
    %p166 = por %p164, %p165
    %p167 = scmp.ne.s32.totalorder %s155, %s156
    %p168 = scmp.eq.s32.totalorder %s22, 1
    %p169 = por %p167, %p168
    %p171 = scmp.ne.s32.totalorder %s156, %s170
    %p172 = scmp.eq.s32.totalorder %s22, 0
    %p173 = por %p171, %p172
    %s175 = sadd.s32 %s174, 1
    %p178 = scmp.eq.s32.totalorder %s16, 1
    %p179 = scmp.ne.s32.totalorder %s174, %s176
    %p180 = scmp.eq.s32.totalorder %s16, 0
    %p181 = por %p179, %p180
    %p182 = scmp.ne.s32.totalorder %s174, %s176
    %p183 = scmp.eq.s32.totalorder %s21, 1
    %p184 = por %p182, %p183
    %p185 = scmp.ne.s32.totalorder %s176, %s177
    %p186 = scmp.eq.s32.totalorder %s21, 0
    %p187 = por %p185, %p186
    %p188 = scmp.ne.s32.totalorder %s176, %s177
    %p189 = scmp.eq.s32.totalorder %s22, 1
    %p190 = por %p188, %p189
    %p192 = scmp.ne.s32.totalorder %s177, %s191
    %p193 = scmp.eq.s32.totalorder %s22, 0
    %p194 = por %p192, %p193
    %s196 = sadd.s32 %s195, 1
    %p199 = scmp.eq.s32.totalorder %s16, 1
    %p200 = scmp.ne.s32.totalorder %s195, %s197
    %p201 = scmp.eq.s32.totalorder %s16, 0
    %p202 = por %p200, %p201
    %p203 = scmp.ne.s32.totalorder %s195, %s197
    %p204 = scmp.eq.s32.totalorder %s21, 1
    %p205 = por %p203, %p204
    %p206 = scmp.ne.s32.totalorder %s197, %s198
    %p207 = scmp.eq.s32.totalorder %s21, 0
    %p208 = por %p206, %p207
    %p209 = scmp.ne.s32.totalorder %s197, %s198
    %p210 = scmp.eq.s32.totalorder %s22, 1
    %p211 = por %p209, %p210
    %p213 = scmp.ne.s32.totalorder %s198, %s212
    %p214 = scmp.eq.s32.totalorder %s22, 0
    %p215 = por %p213, %p214
    %s217 = sadd.s32 %s216, 1
    %p220 = scmp.eq.s32.totalorder %s16, 1
    %p221 = scmp.ne.s32.totalorder %s216, %s218
    %p222 = scmp.eq.s32.totalorder %s16, 0
    %p223 = por %p221, %p222
    %p224 = scmp.ne.s32.totalorder %s216, %s218
    %p225 = scmp.eq.s32.totalorder %s21, 1
    %p226 = por %p224, %p225
    %p227 = scmp.ne.s32.totalorder %s218, %s219
    %p228 = scmp.eq.s32.totalorder %s21, 0
    %p229 = por %p227, %p228
    %p230 = scmp.ne.s32.totalorder %s218, %s219
    %p231 = scmp.eq.s32.totalorder %s22, 1
    %p232 = por %p230, %p231
    %p234 = scmp.ne.s32.totalorder %s219, %s233
    %p235 = scmp.eq.s32.totalorder %s22, 0
    %p236 = por %p234, %p235
    %s238 = sadd.s32 %s237, 1
    %p241 = scmp.eq.s32.totalorder %s16, 1
    %p242 = scmp.ne.s32.totalorder %s237, %s239
    %p243 = scmp.eq.s32.totalorder %s16, 0
    %p244 = por %p242, %p243
    %p245 = scmp.ne.s32.totalorder %s237, %s239
    %p246 = scmp.eq.s32.totalorder %s21, 1
    %p247 = por %p245, %p246
    %p248 = scmp.ne.s32.totalorder %s239, %s240
    %p249 = scmp.eq.s32.totalorder %s21, 0
    %p250 = por %p248, %p249
    %p251 = scmp.ne.s32.totalorder %s239, %s240
    %p252 = scmp.eq.s32.totalorder %s22, 1
    %p253 = por %p251, %p252
    %p255 = scmp.ne.s32.totalorder %s240, %s254
    %p256 = scmp.eq.s32.totalorder %s22, 0
    %p257 = por %p255, %p256
    %s258 = ssub.s32 %s23, %s35
    %s259 = ssub.s32 %s24, %s31
    %s260 = sor.u32 %s258, %s259
    %p261 = scmp.eq.s32.totalorder %s260, 0
    %s263 = sadd.s32 %s262, 1
    %s264 = scalar_select %p261, %s262, %s263
    %p267 = pneg %p261
    %p268 = scmp.eq.s32.totalorder %s16, 1
    %p269 = por %p267, %p268
    %p270 = scmp.ne.s32.totalorder %s262, %s265
    %p271 = scmp.eq.s32.totalorder %s16, 0
    %p272 = por %p270, %p271
    %p273 = scmp.ne.s32.totalorder %s262, %s265
    %p274 = scmp.eq.s32.totalorder %s21, 1
    %p275 = por %p273, %p274
    %p276 = scmp.ne.s32.totalorder %s265, %s266
    %p277 = scmp.eq.s32.totalorder %s21, 0
    %p278 = por %p276, %p277
    %p279 = scmp.ne.s32.totalorder %s265, %s266
    %p280 = scmp.eq.s32.totalorder %s22, 1
    %p281 = por %p279, %p280
    %p283 = scmp.ne.s32.totalorder %s266, %s282
    %p284 = scmp.eq.s32.totalorder %s22, 0
    %p285 = por %p283, %p284
    %p286 = scmp.le.s32.totalorder 1, %s16
    %p287 = scmp.lt.s32.totalorder %s16, 3
    %p288 = pnand %p286, %p287
    %p289 = pneg %p288
    // Predicated region
    $region9: #{inception1d_forward.9} parent=5 // pred_check
      _
    $region10: #{inception1d_forward.9} parent=5 // pred_check_branch
      %291 = sbr.rel (%p288) target = $region12
    $region11: #{inception1d_forward.9} parent=5 // pred_region
      %s292 = ssub.s32 %s16, 1
      // Predicated region
      $region13: #{inception1d_forward.9} parent=11 // pred_check
        %p293 = pneg %p103
      $region14: #{inception1d_forward.9} parent=11 // pred_check_branch
        %295 = sbr.rel (%p293) target = $region16
      $region15: #{inception1d_forward.9} parent=11 // pred_region
        _
      $region16: #{inception1d_forward.9} parent=11 // pred_fallthru
        _
      // Predicated region
      $region17: #{inception1d_forward.9} parent=11 // pred_check
        %p296 = pneg %p124
      $region18: #{inception1d_forward.9} parent=11 // pred_check_branch
        %298 = sbr.rel (%p296) target = $region20
      $region19: #{inception1d_forward.9} parent=11 // pred_region
        _
      $region20: #{inception1d_forward.9} parent=11 // pred_fallthru
        _
      // Predicated region
      $region21: #{inception1d_forward.9} parent=11 // pred_check
        %p299 = pneg %p145
      $region22: #{inception1d_forward.9} parent=11 // pred_check_branch
        %301 = sbr.rel (%p299) target = $region24
      $region23: #{inception1d_forward.9} parent=11 // pred_region
        _
      $region24: #{inception1d_forward.9} parent=11 // pred_fallthru
        _
      // Predicated region
      $region25: #{inception1d_forward.9} parent=11 // pred_check
        %p302 = pneg %p166
      $region26: #{inception1d_forward.9} parent=11 // pred_check_branch
        %304 = sbr.rel (%p302) target = $region28
      $region27: #{inception1d_forward.9} parent=11 // pred_region
        _
      $region28: #{inception1d_forward.9} parent=11 // pred_fallthru
        _
      // Predicated region
      $region29: #{inception1d_forward.9} parent=11 // pred_check
        %p305 = pneg %p187
      $region30: #{inception1d_forward.9} parent=11 // pred_check_branch
        %307 = sbr.rel (%p305) target = $region32
      $region31: #{inception1d_forward.9} parent=11 // pred_region
        _
      $region32: #{inception1d_forward.9} parent=11 // pred_fallthru
        _
      // Predicated region
      $region33: #{inception1d_forward.9} parent=11 // pred_check
        %p308 = pneg %p208
      $region34: #{inception1d_forward.9} parent=11 // pred_check_branch
        %310 = sbr.rel (%p308) target = $region36
      $region35: #{inception1d_forward.9} parent=11 // pred_region
        _
      $region36: #{inception1d_forward.9} parent=11 // pred_fallthru
        _
      // Predicated region
      $region37: #{inception1d_forward.9} parent=11 // pred_check
        %p311 = pneg %p229
      $region38: #{inception1d_forward.9} parent=11 // pred_check_branch
        %313 = sbr.rel (%p311) target = $region40
      $region39: #{inception1d_forward.9} parent=11 // pred_region
        _
      $region40: #{inception1d_forward.9} parent=11 // pred_fallthru
        _
      // Predicated region
      $region41: #{inception1d_forward.9} parent=11 // pred_check
        %p314 = pneg %p250
      $region42: #{inception1d_forward.9} parent=11 // pred_check_branch
        %316 = sbr.rel (%p314) target = $region44
      $region43: #{inception1d_forward.9} parent=11 // pred_region
        _
      $region44: #{inception1d_forward.9} parent=11 // pred_fallthru
        _
    $region12: #{inception1d_forward.9} parent=5 // pred_fallthru
      _
    %p317 = scmp.lt.s32.totalorder %s16, 2
    // Predicated region
    $region45: #{inception1d_forward.9} parent=5 // pred_check
      %p318 = pneg %p317
    $region46: #{inception1d_forward.9} parent=5 // pred_check_branch
      %320 = sbr.rel (%p318) target = $region48
    $region47: #{inception1d_forward.9} parent=5 // pred_region
      // Predicated region
      $region49: #{inception1d_forward.9} parent=47 // pred_check
        %p321 = pneg %p48
      $region50: #{inception1d_forward.9} parent=47 // pred_check_branch
        %323 = sbr.rel (%p321) target = $region52
      $region51: #{inception1d_forward.9} parent=47 // pred_region
        %p324 = scmp.lt.s32.totalorder %s23, 1
        %s325 = scalar_select %p324, %s23, 1
        %s326 = smul.addr %s325, 7
        %s327 = smul.addr %s326, 4
        %s328 = scalar_lea.vmem %s0, %s327
      $region52: #{inception1d_forward.9} parent=47 // pred_fallthru
        _
      // Predicated region
      $region53: #{inception1d_forward.9} parent=47 // pred_check
        %p329 = pneg %p76
      $region54: #{inception1d_forward.9} parent=47 // pred_check_branch
        %331 = sbr.rel (%p329) target = $region56
      $region55: #{inception1d_forward.9} parent=47 // pred_region
        %s332 = smul.u32 2, %s24
        %p333 = scmp.lt.s32.totalorder %s23, 1
        %s334 = scalar_select %p333, %s23, 1
        %p335 = scmp.lt.s32.totalorder %s332, 1
        %s336 = scalar_select %p335, %s332, 1
        %s337 = smul.addr %s334, 2
        %s338 = sadd.s32 %s336, %s337
        %s339 = smul.addr %s338, 4
        %s340 = scalar_lea.vmem %s1, %s339
        %s341 = smul.u32 2, %s24
      $region56: #{inception1d_forward.9} parent=47 // pred_fallthru
        _
    $region48: #{inception1d_forward.9} parent=5 // pred_fallthru
      _
    %p342 = scmp.le.s32.totalorder 1, %s16
    %p343 = scmp.lt.s32.totalorder %s16, 3
    %p344 = pnand %p342, %p343
    %p345 = pneg %p344
    // Predicated region
    $region57: #{inception1d_forward.9} parent=5 // pred_check
      _
    $region58: #{inception1d_forward.9} parent=5 // pred_check_branch
      %347 = sbr.rel (%p344) target = $region60
    $region59: #{inception1d_forward.9} parent=5 // pred_region
      %s348 = ssub.s32 %s16, 1
      %p349 = scmp.lt.s32.totalorder %s25, 1
      %s350 = scalar_select %p349, %s25, 1
      %s351 = smul.addr %s350, 7
      %s352 = smul.addr %s351, 4
      %s353 = scalar_lea.vmem %s0, %s352
      %p354 = pneg %p54
      %p355 = pneg %p51
      %s356 = smul.u32 2, %s26
      %p357 = scmp.lt.s32.totalorder %s25, 1
      %s358 = scalar_select %p357, %s25, 1
      %p359 = scmp.lt.s32.totalorder %s356, 1
      %s360 = scalar_select %p359, %s356, 1
      %s361 = smul.addr %s358, 2
      %s362 = sadd.s32 %s360, %s361
      %s363 = smul.addr %s362, 4
      %s364 = scalar_lea.vmem %s1, %s363
      %p365 = pneg %p82
      %p366 = pneg %p79
      %p367 = pneg %p103
      %p368 = pneg %p100
      %p369 = pneg %p124
      %p370 = pneg %p121
      %p371 = pneg %p145
      %p372 = pneg %p142
      %p373 = pneg %p166
      %p374 = pneg %p163
      %p375 = pneg %p187
      %p376 = pneg %p184
      %p377 = pneg %p208
      %p378 = pneg %p205
      %p379 = pneg %p229
      %p380 = pneg %p226
      %p381 = pneg %p250
      %p382 = pneg %p247
      %p383 = pneg %p278
      %p384 = pneg %p275
      %s385 = smul.u32 2, %s26
      %p386 = scmp.lt.s32.totalorder %s25, 1
      %s387 = scalar_select %p386, %s25, 1
      %p388 = scmp.lt.s32.totalorder %s385, 1
      %s389 = scalar_select %p388, %s385, 1
      %s390 = smul.addr %s387, 2
      %s391 = sadd.s32 %s389, %s390
      %s392 = smul.addr %s391, 4
      %s393 = scalar_lea.vmem %s10, %s392
      %p394 = scmp.lt.s32.totalorder %s25, 1
      %s395 = scalar_select %p394, %s25, 1
      %s396 = smul.addr %s395, 7
      %s397 = smul.addr %s396, 4
      %s398 = scalar_lea.vmem %s0, %s397
      %s399 = smul.u32 2, %s26
      %p400 = scmp.lt.s32.totalorder %s25, 1
      %s401 = scalar_select %p400, %s25, 1
      %p402 = scmp.lt.s32.totalorder %s399, 1
      %s403 = scalar_select %p402, %s399, 1
      %s404 = smul.addr %s401, 2
      %s405 = sadd.s32 %s403, %s404
      %s406 = smul.addr %s405, 4
      %s407 = scalar_lea.vmem %s1, %s406
      %s408 = smul.u32 2, %s26
      %s409 = smul.u32 2, %s26
      %p410 = scmp.lt.s32.totalorder %s25, 1
      %s411 = scalar_select %p410, %s25, 1
      %p412 = scmp.lt.s32.totalorder %s409, 1
      %s413 = scalar_select %p412, %s409, 1
      %s414 = smul.addr %s411, 2
      %s415 = sadd.s32 %s413, %s414
      %s416 = smul.addr %s415, 4
      %s417 = scalar_lea.vmem %s10, %s416
      %s418 = smul.u32 2, %s26
      %s423 = smul.u32 %s26, 16
      %s424 = sshra.s32 %s423, 3
      %s425 = sand.u32 %s423, 7
      %s426 = smul.addr %s424, 4
      %s427 = scalar_lea.vmem %s398, %s426
      %v428 = vld [vmem:[%s427] sm:$0xf]
      %v429 = vld [vmem:[%s427 + $0x4] sm:$0xf]
      %v430 = vld [vmem:[%s427 + $0x8] sm:$0xf]
      %v431 = vld [vmem:[%s427 + $0xc] sm:$0xf]
      %v432 = vld [vmem:[%s427 + $0x10] sm:$0xf]
      %v433 = vld [vmem:[%s427 + $0x14] sm:$0xf]
      %v434 = vld [vmem:[%s427 + $0x18] sm:$0xf]
      %v435 = vld [vmem:[%s2] sm:$0xf]
      %v436 = vld [vmem:[%s2 + $0x4] sm:$0xf]
      %v437 = vld [vmem:[%s2 + $0x8] sm:$0xf]
      %v438 = vld [vmem:[%s2 + $0xc] sm:$0xf]
      %v439 = vld [vmem:[%s2 + $0x10] sm:$0xf]
      %v440 = vld [vmem:[%s2 + $0x14] sm:$0xf]
      %v441 = vld [vmem:[%s2 + $0x18] sm:$0xf]
      %v442 = vld [vmem:[%s2 + $0x1c] sm:$0xf]
      %v443 = vld [vmem:[%s2 + $0x20] sm:$0xf]
      %v444 = vld [vmem:[%s2 + $0x24] sm:$0xf]
      %v445 = vld [vmem:[%s2 + $0x28] sm:$0xf]
      %v446 = vld [vmem:[%s2 + $0x2c] sm:$0xf]
      %v447 = vld [vmem:[%s2 + $0x30] sm:$0xf]
      %v448 = vld [vmem:[%s2 + $0x34] sm:$0xf]
      %v449 = vld [vmem:[%s2 + $0x38] sm:$0xf]
      %v450 = vld [vmem:[%s2 + $0x3c] sm:$0xf]
      %v458 = vunpack.c.l.b16 %v428
      %v459 = vunpack.c.l.b16 %v429
      %v460 = vunpack.c.l.b16 %v430
      %v461 = vunpack.c.l.b16 %v431
      %v462 = vunpack.c.l.b16 %v432
      %v463 = vunpack.c.l.b16 %v433
      %v464 = vunpack.c.l.b16 %v434
      %v465 = vpack.c.b16 %v459, %v458
      %v466 = vpack.c.b16 %v461, %v460
      %v467 = vpack.c.b16 %v463, %v462
      %v468 = vpack.c.b16 %v464, %v464
      %v489 = vunpack.c.l.b16 %v435
      %v490 = vunpack.c.l.b16 %v436
      %v491 = vunpack.c.l.b16 %v437
      %v492 = vunpack.c.l.b16 %v438
      %v493 = vunpack.c.l.b16 %v439
      %v494 = vunpack.c.l.b16 %v440
      %v495 = vunpack.c.l.b16 %v441
      %v496 = vunpack.c.l.b16 %v442
      %v497 = vunpack.c.l.b16 %v443
      %v498 = vunpack.c.l.b16 %v444
      %v499 = vunpack.c.l.b16 %v445
      %v500 = vunpack.c.l.b16 %v446
      %v501 = vunpack.c.l.b16 %v447
      %v502 = vunpack.c.l.b16 %v448
      %v503 = vunpack.c.l.b16 %v449
      %v504 = vunpack.c.l.b16 %v450
      %v505 = vpack.c.b16 %v490, %v489
      %v506 = vpack.c.b16 %v492, %v491
      %v507 = vpack.c.b16 %v494, %v493
      %v508 = vpack.c.b16 %v496, %v495
      %v509 = vpack.c.b16 %v498, %v497
      %v510 = vpack.c.b16 %v500, %v499
      %v511 = vpack.c.b16 %v502, %v501
      %v512 = vpack.c.b16 %v504, %v503
      %521 = vmatprep.subr.bf16.mxu0 0
      %522 = vmatpush1.bf16.msra.mxu0 %v505
      %523 = vmatprep.subr.bf16.mxu0 0
      %524 = vmatpush1.bf16.msra.mxu0 %v506
      %525 = vmatprep.subr.bf16.mxu0 0
      %526 = vmatpush1.bf16.msra.mxu0 %v507
      %527 = vmatprep.subr.bf16.mxu0 0
      %528 = vmatpush1.bf16.msra.mxu0 %v508
      %529 = vmatprep.subr.bf16.mxu0 0
      %530 = vmatpush1.bf16.msra.mxu0 %v509
      %531 = vmatprep.subr.bf16.mxu0 0
      %532 = vmatpush1.bf16.msra.mxu0 %v510
      %533 = vmatprep.subr.bf16.mxu0 0
      %534 = vmatpush1.bf16.msra.mxu0 %v511
      %535 = vmatprep.subr.bf16.mxu0 0
      %536 = vmatpush1.bf16.msra.mxu0 %v512
      %537 = vmatprep.subr.bf16.mxu0 0
      %538 = vmatpush1.bf16.msra.mxu0 0
      %539 = vmatprep.subr.bf16.mxu0 0
      %540 = vmatpush1.bf16.msra.mxu0 0
      %541 = vmatprep.subr.bf16.mxu0 0
      %542 = vmatpush1.bf16.msra.mxu0 0
      %543 = vmatprep.subr.bf16.mxu0 0
      %544 = vmatpush1.bf16.msra.mxu0 0
      %545 = vmatprep.subr.bf16.mxu0 0
      %546 = vmatpush1.bf16.msra.mxu0 0
      %547 = vmatprep.subr.bf16.mxu0 0
      %548 = vmatpush1.bf16.msra.mxu0 0
      %549 = vmatprep.subr.bf16.mxu0 0
      %550 = vmatpush1.bf16.msra.mxu0 0
      %551 = vmatprep.subr.bf16.mxu0 0
      %552 = vmatpush1.bf16.msra.mxu0 0
      %553 = vmatprep.mubr.bf16.mxu0 0
      %554 = vmatmul.mubr.bf16.gmra.mrb[0].mxu0 %v465
      %v555 = vpop.f32.mrb[0].mxu0
      %v556 = vadd.f32 0.0, %v555
      %v557 = vpop.f32.mrb[0].mxu0
      %v558 = vpop.f32.mrb[0].mxu0
      %v559 = vadd.f32 0.0, %v558
      %v560 = vpop.f32.mrb[0].mxu0
      %561 = vmatprep.mubr.bf16.mxu0 0
      %562 = vmatmul.mubr.bf16.gmra.mrb[0].mxu0 %v466
      %v563 = vpop.f32.mrb[0].mxu0
      %v564 = vadd.f32 0.0, %v563
      %v565 = vpop.f32.mrb[0].mxu0
      %v566 = vpop.f32.mrb[0].mxu0
      %v567 = vadd.f32 0.0, %v566
      %v568 = vpop.f32.mrb[0].mxu0
      %569 = vmatprep.mubr.bf16.mxu0 0
      %570 = vmatmul.mubr.bf16.gmra.mrb[0].mxu0 %v467
      %v571 = vpop.f32.mrb[0].mxu0
      %v572 = vadd.f32 0.0, %v571
      %v573 = vpop.f32.mrb[0].mxu0
      %v574 = vpop.f32.mrb[0].mxu0
      %v575 = vadd.f32 0.0, %v574
      %v576 = vpop.f32.mrb[0].mxu0
      %577 = vmatprep.mubr.bf16.mxu0 0
      %578 = vmatmul.mubr.bf16.gmra.mrb[0].mxu0 %v468
      %v579 = vpop.f32.mrb[0].mxu0
      %v580 = vadd.f32 0.0, %v579
      %v581 = vpop.f32.mrb[0].mxu0
      %v582 = vpop.f32.mrb[0].mxu0
      %v583 = vpop.f32.mrb[0].mxu0
      %584 = vdwg.mxu0
      %v585 = vpack.c.bf16 %v559, %v556
      %v586 = vpack.c.bf16 %v567, %v564
      %v587 = vpack.c.bf16 %v575, %v572
      %v588 = vpack.c.bf16 %v580, %v580
      %vm589 = vsmask.f32 7424
      %v591 = vshrl.u32 %v585, 16
      %v593 = vshll.u32 %v585, 16
      %v595 = vrot.slane %v593, 1
      %v596 = vor.u32 %v591, %v595
      %v598 = vshll.u32 %v586, 16
      %v600 = vrot.slane %v598, 1
      %v601 = vsel %vm589, %v596, %v600
      %v602 = vshrl.u32 %v586, 16
      %604 = vrot.lane.b32.xlu0 %v601, 32
      %v605 = vpop.permute.xlu0 %604
      %606 = vrot.lane.b32.xlu0 %v602, 32
      %v607 = vpop.permute.xlu0 %606
      %vm610 = vcmask 1046528
      %v611 = vrot.slane %v585, 1
      %v612 = vrot.slane %v586, 1
      %v613 = vsel %vm610, %v611, %v612
      %614 = vrot.lane.b32.xlu0 %v613, 64
      %v615 = vpop.permute.xlu0 %614
      %616 = vrot.lane.b32.xlu0 %v612, 64
      %v617 = vpop.permute.xlu0 %616
      %vm618 = vsmask.f32 6400
      %v619 = vrot.slane %v591, 1
      %v620 = vrot.slane %v593, 2
      %v621 = vor.u32 %v619, %v620
      %v622 = vrot.slane %v602, 1
      %v623 = vrot.slane %v598, 2
      %v624 = vor.u32 %v622, %v623
      %v625 = vsel %vm618, %v621, %v624
      %626 = vrot.lane.b32.xlu0 %v625, 96
      %v627 = vpop.permute.xlu0 %626
      %628 = vrot.lane.b32.xlu0 %v622, 96
      %v629 = vpop.permute.xlu0 %628
      %vm630 = vcmask 1045504
      %v631 = vrot.slane %v585, 2
      %v632 = vrot.slane %v586, 2
      %v633 = vsel %vm630, %v631, %v632
      %vm634 = vsmask.f32 5376
      %v635 = vrot.slane %v591, 2
      %v636 = vrot.slane %v593, 3
      %v637 = vor.u32 %v635, %v636
      %v638 = vrot.slane %v602, 2
      %v639 = vrot.slane %v598, 3
      %v640 = vor.u32 %v638, %v639
      %v641 = vsel %vm634, %v637, %v640
      %642 = vrot.lane.b32.xlu0 %v641, 32
      %v643 = vpop.permute.xlu0 %642
      %644 = vrot.lane.b32.xlu0 %v638, 32
      %v645 = vpop.permute.xlu0 %644
      %vm646 = vcmask 1044480
      %v647 = vrot.slane %v585, 3
      %v648 = vrot.slane %v586, 3
      %v649 = vsel %vm646, %v647, %v648
      %650 = vrot.lane.b32.xlu0 %v649, 64
      %v651 = vpop.permute.xlu0 %650
      %652 = vrot.lane.b32.xlu0 %v648, 64
      %v653 = vpop.permute.xlu0 %652
      %vm654 = vsmask.f32 4352
      %v655 = vrot.slane %v591, 3
      %v656 = vrot.slane %v593, 4
      %v657 = vor.u32 %v655, %v656
      %v658 = vrot.slane %v602, 3
      %v659 = vrot.slane %v598, 4
      %v660 = vor.u32 %v658, %v659
      %v661 = vsel %vm654, %v657, %v660
      %662 = vrot.lane.b32.xlu0 %v661, 96
      %v663 = vpop.permute.xlu0 %662
      %664 = vrot.lane.b32.xlu0 %v658, 96
      %v665 = vpop.permute.xlu0 %664
      %vm666 = vcmask 1043456
      %v667 = vrot.slane %v585, 4
      %v668 = vrot.slane %v586, 4
      %v669 = vsel %vm666, %v667, %v668
      %vm670 = vsmask.f32 3328
      %v671 = vrot.slane %v591, 4
      %v672 = vrot.slane %v593, 5
      %v673 = vor.u32 %v671, %v672
      %v674 = vrot.slane %v602, 4
      %v675 = vrot.slane %v598, 5
      %v676 = vor.u32 %v674, %v675
      %v677 = vsel %vm670, %v673, %v676
      %678 = vrot.lane.b32.xlu0 %v677, 32
      %v679 = vpop.permute.xlu0 %678
      %680 = vrot.lane.b32.xlu0 %v674, 32
      %v681 = vpop.permute.xlu0 %680
      %vm682 = vcmask 1042432
      %v683 = vrot.slane %v585, 5
      %v684 = vrot.slane %v586, 5
      %v685 = vsel %vm682, %v683, %v684
      %686 = vrot.lane.b32.xlu0 %v685, 64
      %v687 = vpop.permute.xlu0 %686
      %688 = vrot.lane.b32.xlu0 %v684, 64
      %v689 = vpop.permute.xlu0 %688
      %vm690 = vsmask.f32 2304
      %v691 = vrot.slane %v591, 5
      %v692 = vrot.slane %v593, 6
      %v693 = vor.u32 %v691, %v692
      %v694 = vrot.slane %v602, 5
      %v695 = vrot.slane %v598, 6
      %v696 = vor.u32 %v694, %v695
      %v697 = vsel %vm690, %v693, %v696
      %698 = vrot.lane.b32.xlu0 %v697, 96
      %v699 = vpop.permute.xlu0 %698
      %700 = vrot.lane.b32.xlu0 %v694, 96
      %v701 = vpop.permute.xlu0 %700
      %vm702 = vcmask 1041408
      %v703 = vrot.slane %v585, 6
      %v704 = vrot.slane %v586, 6
      %v705 = vsel %vm702, %v703, %v704
      %vm706 = vsmask.f32 1280
      %v707 = vrot.slane %v591, 6
      %v708 = vrot.slane %v593, 7
      %v709 = vor.u32 %v707, %v708
      %v710 = vrot.slane %v602, 6
      %v711 = vrot.slane %v598, 7
      %v712 = vor.u32 %v710, %v711
      %v713 = vsel %vm706, %v709, %v712
      %714 = vrot.lane.b32.xlu0 %v713, 32
      %v715 = vpop.permute.xlu0 %714
      %716 = vrot.lane.b32.xlu0 %v710, 32
      %v717 = vpop.permute.xlu0 %716
      %vm718 = vcmask 1040384
      %v719 = vrot.slane %v585, 7
      %v720 = vrot.slane %v586, 7
      %v721 = vsel %vm718, %v719, %v720
      %722 = vrot.lane.b32.xlu0 %v721, 64
      %v723 = vpop.permute.xlu0 %722
      %724 = vrot.lane.b32.xlu0 %v720, 64
      %v725 = vpop.permute.xlu0 %724
      %v726 = vrot.slane %v602, 7
      %v727 = vor.u32 %v726, %v598
      %728 = vrot.lane.b32.xlu0 %v727, 96
      %v729 = vpop.permute.xlu0 %728
      %730 = vrot.lane.b32.xlu0 %v726, 96
      %v731 = vpop.permute.xlu0 %730
      %vm732 = vcmask 261120
      %v734 = vsel %vm732, %v585, %v605
      %v736 = vsel %vm732, %v586, %v607
      %vm737 = vcmask 523264
      %v739 = vsel %vm737, %v734, %v615
      %v741 = vsel %vm737, %v736, %v617
      %vm742 = vcmask 785408
      %v744 = vsel %vm742, %v739, %v627
      %v746 = vsel %vm742, %v741, %v629
      %v749 = vsel %vm732, %v633, %v643
      %v752 = vsel %vm732, %v632, %v645
      %v754 = vsel %vm737, %v749, %v651
      %v756 = vsel %vm737, %v752, %v653
      %v758 = vsel %vm742, %v754, %v663
      %v760 = vsel %vm742, %v756, %v665
      %v763 = vsel %vm732, %v669, %v679
      %v766 = vsel %vm732, %v668, %v681
      %v768 = vsel %vm737, %v763, %v687
      %v770 = vsel %vm737, %v766, %v689
      %v772 = vsel %vm742, %v768, %v699
      %v774 = vsel %vm742, %v770, %v701
      %v777 = vsel %vm732, %v705, %v715
      %v780 = vsel %vm732, %v704, %v717
      %v782 = vsel %vm737, %v777, %v723
      %v784 = vsel %vm737, %v780, %v725
      %v786 = vsel %vm742, %v782, %v729
      %v788 = vsel %vm742, %v784, %v731
      %v789 = vor.u32 %v602, %v600
      %v791 = vshll.u32 %v587, 16
      %v793 = vrot.slane %v791, 1
      %v794 = vsel %vm589, %v789, %v793
      %v795 = vshrl.u32 %v587, 16
      %797 = vrot.lane.b32.xlu0 %v794, 32
      %v798 = vpop.permute.xlu0 %797
      %799 = vrot.lane.b32.xlu0 %v795, 32
      %v800 = vpop.permute.xlu0 %799
      %v802 = vrot.slane %v587, 1
      %v803 = vsel %vm610, %v612, %v802
      %804 = vrot.lane.b32.xlu0 %v803, 64
      %v805 = vpop.permute.xlu0 %804
      %806 = vrot.lane.b32.xlu0 %v802, 64
      %v807 = vpop.permute.xlu0 %806
      %v808 = vrot.slane %v795, 1
      %v809 = vrot.slane %v791, 2
      %v810 = vor.u32 %v808, %v809
      %v811 = vsel %vm618, %v624, %v810
      %812 = vrot.lane.b32.xlu0 %v811, 96
      %v813 = vpop.permute.xlu0 %812
      %814 = vrot.lane.b32.xlu0 %v808, 96
      %v815 = vpop.permute.xlu0 %814
      %v816 = vrot.slane %v587, 2
      %v817 = vsel %vm630, %v632, %v816
      %v818 = vrot.slane %v795, 2
      %v819 = vrot.slane %v791, 3
      %v820 = vor.u32 %v818, %v819
      %v821 = vsel %vm634, %v640, %v820
      %822 = vrot.lane.b32.xlu0 %v821, 32
      %v823 = vpop.permute.xlu0 %822
      %824 = vrot.lane.b32.xlu0 %v818, 32
      %v825 = vpop.permute.xlu0 %824
      %v826 = vrot.slane %v587, 3
      %v827 = vsel %vm646, %v648, %v826
      %828 = vrot.lane.b32.xlu0 %v827, 64
      %v829 = vpop.permute.xlu0 %828
      %830 = vrot.lane.b32.xlu0 %v826, 64
      %v831 = vpop.permute.xlu0 %830
      %v832 = vrot.slane %v795, 3
      %v833 = vrot.slane %v791, 4
      %v834 = vor.u32 %v832, %v833
      %v835 = vsel %vm654, %v660, %v834
      %836 = vrot.lane.b32.xlu0 %v835, 96
      %v837 = vpop.permute.xlu0 %836
      %838 = vrot.lane.b32.xlu0 %v832, 96
      %v839 = vpop.permute.xlu0 %838
      %v840 = vrot.slane %v587, 4
      %v841 = vsel %vm666, %v668, %v840
      %v842 = vrot.slane %v795, 4
      %v843 = vrot.slane %v791, 5
      %v844 = vor.u32 %v842, %v843
      %v845 = vsel %vm670, %v676, %v844
      %846 = vrot.lane.b32.xlu0 %v845, 32
      %v847 = vpop.permute.xlu0 %846
      %848 = vrot.lane.b32.xlu0 %v842, 32
      %v849 = vpop.permute.xlu0 %848
      %v850 = vrot.slane %v587, 5
      %v851 = vsel %vm682, %v684, %v850
      %852 = vrot.lane.b32.xlu0 %v851, 64
      %v853 = vpop.permute.xlu0 %852
      %854 = vrot.lane.b32.xlu0 %v850, 64
      %v855 = vpop.permute.xlu0 %854
      %v856 = vrot.slane %v795, 5
      %v857 = vrot.slane %v791, 6
      %v858 = vor.u32 %v856, %v857
      %v859 = vsel %vm690, %v696, %v858
      %860 = vrot.lane.b32.xlu0 %v859, 96
      %v861 = vpop.permute.xlu0 %860
      %862 = vrot.lane.b32.xlu0 %v856, 96
      %v863 = vpop.permute.xlu0 %862
      %v864 = vrot.slane %v587, 6
      %v865 = vsel %vm702, %v704, %v864
      %v866 = vrot.slane %v795, 6
      %v867 = vrot.slane %v791, 7
      %v868 = vor.u32 %v866, %v867
      %v869 = vsel %vm706, %v712, %v868
      %870 = vrot.lane.b32.xlu0 %v869, 32
      %v871 = vpop.permute.xlu0 %870
      %872 = vrot.lane.b32.xlu0 %v866, 32
      %v873 = vpop.permute.xlu0 %872
      %v874 = vrot.slane %v587, 7
      %v875 = vsel %vm718, %v720, %v874
      %876 = vrot.lane.b32.xlu0 %v875, 64
      %v877 = vpop.permute.xlu0 %876
      %878 = vrot.lane.b32.xlu0 %v874, 64
      %v879 = vpop.permute.xlu0 %878
      %v880 = vrot.slane %v795, 7
      %v881 = vor.u32 %v880, %v791
      %882 = vrot.lane.b32.xlu0 %v881, 96
      %v883 = vpop.permute.xlu0 %882
      %884 = vrot.lane.b32.xlu0 %v880, 96
      %v885 = vpop.permute.xlu0 %884
      %v887 = vsel %vm732, %v586, %v798
      %v889 = vsel %vm732, %v587, %v800
      %v891 = vsel %vm737, %v887, %v805
      %v893 = vsel %vm737, %v889, %v807
      %v895 = vsel %vm742, %v891, %v813
      %v897 = vsel %vm742, %v893, %v815
      %v900 = vsel %vm732, %v817, %v823
      %v903 = vsel %vm732, %v816, %v825
      %v905 = vsel %vm737, %v900, %v829
      %v907 = vsel %vm737, %v903, %v831
      %v909 = vsel %vm742, %v905, %v837
      %v911 = vsel %vm742, %v907, %v839
      %v914 = vsel %vm732, %v841, %v847
      %v917 = vsel %vm732, %v840, %v849
      %v919 = vsel %vm737, %v914, %v853
      %v921 = vsel %vm737, %v917, %v855
      %v923 = vsel %vm742, %v919, %v861
      %v925 = vsel %vm742, %v921, %v863
      %v928 = vsel %vm732, %v865, %v871
      %v931 = vsel %vm732, %v864, %v873
      %v933 = vsel %vm737, %v928, %v877
      %v935 = vsel %vm737, %v931, %v879
      %v937 = vsel %vm742, %v933, %v883
      %v939 = vsel %vm742, %v935, %v885
      %v940 = vor.u32 %v795, %v793
      %v942 = vshll.u32 %v588, 16
      %v944 = vrot.slane %v942, 1
      %v945 = vsel %vm589, %v940, %v944
      %v946 = vshrl.u32 %v588, 16
      %948 = vrot.lane.b32.xlu0 %v945, 32
      %v949 = vpop.permute.xlu0 %948
      %950 = vrot.lane.b32.xlu0 %v946, 32
      %v951 = vpop.permute.xlu0 %950
      %v953 = vrot.slane %v588, 1
      %v954 = vsel %vm610, %v802, %v953
      %955 = vrot.lane.b32.xlu0 %v954, 64
      %v956 = vpop.permute.xlu0 %955
      %957 = vrot.lane.b32.xlu0 %v953, 64
      %v958 = vpop.permute.xlu0 %957
      %v959 = vrot.slane %v946, 1
      %v960 = vrot.slane %v942, 2
      %v961 = vor.u32 %v959, %v960
      %v962 = vsel %vm618, %v810, %v961
      %963 = vrot.lane.b32.xlu0 %v962, 96
      %v964 = vpop.permute.xlu0 %963
      %965 = vrot.lane.b32.xlu0 %v959, 96
      %v966 = vpop.permute.xlu0 %965
      %v967 = vrot.slane %v588, 2
      %v968 = vsel %vm630, %v816, %v967
      %v969 = vrot.slane %v946, 2
      %v970 = vrot.slane %v942, 3
      %v971 = vor.u32 %v969, %v970
      %v972 = vsel %vm634, %v820, %v971
      %973 = vrot.lane.b32.xlu0 %v972, 32
      %v974 = vpop.permute.xlu0 %973
      %975 = vrot.lane.b32.xlu0 %v969, 32
      %v976 = vpop.permute.xlu0 %975
      %v977 = vrot.slane %v588, 3
      %v978 = vsel %vm646, %v826, %v977
      %979 = vrot.lane.b32.xlu0 %v978, 64
      %v980 = vpop.permute.xlu0 %979
      %981 = vrot.lane.b32.xlu0 %v977, 64
      %v982 = vpop.permute.xlu0 %981
      %v983 = vrot.slane %v946, 3
      %v984 = vrot.slane %v942, 4
      %v985 = vor.u32 %v983, %v984
      %v986 = vsel %vm654, %v834, %v985
      %987 = vrot.lane.b32.xlu0 %v986, 96
      %v988 = vpop.permute.xlu0 %987
      %989 = vrot.lane.b32.xlu0 %v983, 96
      %v990 = vpop.permute.xlu0 %989
      %v992 = vsel %vm732, %v587, %v949
      %v994 = vsel %vm732, %v588, %v951
      %v996 = vsel %vm737, %v992, %v956
      %v998 = vsel %vm737, %v994, %v958
      %v1000 = vsel %vm742, %v996, %v964
      %v1002 = vsel %vm742, %v998, %v966
      %v1005 = vsel %vm732, %v968, %v974
      %v1008 = vsel %vm732, %v967, %v976
      %v1010 = vsel %vm737, %v1005, %v980
      %v1012 = vsel %vm737, %v1008, %v982
      %v1014 = vsel %vm742, %v1010, %v988
      %v1016 = vsel %vm742, %v1012, %v990
      %v1017 = vld [vmem:[%s3] sm:$0xf]
      %v1018 = vld [vmem:[%s3 + $0x4] sm:$0xf]
      %v1019 = vld [vmem:[%s3 + $0x8] sm:$0xf]
      %v1020 = vld [vmem:[%s3 + $0xc] sm:$0xf]
      %v1021 = vld [vmem:[%s3 + $0x10] sm:$0xf]
      %v1022 = vld [vmem:[%s3 + $0x14] sm:$0xf]
      %v1023 = vld [vmem:[%s3 + $0x18] sm:$0xf]
      %v1024 = vld [vmem:[%s3 + $0x1c] sm:$0xf]
      %v1025 = vld [vmem:[%s3 + $0x20] sm:$0xf]
      %v1026 = vld [vmem:[%s3 + $0x24] sm:$0xf]
      %v1027 = vld [vmem:[%s3 + $0x28] sm:$0xf]
      %v1028 = vld [vmem:[%s3 + $0x2c] sm:$0xf]
      %v1029 = vld [vmem:[%s3 + $0x30] sm:$0xf]
      %v1030 = vld [vmem:[%s3 + $0x34] sm:$0xf]
      %v1031 = vld [vmem:[%s3 + $0x38] sm:$0xf]
      %v1032 = vld [vmem:[%s3 + $0x3c] sm:$0xf]
      %v1033 = vld [vmem:[%s3 + $0x40] sm:$0xf]
      %v1034 = vld [vmem:[%s3 + $0x44] sm:$0xf]
      %v1035 = vld [vmem:[%s3 + $0x48] sm:$0xf]
      %v1036 = vld [vmem:[%s3 + $0x4c] sm:$0xf]
      %v1037 = vld [vmem:[%s3 + $0x50] sm:$0xf]
      %v1038 = vld [vmem:[%s3 + $0x54] sm:$0xf]
      %v1039 = vld [vmem:[%s3 + $0x58] sm:$0xf]
      %v1040 = vld [vmem:[%s3 + $0x5c] sm:$0xf]
      %v1041 = vld [vmem:[%s3 + $0x60] sm:$0xf]
      %v1042 = vld [vmem:[%s3 + $0x64] sm:$0xf]
      %v1043 = vld [vmem:[%s3 + $0x68] sm:$0xf]
      %v1044 = vld [vmem:[%s3 + $0x6c] sm:$0xf]
      %v1045 = vld [vmem:[%s3 + $0x70] sm:$0xf]
      %v1046 = vld [vmem:[%s3 + $0x74] sm:$0xf]
      %v1047 = vld [vmem:[%s3 + $0x78] sm:$0xf]
      %v1048 = vld [vmem:[%s3 + $0x7c] sm:$0xf]
      %v1049 = vld [vmem:[%s3 + $0x80] sm:$0xf]
      %v1050 = vld [vmem:[%s3 + $0x84] sm:$0xf]
      %v1051 = vld [vmem:[%s3 + $0x88] sm:$0xf]
      %v1052 = vld [vmem:[%s3 + $0x8c] sm:$0xf]
      %v1053 = vld [vmem:[%s3 + $0x90] sm:$0xf]
      %v1054 = vld [vmem:[%s3 + $0x94] sm:$0xf]
      %v1055 = vld [vmem:[%s3 + $0x98] sm:$0xf]
      %v1056 = vld [vmem:[%s3 + $0x9c] sm:$0xf]
      %v1057 = vld [vmem:[%s3 + $0xa0] sm:$0xf]
      %v1058 = vld [vmem:[%s3 + $0xa4] sm:$0xf]
      %v1059 = vld [vmem:[%s3 + $0xa8] sm:$0xf]
      %v1060 = vld [vmem:[%s3 + $0xac] sm:$0xf]
      %v1061 = vld [vmem:[%s3 + $0xb0] sm:$0xf]
      %v1062 = vld [vmem:[%s3 + $0xb4] sm:$0xf]
      %v1063 = vld [vmem:[%s3 + $0xb8] sm:$0xf]
      %v1064 = vld [vmem:[%s3 + $0xbc] sm:$0xf]
      %v1065 = vld [vmem:[%s3 + $0xc0] sm:$0xf]
      %v1066 = vld [vmem:[%s3 + $0xc4] sm:$0xf]
      %v1067 = vld [vmem:[%s3 + $0xc8] sm:$0xf]
      %v1068 = vld [vmem:[%s3 + $0xcc] sm:$0xf]
      %v1069 = vld [vmem:[%s3 + $0xd0] sm:$0xf]
      %v1070 = vld [vmem:[%s3 + $0xd4] sm:$0xf]
      %v1071 = vld [vmem:[%s3 + $0xd8] sm:$0xf]
      %v1072 = vld [vmem:[%s3 + $0xdc] sm:$0xf]
      %v1073 = vld [vmem:[%s3 + $0xe0] sm:$0xf]
      %v1074 = vld [vmem:[%s3 + $0xe4] sm:$0xf]
      %v1075 = vld [vmem:[%s3 + $0xe8] sm:$0xf]
      %v1076 = vld [vmem:[%s3 + $0xec] sm:$0xf]
      %v1077 = vld [vmem:[%s3 + $0xf0] sm:$0xf]
      %v1078 = vld [vmem:[%s3 + $0xf4] sm:$0xf]
      %v1079 = vld [vmem:[%s3 + $0xf8] sm:$0xf]
      %v1080 = vld [vmem:[%s3 + $0xfc] sm:$0xf]
      %v1081 = vld [vmem:[%s3 + $0x100] sm:$0xf]
      %v1082 = vld [vmem:[%s3 + $0x104] sm:$0xf]
      %v1083 = vld [vmem:[%s3 + $0x108] sm:$0xf]
      %v1084 = vld [vmem:[%s3 + $0x10c] sm:$0xf]
      %v1085 = vld [vmem:[%s3 + $0x110] sm:$0xf]
      %v1086 = vld [vmem:[%s3 + $0x114] sm:$0xf]
      %v1087 = vld [vmem:[%s3 + $0x118] sm:$0xf]
      %v1088 = vld [vmem:[%s3 + $0x11c] sm:$0xf]
      %v1089 = vld [vmem:[%s3 + $0x120] sm:$0xf]
      %v1090 = vld [vmem:[%s3 + $0x124] sm:$0xf]
      %v1091 = vld [vmem:[%s3 + $0x128] sm:$0xf]
      %v1092 = vld [vmem:[%s3 + $0x12c] sm:$0xf]
      %v1093 = vld [vmem:[%s3 + $0x130] sm:$0xf]
      %v1094 = vld [vmem:[%s3 + $0x134] sm:$0xf]
      %v1095 = vld [vmem:[%s3 + $0x138] sm:$0xf]
      %v1096 = vld [vmem:[%s3 + $0x13c] sm:$0xf]
      %v1097 = vld [vmem:[%s3 + $0x140] sm:$0xf]
      %v1098 = vld [vmem:[%s3 + $0x144] sm:$0xf]
      %v1099 = vld [vmem:[%s3 + $0x148] sm:$0xf]
      %v1100 = vld [vmem:[%s3 + $0x14c] sm:$0xf]
      %v1101 = vld [vmem:[%s3 + $0x150] sm:$0xf]
      %v1102 = vld [vmem:[%s3 + $0x154] sm:$0xf]
      %v1103 = vld [vmem:[%s3 + $0x158] sm:$0xf]
      %v1104 = vld [vmem:[%s3 + $0x15c] sm:$0xf]
      %v1105 = vld [vmem:[%s3 + $0x160] sm:$0xf]
      %v1106 = vld [vmem:[%s3 + $0x164] sm:$0xf]
      %v1107 = vld [vmem:[%s3 + $0x168] sm:$0xf]
      %v1108 = vld [vmem:[%s3 + $0x16c] sm:$0xf]
      %v1109 = vld [vmem:[%s3 + $0x170] sm:$0xf]
      %v1110 = vld [vmem:[%s3 + $0x174] sm:$0xf]
      %v1111 = vld [vmem:[%s3 + $0x178] sm:$0xf]
      %v1112 = vld [vmem:[%s3 + $0x17c] sm:$0xf]
      %v1113 = vld [vmem:[%s3 + $0x180] sm:$0xf]
      %v1114 = vld [vmem:[%s3 + $0x184] sm:$0xf]
      %v1115 = vld [vmem:[%s3 + $0x188] sm:$0xf]
      %v1116 = vld [vmem:[%s3 + $0x18c] sm:$0xf]
      %v1117 = vld [vmem:[%s3 + $0x190] sm:$0xf]
      %v1118 = vld [vmem:[%s3 + $0x194] sm:$0xf]
      %v1119 = vld [vmem:[%s3 + $0x198] sm:$0xf]
      %v1120 = vld [vmem:[%s3 + $0x19c] sm:$0xf]
      %v1121 = vld [vmem:[%s3 + $0x1a0] sm:$0xf]
      %v1122 = vld [vmem:[%s3 + $0x1a4] sm:$0xf]
      %v1123 = vld [vmem:[%s3 + $0x1a8] sm:$0xf]
      %v1124 = vld [vmem:[%s3 + $0x1ac] sm:$0xf]
      %v1125 = vld [vmem:[%s3 + $0x1b0] sm:$0xf]
      %v1126 = vld [vmem:[%s3 + $0x1b4] sm:$0xf]
      %v1127 = vld [vmem:[%s3 + $0x1b8] sm:$0xf]
      %v1128 = vld [vmem:[%s3 + $0x1bc] sm:$0xf]
      %v1129 = vld [vmem:[%s3 + $0x1c0] sm:$0xf]
      %v1130 = vld [vmem:[%s3 + $0x1c4] sm:$0xf]
      %v1131 = vld [vmem:[%s3 + $0x1c8] sm:$0xf]
      %v1132 = vld [vmem:[%s3 + $0x1cc] sm:$0xf]
      %v1133 = vld [vmem:[%s3 + $0x1d0] sm:$0xf]
      %v1134 = vld [vmem:[%s3 + $0x1d4] sm:$0xf]
      %v1135 = vld [vmem:[%s3 + $0x1d8] sm:$0xf]
      %v1136 = vld [vmem:[%s3 + $0x1dc] sm:$0xf]
      %v1137 = vld [vmem:[%s3 + $0x1e0] sm:$0xf]
      %v1138 = vld [vmem:[%s3 + $0x1e4] sm:$0xf]
      %v1139 = vld [vmem:[%s3 + $0x1e8] sm:$0xf]
      %v1140 = vld [vmem:[%s3 + $0x1ec] sm:$0xf]
      %v1141 = vld [vmem:[%s3 + $0x1f0] sm:$0xf]
      %v1142 = vld [vmem:[%s3 + $0x1f4] sm:$0xf]
      %v1143 = vld [vmem:[%s3 + $0x1f8] sm:$0xf]
      %v1144 = vld [vmem:[%s3 + $0x1fc] sm:$0xf]
      %v1145 = vld [vmem:[%s3 + $0x200] sm:$0xf]
      %v1146 = vld [vmem:[%s3 + $0x204] sm:$0xf]
      %v1147 = vld [vmem:[%s3 + $0x208] sm:$0xf]
      %v1148 = vld [vmem:[%s3 + $0x20c] sm:$0xf]
      %v1149 = vld [vmem:[%s3 + $0x210] sm:$0xf]
      %v1150 = vld [vmem:[%s3 + $0x214] sm:$0xf]
      %v1151 = vld [vmem:[%s3 + $0x218] sm:$0xf]
      %v1152 = vld [vmem:[%s3 + $0x21c] sm:$0xf]
      %v1153 = vld [vmem:[%s3 + $0x220] sm:$0xf]
      %v1154 = vld [vmem:[%s3 + $0x224] sm:$0xf]
      %v1155 = vld [vmem:[%s3 + $0x228] sm:$0xf]
      %v1156 = vld [vmem:[%s3 + $0x22c] sm:$0xf]
      %v1157 = vld [vmem:[%s3 + $0x230] sm:$0xf]
      %v1158 = vld [vmem:[%s3 + $0x234] sm:$0xf]
      %v1159 = vld [vmem:[%s3 + $0x238] sm:$0xf]
      %v1160 = vld [vmem:[%s3 + $0x23c] sm:$0xf]
      %v1161 = vld [vmem:[%s3 + $0x240] sm:$0xf]
      %v1162 = vld [vmem:[%s3 + $0x244] sm:$0xf]
      %v1163 = vld [vmem:[%s3 + $0x248] sm:$0xf]
      %v1164 = vld [vmem:[%s3 + $0x24c] sm:$0xf]
      %v1165 = vld [vmem:[%s3 + $0x250] sm:$0xf]
      %v1166 = vld [vmem:[%s3 + $0x254] sm:$0xf]
      %v1167 = vld [vmem:[%s3 + $0x258] sm:$0xf]
      %v1168 = vld [vmem:[%s3 + $0x25c] sm:$0xf]
      %v1169 = vld [vmem:[%s3 + $0x260] sm:$0xf]
      %v1170 = vld [vmem:[%s3 + $0x264] sm:$0xf]
      %v1171 = vld [vmem:[%s3 + $0x268] sm:$0xf]
      %v1172 = vld [vmem:[%s3 + $0x26c] sm:$0xf]
      %v1173 = vld [vmem:[%s3 + $0x270] sm:$0xf]
      %v1174 = vld [vmem:[%s3 + $0x274] sm:$0xf]
      %v1175 = vld [vmem:[%s3 + $0x278] sm:$0xf]
      %v1176 = vld [vmem:[%s3 + $0x27c] sm:$0xf]
      %v1177 = vshrl.u32 %v744, 16
      %v1179 = vshll.u32 %v744, 16
      %v1181 = vrot.slane %v1179, 1
      %v1182 = vor.u32 %v1177, %v1181
      %v1183 = vshll.u32 %v746, 16
      %v1185 = vrot.slane %v1183, 1
      %v1186 = vsel %vm589, %v1182, %v1185
      %v1187 = vshrl.u32 %v758, 16
      %v1189 = vshll.u32 %v758, 16
      %v1191 = vrot.slane %v1189, 1
      %v1192 = vor.u32 %v1187, %v1191
      %v1193 = vshll.u32 %v760, 16
      %v1195 = vrot.slane %v1193, 1
      %v1196 = vsel %vm589, %v1192, %v1195
      %v1197 = vshrl.u32 %v772, 16
      %v1199 = vshll.u32 %v772, 16
      %v1201 = vrot.slane %v1199, 1
      %v1202 = vor.u32 %v1197, %v1201
      %v1203 = vshll.u32 %v774, 16
      %v1205 = vrot.slane %v1203, 1
      %v1206 = vsel %vm589, %v1202, %v1205
      %v1207 = vshrl.u32 %v786, 16
      %v1209 = vshll.u32 %v786, 16
      %v1211 = vrot.slane %v1209, 1
      %v1212 = vor.u32 %v1207, %v1211
      %v1213 = vshll.u32 %v788, 16
      %v1215 = vrot.slane %v1213, 1
      %v1216 = vsel %vm589, %v1212, %v1215
      %v1217 = vshrl.u32 %v895, 16
      %v1219 = vshll.u32 %v895, 16
      %v1221 = vrot.slane %v1219, 1
      %v1222 = vor.u32 %v1217, %v1221
      %v1223 = vshll.u32 %v897, 16
      %v1225 = vrot.slane %v1223, 1
      %v1226 = vsel %vm589, %v1222, %v1225
      %v1227 = vshrl.u32 %v909, 16
      %v1229 = vshll.u32 %v909, 16
      %v1231 = vrot.slane %v1229, 1
      %v1232 = vor.u32 %v1227, %v1231
      %v1233 = vshll.u32 %v911, 16
      %v1235 = vrot.slane %v1233, 1
      %v1236 = vsel %vm589, %v1232, %v1235
      %v1237 = vshrl.u32 %v923, 16
      %v1239 = vshll.u32 %v923, 16
      %v1241 = vrot.slane %v1239, 1
      %v1242 = vor.u32 %v1237, %v1241
      %v1243 = vshll.u32 %v925, 16
      %v1245 = vrot.slane %v1243, 1
      %v1246 = vsel %vm589, %v1242, %v1245
      %v1247 = vshrl.u32 %v937, 16
      %v1249 = vshll.u32 %v937, 16
      %v1251 = vrot.slane %v1249, 1
      %v1252 = vor.u32 %v1247, %v1251
      %v1253 = vshll.u32 %v939, 16
      %v1255 = vrot.slane %v1253, 1
      %v1256 = vsel %vm589, %v1252, %v1255
      %v1257 = vshrl.u32 %v1000, 16
      %v1259 = vshll.u32 %v1000, 16
      %v1261 = vrot.slane %v1259, 1
      %v1262 = vor.u32 %v1257, %v1261
      %v1263 = vshll.u32 %v1002, 16
      %v1265 = vrot.slane %v1263, 1
      %v1266 = vsel %vm589, %v1262, %v1265
      %v1267 = vshrl.u32 %v1014, 16
      %v1269 = vshll.u32 %v1014, 16
      %v1271 = vrot.slane %v1269, 1
      %v1272 = vor.u32 %v1267, %v1271
      %v1273 = vshll.u32 %v1016, 16
      %v1275 = vrot.slane %v1273, 1
      %v1276 = vsel %vm589, %v1272, %v1275
      %v1447 = vunpack.c.l.b16 %v1017
      %v1448 = vunpack.c.l.b16 %v1018
      %v1449 = vunpack.c.l.b16 %v1019
      %v1450 = vunpack.c.l.b16 %v1020
      %v1451 = vunpack.c.l.b16 %v1021
      %v1452 = vunpack.c.l.b16 %v1022
      %v1453 = vunpack.c.l.b16 %v1023
      %v1454 = vunpack.c.l.b16 %v1024
      %v1455 = vunpack.c.l.b16 %v1025
      %v1456 = vunpack.c.l.b16 %v1026
      %v1457 = vunpack.c.l.b16 %v1027
      %v1458 = vunpack.c.l.b16 %v1028
      %v1459 = vunpack.c.l.b16 %v1029
      %v1460 = vunpack.c.l.b16 %v1030
      %v1461 = vunpack.c.l.b16 %v1031
      %v1462 = vunpack.c.l.b16 %v1032
      %v1463 = vunpack.c.l.b16 %v1033
      %v1464 = vunpack.c.l.b16 %v1034
      %v1465 = vunpack.c.l.b16 %v1035
      %v1466 = vunpack.c.l.b16 %v1036
      %v1467 = vunpack.c.l.b16 %v1037
      %v1468 = vunpack.c.l.b16 %v1038
      %v1469 = vunpack.c.l.b16 %v1039
      %v1470 = vunpack.c.l.b16 %v1040
      %v1471 = vunpack.c.l.b16 %v1041
      %v1472 = vunpack.c.l.b16 %v1042
      %v1473 = vunpack.c.l.b16 %v1043
      %v1474 = vunpack.c.l.b16 %v1044
      %v1475 = vunpack.c.l.b16 %v1045
      %v1476 = vunpack.c.l.b16 %v1046
      %v1477 = vunpack.c.l.b16 %v1047
      %v1478 = vunpack.c.l.b16 %v1048
      %v1479 = vunpack.c.l.b16 %v1049
      %v1480 = vunpack.c.l.b16 %v1050
      %v1481 = vunpack.c.l.b16 %v1051
      %v1482 = vunpack.c.l.b16 %v1052
      %v1483 = vunpack.c.l.b16 %v1053
      %v1484 = vunpack.c.l.b16 %v1054
      %v1485 = vunpack.c.l.b16 %v1055
      %v1486 = vunpack.c.l.b16 %v1056
      %v1487 = vunpack.c.l.b16 %v1057
      %v1488 = vunpack.c.l.b16 %v1058
      %v1489 = vunpack.c.l.b16 %v1059
      %v1490 = vunpack.c.l.b16 %v1060
      %v1491 = vunpack.c.l.b16 %v1061
      %v1492 = vunpack.c.l.b16 %v1062
      %v1493 = vunpack.c.l.b16 %v1063
      %v1494 = vunpack.c.l.b16 %v1064
      %v1495 = vunpack.c.l.b16 %v1065
      %v1496 = vunpack.c.l.b16 %v1066
      %v1497 = vunpack.c.l.b16 %v1067
      %v1498 = vunpack.c.l.b16 %v1068
      %v1499 = vunpack.c.l.b16 %v1069
      %v1500 = vunpack.c.l.b16 %v1070
      %v1501 = vunpack.c.l.b16 %v1071
      %v1502 = vunpack.c.l.b16 %v1072
      %v1503 = vunpack.c.l.b16 %v1073
      %v1504 = vunpack.c.l.b16 %v1074
      %v1505 = vunpack.c.l.b16 %v1075
      %v1506 = vunpack.c.l.b16 %v1076
      %v1507 = vunpack.c.l.b16 %v1077
      %v1508 = vunpack.c.l.b16 %v1078
      %v1509 = vunpack.c.l.b16 %v1079
      %v1510 = vunpack.c.l.b16 %v1080
      %v1511 = vunpack.c.l.b16 %v1081
      %v1512 = vunpack.c.l.b16 %v1082
      %v1513 = vunpack.c.l.b16 %v1083
      %v1514 = vunpack.c.l.b16 %v1084
      %v1515 = vunpack.c.l.b16 %v1085
      %v1516 = vunpack.c.l.b16 %v1086
      %v1517 = vunpack.c.l.b16 %v1087
      %v1518 = vunpack.c.l.b16 %v1088
      %v1519 = vunpack.c.l.b16 %v1089
      %v1520 = vunpack.c.l.b16 %v1090
      %v1521 = vunpack.c.l.b16 %v1091
      %v1522 = vunpack.c.l.b16 %v1092
      %v1523 = vunpack.c.l.b16 %v1093
      %v1524 = vunpack.c.l.b16 %v1094
      %v1525 = vunpack.c.l.b16 %v1095
      %v1526 = vunpack.c.l.b16 %v1096
      %v1527 = vunpack.c.l.b16 %v1097
      %v1528 = vunpack.c.l.b16 %v1098
      %v1529 = vunpack.c.l.b16 %v1099
      %v1530 = vunpack.c.l.b16 %v1100
      %v1531 = vunpack.c.l.b16 %v1101
      %v1532 = vunpack.c.l.b16 %v1102
      %v1533 = vunpack.c.l.b16 %v1103
      %v1534 = vunpack.c.l.b16 %v1104
      %v1535 = vunpack.c.l.b16 %v1105
      %v1536 = vunpack.c.l.b16 %v1106
      %v1537 = vunpack.c.l.b16 %v1107
      %v1538 = vunpack.c.l.b16 %v1108
      %v1539 = vunpack.c.l.b16 %v1109
      %v1540 = vunpack.c.l.b16 %v1110
      %v1541 = vunpack.c.l.b16 %v1111
      %v1542 = vunpack.c.l.b16 %v1112
      %v1543 = vunpack.c.l.b16 %v1113
      %v1544 = vunpack.c.l.b16 %v1114
      %v1545 = vunpack.c.l.b16 %v1115
      %v1546 = vunpack.c.l.b16 %v1116
      %v1547 = vunpack.c.l.b16 %v1117
      %v1548 = vunpack.c.l.b16 %v1118
      %v1549 = vunpack.c.l.b16 %v1119
      %v1550 = vunpack.c.l.b16 %v1120
      %v1551 = vunpack.c.l.b16 %v1121
      %v1552 = vunpack.c.l.b16 %v1122
      %v1553 = vunpack.c.l.b16 %v1123
      %v1554 = vunpack.c.l.b16 %v1124
      %v1555 = vunpack.c.l.b16 %v1125
      %v1556 = vunpack.c.l.b16 %v1126
      %v1557 = vunpack.c.l.b16 %v1127
      %v1558 = vunpack.c.l.b16 %v1128
      %v1559 = vunpack.c.l.b16 %v1129
      %v1560 = vunpack.c.l.b16 %v1130
      %v1561 = vunpack.c.l.b16 %v1131
      %v1562 = vunpack.c.l.b16 %v1132
      %v1563 = vunpack.c.l.b16 %v1133
      %v1564 = vunpack.c.l.b16 %v1134
      %v1565 = vunpack.c.l.b16 %v1135
      %v1566 = vunpack.c.l.b16 %v1136
      %v1567 = vunpack.c.l.b16 %v1137
      %v1568 = vunpack.c.l.b16 %v1138
      %v1569 = vunpack.c.l.b16 %v1139
      %v1570 = vunpack.c.l.b16 %v1140
      %v1571 = vunpack.c.l.b16 %v1141
      %v1572 = vunpack.c.l.b16 %v1142
      %v1573 = vunpack.c.l.b16 %v1143
      %v1574 = vunpack.c.l.b16 %v1144
      %v1575 = vunpack.c.l.b16 %v1145
      %v1576 = vunpack.c.l.b16 %v1146
      %v1577 = vunpack.c.l.b16 %v1147
      %v1578 = vunpack.c.l.b16 %v1148
      %v1579 = vunpack.c.l.b16 %v1149
      %v1580 = vunpack.c.l.b16 %v1150
      %v1581 = vunpack.c.l.b16 %v1151
      %v1582 = vunpack.c.l.b16 %v1152
      %v1583 = vunpack.c.l.b16 %v1153
      %v1584 = vunpack.c.l.b16 %v1154
      %v1585 = vunpack.c.l.b16 %v1155
      %v1586 = vunpack.c.l.b16 %v1156
      %v1587 = vunpack.c.l.b16 %v1157
      %v1588 = vunpack.c.l.b16 %v1158
      %v1589 = vunpack.c.l.b16 %v1159
      %v1590 = vunpack.c.l.b16 %v1160
      %v1591 = vunpack.c.l.b16 %v1161
      %v1592 = vunpack.c.l.b16 %v1162
      %v1593 = vunpack.c.l.b16 %v1163
      %v1594 = vunpack.c.l.b16 %v1164
      %v1595 = vunpack.c.l.b16 %v1165
      %v1596 = vunpack.c.l.b16 %v1166
      %v1597 = vunpack.c.l.b16 %v1167
      %v1598 = vunpack.c.l.b16 %v1168
      %v1599 = vunpack.c.l.b16 %v1169
      %v1600 = vunpack.c.l.b16 %v1170
      %v1601 = vunpack.c.l.b16 %v1171
      %v1602 = vunpack.c.l.b16 %v1172
      %v1603 = vunpack.c.l.b16 %v1173
      %v1604 = vunpack.c.l.b16 %v1174
      %v1605 = vunpack.c.l.b16 %v1175
      %v1606 = vunpack.c.l.b16 %v1176
      %v1607 = vpack.c.b16 %v1448, %v1447
      %v1608 = vpack.c.b16 %v1450, %v1449
      %v1609 = vpack.c.b16 %v1452, %v1451
      %v1610 = vpack.c.b16 %v1454, %v1453
      %v1611 = vpack.c.b16 %v1456, %v1455
      %v1612 = vpack.c.b16 %v1458, %v1457
      %v1613 = vpack.c.b16 %v1460, %v1459
      %v1614 = vpack.c.b16 %v1462, %v1461
      %v1615 = vpack.c.b16 %v1464, %v1463
      %v1616 = vpack.c.b16 %v1466, %v1465
      %v1617 = vpack.c.b16 %v1468, %v1467
      %v1618 = vpack.c.b16 %v1470, %v1469
      %v1619 = vpack.c.b16 %v1472, %v1471
      %v1620 = vpack.c.b16 %v1474, %v1473
      %v1621 = vpack.c.b16 %v1476, %v1475
      %v1622 = vpack.c.b16 %v1478, %v1477
      %v1623 = vpack.c.b16 %v1480, %v1479
      %v1624 = vpack.c.b16 %v1482, %v1481
      %v1625 = vpack.c.b16 %v1484, %v1483
      %v1626 = vpack.c.b16 %v1486, %v1485
      %v1627 = vpack.c.b16 %v1488, %v1487
      %v1628 = vpack.c.b16 %v1490, %v1489
      %v1629 = vpack.c.b16 %v1492, %v1491
      %v1630 = vpack.c.b16 %v1494, %v1493
      %v1631 = vpack.c.b16 %v1496, %v1495
      %v1632 = vpack.c.b16 %v1498, %v1497
      %v1633 = vpack.c.b16 %v1500, %v1499
      %v1634 = vpack.c.b16 %v1502, %v1501
      %v1635 = vpack.c.b16 %v1504, %v1503
      %v1636 = vpack.c.b16 %v1506, %v1505
      %v1637 = vpack.c.b16 %v1508, %v1507
      %v1638 = vpack.c.b16 %v1510, %v1509
      %v1639 = vpack.c.b16 %v1512, %v1511
      %v1640 = vpack.c.b16 %v1514, %v1513
      %v1641 = vpack.c.b16 %v1516, %v1515
      %v1642 = vpack.c.b16 %v1518, %v1517
      %v1643 = vpack.c.b16 %v1520, %v1519
      %v1644 = vpack.c.b16 %v1522, %v1521
      %v1645 = vpack.c.b16 %v1524, %v1523
      %v1646 = vpack.c.b16 %v1526, %v1525
      %v1647 = vpack.c.b16 %v1528, %v1527
      %v1648 = vpack.c.b16 %v1530, %v1529
      %v1649 = vpack.c.b16 %v1532, %v1531
      %v1650 = vpack.c.b16 %v1534, %v1533
      %v1651 = vpack.c.b16 %v1536, %v1535
      %v1652 = vpack.c.b16 %v1538, %v1537
      %v1653 = vpack.c.b16 %v1540, %v1539
      %v1654 = vpack.c.b16 %v1542, %v1541
      %v1655 = vpack.c.b16 %v1544, %v1543
      %v1656 = vpack.c.b16 %v1546, %v1545
      %v1657 = vpack.c.b16 %v1548, %v1547
      %v1658 = vpack.c.b16 %v1550, %v1549
      %v1659 = vpack.c.b16 %v1552, %v1551
      %v1660 = vpack.c.b16 %v1554, %v1553
      %v1661 = vpack.c.b16 %v1556, %v1555
      %v1662 = vpack.c.b16 %v1558, %v1557
      %v1663 = vpack.c.b16 %v1560, %v1559
      %v1664 = vpack.c.b16 %v1562, %v1561
      %v1665 = vpack.c.b16 %v1564, %v1563
      %v1666 = vpack.c.b16 %v1566, %v1565
      %v1667 = vpack.c.b16 %v1568, %v1567
      %v1668 = vpack.c.b16 %v1570, %v1569
      %v1669 = vpack.c.b16 %v1572, %v1571
      %v1670 = vpack.c.b16 %v1574, %v1573
      %v1671 = vpack.c.b16 %v1576, %v1575
      %v1672 = vpack.c.b16 %v1578, %v1577
      %v1673 = vpack.c.b16 %v1580, %v1579
      %v1674 = vpack.c.b16 %v1582, %v1581
      %v1675 = vpack.c.b16 %v1584, %v1583
      %v1676 = vpack.c.b16 %v1586, %v1585
      %v1677 = vpack.c.b16 %v1588, %v1587
      %v1678 = vpack.c.b16 %v1590, %v1589
      %v1679 = vpack.c.b16 %v1592, %v1591
      %v1680 = vpack.c.b16 %v1594, %v1593
      %v1681 = vpack.c.b16 %v1596, %v1595
      %v1682 = vpack.c.b16 %v1598, %v1597
      %v1683 = vpack.c.b16 %v1600, %v1599
      %v1684 = vpack.c.b16 %v1602, %v1601
      %v1685 = vpack.c.b16 %v1604, %v1603
      %v1686 = vpack.c.b16 %v1606, %v1605
      %1767 = vmatprep.subr.bf16.mxu0 0
      %1768 = vmatpush1.bf16.msra.mxu0 %v1607
      %1769 = vmatprep.subr.bf16.mxu0 0
      %1770 = vmatpush1.bf16.msra.mxu0 %v1608
      %1771 = vmatprep.subr.bf16.mxu0 0
      %1772 = vmatpush1.bf16.msra.mxu0 %v1609
      %1773 = vmatprep.subr.bf16.mxu0 0
      %1774 = vmatpush1.bf16.msra.mxu0 %v1610
      %1775 = vmatprep.subr.bf16.mxu0 0
      %1776 = vmatpush1.bf16.msra.mxu0 %v1611
      %1777 = vmatprep.subr.bf16.mxu0 0
      %1778 = vmatpush1.bf16.msra.mxu0 %v1612
      %1779 = vmatprep.subr.bf16.mxu0 0
      %1780 = vmatpush1.bf16.msra.mxu0 %v1613
      %1781 = vmatprep.subr.bf16.mxu0 0
      %1782 = vmatpush1.bf16.msra.mxu0 %v1614
      %1783 = vmatprep.subr.bf16.mxu0 0
      %1784 = vmatpush1.bf16.msra.mxu0 %v1615
      %1785 = vmatprep.subr.bf16.mxu0 0
      %1786 = vmatpush1.bf16.msra.mxu0 %v1616
      %1787 = vmatprep.subr.bf16.mxu0 0
      %1788 = vmatpush1.bf16.msra.mxu0 %v1617
      %1789 = vmatprep.subr.bf16.mxu0 0
      %1790 = vmatpush1.bf16.msra.mxu0 %v1618
      %1791 = vmatprep.subr.bf16.mxu0 0
      %1792 = vmatpush1.bf16.msra.mxu0 %v1619
      %1793 = vmatprep.subr.bf16.mxu0 0
      %1794 = vmatpush1.bf16.msra.mxu0 %v1620
      %1795 = vmatprep.subr.bf16.mxu0 0
      %1796 = vmatpush1.bf16.msra.mxu0 %v1621
      %1797 = vmatprep.subr.bf16.mxu0 0
      %1798 = vmatpush1.bf16.msra.mxu0 %v1622
      %1799 = vmatprep.mubr.bf16.mxu0 %v1196
      %1800 = vmatmul.mubr.bf16.gmra.mrb[0].mxu0 %v1186
      %v1801 = vpop.f32.mrb[0].mxu0
      %v1802 = vadd.f32 0.0, %v1801
      %v1803 = vpop.f32.mrb[0].mxu0
      %v1804 = vpop.f32.mrb[0].mxu0
      %v1805 = vadd.f32 0.0, %v1804
      %v1806 = vpop.f32.mrb[0].mxu0
      %1807 = vdwg.mxu0
      %1808 = vmatprep.subr.bf16.mxu0 0
      %1809 = vmatpush1.bf16.msra.mxu0 %v1623
      %1810 = vmatprep.subr.bf16.mxu0 0
      %1811 = vmatpush1.bf16.msra.mxu0 %v1624
      %1812 = vmatprep.subr.bf16.mxu0 0
      %1813 = vmatpush1.bf16.msra.mxu0 %v1625
      %1814 = vmatprep.subr.bf16.mxu0 0
      %1815 = vmatpush1.bf16.msra.mxu0 %v1626
      %1816 = vmatprep.subr.bf16.mxu0 0
      %1817 = vmatpush1.bf16.msra.mxu0 %v1627
      %1818 = vmatprep.subr.bf16.mxu0 0
      %1819 = vmatpush1.bf16.msra.mxu0 %v1628
      %1820 = vmatprep.subr.bf16.mxu0 0
      %1821 = vmatpush1.bf16.msra.mxu0 %v1629
      %1822 = vmatprep.subr.bf16.mxu0 0
      %1823 = vmatpush1.bf16.msra.mxu0 %v1630
      %1824 = vmatprep.subr.bf16.mxu0 0
      %1825 = vmatpush1.bf16.msra.mxu0 %v1631
      %1826 = vmatprep.subr.bf16.mxu0 0
      %1827 = vmatpush1.bf16.msra.mxu0 %v1632
      %1828 = vmatprep.subr.bf16.mxu0 0
      %1829 = vmatpush1.bf16.msra.mxu0 %v1633
      %1830 = vmatprep.subr.bf16.mxu0 0
      %1831 = vmatpush1.bf16.msra.mxu0 %v1634
      %1832 = vmatprep.subr.bf16.mxu0 0
      %1833 = vmatpush1.bf16.msra.mxu0 %v1635
      %1834 = vmatprep.subr.bf16.mxu0 0
      %1835 = vmatpush1.bf16.msra.mxu0 %v1636
      %1836 = vmatprep.subr.bf16.mxu0 0
      %1837 = vmatpush1.bf16.msra.mxu0 %v1637
      %1838 = vmatprep.subr.bf16.mxu0 0
      %1839 = vmatpush1.bf16.msra.mxu0 %v1638
      %1840 = vmatprep.mubr.bf16.mxu0 %v1216
      %1841 = vmatmul.mubr.bf16.gmra.mrb[0].mxu0 %v1206
      %v1842 = vpop.f32.mrb[0].mxu0
      %v1843 = vadd.f32 %v1802, %v1842
      %v1844 = vpop.f32.mrb[0].mxu0
      %v1845 = vpop.f32.mrb[0].mxu0
      %v1846 = vadd.f32 %v1805, %v1845
      %v1847 = vpop.f32.mrb[0].mxu0
      %1848 = vdwg.mxu0
      %1849 = vmatprep.subr.bf16.mxu0 0
      %1850 = vmatpush1.bf16.msra.mxu0 %v1639
      %1851 = vmatprep.subr.bf16.mxu0 0
      %1852 = vmatpush1.bf16.msra.mxu0 %v1640
      %1853 = vmatprep.subr.bf16.mxu0 0
      %1854 = vmatpush1.bf16.msra.mxu0 %v1641
      %1855 = vmatprep.subr.bf16.mxu0 0
      %1856 = vmatpush1.bf16.msra.mxu0 %v1642
      %1857 = vmatprep.subr.bf16.mxu0 0
      %1858 = vmatpush1.bf16.msra.mxu0 %v1643
      %1859 = vmatprep.subr.bf16.mxu0 0
      %1860 = vmatpush1.bf16.msra.mxu0 %v1644
      %1861 = vmatprep.subr.bf16.mxu0 0
      %1862 = vmatpush1.bf16.msra.mxu0 %v1645
      %1863 = vmatprep.subr.bf16.mxu0 0
      %1864 = vmatpush1.bf16.msra.mxu0 %v1646
      %1865 = vmatprep.subr.bf16.mxu0 0
      %1866 = vmatpush1.bf16.msra.mxu0 %v1647
      %1867 = vmatprep.subr.bf16.mxu0 0
      %1868 = vmatpush1.bf16.msra.mxu0 %v1648
      %1869 = vmatprep.subr.bf16.mxu0 0
      %1870 = vmatpush1.bf16.msra.mxu0 %v1649
      %1871 = vmatprep.subr.bf16.mxu0 0
      %1872 = vmatpush1.bf16.msra.mxu0 %v1650
      %1873 = vmatprep.subr.bf16.mxu0 0
      %1874 = vmatpush1.bf16.msra.mxu0 %v1651
      %1875 = vmatprep.subr.bf16.mxu0 0
      %1876 = vmatpush1.bf16.msra.mxu0 %v1652
      %1877 = vmatprep.subr.bf16.mxu0 0
      %1878 = vmatpush1.bf16.msra.mxu0 %v1653
      %1879 = vmatprep.subr.bf16.mxu0 0
      %1880 = vmatpush1.bf16.msra.mxu0 %v1654
      %1881 = vmatprep.mubr.bf16.mxu0 %v1236
      %1882 = vmatmul.mubr.bf16.gmra.mrb[0].mxu0 %v1226
      %v1883 = vpop.f32.mrb[0].mxu0
      %v1884 = vadd.f32 %v1843, %v1883
      %v1885 = vpop.f32.mrb[0].mxu0
      %v1886 = vpop.f32.mrb[0].mxu0
      %v1887 = vadd.f32 %v1846, %v1886
      %v1888 = vpop.f32.mrb[0].mxu0
      %1889 = vdwg.mxu0
      %1890 = vmatprep.subr.bf16.mxu0 0
      %1891 = vmatpush1.bf16.msra.mxu0 %v1655
      %1892 = vmatprep.subr.bf16.mxu0 0
      %1893 = vmatpush1.bf16.msra.mxu0 %v1656
      %1894 = vmatprep.subr.bf16.mxu0 0
      %1895 = vmatpush1.bf16.msra.mxu0 %v1657
      %1896 = vmatprep.subr.bf16.mxu0 0
      %1897 = vmatpush1.bf16.msra.mxu0 %v1658
      %1898 = vmatprep.subr.bf16.mxu0 0
      %1899 = vmatpush1.bf16.msra.mxu0 %v1659
      %1900 = vmatprep.subr.bf16.mxu0 0
      %1901 = vmatpush1.bf16.msra.mxu0 %v1660
      %1902 = vmatprep.subr.bf16.mxu0 0
      %1903 = vmatpush1.bf16.msra.mxu0 %v1661
      %1904 = vmatprep.subr.bf16.mxu0 0
      %1905 = vmatpush1.bf16.msra.mxu0 %v1662
      %1906 = vmatprep.subr.bf16.mxu0 0
      %1907 = vmatpush1.bf16.msra.mxu0 %v1663
      %1908 = vmatprep.subr.bf16.mxu0 0
      %1909 = vmatpush1.bf16.msra.mxu0 %v1664
      %1910 = vmatprep.subr.bf16.mxu0 0
      %1911 = vmatpush1.bf16.msra.mxu0 %v1665
      %1912 = vmatprep.subr.bf16.mxu0 0
      %1913 = vmatpush1.bf16.msra.mxu0 %v1666
      %1914 = vmatprep.subr.bf16.mxu0 0
      %1915 = vmatpush1.bf16.msra.mxu0 %v1667
      %1916 = vmatprep.subr.bf16.mxu0 0
      %1917 = vmatpush1.bf16.msra.mxu0 %v1668
      %1918 = vmatprep.subr.bf16.mxu0 0
      %1919 = vmatpush1.bf16.msra.mxu0 %v1669
      %1920 = vmatprep.subr.bf16.mxu0 0
      %1921 = vmatpush1.bf16.msra.mxu0 %v1670
      %1922 = vmatprep.mubr.bf16.mxu0 %v1256
      %1923 = vmatmul.mubr.bf16.gmra.mrb[0].mxu0 %v1246
      %v1924 = vpop.f32.mrb[0].mxu0
      %v1925 = vadd.f32 %v1884, %v1924
      %v1926 = vpop.f32.mrb[0].mxu0
      %v1927 = vpop.f32.mrb[0].mxu0
      %v1928 = vadd.f32 %v1887, %v1927
      %v1929 = vpop.f32.mrb[0].mxu0
      %1930 = vdwg.mxu0
      %1931 = vmatprep.subr.bf16.mxu0 0
      %1932 = vmatpush1.bf16.msra.mxu0 %v1671
      %1933 = vmatprep.subr.bf16.mxu0 0
      %1934 = vmatpush1.bf16.msra.mxu0 %v1672
      %1935 = vmatprep.subr.bf16.mxu0 0
      %1936 = vmatpush1.bf16.msra.mxu0 %v1673
      %1937 = vmatprep.subr.bf16.mxu0 0
      %1938 = vmatpush1.bf16.msra.mxu0 %v1674
      %1939 = vmatprep.subr.bf16.mxu0 0
      %1940 = vmatpush1.bf16.msra.mxu0 %v1675
      %1941 = vmatprep.subr.bf16.mxu0 0
      %1942 = vmatpush1.bf16.msra.mxu0 %v1676
      %1943 = vmatprep.subr.bf16.mxu0 0
      %1944 = vmatpush1.bf16.msra.mxu0 %v1677
      %1945 = vmatprep.subr.bf16.mxu0 0
      %1946 = vmatpush1.bf16.msra.mxu0 %v1678
      %1947 = vmatprep.subr.bf16.mxu0 0
      %1948 = vmatpush1.bf16.msra.mxu0 %v1679
      %1949 = vmatprep.subr.bf16.mxu0 0
      %1950 = vmatpush1.bf16.msra.mxu0 %v1680
      %1951 = vmatprep.subr.bf16.mxu0 0
      %1952 = vmatpush1.bf16.msra.mxu0 %v1681
      %1953 = vmatprep.subr.bf16.mxu0 0
      %1954 = vmatpush1.bf16.msra.mxu0 %v1682
      %1955 = vmatprep.subr.bf16.mxu0 0
      %1956 = vmatpush1.bf16.msra.mxu0 %v1683
      %1957 = vmatprep.subr.bf16.mxu0 0
      %1958 = vmatpush1.bf16.msra.mxu0 %v1684
      %1959 = vmatprep.subr.bf16.mxu0 0
      %1960 = vmatpush1.bf16.msra.mxu0 %v1685
      %1961 = vmatprep.subr.bf16.mxu0 0
      %1962 = vmatpush1.bf16.msra.mxu0 %v1686
      %1963 = vmatprep.mubr.bf16.mxu0 %v1276
      %1964 = vmatmul.mubr.bf16.gmra.mrb[0].mxu0 %v1266
      %v1965 = vpop.f32.mrb[0].mxu0
      %v1966 = vadd.f32 %v1925, %v1965
      %v1967 = vpop.f32.mrb[0].mxu0
      %v1968 = vpop.f32.mrb[0].mxu0
      %v1969 = vadd.f32 %v1928, %v1968
      %v1970 = vpop.f32.mrb[0].mxu0
      %1971 = vdwg.mxu0
      %v1972 = vlaneseq
      %v1973 = vshrl.u32 %v1972, 7
      %v1974 = vadd.s32 %v1973, 8
      %v1975 = vstv %s423
      %v1976 = vadd.s32 %v1975, %v1973
      %v1977 = vadd.s32 %v1975, %v1974
      %vm1978 = vcmp.eq.s32.totalorder %v1976, 0
      %vm1979 = vcmp.eq.s32.totalorder %v1977, 0
      %v1980 = vsel %vm1978, 1, 0
      %v1981 = vsel %vm1979, 1, 0
      %vm1982 = vcmp.eq.s32.totalorder %v1980, 1
      %vm1983 = vcmp.eq.s32.totalorder %v1981, 1
      %vm1984 = vmpackc.low %vm1982, %vm1982
      %vm1985 = vmpackc.low %vm1983, %vm1983
      %v1986 = vsel %vm1984, 65537, 0
      %v1987 = vsel %vm1985, 65537, 0
      %vm1988 = vsmask.f32 5392
      %vm1989 = vmor %vm706, %vm1988
      %v1991 = vshrl.u32 %v1986, 16
      %v1993 = vrot.slane %v1991, 6
      %v1994 = vshll.u32 %v1986, 16
      %v1996 = vrot.slane %v1994, 7
      %v1997 = vor.u32 %v1993, %v1996
      %v1998 = vrot.slane %v1997, 4
      %v2000 = vshrl.u32 %v1987, 16
      %v2002 = vrot.slane %v2000, 6
      %v2003 = vshll.u32 %v1987, 16
      %v2005 = vrot.slane %v2003, 7
      %v2006 = vor.u32 %v2002, %v2005
      %v2007 = vsel %vm1989, %v1998, %v2006
      %v2008 = vrot.slane %v2006, 4
      %vm2009 = vcmp.ne.s16.totalorder %v1997, 0
      %vm2010 = vcmp.ne.s16.totalorder %v2007, 0
      %vm2011 = vcmp.ne.s16.totalorder %v2008, 0
      %v2012 = vsel %vm2009, 4286644096, %v430
      %v2013 = vsel %vm2010, 4286644096, %v431
      %v2014 = vsel %vm2011, 4286644096, %v432
      %vm2015 = vcmp.eq.s32.totalorder %v1976, 15
      %vm2016 = vcmp.eq.s32.totalorder %v1977, 15
      %v2017 = vsel %vm2015, 1, 0
      %v2018 = vsel %vm2016, 1, 0
      %vm2019 = vcmp.eq.s32.totalorder %v2017, 1
      %vm2020 = vcmp.eq.s32.totalorder %v2018, 1
      %vm2021 = vmpackc.low %vm2019, %vm2019
      %vm2022 = vmpackc.low %vm2020, %vm2020
      %v2023 = vsel %vm2021, 65537, 0
      %v2024 = vsel %vm2022, 65537, 0
      %vm2025 = vsmask.f32 6416
      %vm2026 = vmor %vm690, %vm2025
      %v2028 = vshrl.u32 %v2023, 16
      %v2030 = vrot.slane %v2028, 5
      %v2031 = vshll.u32 %v2023, 16
      %v2033 = vrot.slane %v2031, 6
      %v2034 = vor.u32 %v2030, %v2033
      %v2035 = vrot.slane %v2034, 4
      %v2037 = vshrl.u32 %v2024, 16
      %v2039 = vrot.slane %v2037, 5
      %v2040 = vshll.u32 %v2024, 16
      %v2042 = vrot.slane %v2040, 6
      %v2043 = vor.u32 %v2039, %v2042
      %v2044 = vsel %vm2026, %v2035, %v2043
      %v2045 = vrot.slane %v2043, 4
      %vm2046 = vcmp.ne.s16.totalorder %v2034, 0
      %vm2047 = vcmp.ne.s16.totalorder %v2044, 0
      %vm2048 = vcmp.ne.s16.totalorder %v2045, 0
      %v2049 = vsel %vm2046, 4286644096, %v430
      %v2050 = vsel %vm2047, 4286644096, %v431
      %v2051 = vsel %vm2048, 4286644096, %v432
      %vm2052 = vsmask.f32 7440
      %vm2053 = vmor %vm670, %vm2052
      %v2055 = vshrl.u32 %v430, 16
      %v2057 = vrot.slane %v2055, 4
      %v2058 = vshll.u32 %v430, 16
      %v2060 = vrot.slane %v2058, 5
      %v2061 = vor.u32 %v2057, %v2060
      %v2062 = vrot.slane %v2061, 4
      %v2064 = vshll.u32 %v431, 16
      %v2066 = vrot.slane %v2064, 5
      %v2067 = vsel %vm2053, %v2062, %v2066
      %v2068 = vshrl.u32 %v431, 16
      %v2070 = vrot.slane %v2068, 4
      %v2071 = vor.u32 %v2070, %v2066
      %v2072 = vrot.slane %v2071, 4
      %v2074 = vshll.u32 %v432, 16
      %v2076 = vrot.slane %v2074, 5
      %v2077 = vsel %vm2053, %v2072, %v2076
      %v2078 = vshrl.u32 %v432, 16
      %v2080 = vrot.slane %v2078, 4
      %v2081 = vor.u32 %v2080, %v2076
      %v2082 = vrot.slane %v2081, 4
      %v2086 = vmax.bf16 %v2012, %v2067
      %v2087 = vmax.bf16 %v2013, %v2077
      %v2088 = vmax.bf16 %v2014, %v2082
      %vm2092 = vcmask 1046532
      %vm2093 = vmor %vm682, %vm2092
      %v2094 = vrot.slane %v2049, 5
      %v2095 = vrot.slane %v2094, 4
      %v2096 = vrot.slane %v2050, 5
      %v2097 = vsel %vm2093, %v2095, %v2096
      %v2098 = vrot.slane %v2096, 4
      %v2099 = vrot.slane %v2051, 5
      %v2100 = vsel %vm2093, %v2098, %v2099
      %v2101 = vrot.slane %v2099, 4
      %v2105 = vmax.bf16 %v2086, %v2097
      %v2106 = vmax.bf16 %v2087, %v2100
      %v2107 = vmax.bf16 %v2088, %v2101
      %v2108 = vld [vmem:[%s4] sm:$0xf]
      %v2109 = vld [vmem:[%s4 + $0x4] sm:$0xf]
      %v2110 = vld [vmem:[%s4 + $0x8] sm:$0xf]
      %v2111 = vld [vmem:[%s4 + $0xc] sm:$0xf]
      %v2112 = vld [vmem:[%s4 + $0x10] sm:$0xf]
      %v2113 = vld [vmem:[%s4 + $0x14] sm:$0xf]
      %v2114 = vld [vmem:[%s4 + $0x18] sm:$0xf]
      %v2115 = vld [vmem:[%s4 + $0x1c] sm:$0xf]
      %v2116 = vld [vmem:[%s4 + $0x20] sm:$0xf]
      %v2117 = vld [vmem:[%s4 + $0x24] sm:$0xf]
      %v2118 = vld [vmem:[%s4 + $0x28] sm:$0xf]
      %v2119 = vld [vmem:[%s4 + $0x2c] sm:$0xf]
      %v2120 = vld [vmem:[%s4 + $0x30] sm:$0xf]
      %v2121 = vld [vmem:[%s4 + $0x34] sm:$0xf]
      %v2122 = vld [vmem:[%s4 + $0x38] sm:$0xf]
      %v2123 = vld [vmem:[%s4 + $0x3c] sm:$0xf]
      %v2127 = vunpack.c.l.b16 %v2105
      %v2128 = vunpack.c.l.b16 %v2106
      %v2129 = vunpack.c.l.b16 %v2107
      %v2130 = vpack.c.b16 %v2128, %v2127
      %v2131 = vpack.c.b16 %v2129, %v2129
      %v2133 = vshrl.u32 %v2130, 16
      %v2135 = vrot.slane %v2133, 1
      %v2136 = vshll.u32 %v2130, 16
      %v2138 = vrot.slane %v2136, 2
      %v2139 = vor.u32 %v2135, %v2138
      %v2141 = vshrl.u32 %v2131, 16
      %v2143 = vrot.slane %v2141, 1
      %v2144 = vshll.u32 %v2131, 16
      %v2146 = vrot.slane %v2144, 2
      %v2147 = vor.u32 %v2143, %v2146
      %v2148 = vsel %vm618, %v2139, %v2147
      %v2166 = vunpack.c.l.b16 %v2108
      %v2167 = vunpack.c.l.b16 %v2109
      %v2168 = vunpack.c.l.b16 %v2110
      %v2169 = vunpack.c.l.b16 %v2111
      %v2170 = vunpack.c.l.b16 %v2112
      %v2171 = vunpack.c.l.b16 %v2113
      %v2172 = vunpack.c.l.b16 %v2114
      %v2173 = vunpack.c.l.b16 %v2115
      %v2174 = vunpack.c.l.b16 %v2116
      %v2175 = vunpack.c.l.b16 %v2117
      %v2176 = vunpack.c.l.b16 %v2118
      %v2177 = vunpack.c.l.b16 %v2119
      %v2178 = vunpack.c.l.b16 %v2120
      %v2179 = vunpack.c.l.b16 %v2121
      %v2180 = vunpack.c.l.b16 %v2122
      %v2181 = vunpack.c.l.b16 %v2123
      %v2182 = vpack.c.b16 %v2167, %v2166
      %v2183 = vpack.c.b16 %v2169, %v2168
      %v2184 = vpack.c.b16 %v2171, %v2170
      %v2185 = vpack.c.b16 %v2173, %v2172
      %v2186 = vpack.c.b16 %v2175, %v2174
      %v2187 = vpack.c.b16 %v2177, %v2176
      %v2188 = vpack.c.b16 %v2179, %v2178
      %v2189 = vpack.c.b16 %v2181, %v2180
      %2198 = vmatprep.subr.bf16.mxu0 0
      %2199 = vmatpush1.bf16.msra.mxu0 %v2182
      %2200 = vmatprep.subr.bf16.mxu0 0
      %2201 = vmatpush1.bf16.msra.mxu0 %v2183
      %2202 = vmatprep.subr.bf16.mxu0 0
      %2203 = vmatpush1.bf16.msra.mxu0 %v2184
      %2204 = vmatprep.subr.bf16.mxu0 0
      %2205 = vmatpush1.bf16.msra.mxu0 %v2185
      %2206 = vmatprep.subr.bf16.mxu0 0
      %2207 = vmatpush1.bf16.msra.mxu0 %v2186
      %2208 = vmatprep.subr.bf16.mxu0 0
      %2209 = vmatpush1.bf16.msra.mxu0 %v2187
      %2210 = vmatprep.subr.bf16.mxu0 0
      %2211 = vmatpush1.bf16.msra.mxu0 %v2188
      %2212 = vmatprep.subr.bf16.mxu0 0
      %2213 = vmatpush1.bf16.msra.mxu0 %v2189
      %2214 = vmatprep.subr.bf16.mxu0 0
      %2215 = vmatpush1.bf16.msra.mxu0 0
      %2216 = vmatprep.subr.bf16.mxu0 0
      %2217 = vmatpush1.bf16.msra.mxu0 0
      %2218 = vmatprep.subr.bf16.mxu0 0
      %2219 = vmatpush1.bf16.msra.mxu0 0
      %2220 = vmatprep.subr.bf16.mxu0 0
      %2221 = vmatpush1.bf16.msra.mxu0 0
      %2222 = vmatprep.subr.bf16.mxu0 0
      %2223 = vmatpush1.bf16.msra.mxu0 0
      %2224 = vmatprep.subr.bf16.mxu0 0
      %2225 = vmatpush1.bf16.msra.mxu0 0
      %2226 = vmatprep.subr.bf16.mxu0 0
      %2227 = vmatpush1.bf16.msra.mxu0 0
      %2228 = vmatprep.subr.bf16.mxu0 0
      %2229 = vmatpush1.bf16.msra.mxu0 0
      %2230 = vmatprep.mubr.bf16.mxu0 0
      %2231 = vmatmul.mubr.bf16.gmra.mrb[0].mxu0 %v2148
      %v2232 = vpop.f32.mrb[0].mxu0
      %v2233 = vadd.f32 0.0, %v2232
      %v2234 = vpop.f32.mrb[0].mxu0
      %v2235 = vpop.f32.mrb[0].mxu0
      %v2236 = vadd.f32 0.0, %v2235
      %v2237 = vpop.f32.mrb[0].mxu0
      %2238 = vdwg.mxu0
      %2241 = vrot.lane.b32.xlu0 %v2233, 96
      %v2242 = vpop.permute.xlu0 %2241
      %2243 = vrot.lane.b32.xlu0 %v2236, 96
      %v2244 = vpop.permute.xlu0 %2243
      %v2247 = vsel %vm742, %v1966, %v2242
      %v2248 = vsel %vm742, %v1969, %v2244
      %v2249 = vld [vmem:[%s5] sm:$0x1]
      %v2251 = vlaneseq
      %v2252 = vshrl.u32 %v2251, 7
      %v2253 = vsub.s32 0, %v2252
      %v2254 = vrot.slane %v2249, %v2253
      %v2256 = vmul.f32 %v2247, %v2254
      %v2257 = vmul.f32 %v2248, %v2254
      %v2258 = vld [vmem:[%s6] sm:$0x1]
      %v2260 = vlaneseq
      %v2261 = vshrl.u32 %v2260, 7
      %v2262 = vsub.s32 0, %v2261
      %v2263 = vrot.slane %v2258, %v2262
      %v2265 = vadd.f32 %v2256, %v2263
      %v2266 = vadd.f32 %v2257, %v2263
      %v2267 = vmax.f32 %v2265, 0.0
      %v2268 = vmax.f32 %v2266, 0.0
      %v2269 = vld [vmem:[%s407] sm:$0xf]
      %v2270 = vld [vmem:[%s407 + $0x4] sm:$0xf]
      %v2271 = vld [vmem:[%s7] sm:$0xf]
      %v2274 = vunpack.c.l.b16 %v2269
      %v2275 = vunpack.c.l.b16 %v2270
      %v2276 = vpack.c.b16 %v2275, %v2274
      %vm2277 = vcmask 64512
      %v2279 = vsel %vm2277, %v2276, 0
      %vm2281 = vcmask 1043456
      %v2283 = vsel %vm2281, %v2271, 0
      %2285 = vmatprep.subr.bf16.mxu0 0
      %2286 = vmatpush1.bf16.msra.mxu0 %v2283
      %2287 = vmatprep.subr.bf16.mxu0 0
      %2288 = vmatpush1.bf16.msra.mxu0 0
      %2289 = vmatprep.subr.bf16.mxu0 0
      %2290 = vmatpush1.bf16.msra.mxu0 0
      %2291 = vmatprep.subr.bf16.mxu0 0
      %2292 = vmatpush1.bf16.msra.mxu0 0
      %2293 = vmatprep.subr.bf16.mxu0 0
      %2294 = vmatpush1.bf16.msra.mxu0 0
      %2295 = vmatprep.subr.bf16.mxu0 0
      %2296 = vmatpush1.bf16.msra.mxu0 0
      %2297 = vmatprep.subr.bf16.mxu0 0
      %2298 = vmatpush1.bf16.msra.mxu0 0
      %2299 = vmatprep.subr.bf16.mxu0 0
      %2300 = vmatpush1.bf16.msra.mxu0 0
      %2301 = vmatprep.subr.bf16.mxu0 0
      %2302 = vmatpush1.bf16.msra.mxu0 0
      %2303 = vmatprep.subr.bf16.mxu0 0
      %2304 = vmatpush1.bf16.msra.mxu0 0
      %2305 = vmatprep.subr.bf16.mxu0 0
      %2306 = vmatpush1.bf16.msra.mxu0 0
      %2307 = vmatprep.subr.bf16.mxu0 0
      %2308 = vmatpush1.bf16.msra.mxu0 0
      %2309 = vmatprep.subr.bf16.mxu0 0
      %2310 = vmatpush1.bf16.msra.mxu0 0
      %2311 = vmatprep.subr.bf16.mxu0 0
      %2312 = vmatpush1.bf16.msra.mxu0 0
      %2313 = vmatprep.subr.bf16.mxu0 0
      %2314 = vmatpush1.bf16.msra.mxu0 0
      %2315 = vmatprep.subr.bf16.mxu0 0
      %2316 = vmatpush1.bf16.msra.mxu0 0
      %2317 = vmatprep.mubr.bf16.mxu0 0
      %2318 = vmatmul.mubr.bf16.gmra.mrb[0].mxu0 %v2279
      %v2319 = vpop.f32.mrb[0].mxu0
      %v2320 = vadd.f32 0.0, %v2319
      %v2321 = vpop.f32.mrb[0].mxu0
      %v2322 = vpop.f32.mrb[0].mxu0
      %v2323 = vadd.f32 0.0, %v2322
      %v2324 = vpop.f32.mrb[0].mxu0
      %2325 = vdwg.mxu0
      %v2326 = vld [vmem:[%s8] sm:$0x1]
      %v2328 = vlaneseq
      %v2329 = vshrl.u32 %v2328, 7
      %v2330 = vsub.s32 0, %v2329
      %v2331 = vrot.slane %v2326, %v2330
      %v2333 = vmul.f32 %v2320, %v2331
      %v2334 = vmul.f32 %v2323, %v2331
      %v2335 = vld [vmem:[%s9] sm:$0x1]
      %v2337 = vlaneseq
      %v2338 = vshrl.u32 %v2337, 7
      %v2339 = vsub.s32 0, %v2338
      %v2340 = vrot.slane %v2335, %v2339
      %v2342 = vadd.f32 %v2333, %v2340
      %v2343 = vadd.f32 %v2334, %v2340
      %v2344 = vadd.f32 %v2267, %v2342
      %v2345 = vadd.f32 %v2268, %v2343
      %v2346 = vmax.f32 %v2344, 0.0
      %v2347 = vmax.f32 %v2345, 0.0
      %v2348 = vpack.c.bf16 %v2347, %v2346
      %v2350 = vunpack.c.l.b16 %v2348
      %v2351 = vunpack.c.h.b16 %v2348
      %v2352 = vpack.c.b16 %v2350, %v2350
      %v2353 = vpack.c.b16 %v2351, %v2351
      %2356 = vst [vmem:[%s417] sm:$0xf] %v2352
      %2357 = vst [vmem:[%s417 + $0x4] sm:$0xf] %v2353
      %s2358 = smul.u32 2, %s26
      %p2359 = scmp.lt.s32.totalorder %s25, 1
      %s2360 = scalar_select %p2359, %s25, 1
      %p2361 = scmp.lt.s32.totalorder %s2358, 1
      %s2362 = scalar_select %p2361, %s2358, 1
      %s2363 = smul.addr %s2360, 2
      %s2364 = sadd.s32 %s2362, %s2363
      %s2365 = smul.addr %s2364, 4
      %s2366 = scalar_lea.vmem %s10, %s2365
      // Predicated region
      $region61: #{inception1d_forward.9} parent=59 // pred_check
        %p2367 = pneg %p275
      $region62: #{inception1d_forward.9} parent=59 // pred_check_branch
        %2369 = sbr.rel (%p2367) target = $region64
      $region63: #{inception1d_forward.9} parent=59 // pred_region
        %s2370 = smul.u32 2, %s26
      $region64: #{inception1d_forward.9} parent=59 // pred_fallthru
        _
    $region60: #{inception1d_forward.9} parent=5 // pred_fallthru
      _
    %p2371 = scmp.le.s32.totalorder 2, %s16
    // Predicated region
    $region65: #{inception1d_forward.9} parent=5 // pred_check
      %p2372 = pneg %p2371
    $region66: #{inception1d_forward.9} parent=5 // pred_check_branch
      %2374 = sbr.rel (%p2372) target = $region68
    $region67: #{inception1d_forward.9} parent=5 // pred_region
      %s2375 = ssub.s32 %s16, 2
      // Predicated region
      $region69: #{inception1d_forward.9} parent=67 // pred_check
        %p2376 = pneg %p281
      $region70: #{inception1d_forward.9} parent=67 // pred_check_branch
        %2378 = sbr.rel (%p2376) target = $region72
      $region71: #{inception1d_forward.9} parent=67 // pred_region
        %s2379 = smul.u32 2, %s28
        %p2380 = scmp.lt.s32.totalorder %s27, 1
        %s2381 = scalar_select %p2380, %s27, 1
        %p2382 = scmp.lt.s32.totalorder %s2379, 1
        %s2383 = scalar_select %p2382, %s2379, 1
        %s2384 = smul.addr %s2381, 2
        %s2385 = sadd.s32 %s2383, %s2384
        %s2386 = smul.addr %s2385, 4
        %s2387 = scalar_lea.vmem %s10, %s2386
      $region72: #{inception1d_forward.9} parent=67 // pred_fallthru
        _
    $region68: #{inception1d_forward.9} parent=5 // pred_fallthru
      _
  $region6: #{inception1d_forward.9} parent=0 // loop_footer
    %s20 = sadd.s32 1, %s16
  $region7: #{inception1d_forward.9} parent=0 // loop_footer_branch
    %15 = sbr.rel target = $region3
  $region8: #{inception1d_forward.9} parent=0 // loop_exit
    _

// kernel: inception1d_forward.13
$region0: #{inception1d_forward.13}
  #allocation0 [shape = 'u32[]', space=smem, size = 0x4, offset = 0x4, fixed_abs, tag = 'smem constant byte address 0x4 - core index']
  #allocation1 [shape = 'u32[144,128]{1,0:T(1,128)}', space=vmem, size = 0x12000, scoped, tag = 'internal scratch']
  %s0 = inlined_call_operand.vmem [shape: bf16[2,16,128], index: 0, kind: input, shape index: {}]
  %s1 = inlined_call_operand.vmem [shape: f32[1,256], index: 1, kind: input, shape index: {}]
  %s2 = inlined_call_operand.vmem [shape: f32[1,256], index: 2, kind: input, shape index: {}]
  %s3 = inlined_call_operand.vmem [shape: f32[256,2], index: 3, kind: input, shape index: {}]
  %s4 = inlined_call_operand.vmem [shape: f32[1,2], index: 4, kind: input, shape index: {}]
  %s5 = inlined_call_operand.hbm [shape: f32[2,2], index: 5, kind: output, shape index: {}]
  %s6 = sld [smem:[#allocation0]]
  $region30: #{inception1d_forward.13} parent=0
    _
  %s8 = ssub.s32 1, %s6
  %s9 = scalar_select 0, %s8, %s6
  $region1: #{inception1d_forward.13} parent=0
    #allocation2 [shape = 'u8[1024]{0}', space=vmem, size = 0x400, scoped, tag = 'output window, operand 0, single buffered']
    #allocation3 [shape = 's32[1]{0}', space=sflag, size = 0x4, scoped, tag = 'scoped memory for inception1d_forward.13']
    %10 = vsyncpa [#allocation3], 0
    // Predicated region
    $region2: #{inception1d_forward.13} parent=1 // pred_check
      _
    $region3: #{inception1d_forward.13} parent=1 // pred_check_branch
      %12 = sbr.rel (0) target = $region5
    $region4: #{inception1d_forward.13} parent=1 // pred_region
      _
    $region5: #{inception1d_forward.13} parent=1 // pred_fallthru
      _
    // Predicated region
    $region6: #{inception1d_forward.13} parent=1 // pred_check
      _
    $region7: #{inception1d_forward.13} parent=1 // pred_check_branch
      %14 = sbr.rel (0) target = $region9
    $region8: #{inception1d_forward.13} parent=1 // pred_region
      _
    $region9: #{inception1d_forward.13} parent=1 // pred_fallthru
      _
    // Predicated region
    $region10: #{inception1d_forward.13} parent=1 // pred_check
      _
    $region11: #{inception1d_forward.13} parent=1 // pred_check_branch
      %16 = sbr.rel (0) target = $region13
    $region12: #{inception1d_forward.13} parent=1 // pred_region
      _
    $region13: #{inception1d_forward.13} parent=1 // pred_fallthru
      _
    // Predicated region
    $region14: #{inception1d_forward.13} parent=1 // pred_check
      _
    $region15: #{inception1d_forward.13} parent=1 // pred_check_branch
      %18 = sbr.rel (0) target = $region17
    $region16: #{inception1d_forward.13} parent=1 // pred_region
      _
    $region17: #{inception1d_forward.13} parent=1 // pred_fallthru
      _
    // Predicated region
    $region18: #{inception1d_forward.13} parent=1 // pred_check
      _
    $region19: #{inception1d_forward.13} parent=1 // pred_check_branch
      %20 = sbr.rel (0) target = $region21
    $region20: #{inception1d_forward.13} parent=1 // pred_region
      _
    $region21: #{inception1d_forward.13} parent=1 // pred_fallthru
      _
    %v21 = vld [vmem:[%s0] sm:$0xf]
    %v22 = vld [vmem:[%s0 + $0x4] sm:$0xf]
    %v23 = vld [vmem:[%s0 + $0x8] sm:$0xf]
    %v24 = vld [vmem:[%s0 + $0xc] sm:$0xf]
    %v25 = vunpack.c.l.bf16 %v21
    %v26 = vunpack.c.l.bf16 %v22
    %v27 = vunpack.c.l.bf16 %v23
    %v28 = vunpack.c.l.bf16 %v24
    %v29 = vmax.f32 %v25, %v26
    %v30 = vrot.slane %v29, 4
    %v31 = vmax.f32 %v29, %v30
    %v32 = vrot.slane %v31, 2
    %v33 = vmax.f32 %v31, %v32
    %v34 = vrot.slane %v33, 1
    %v35 = vmax.f32 %v33, %v34
    %v36 = vmax.f32 %v27, %v28
    %v37 = vrot.slane %v36, 4
    %v38 = vmax.f32 %v36, %v37
    %v39 = vrot.slane %v38, 2
    %v40 = vmax.f32 %v38, %v39
    %v41 = vrot.slane %v40, 1
    %v42 = vmax.f32 %v40, %v41
    %v43 = vadd.f32 %v25, %v26
    %v44 = vrot.slane %v43, 4
    %v45 = vadd.f32 %v43, %v44
    %v46 = vrot.slane %v45, 2
    %v47 = vadd.f32 %v45, %v46
    %v48 = vrot.slane %v47, 1
    %v49 = vadd.f32 %v47, %v48
    %v50 = vadd.f32 %v27, %v28
    %v51 = vrot.slane %v50, 4
    %v52 = vadd.f32 %v50, %v51
    %v53 = vrot.slane %v52, 2
    %v54 = vadd.f32 %v52, %v53
    %v55 = vrot.slane %v54, 1
    %v56 = vadd.f32 %v54, %v55
    %v57 = vrcp.pop 16.0
    %v58 = vmul.f32 %v49, %v57
    %v59 = vmul.f32 %v56, %v57
    %vm62 = vcmask 1041409
    %v63 = vsel %vm62, %v42, %v35
    %v67 = vsel %vm62, %v59, %v58
    %v69 = vld [vmem:[%s1] sm:$0x3]
    %v71 = vlaneseq
    %v72 = vshrl.u32 %v71, 7
    %v73 = vsub.s32 0, %v72
    %v74 = vrot.slane %v69, %v73
    %v75 = vlaneseq
    %v76 = vshrl.u32 %v75, 7
    %v77 = vsub.s32 1, %v76
    %v78 = vrot.slane %v69, %v77
    %v81 = vmul.f32 %v63, %v74
    %v82 = vmul.f32 %v67, %v78
    %v83 = vld [vmem:[%s2] sm:$0x3]
    %v85 = vlaneseq
    %v86 = vshrl.u32 %v85, 7
    %v87 = vsub.s32 0, %v86
    %v88 = vrot.slane %v83, %v87
    %v89 = vlaneseq
    %v90 = vshrl.u32 %v89, 7
    %v91 = vsub.s32 1, %v90
    %v92 = vrot.slane %v83, %v91
    %v95 = vadd.f32 %v81, %v88
    %v96 = vadd.f32 %v82, %v92
    %v97 = vld [vmem:[%s3] sm:$0xff]
    %v98 = vld [vmem:[%s3 + $0x8] sm:$0xff]
    %v99 = vld [vmem:[%s3 + $0x10] sm:$0xff]
    %v100 = vld [vmem:[%s3 + $0x18] sm:$0xff]
    %v101 = vld [vmem:[%s3 + $0x20] sm:$0xff]
    %v102 = vld [vmem:[%s3 + $0x28] sm:$0xff]
    %v103 = vld [vmem:[%s3 + $0x30] sm:$0xff]
    %v104 = vld [vmem:[%s3 + $0x38] sm:$0xff]
    %v105 = vld [vmem:[%s3 + $0x40] sm:$0xff]
    %v106 = vld [vmem:[%s3 + $0x48] sm:$0xff]
    %v107 = vld [vmem:[%s3 + $0x50] sm:$0xff]
    %v108 = vld [vmem:[%s3 + $0x58] sm:$0xff]
    %v109 = vld [vmem:[%s3 + $0x60] sm:$0xff]
    %v110 = vld [vmem:[%s3 + $0x68] sm:$0xff]
    %v111 = vld [vmem:[%s3 + $0x70] sm:$0xff]
    %v112 = vld [vmem:[%s3 + $0x78] sm:$0xff]
    %v113 = vld [vmem:[%s3 + $0x80] sm:$0xff]
    %v114 = vld [vmem:[%s3 + $0x88] sm:$0xff]
    %v115 = vld [vmem:[%s3 + $0x90] sm:$0xff]
    %v116 = vld [vmem:[%s3 + $0x98] sm:$0xff]
    %v117 = vld [vmem:[%s3 + $0xa0] sm:$0xff]
    %v118 = vld [vmem:[%s3 + $0xa8] sm:$0xff]
    %v119 = vld [vmem:[%s3 + $0xb0] sm:$0xff]
    %v120 = vld [vmem:[%s3 + $0xb8] sm:$0xff]
    %v121 = vld [vmem:[%s3 + $0xc0] sm:$0xff]
    %v122 = vld [vmem:[%s3 + $0xc8] sm:$0xff]
    %v123 = vld [vmem:[%s3 + $0xd0] sm:$0xff]
    %v124 = vld [vmem:[%s3 + $0xd8] sm:$0xff]
    %v125 = vld [vmem:[%s3 + $0xe0] sm:$0xff]
    %v126 = vld [vmem:[%s3 + $0xe8] sm:$0xff]
    %v127 = vld [vmem:[%s3 + $0xf0] sm:$0xff]
    %v128 = vld [vmem:[%s3 + $0xf8] sm:$0xff]
    %v129 = vld [vmem:[%s4] sm:$0x1]
    %v131 = vlaneseq
    %v132 = vshrl.u32 %v131, 7
    %v133 = vsub.s32 0, %v132
    %v134 = vrot.slane %v129, %v133
    %136 = vmatprep.subr.mxu0 0.0
    %137 = vmatpush1.msra.mxu0 %v97
    %138 = vmatprep.subr.mxu0 0.0
    %139 = vmatpush1.msra.mxu0 %v98
    %140 = vmatprep.subr.mxu0 0.0
    %141 = vmatpush1.msra.mxu0 %v99
    %142 = vmatprep.subr.mxu0 0.0
    %143 = vmatpush1.msra.mxu0 %v100
    %144 = vmatprep.subr.mxu0 0.0
    %145 = vmatpush1.msra.mxu0 %v101
    %146 = vmatprep.subr.mxu0 0.0
    %147 = vmatpush1.msra.mxu0 %v102
    %148 = vmatprep.subr.mxu0 0.0
    %149 = vmatpush1.msra.mxu0 %v103
    %150 = vmatprep.subr.mxu0 0.0
    %151 = vmatpush1.msra.mxu0 %v104
    %152 = vmatprep.subr.mxu0 0.0
    %153 = vmatpush1.msra.mxu0 %v105
    %154 = vmatprep.subr.mxu0 0.0
    %155 = vmatpush1.msra.mxu0 %v106
    %156 = vmatprep.subr.mxu0 0.0
    %157 = vmatpush1.msra.mxu0 %v107
    %158 = vmatprep.subr.mxu0 0.0
    %159 = vmatpush1.msra.mxu0 %v108
    %160 = vmatprep.subr.mxu0 0.0
    %161 = vmatpush1.msra.mxu0 %v109
    %162 = vmatprep.subr.mxu0 0.0
    %163 = vmatpush1.msra.mxu0 %v110
    %164 = vmatprep.subr.mxu0 0.0
    %165 = vmatpush1.msra.mxu0 %v111
    %166 = vmatprep.subr.mxu0 0.0
    %167 = vmatpush1.msra.mxu0 %v112
    %168 = vmatprep.subr.mxu0 0.0
    %169 = vmatpush1.msra.mxu0 %v113
    %170 = vmatprep.subr.mxu0 0.0
    %171 = vmatpush1.msra.mxu0 %v114
    %172 = vmatprep.subr.mxu0 0.0
    %173 = vmatpush1.msra.mxu0 %v115
    %174 = vmatprep.subr.mxu0 0.0
    %175 = vmatpush1.msra.mxu0 %v116
    %176 = vmatprep.subr.mxu0 0.0
    %177 = vmatpush1.msra.mxu0 %v117
    %178 = vmatprep.subr.mxu0 0.0
    %179 = vmatpush1.msra.mxu0 %v118
    %180 = vmatprep.subr.mxu0 0.0
    %181 = vmatpush1.msra.mxu0 %v119
    %182 = vmatprep.subr.mxu0 0.0
    %183 = vmatpush1.msra.mxu0 %v120
    %184 = vmatprep.subr.mxu0 0.0
    %185 = vmatpush1.msra.mxu0 %v121
    %186 = vmatprep.subr.mxu0 0.0
    %187 = vmatpush1.msra.mxu0 %v122
    %188 = vmatprep.subr.mxu0 0.0
    %189 = vmatpush1.msra.mxu0 %v123
    %190 = vmatprep.subr.mxu0 0.0
    %191 = vmatpush1.msra.mxu0 %v124
    %192 = vmatprep.subr.mxu0 0.0
    %193 = vmatpush1.msra.mxu0 %v125
    %194 = vmatprep.subr.mxu0 0.0
    %195 = vmatpush1.msra.mxu0 %v126
    %196 = vmatprep.subr.mxu0 0.0
    %197 = vmatpush1.msra.mxu0 %v127
    %198 = vmatprep.subr.mxu0 0.0
    %199 = vmatpush1.msra.mxu0 %v128
    %200 = vmatprep.mubr.f32.mxu0 %v96
    %201 = vmatmul.mubr.f32.gmra.mrb[0].mxu0 %v95
    %v202 = vpop.f32.mrb[0].mxu0
    %v203 = vadd.f32 %v134, %v202
    %v204 = vpop.f32.mrb[0].mxu0
    %205 = vdwg.mxu0
    %vm206 = vcmask 9216
    %207 = vst.msk [vmem:[#allocation2] sm:$0x3] %vm206, %v203
    // Predicated region
    $region22: #{inception1d_forward.13} parent=1 // pred_check
      _
    $region23: #{inception1d_forward.13} parent=1 // pred_check_branch
      %209 = sbr.rel (0) target = $region25
    $region24: #{inception1d_forward.13} parent=1 // pred_region
      %s211 = ssub.s32 32, 32
      %212 = vsyncadd [#allocation3], %s211
      %s214 = sshll.u32 [#allocation2], 4
      %s215 = int_to_ptr.vmem [resolvable:$true] %s214
      %217 = dma.vmem_to_hbm [thread:$0]  %s215, 32, %s5, [#allocation3]
    $region25: #{inception1d_forward.13} parent=1 // pred_fallthru
      _
    // Predicated region
    $region26: #{inception1d_forward.13} parent=1 // pred_check
      _
    $region27: #{inception1d_forward.13} parent=1 // pred_check_branch
      %219 = sbr.rel (0) target = $region29
    $region28: #{inception1d_forward.13} parent=1 // pred_region
      %220 = dma.done [#allocation3], 32
    $region29: #{inception1d_forward.13} parent=1 // pred_fallthru
      _
    %221 = vsyncpa [#allocation3], 1

</llo_original>
